<compile_context>
chip_gen: v7x
topology: tpu7x:2x2x1
jax: 0.10.0
libtpu: 0.0.40
codegen_flags: <defaults>
</compile_context>

<pallas_src>
import jax
import jax.numpy as jnp
from jax.experimental import pallas as pl
from jax.experimental.pallas import tpu as pltpu

EPS = 1e-5


def conv_bn_add_kernel(x_ref, w_ref, g_ref, b_ref, r_ref, out_ref):
    # x_ref: (Cin, P)  f32, resident (same block every grid step -> fetched once)
    # w_ref: (TN, Cin) bf16, streamed per Cout tile (dominant DMA, software-pipelined)
    # g_ref/b_ref: (TN, 1) f32;  r_ref/out_ref: (TN, P) f32 tiles
    # 1x1 conv == per-pixel channel mix == MXU matmul with f32 accumulation.
    x_bf16 = x_ref[...].astype(jnp.bfloat16)  # in-kernel cast rides free VPU slack
    y = jnp.dot(w_ref[...], x_bf16, preferred_element_type=jnp.float32)  # (TN, P) f32

    # Train-mode BatchNorm per output channel over the P = N*H*W axis.
    # Two-pass (mean-subtracted) variance: avoids E[y^2]-mean^2 cancellation; y is in VMEM
    # so the second reduction is essentially free on this HBM-bound kernel.
    inv_n = 1.0 / y.shape[1]
    mean = jnp.sum(y, axis=1, keepdims=True) * inv_n          # (TN, 1)
    centered = y - mean
    var = jnp.sum(centered * centered, axis=1, keepdims=True) * inv_n   # biased variance
    scale = jax.lax.rsqrt(var + EPS) * g_ref[...]             # fold gamma into the scale

    # Residual add fused into the epilogue.
    out_ref[...] = r_ref[...] + centered * scale + b_ref[...]


def prepare_params(weight, gamma, beta):
    """One-time parameter prep (hoisted out of the hot path):
    bf16 (Cout, Cin) conv weight + column-shaped f32 BN affine params."""
    Cout, Cin = weight.shape[0], weight.shape[1]
    w2d = weight.reshape(Cout, Cin).astype(jnp.bfloat16)   # never transposed
    g2d = gamma.astype(jnp.float32).reshape(Cout, 1)
    b2d = beta.astype(jnp.float32).reshape(Cout, 1)
    return w2d, g2d, b2d


def conv_bn_add(x277, x265, w2d, g2d, b2d, *, tn=696):
    """x277, x265: (N, C, H, W) f32.  w2d: (Cout, Cin) bf16.  g2d/b2d: (Cout, 1) f32."""
    N, Cin, H, W = x277.shape
    Cout = w2d.shape[0]
    P = N * H * W
    assert Cout % tn == 0, "tn must divide Cout exactly (no padding path)"
    assert tn % 8 == 0

    # (C, P) layout. For N == 1 (the module's case) these reshapes are free views — no HBM
    # transpose and no extra copies. General N falls back to a single transpose each.
    if N == 1:
        x_cp = x277.reshape(Cin, P)
        r_cp = x265.reshape(Cout, P)
    else:
        x_cp = jnp.transpose(x277, (1, 0, 2, 3)).reshape(Cin, P)
        r_cp = jnp.transpose(x265, (1, 0, 2, 3)).reshape(Cout, P)

    flops = 2 * Cout * Cin * P
    bytes_accessed = (Cin * P * 4          # x (f32)
                      + Cout * Cin * 2     # weight (bf16)
                      + Cout * P * 4 * 2   # residual in + output (f32)
                      + Cout * 4 * 2)      # gamma + beta

    out_cp = pl.pallas_call(
        conv_bn_add_kernel,
        out_shape=jax.ShapeDtypeStruct((Cout, P), jnp.float32),
        grid=(Cout // tn,),                                   # 2 steps -> 1 tile per TC on v7x
        in_specs=[
            pl.BlockSpec((Cin, P), lambda j: (0, 0)),    # x: fetched once, stays resident
            pl.BlockSpec((tn, Cin), lambda j: (j, 0)),   # weight tile: streamed & pipelined
            pl.BlockSpec((tn, 1), lambda j: (j, 0)),     # gamma tile
            pl.BlockSpec((tn, 1), lambda j: (j, 0)),     # beta tile
            pl.BlockSpec((tn, P), lambda j: (j, 0)),     # residual tile
        ],
        out_specs=pl.BlockSpec((tn, P), lambda j: (j, 0)),
        compiler_params=pltpu.CompilerParams(
            dimension_semantics=("parallel",),           # independent Cout tiles -> megacore
            vmem_limit_bytes=16 << 20,                   # peak ~8 MB, leave headroom on v7x
        ),
        cost_estimate=pl.CostEstimate(
            flops=flops, bytes_accessed=bytes_accessed, transcendentals=0),
    )(x_cp, w2d, g2d, b2d, r_cp)

    if N == 1:
        return out_cp.reshape(1, Cout, H, W)             # free view back to NCHW
    return out_cp.reshape(Cout, N, H, W).transpose(1, 0, 2, 3)


def reference(x277, x265, weight, gamma, beta):
    # Pure-f32 JAX reference of the PyTorch forward (train-mode BN, biased variance).
    # TODO(synk): the PyTorch module also updates BN running_mean/running_var as a training
    # side effect; only the forward activation is reproduced here.
    N, C, H, W = x277.shape
    w = weight.reshape(C, C)
    y = jnp.einsum('nchw,oc->nohw', x277, w)
    mean = jnp.mean(y, axis=(0, 2, 3), keepdims=True)
    var = jnp.mean((y - mean) ** 2, axis=(0, 2, 3), keepdims=True)
    y_hat = (y - mean) / jnp.sqrt(var + EPS)
    y_hat = y_hat * gamma.reshape(1, C, 1, 1) + beta.reshape(1, C, 1, 1)
    return x265 + y_hat


if __name__ == "__main__":
    key = jax.random.PRNGKey(0)
    k1, k2, k3, k4, k5 = jax.random.split(key, 5)

    N, C, H, W = 1, 1392, 14, 14  # shapes implied by the module
    x277 = jax.random.normal(k1, (N, C, H, W), dtype=jnp.float32)
    x265 = jax.random.normal(k2, (N, C, H, W), dtype=jnp.float32)

    # Deterministic synthetic parameters matching the module's shapes.
    weight = jax.random.normal(k3, (C, C, 1, 1), dtype=jnp.float32) * 0.02  # Conv2d 1x1, no bias
    gamma = 1.0 + 0.1 * jax.random.normal(k4, (C,), dtype=jnp.float32)      # BN weight
    beta = 0.1 * jax.random.normal(k5, (C,), dtype=jnp.float32)             # BN bias

    # One-time parameter prep (outside the per-call hot path).
    w2d, g2d, b2d = prepare_params(weight, gamma, beta)

    out = jax.block_until_ready(conv_bn_add(x277, x265, w2d, g2d, b2d))
    ref = reference(x277, x265, weight, gamma, beta)

    assert out.shape == (N, C, H, W)
    assert bool(jnp.all(jnp.isfinite(out)))
    # Kernel uses bf16 matmul operands (f32 accumulation); tolerance sized for bf16 input
    # rounding over a Cin=1392 contraction vs the pure-f32 reference.
    assert jnp.allclose(out, ref, atol=3e-2, rtol=3e-2), float(jnp.max(jnp.abs(out - ref)))

    print("KERNEL_OK")
</pallas_src>

<mosaic_0001>
module attributes {stable_mosaic.version = 11 : i64} {
  func.func @conv_bn_add_kernel(%arg0: i32, %arg1: memref<1392x196xf32, #tpu.memory_space<vmem>>, %arg2: memref<696x1392xbf16, #tpu.memory_space<vmem>>, %arg3: memref<696x1xf32, #tpu.memory_space<vmem>>, %arg4: memref<696x1xf32, #tpu.memory_space<vmem>>, %arg5: memref<696x196xf32, #tpu.memory_space<vmem>>, %arg6: memref<696x196xf32, #tpu.memory_space<vmem>>) attributes {dimension_semantics = [#tpu.dimension_semantics<parallel>], iteration_bounds = array<i64: 2>, scalar_prefetch = 0 : i64, scratch_operands = 0 : i64, tpu.core_type = #tpu.core_type<tc>, window_params = [{pipeline_mode = #tpu.pipeline_mode<synchronous>, transform_indices = @transform_0, window_bounds = array<i64: 1392, 196>}, {transform_indices = @transform_1, window_bounds = array<i64: 696, 1392>}, {transform_indices = @transform_2, window_bounds = array<i64: 696, 1>}, {transform_indices = @transform_3, window_bounds = array<i64: 696, 1>}, {transform_indices = @transform_4, window_bounds = array<i64: 696, 196>}, {transform_indices = @transform_5, window_bounds = array<i64: 696, 196>}]} {
    %c0 = arith.constant 0 : index
    %c0_0 = arith.constant 0 : index
    %0 = vector.load %arg1[%c0, %c0_0] : memref<1392x196xf32, #tpu.memory_space<vmem>>, vector<1392x196xf32>
    %1 = arith.truncf %0 : vector<1392x196xf32> to vector<1392x196xbf16>
    %c0_1 = arith.constant 0 : index
    %c0_2 = arith.constant 0 : index
    %2 = vector.load %arg2[%c0_1, %c0_2] : memref<696x1392xbf16, #tpu.memory_space<vmem>>, vector<696x1392xbf16>
    %cst = arith.constant dense<0.000000e+00> : vector<696x196xf32>
    %3 = tpu.matmul %2, %1, %cst {dimension_numbers = #tpu.dot_dimension_numbers<[1], [0], [0], [1], [0, 0, 1, 1], [], []>} : vector<696x1392xbf16>, vector<1392x196xbf16>, vector<696x196xf32> -> vector<696x196xf32>
    %cst_3 = arith.constant dense<0.000000e+00> : vector<696xf32>
    %4 = vector.multi_reduction <add>, %3, %cst_3 [1] : vector<696x196xf32> to vector<696xf32>
    %5 = vector.shape_cast %4 : vector<696xf32> to vector<696x1xf32>
    %cst_4 = arith.constant 0.00510204071 : f32
    %6 = vector.broadcast %cst_4 : f32 to vector<696x1xf32>
    %7 = arith.mulf %5, %6 : vector<696x1xf32>
    %8 = vector.broadcast %7 : vector<696x1xf32> to vector<696x196xf32>
    %9 = arith.subf %3, %8 : vector<696x196xf32>
    %10 = arith.mulf %9, %9 : vector<696x196xf32>
    %cst_5 = arith.constant dense<0.000000e+00> : vector<696xf32>
    %11 = vector.multi_reduction <add>, %10, %cst_5 [1] : vector<696x196xf32> to vector<696xf32>
    %12 = vector.shape_cast %11 : vector<696xf32> to vector<696x1xf32>
    %cst_6 = arith.constant 0.00510204071 : f32
    %13 = vector.broadcast %cst_6 : f32 to vector<696x1xf32>
    %14 = arith.mulf %12, %13 : vector<696x1xf32>
    %cst_7 = arith.constant 9.99999974E-6 : f32
    %15 = vector.broadcast %cst_7 : f32 to vector<696x1xf32>
    %16 = arith.addf %14, %15 : vector<696x1xf32>
    %17 = math.rsqrt %16 : vector<696x1xf32>
    %c0_8 = arith.constant 0 : index
    %c0_9 = arith.constant 0 : index
    %18 = vector.load %arg3[%c0_8, %c0_9] : memref<696x1xf32, #tpu.memory_space<vmem>>, vector<696x1xf32>
    %19 = arith.mulf %17, %18 : vector<696x1xf32>
    %c0_10 = arith.constant 0 : index
    %c0_11 = arith.constant 0 : index
    %20 = vector.load %arg5[%c0_10, %c0_11] : memref<696x196xf32, #tpu.memory_space<vmem>>, vector<696x196xf32>
    %21 = vector.broadcast %19 : vector<696x1xf32> to vector<696x196xf32>
    %22 = arith.mulf %9, %21 : vector<696x196xf32>
    %23 = arith.addf %20, %22 : vector<696x196xf32>
    %c0_12 = arith.constant 0 : index
    %c0_13 = arith.constant 0 : index
    %24 = vector.load %arg4[%c0_12, %c0_13] : memref<696x1xf32, #tpu.memory_space<vmem>>, vector<696x1xf32>
    %25 = vector.broadcast %24 : vector<696x1xf32> to vector<696x196xf32>
    %26 = arith.addf %23, %25 : vector<696x196xf32>
    %c0_14 = arith.constant 0 : index
    %c0_15 = arith.constant 0 : index
    %27 = vector.load %arg6[%c0_14, %c0_15] : memref<696x196xf32, #tpu.memory_space<vmem>>, vector<696x196xf32>
    tpu.vector_store %arg6[%c0_14, %c0_15], %26 {strides = array<i32>} : memref<696x196xf32, #tpu.memory_space<vmem>>, vector<696x196xf32>,
    return
  }
  func.func @transform_0(%arg0: i32) -> (i32, i32) {
    %c0_i32 = arith.constant 0 : i32
    %c0_i32_0 = arith.constant 0 : i32
    %c0_i32_1 = arith.constant 0 : i32
    return %c0_i32, %c0_i32_0 : i32, i32
  }
  func.func @transform_1(%arg0: i32) -> (i32, i32) {
    %c0_i32 = arith.constant 0 : i32
    %c0_i32_0 = arith.constant 0 : i32
    return %arg0, %c0_i32 : i32, i32
  }
  func.func @transform_2(%arg0: i32) -> (i32, i32) {
    %c0_i32 = arith.constant 0 : i32
    %c0_i32_0 = arith.constant 0 : i32
    return %arg0, %c0_i32 : i32, i32
  }
  func.func @transform_3(%arg0: i32) -> (i32, i32) {
    %c0_i32 = arith.constant 0 : i32
    %c0_i32_0 = arith.constant 0 : i32
    return %arg0, %c0_i32 : i32, i32
  }
  func.func @transform_4(%arg0: i32) -> (i32, i32) {
    %c0_i32 = arith.constant 0 : i32
    %c0_i32_0 = arith.constant 0 : i32
    return %arg0, %c0_i32 : i32, i32
  }
  func.func @transform_5(%arg0: i32) -> (i32, i32) {
    %c0_i32 = arith.constant 0 : i32
    %c0_i32_0 = arith.constant 0 : i32
    return %arg0, %c0_i32 : i32, i32
  }
}

</mosaic_0001>

<llo_original>
// kernel: tpu_custom_call.1
$region0: #{tpu_custom_call.1}
  #allocation0 [shape = 'u32[]', space=smem, size = 0x4, offset = 0x4, fixed_abs, tag = 'smem constant byte address 0x4 - core index']
  #allocation1 [shape = 'u32[144,128]{1,0:T(1,128)}', space=vmem, size = 0x12000, scoped, tag = 'internal scratch']
  %s0 = inlined_call_operand.vmem [shape: f32[1392,196], index: 0, kind: input, shape index: {}]
  %s1 = inlined_call_operand.vmem [shape: bf16[1392,1392], index: 1, kind: input, shape index: {}]
  %s2 = inlined_call_operand.vmem [shape: f32[1392,1], index: 2, kind: input, shape index: {}]
  %s3 = inlined_call_operand.vmem [shape: f32[1392,1], index: 3, kind: input, shape index: {}]
  %s4 = inlined_call_operand.vmem [shape: f32[1392,196], index: 4, kind: input, shape index: {}]
  %s5 = inlined_call_operand.vmem [shape: f32[1392,196], index: 5, kind: output, shape index: {}]
  %s6 = sld [smem:[#allocation0]]
  $region53: #{tpu_custom_call.1} parent=0
    _
  %s8 = ssub.s32 1, %s6
  %s9 = scalar_select 0, %s8, %s6
  loop: start=0, step=1, limit=4
  $region2: #{tpu_custom_call.1} parent=0 // loop_pre_header
    _
  $region3: #{tpu_custom_call.1} parent=0 // loop_header
    %s11 = sphi 0, %s15
    %p12 = scmp.ge.s32.totalorder %s11, 4
    %s19 = sphi 0, %s19
    %s21 = sphi 0, %s19
    %s22 = sphi 0, %s21
    %s36 = sphi 0, %s22
    %s42 = sphi 0, %s44
    %s45 = sphi 0, %s42
    %s46 = sphi 0, %s45
    %s62 = sphi 0, %s46
    %s68 = sphi 0, %s70
    %s71 = sphi 0, %s68
    %s72 = sphi 0, %s71
    %s88 = sphi 0, %s72
    %s94 = sphi 0, %s96
    %s97 = sphi 0, %s94
    %s98 = sphi 0, %s97
    %s114 = sphi 0, %s98
    %s120 = sphi 0, %s122
    %s123 = sphi 0, %s120
    %s124 = sphi 0, %s123
    %s140 = sphi 0, %s124
    %s146 = sphi 0, %s148
    %s149 = sphi 0, %s146
    %s150 = sphi 0, %s149
    %s166 = sphi 0, %s150
  $region4: #{tpu_custom_call.1} parent=0 // loop_header_branch
    %14 = sbr.rel (%p12) target = $region8
  $region5: #{tpu_custom_call.1} parent=0 // loop_body
    %s16 = ssub.s32 %s11, 1
    %s17 = ssub.s32 %s11, 2
    %s18 = sadd.s32 %s11, 1
    %s20 = sadd.s32 %s19, 1
    %p23 = scmp.eq.s32.totalorder %s11, 1
    %p24 = scmp.ne.s32.totalorder %s19, %s21
    %p25 = scmp.eq.s32.totalorder %s11, 0
    %p26 = por %p24, %p25
    %p27 = scmp.ne.s32.totalorder %s19, %s21
    %p28 = scmp.eq.s32.totalorder %s16, 1
    %p29 = por %p27, %p28
    %p30 = scmp.ne.s32.totalorder %s21, %s22
    %p31 = scmp.eq.s32.totalorder %s16, 0
    %p32 = por %p30, %p31
    %p33 = scmp.ne.s32.totalorder %s21, %s22
    %p34 = scmp.eq.s32.totalorder %s17, 1
    %p35 = por %p33, %p34
    %p37 = scmp.ne.s32.totalorder %s22, %s36
    %p38 = scmp.eq.s32.totalorder %s17, 0
    %p39 = por %p37, %p38
    %s40 = ssub.s32 %s11, %s18
    %p41 = scmp.eq.s32.totalorder %s40, 0
    %s43 = sadd.s32 %s42, 1
    %s44 = scalar_select %p41, %s42, %s43
    %p47 = pneg %p41
    %p48 = scmp.eq.s32.totalorder %s11, 1
    %p49 = por %p47, %p48
    %p50 = scmp.ne.s32.totalorder %s42, %s45
    %p51 = scmp.eq.s32.totalorder %s11, 0
    %p52 = por %p50, %p51
    %p53 = scmp.ne.s32.totalorder %s42, %s45
    %p54 = scmp.eq.s32.totalorder %s16, 1
    %p55 = por %p53, %p54
    %p56 = scmp.ne.s32.totalorder %s45, %s46
    %p57 = scmp.eq.s32.totalorder %s16, 0
    %p58 = por %p56, %p57
    %p59 = scmp.ne.s32.totalorder %s45, %s46
    %p60 = scmp.eq.s32.totalorder %s17, 1
    %p61 = por %p59, %p60
    %p63 = scmp.ne.s32.totalorder %s46, %s62
    %p64 = scmp.eq.s32.totalorder %s17, 0
    %p65 = por %p63, %p64
    %s66 = ssub.s32 %s11, %s18
    %p67 = scmp.eq.s32.totalorder %s66, 0
    %s69 = sadd.s32 %s68, 1
    %s70 = scalar_select %p67, %s68, %s69
    %p73 = pneg %p67
    %p74 = scmp.eq.s32.totalorder %s11, 1
    %p75 = por %p73, %p74
    %p76 = scmp.ne.s32.totalorder %s68, %s71
    %p77 = scmp.eq.s32.totalorder %s11, 0
    %p78 = por %p76, %p77
    %p79 = scmp.ne.s32.totalorder %s68, %s71
    %p80 = scmp.eq.s32.totalorder %s16, 1
    %p81 = por %p79, %p80
    %p82 = scmp.ne.s32.totalorder %s71, %s72
    %p83 = scmp.eq.s32.totalorder %s16, 0
    %p84 = por %p82, %p83
    %p85 = scmp.ne.s32.totalorder %s71, %s72
    %p86 = scmp.eq.s32.totalorder %s17, 1
    %p87 = por %p85, %p86
    %p89 = scmp.ne.s32.totalorder %s72, %s88
    %p90 = scmp.eq.s32.totalorder %s17, 0
    %p91 = por %p89, %p90
    %s92 = ssub.s32 %s11, %s18
    %p93 = scmp.eq.s32.totalorder %s92, 0
    %s95 = sadd.s32 %s94, 1
    %s96 = scalar_select %p93, %s94, %s95
    %p99 = pneg %p93
    %p100 = scmp.eq.s32.totalorder %s11, 1
    %p101 = por %p99, %p100
    %p102 = scmp.ne.s32.totalorder %s94, %s97
    %p103 = scmp.eq.s32.totalorder %s11, 0
    %p104 = por %p102, %p103
    %p105 = scmp.ne.s32.totalorder %s94, %s97
    %p106 = scmp.eq.s32.totalorder %s16, 1
    %p107 = por %p105, %p106
    %p108 = scmp.ne.s32.totalorder %s97, %s98
    %p109 = scmp.eq.s32.totalorder %s16, 0
    %p110 = por %p108, %p109
    %p111 = scmp.ne.s32.totalorder %s97, %s98
    %p112 = scmp.eq.s32.totalorder %s17, 1
    %p113 = por %p111, %p112
    %p115 = scmp.ne.s32.totalorder %s98, %s114
    %p116 = scmp.eq.s32.totalorder %s17, 0
    %p117 = por %p115, %p116
    %s118 = ssub.s32 %s11, %s18
    %p119 = scmp.eq.s32.totalorder %s118, 0
    %s121 = sadd.s32 %s120, 1
    %s122 = scalar_select %p119, %s120, %s121
    %p125 = pneg %p119
    %p126 = scmp.eq.s32.totalorder %s11, 1
    %p127 = por %p125, %p126
    %p128 = scmp.ne.s32.totalorder %s120, %s123
    %p129 = scmp.eq.s32.totalorder %s11, 0
    %p130 = por %p128, %p129
    %p131 = scmp.ne.s32.totalorder %s120, %s123
    %p132 = scmp.eq.s32.totalorder %s16, 1
    %p133 = por %p131, %p132
    %p134 = scmp.ne.s32.totalorder %s123, %s124
    %p135 = scmp.eq.s32.totalorder %s16, 0
    %p136 = por %p134, %p135
    %p137 = scmp.ne.s32.totalorder %s123, %s124
    %p138 = scmp.eq.s32.totalorder %s17, 1
    %p139 = por %p137, %p138
    %p141 = scmp.ne.s32.totalorder %s124, %s140
    %p142 = scmp.eq.s32.totalorder %s17, 0
    %p143 = por %p141, %p142
    %s144 = ssub.s32 %s11, %s18
    %p145 = scmp.eq.s32.totalorder %s144, 0
    %s147 = sadd.s32 %s146, 1
    %s148 = scalar_select %p145, %s146, %s147
    %p151 = pneg %p145
    %p152 = scmp.eq.s32.totalorder %s11, 1
    %p153 = por %p151, %p152
    %p154 = scmp.ne.s32.totalorder %s146, %s149
    %p155 = scmp.eq.s32.totalorder %s11, 0
    %p156 = por %p154, %p155
    %p157 = scmp.ne.s32.totalorder %s146, %s149
    %p158 = scmp.eq.s32.totalorder %s16, 1
    %p159 = por %p157, %p158
    %p160 = scmp.ne.s32.totalorder %s149, %s150
    %p161 = scmp.eq.s32.totalorder %s16, 0
    %p162 = por %p160, %p161
    %p163 = scmp.ne.s32.totalorder %s149, %s150
    %p164 = scmp.eq.s32.totalorder %s17, 1
    %p165 = por %p163, %p164
    %p167 = scmp.ne.s32.totalorder %s150, %s166
    %p168 = scmp.eq.s32.totalorder %s17, 0
    %p169 = por %p167, %p168
    %p170 = scmp.le.s32.totalorder 1, %s11
    %p171 = scmp.lt.s32.totalorder %s11, 3
    %p172 = pnand %p170, %p171
    %p173 = pneg %p172
    // Predicated region
    $region9: #{tpu_custom_call.1} parent=5 // pred_check
      _
    $region10: #{tpu_custom_call.1} parent=5 // pred_check_branch
      %175 = sbr.rel (%p172) target = $region12
    $region11: #{tpu_custom_call.1} parent=5 // pred_region
      %s176 = ssub.s32 %s11, 1
      // Predicated region
      $region13: #{tpu_custom_call.1} parent=11 // pred_check
        %p177 = pneg %p32
      $region14: #{tpu_custom_call.1} parent=11 // pred_check_branch
        %179 = sbr.rel (%p177) target = $region16
      $region15: #{tpu_custom_call.1} parent=11 // pred_region
        _
      $region16: #{tpu_custom_call.1} parent=11 // pred_fallthru
        _
    $region12: #{tpu_custom_call.1} parent=5 // pred_fallthru
      _
    %p180 = scmp.lt.s32.totalorder %s11, 2
    // Predicated region
    $region17: #{tpu_custom_call.1} parent=5 // pred_check
      %p181 = pneg %p180
    $region18: #{tpu_custom_call.1} parent=5 // pred_check_branch
      %183 = sbr.rel (%p181) target = $region20
    $region19: #{tpu_custom_call.1} parent=5 // pred_region
      // Predicated region
      $region21: #{tpu_custom_call.1} parent=19 // pred_check
        %p184 = pneg %p52
      $region22: #{tpu_custom_call.1} parent=19 // pred_check_branch
        %186 = sbr.rel (%p184) target = $region24
      $region23: #{tpu_custom_call.1} parent=19 // pred_region
        %s187 = smul.u32 87, %s11
        %p188 = scmp.lt.s32.totalorder %s187, 173
        %s189 = scalar_select %p188, %s187, 173
        %s190 = smul.addr %s189, 11
        %s191 = smul.addr %s190, 4
        %s192 = scalar_lea.vmem %s1, %s191
        %s193 = smul.u32 87, %s11
      $region24: #{tpu_custom_call.1} parent=19 // pred_fallthru
        _
      // Predicated region
      $region25: #{tpu_custom_call.1} parent=19 // pred_check
        %p194 = pneg %p78
      $region26: #{tpu_custom_call.1} parent=19 // pred_check_branch
        %196 = sbr.rel (%p194) target = $region28
      $region27: #{tpu_custom_call.1} parent=19 // pred_region
        %s197 = smul.u32 87, %s11
        %p198 = scmp.lt.s32.totalorder %s197, 173
        %s199 = scalar_select %p198, %s197, 173
        %s200 = smul.addr %s199, 8
        %s201 = scalar_lea.vmem %s2, %s200
        %s202 = smul.u32 87, %s11
      $region28: #{tpu_custom_call.1} parent=19 // pred_fallthru
        _
      // Predicated region
      $region29: #{tpu_custom_call.1} parent=19 // pred_check
        %p203 = pneg %p104
      $region30: #{tpu_custom_call.1} parent=19 // pred_check_branch
        %205 = sbr.rel (%p203) target = $region32
      $region31: #{tpu_custom_call.1} parent=19 // pred_region
        %s206 = smul.u32 87, %s11
        %p207 = scmp.lt.s32.totalorder %s206, 173
        %s208 = scalar_select %p207, %s206, 173
        %s209 = smul.addr %s208, 8
        %s210 = scalar_lea.vmem %s3, %s209
        %s211 = smul.u32 87, %s11
      $region32: #{tpu_custom_call.1} parent=19 // pred_fallthru
        _
      // Predicated region
      $region33: #{tpu_custom_call.1} parent=19 // pred_check
        %p212 = pneg %p130
      $region34: #{tpu_custom_call.1} parent=19 // pred_check_branch
        %214 = sbr.rel (%p212) target = $region36
      $region35: #{tpu_custom_call.1} parent=19 // pred_region
        %s215 = smul.u32 87, %s11
        %p216 = scmp.lt.s32.totalorder %s215, 173
        %s217 = scalar_select %p216, %s215, 173
        %s218 = smul.addr %s217, 2
        %s219 = smul.addr %s218, 8
        %s220 = scalar_lea.vmem %s4, %s219
        %s221 = smul.u32 87, %s11
      $region36: #{tpu_custom_call.1} parent=19 // pred_fallthru
        _
    $region20: #{tpu_custom_call.1} parent=5 // pred_fallthru
      _
    %p222 = scmp.le.s32.totalorder 1, %s11
    %p223 = scmp.lt.s32.totalorder %s11, 3
    %p224 = pnand %p222, %p223
    %p225 = pneg %p224
    // Predicated region
    $region37: #{tpu_custom_call.1} parent=5 // pred_check
      _
    $region38: #{tpu_custom_call.1} parent=5 // pred_check_branch
      %227 = sbr.rel (%p224) target = $region40
    $region39: #{tpu_custom_call.1} parent=5 // pred_region
      %s228 = ssub.s32 %s11, 1
      %p229 = pneg %p32
      %p230 = pneg %p29
      %s231 = smul.u32 87, %s16
      %p232 = scmp.lt.s32.totalorder %s231, 173
      %s233 = scalar_select %p232, %s231, 173
      %s234 = smul.addr %s233, 11
      %s235 = smul.addr %s234, 4
      %s236 = scalar_lea.vmem %s1, %s235
      %p237 = pneg %p58
      %p238 = pneg %p55
      %s239 = smul.u32 87, %s16
      %p240 = scmp.lt.s32.totalorder %s239, 173
      %s241 = scalar_select %p240, %s239, 173
      %s242 = smul.addr %s241, 8
      %s243 = scalar_lea.vmem %s2, %s242
      %p244 = pneg %p84
      %p245 = pneg %p81
      %s246 = smul.u32 87, %s16
      %p247 = scmp.lt.s32.totalorder %s246, 173
      %s248 = scalar_select %p247, %s246, 173
      %s249 = smul.addr %s248, 8
      %s250 = scalar_lea.vmem %s3, %s249
      %p251 = pneg %p110
      %p252 = pneg %p107
      %s253 = smul.u32 87, %s16
      %p254 = scmp.lt.s32.totalorder %s253, 173
      %s255 = scalar_select %p254, %s253, 173
      %s256 = smul.addr %s255, 2
      %s257 = smul.addr %s256, 8
      %s258 = scalar_lea.vmem %s4, %s257
      %p259 = pneg %p136
      %p260 = pneg %p133
      %p261 = pneg %p162
      %p262 = pneg %p159
      %s263 = smul.u32 87, %s16
      %p264 = scmp.lt.s32.totalorder %s263, 173
      %s265 = scalar_select %p264, %s263, 173
      %s266 = smul.addr %s265, 2
      %s267 = smul.addr %s266, 8
      %s268 = scalar_lea.vmem %s5, %s267
      %s269 = smul.u32 87, %s16
      %p270 = scmp.lt.s32.totalorder %s269, 173
      %s271 = scalar_select %p270, %s269, 173
      %s272 = smul.addr %s271, 11
      %s273 = smul.addr %s272, 4
      %s274 = scalar_lea.vmem %s1, %s273
      %s275 = smul.u32 87, %s16
      %s276 = smul.u32 87, %s16
      %p277 = scmp.lt.s32.totalorder %s276, 173
      %s278 = scalar_select %p277, %s276, 173
      %s279 = smul.addr %s278, 8
      %s280 = scalar_lea.vmem %s2, %s279
      %s281 = smul.u32 87, %s16
      %s282 = smul.u32 87, %s16
      %p283 = scmp.lt.s32.totalorder %s282, 173
      %s284 = scalar_select %p283, %s282, 173
      %s285 = smul.addr %s284, 8
      %s286 = scalar_lea.vmem %s3, %s285
      %s287 = smul.u32 87, %s16
      %s288 = smul.u32 87, %s16
      %p289 = scmp.lt.s32.totalorder %s288, 173
      %s290 = scalar_select %p289, %s288, 173
      %s291 = smul.addr %s290, 2
      %s292 = smul.addr %s291, 8
      %s293 = scalar_lea.vmem %s4, %s292
      %s294 = smul.u32 87, %s16
      %s295 = smul.u32 87, %s16
      %p296 = scmp.lt.s32.totalorder %s295, 173
      %s297 = scalar_select %p296, %s295, 173
      %s298 = smul.addr %s297, 2
      %s299 = smul.addr %s298, 8
      %s300 = scalar_lea.vmem %s5, %s299
      %s301 = smul.u32 87, %s16
      %v303 = vld [vmem:[%s0] sm:$0xff]
      %v304 = vld [vmem:[%s0 + $0x8] sm:$0xff]
      %v305 = vld [vmem:[%s0 + $0x10] sm:$0xff]
      %v306 = vld [vmem:[%s0 + $0x18] sm:$0xff]
      %v307 = vld [vmem:[%s0 + $0x20] sm:$0xff]
      %v308 = vld [vmem:[%s0 + $0x28] sm:$0xff]
      %v309 = vld [vmem:[%s0 + $0x30] sm:$0xff]
      %v310 = vld [vmem:[%s0 + $0x38] sm:$0xff]
      %v311 = vld [vmem:[%s0 + $0x40] sm:$0xff]
      %v312 = vld [vmem:[%s0 + $0x48] sm:$0xff]
      %v313 = vld [vmem:[%s0 + $0x50] sm:$0xff]
      %v314 = vld [vmem:[%s0 + $0x58] sm:$0xff]
      %v315 = vld [vmem:[%s0 + $0x60] sm:$0xff]
      %v316 = vld [vmem:[%s0 + $0x68] sm:$0xff]
      %v317 = vld [vmem:[%s0 + $0x70] sm:$0xff]
      %v318 = vld [vmem:[%s0 + $0x78] sm:$0xff]
      %v319 = vld [vmem:[%s0 + $0x80] sm:$0xff]
      %v320 = vld [vmem:[%s0 + $0x88] sm:$0xff]
      %v321 = vld [vmem:[%s0 + $0x90] sm:$0xff]
      %v322 = vld [vmem:[%s0 + $0x98] sm:$0xff]
      %v323 = vld [vmem:[%s0 + $0xa0] sm:$0xff]
      %v324 = vld [vmem:[%s0 + $0xa8] sm:$0xff]
      %v325 = vld [vmem:[%s0 + $0xb0] sm:$0xff]
      %v326 = vld [vmem:[%s0 + $0xb8] sm:$0xff]
      %v327 = vld [vmem:[%s0 + $0xc0] sm:$0xff]
      %v328 = vld [vmem:[%s0 + $0xc8] sm:$0xff]
      %v329 = vld [vmem:[%s0 + $0xd0] sm:$0xff]
      %v330 = vld [vmem:[%s0 + $0xd8] sm:$0xff]
      %v331 = vld [vmem:[%s0 + $0xe0] sm:$0xff]
      %v332 = vld [vmem:[%s0 + $0xe8] sm:$0xff]
      %v333 = vld [vmem:[%s0 + $0xf0] sm:$0xff]
      %v334 = vld [vmem:[%s0 + $0xf8] sm:$0xff]
      %v335 = vld [vmem:[%s0 + $0x100] sm:$0xff]
      %v336 = vld [vmem:[%s0 + $0x108] sm:$0xff]
      %v337 = vld [vmem:[%s0 + $0x110] sm:$0xff]
      %v338 = vld [vmem:[%s0 + $0x118] sm:$0xff]
      %v339 = vld [vmem:[%s0 + $0x120] sm:$0xff]
      %v340 = vld [vmem:[%s0 + $0x128] sm:$0xff]
      %v341 = vld [vmem:[%s0 + $0x130] sm:$0xff]
      %v342 = vld [vmem:[%s0 + $0x138] sm:$0xff]
      %v343 = vld [vmem:[%s0 + $0x140] sm:$0xff]
      %v344 = vld [vmem:[%s0 + $0x148] sm:$0xff]
      %v345 = vld [vmem:[%s0 + $0x150] sm:$0xff]
      %v346 = vld [vmem:[%s0 + $0x158] sm:$0xff]
      %v347 = vld [vmem:[%s0 + $0x160] sm:$0xff]
      %v348 = vld [vmem:[%s0 + $0x168] sm:$0xff]
      %v349 = vld [vmem:[%s0 + $0x170] sm:$0xff]
      %v350 = vld [vmem:[%s0 + $0x178] sm:$0xff]
      %v351 = vld [vmem:[%s0 + $0x180] sm:$0xff]
      %v352 = vld [vmem:[%s0 + $0x188] sm:$0xff]
      %v353 = vld [vmem:[%s0 + $0x190] sm:$0xff]
      %v354 = vld [vmem:[%s0 + $0x198] sm:$0xff]
      %v355 = vld [vmem:[%s0 + $0x1a0] sm:$0xff]
      %v356 = vld [vmem:[%s0 + $0x1a8] sm:$0xff]
      %v357 = vld [vmem:[%s0 + $0x1b0] sm:$0xff]
      %v358 = vld [vmem:[%s0 + $0x1b8] sm:$0xff]
      %v359 = vld [vmem:[%s0 + $0x1c0] sm:$0xff]
      %v360 = vld [vmem:[%s0 + $0x1c8] sm:$0xff]
      %v361 = vld [vmem:[%s0 + $0x1d0] sm:$0xff]
      %v362 = vld [vmem:[%s0 + $0x1d8] sm:$0xff]
      %v363 = vld [vmem:[%s0 + $0x1e0] sm:$0xff]
      %v364 = vld [vmem:[%s0 + $0x1e8] sm:$0xff]
      %v365 = vld [vmem:[%s0 + $0x1f0] sm:$0xff]
      %v366 = vld [vmem:[%s0 + $0x1f8] sm:$0xff]
      %v367 = vld [vmem:[%s0 + $0x200] sm:$0xff]
      %v368 = vld [vmem:[%s0 + $0x208] sm:$0xff]
      %v369 = vld [vmem:[%s0 + $0x210] sm:$0xff]
      %v370 = vld [vmem:[%s0 + $0x218] sm:$0xff]
      %v371 = vld [vmem:[%s0 + $0x220] sm:$0xff]
      %v372 = vld [vmem:[%s0 + $0x228] sm:$0xff]
      %v373 = vld [vmem:[%s0 + $0x230] sm:$0xff]
      %v374 = vld [vmem:[%s0 + $0x238] sm:$0xff]
      %v375 = vld [vmem:[%s0 + $0x240] sm:$0xff]
      %v376 = vld [vmem:[%s0 + $0x248] sm:$0xff]
      %v377 = vld [vmem:[%s0 + $0x250] sm:$0xff]
      %v378 = vld [vmem:[%s0 + $0x258] sm:$0xff]
      %v379 = vld [vmem:[%s0 + $0x260] sm:$0xff]
      %v380 = vld [vmem:[%s0 + $0x268] sm:$0xff]
      %v381 = vld [vmem:[%s0 + $0x270] sm:$0xff]
      %v382 = vld [vmem:[%s0 + $0x278] sm:$0xff]
      %v383 = vld [vmem:[%s0 + $0x280] sm:$0xff]
      %v384 = vld [vmem:[%s0 + $0x288] sm:$0xff]
      %v385 = vld [vmem:[%s0 + $0x290] sm:$0xff]
      %v386 = vld [vmem:[%s0 + $0x298] sm:$0xff]
      %v387 = vld [vmem:[%s0 + $0x2a0] sm:$0xff]
      %v388 = vld [vmem:[%s0 + $0x2a8] sm:$0xff]
      %v389 = vld [vmem:[%s0 + $0x2b0] sm:$0xff]
      %v390 = vld [vmem:[%s0 + $0x2b8] sm:$0xff]
      %v391 = vld [vmem:[%s0 + $0x2c0] sm:$0xff]
      %v392 = vld [vmem:[%s0 + $0x2c8] sm:$0xff]
      %v393 = vld [vmem:[%s0 + $0x2d0] sm:$0xff]
      %v394 = vld [vmem:[%s0 + $0x2d8] sm:$0xff]
      %v395 = vld [vmem:[%s0 + $0x2e0] sm:$0xff]
      %v396 = vld [vmem:[%s0 + $0x2e8] sm:$0xff]
      %v397 = vld [vmem:[%s0 + $0x2f0] sm:$0xff]
      %v398 = vld [vmem:[%s0 + $0x2f8] sm:$0xff]
      %v399 = vld [vmem:[%s0 + $0x300] sm:$0xff]
      %v400 = vld [vmem:[%s0 + $0x308] sm:$0xff]
      %v401 = vld [vmem:[%s0 + $0x310] sm:$0xff]
      %v402 = vld [vmem:[%s0 + $0x318] sm:$0xff]
      %v403 = vld [vmem:[%s0 + $0x320] sm:$0xff]
      %v404 = vld [vmem:[%s0 + $0x328] sm:$0xff]
      %v405 = vld [vmem:[%s0 + $0x330] sm:$0xff]
      %v406 = vld [vmem:[%s0 + $0x338] sm:$0xff]
      %v407 = vld [vmem:[%s0 + $0x340] sm:$0xff]
      %v408 = vld [vmem:[%s0 + $0x348] sm:$0xff]
      %v409 = vld [vmem:[%s0 + $0x350] sm:$0xff]
      %v410 = vld [vmem:[%s0 + $0x358] sm:$0xff]
      %v411 = vld [vmem:[%s0 + $0x360] sm:$0xff]
      %v412 = vld [vmem:[%s0 + $0x368] sm:$0xff]
      %v413 = vld [vmem:[%s0 + $0x370] sm:$0xff]
      %v414 = vld [vmem:[%s0 + $0x378] sm:$0xff]
      %v415 = vld [vmem:[%s0 + $0x380] sm:$0xff]
      %v416 = vld [vmem:[%s0 + $0x388] sm:$0xff]
      %v417 = vld [vmem:[%s0 + $0x390] sm:$0xff]
      %v418 = vld [vmem:[%s0 + $0x398] sm:$0xff]
      %v419 = vld [vmem:[%s0 + $0x3a0] sm:$0xff]
      %v420 = vld [vmem:[%s0 + $0x3a8] sm:$0xff]
      %v421 = vld [vmem:[%s0 + $0x3b0] sm:$0xff]
      %v422 = vld [vmem:[%s0 + $0x3b8] sm:$0xff]
      %v423 = vld [vmem:[%s0 + $0x3c0] sm:$0xff]
      %v424 = vld [vmem:[%s0 + $0x3c8] sm:$0xff]
      %v425 = vld [vmem:[%s0 + $0x3d0] sm:$0xff]
      %v426 = vld [vmem:[%s0 + $0x3d8] sm:$0xff]
      %v427 = vld [vmem:[%s0 + $0x3e0] sm:$0xff]
      %v428 = vld [vmem:[%s0 + $0x3e8] sm:$0xff]
      %v429 = vld [vmem:[%s0 + $0x3f0] sm:$0xff]
      %v430 = vld [vmem:[%s0 + $0x3f8] sm:$0xff]
      %v431 = vld [vmem:[%s0 + $0x400] sm:$0xff]
      %v432 = vld [vmem:[%s0 + $0x408] sm:$0xff]
      %v433 = vld [vmem:[%s0 + $0x410] sm:$0xff]
      %v434 = vld [vmem:[%s0 + $0x418] sm:$0xff]
      %v435 = vld [vmem:[%s0 + $0x420] sm:$0xff]
      %v436 = vld [vmem:[%s0 + $0x428] sm:$0xff]
      %v437 = vld [vmem:[%s0 + $0x430] sm:$0xff]
      %v438 = vld [vmem:[%s0 + $0x438] sm:$0xff]
      %v439 = vld [vmem:[%s0 + $0x440] sm:$0xff]
      %v440 = vld [vmem:[%s0 + $0x448] sm:$0xff]
      %v441 = vld [vmem:[%s0 + $0x450] sm:$0xff]
      %v442 = vld [vmem:[%s0 + $0x458] sm:$0xff]
      %v443 = vld [vmem:[%s0 + $0x460] sm:$0xff]
      %v444 = vld [vmem:[%s0 + $0x468] sm:$0xff]
      %v445 = vld [vmem:[%s0 + $0x470] sm:$0xff]
      %v446 = vld [vmem:[%s0 + $0x478] sm:$0xff]
      %v447 = vld [vmem:[%s0 + $0x480] sm:$0xff]
      %v448 = vld [vmem:[%s0 + $0x488] sm:$0xff]
      %v449 = vld [vmem:[%s0 + $0x490] sm:$0xff]
      %v450 = vld [vmem:[%s0 + $0x498] sm:$0xff]
      %v451 = vld [vmem:[%s0 + $0x4a0] sm:$0xff]
      %v452 = vld [vmem:[%s0 + $0x4a8] sm:$0xff]
      %v453 = vld [vmem:[%s0 + $0x4b0] sm:$0xff]
      %v454 = vld [vmem:[%s0 + $0x4b8] sm:$0xff]
      %v455 = vld [vmem:[%s0 + $0x4c0] sm:$0xff]
      %v456 = vld [vmem:[%s0 + $0x4c8] sm:$0xff]
      %v457 = vld [vmem:[%s0 + $0x4d0] sm:$0xff]
      %v458 = vld [vmem:[%s0 + $0x4d8] sm:$0xff]
      %v459 = vld [vmem:[%s0 + $0x4e0] sm:$0xff]
      %v460 = vld [vmem:[%s0 + $0x4e8] sm:$0xff]
      %v461 = vld [vmem:[%s0 + $0x4f0] sm:$0xff]
      %v462 = vld [vmem:[%s0 + $0x4f8] sm:$0xff]
      %v463 = vld [vmem:[%s0 + $0x500] sm:$0xff]
      %v464 = vld [vmem:[%s0 + $0x508] sm:$0xff]
      %v465 = vld [vmem:[%s0 + $0x510] sm:$0xff]
      %v466 = vld [vmem:[%s0 + $0x518] sm:$0xff]
      %v467 = vld [vmem:[%s0 + $0x520] sm:$0xff]
      %v468 = vld [vmem:[%s0 + $0x528] sm:$0xff]
      %v469 = vld [vmem:[%s0 + $0x530] sm:$0xff]
      %v470 = vld [vmem:[%s0 + $0x538] sm:$0xff]
      %v471 = vld [vmem:[%s0 + $0x540] sm:$0xff]
      %v472 = vld [vmem:[%s0 + $0x548] sm:$0xff]
      %v473 = vld [vmem:[%s0 + $0x550] sm:$0xff]
      %v474 = vld [vmem:[%s0 + $0x558] sm:$0xff]
      %v475 = vld [vmem:[%s0 + $0x560] sm:$0xff]
      %v476 = vld [vmem:[%s0 + $0x568] sm:$0xff]
      %v477 = vld [vmem:[%s0 + $0x570] sm:$0xff]
      %v478 = vld [vmem:[%s0 + $0x578] sm:$0xff]
      %v479 = vld [vmem:[%s0 + $0x580] sm:$0xff]
      %v480 = vld [vmem:[%s0 + $0x588] sm:$0xff]
      %v481 = vld [vmem:[%s0 + $0x590] sm:$0xff]
      %v482 = vld [vmem:[%s0 + $0x598] sm:$0xff]
      %v483 = vld [vmem:[%s0 + $0x5a0] sm:$0xff]
      %v484 = vld [vmem:[%s0 + $0x5a8] sm:$0xff]
      %v485 = vld [vmem:[%s0 + $0x5b0] sm:$0xff]
      %v486 = vld [vmem:[%s0 + $0x5b8] sm:$0xff]
      %v487 = vld [vmem:[%s0 + $0x5c0] sm:$0xff]
      %v488 = vld [vmem:[%s0 + $0x5c8] sm:$0xff]
      %v489 = vld [vmem:[%s0 + $0x5d0] sm:$0xff]
      %v490 = vld [vmem:[%s0 + $0x5d8] sm:$0xff]
      %v491 = vld [vmem:[%s0 + $0x5e0] sm:$0xff]
      %v492 = vld [vmem:[%s0 + $0x5e8] sm:$0xff]
      %v493 = vld [vmem:[%s0 + $0x5f0] sm:$0xff]
      %v494 = vld [vmem:[%s0 + $0x5f8] sm:$0xff]
      %v495 = vld [vmem:[%s0 + $0x600] sm:$0xff]
      %v496 = vld [vmem:[%s0 + $0x608] sm:$0xff]
      %v497 = vld [vmem:[%s0 + $0x610] sm:$0xff]
      %v498 = vld [vmem:[%s0 + $0x618] sm:$0xff]
      %v499 = vld [vmem:[%s0 + $0x620] sm:$0xff]
      %v500 = vld [vmem:[%s0 + $0x628] sm:$0xff]
      %v501 = vld [vmem:[%s0 + $0x630] sm:$0xff]
      %v502 = vld [vmem:[%s0 + $0x638] sm:$0xff]
      %v503 = vld [vmem:[%s0 + $0x640] sm:$0xff]
      %v504 = vld [vmem:[%s0 + $0x648] sm:$0xff]
      %v505 = vld [vmem:[%s0 + $0x650] sm:$0xff]
      %v506 = vld [vmem:[%s0 + $0x658] sm:$0xff]
      %v507 = vld [vmem:[%s0 + $0x660] sm:$0xff]
      %v508 = vld [vmem:[%s0 + $0x668] sm:$0xff]
      %v509 = vld [vmem:[%s0 + $0x670] sm:$0xff]
      %v510 = vld [vmem:[%s0 + $0x678] sm:$0xff]
      %v511 = vld [vmem:[%s0 + $0x680] sm:$0xff]
      %v512 = vld [vmem:[%s0 + $0x688] sm:$0xff]
      %v513 = vld [vmem:[%s0 + $0x690] sm:$0xff]
      %v514 = vld [vmem:[%s0 + $0x698] sm:$0xff]
      %v515 = vld [vmem:[%s0 + $0x6a0] sm:$0xff]
      %v516 = vld [vmem:[%s0 + $0x6a8] sm:$0xff]
      %v517 = vld [vmem:[%s0 + $0x6b0] sm:$0xff]
      %v518 = vld [vmem:[%s0 + $0x6b8] sm:$0xff]
      %v519 = vld [vmem:[%s0 + $0x6c0] sm:$0xff]
      %v520 = vld [vmem:[%s0 + $0x6c8] sm:$0xff]
      %v521 = vld [vmem:[%s0 + $0x6d0] sm:$0xff]
      %v522 = vld [vmem:[%s0 + $0x6d8] sm:$0xff]
      %v523 = vld [vmem:[%s0 + $0x6e0] sm:$0xff]
      %v524 = vld [vmem:[%s0 + $0x6e8] sm:$0xff]
      %v525 = vld [vmem:[%s0 + $0x6f0] sm:$0xff]
      %v526 = vld [vmem:[%s0 + $0x6f8] sm:$0xff]
      %v527 = vld [vmem:[%s0 + $0x700] sm:$0xff]
      %v528 = vld [vmem:[%s0 + $0x708] sm:$0xff]
      %v529 = vld [vmem:[%s0 + $0x710] sm:$0xff]
      %v530 = vld [vmem:[%s0 + $0x718] sm:$0xff]
      %v531 = vld [vmem:[%s0 + $0x720] sm:$0xff]
      %v532 = vld [vmem:[%s0 + $0x728] sm:$0xff]
      %v533 = vld [vmem:[%s0 + $0x730] sm:$0xff]
      %v534 = vld [vmem:[%s0 + $0x738] sm:$0xff]
      %v535 = vld [vmem:[%s0 + $0x740] sm:$0xff]
      %v536 = vld [vmem:[%s0 + $0x748] sm:$0xff]
      %v537 = vld [vmem:[%s0 + $0x750] sm:$0xff]
      %v538 = vld [vmem:[%s0 + $0x758] sm:$0xff]
      %v539 = vld [vmem:[%s0 + $0x760] sm:$0xff]
      %v540 = vld [vmem:[%s0 + $0x768] sm:$0xff]
      %v541 = vld [vmem:[%s0 + $0x770] sm:$0xff]
      %v542 = vld [vmem:[%s0 + $0x778] sm:$0xff]
      %v543 = vld [vmem:[%s0 + $0x780] sm:$0xff]
      %v544 = vld [vmem:[%s0 + $0x788] sm:$0xff]
      %v545 = vld [vmem:[%s0 + $0x790] sm:$0xff]
      %v546 = vld [vmem:[%s0 + $0x798] sm:$0xff]
      %v547 = vld [vmem:[%s0 + $0x7a0] sm:$0xff]
      %v548 = vld [vmem:[%s0 + $0x7a8] sm:$0xff]
      %v549 = vld [vmem:[%s0 + $0x7b0] sm:$0xff]
      %v550 = vld [vmem:[%s0 + $0x7b8] sm:$0xff]
      %v551 = vld [vmem:[%s0 + $0x7c0] sm:$0xff]
      %v552 = vld [vmem:[%s0 + $0x7c8] sm:$0xff]
      %v553 = vld [vmem:[%s0 + $0x7d0] sm:$0xff]
      %v554 = vld [vmem:[%s0 + $0x7d8] sm:$0xff]
      %v555 = vld [vmem:[%s0 + $0x7e0] sm:$0xff]
      %v556 = vld [vmem:[%s0 + $0x7e8] sm:$0xff]
      %v557 = vld [vmem:[%s0 + $0x7f0] sm:$0xff]
      %v558 = vld [vmem:[%s0 + $0x7f8] sm:$0xff]
      %v559 = vld [vmem:[%s0 + $0x800] sm:$0xff]
      %v560 = vld [vmem:[%s0 + $0x808] sm:$0xff]
      %v561 = vld [vmem:[%s0 + $0x810] sm:$0xff]
      %v562 = vld [vmem:[%s0 + $0x818] sm:$0xff]
      %v563 = vld [vmem:[%s0 + $0x820] sm:$0xff]
      %v564 = vld [vmem:[%s0 + $0x828] sm:$0xff]
      %v565 = vld [vmem:[%s0 + $0x830] sm:$0xff]
      %v566 = vld [vmem:[%s0 + $0x838] sm:$0xff]
      %v567 = vld [vmem:[%s0 + $0x840] sm:$0xff]
      %v568 = vld [vmem:[%s0 + $0x848] sm:$0xff]
      %v569 = vld [vmem:[%s0 + $0x850] sm:$0xff]
      %v570 = vld [vmem:[%s0 + $0x858] sm:$0xff]
      %v571 = vld [vmem:[%s0 + $0x860] sm:$0xff]
      %v572 = vld [vmem:[%s0 + $0x868] sm:$0xff]
      %v573 = vld [vmem:[%s0 + $0x870] sm:$0xff]
      %v574 = vld [vmem:[%s0 + $0x878] sm:$0xff]
      %v575 = vld [vmem:[%s0 + $0x880] sm:$0xff]
      %v576 = vld [vmem:[%s0 + $0x888] sm:$0xff]
      %v577 = vld [vmem:[%s0 + $0x890] sm:$0xff]
      %v578 = vld [vmem:[%s0 + $0x898] sm:$0xff]
      %v579 = vld [vmem:[%s0 + $0x8a0] sm:$0xff]
      %v580 = vld [vmem:[%s0 + $0x8a8] sm:$0xff]
      %v581 = vld [vmem:[%s0 + $0x8b0] sm:$0xff]
      %v582 = vld [vmem:[%s0 + $0x8b8] sm:$0xff]
      %v583 = vld [vmem:[%s0 + $0x8c0] sm:$0xff]
      %v584 = vld [vmem:[%s0 + $0x8c8] sm:$0xff]
      %v585 = vld [vmem:[%s0 + $0x8d0] sm:$0xff]
      %v586 = vld [vmem:[%s0 + $0x8d8] sm:$0xff]
      %v587 = vld [vmem:[%s0 + $0x8e0] sm:$0xff]
      %v588 = vld [vmem:[%s0 + $0x8e8] sm:$0xff]
      %v589 = vld [vmem:[%s0 + $0x8f0] sm:$0xff]
      %v590 = vld [vmem:[%s0 + $0x8f8] sm:$0xff]
      %v591 = vld [vmem:[%s0 + $0x900] sm:$0xff]
      %v592 = vld [vmem:[%s0 + $0x908] sm:$0xff]
      %v593 = vld [vmem:[%s0 + $0x910] sm:$0xff]
      %v594 = vld [vmem:[%s0 + $0x918] sm:$0xff]
      %v595 = vld [vmem:[%s0 + $0x920] sm:$0xff]
      %v596 = vld [vmem:[%s0 + $0x928] sm:$0xff]
      %v597 = vld [vmem:[%s0 + $0x930] sm:$0xff]
      %v598 = vld [vmem:[%s0 + $0x938] sm:$0xff]
      %v599 = vld [vmem:[%s0 + $0x940] sm:$0xff]
      %v600 = vld [vmem:[%s0 + $0x948] sm:$0xff]
      %v601 = vld [vmem:[%s0 + $0x950] sm:$0xff]
      %v602 = vld [vmem:[%s0 + $0x958] sm:$0xff]
      %v603 = vld [vmem:[%s0 + $0x960] sm:$0xff]
      %v604 = vld [vmem:[%s0 + $0x968] sm:$0xff]
      %v605 = vld [vmem:[%s0 + $0x970] sm:$0xff]
      %v606 = vld [vmem:[%s0 + $0x978] sm:$0xff]
      %v607 = vld [vmem:[%s0 + $0x980] sm:$0xff]
      %v608 = vld [vmem:[%s0 + $0x988] sm:$0xff]
      %v609 = vld [vmem:[%s0 + $0x990] sm:$0xff]
      %v610 = vld [vmem:[%s0 + $0x998] sm:$0xff]
      %v611 = vld [vmem:[%s0 + $0x9a0] sm:$0xff]
      %v612 = vld [vmem:[%s0 + $0x9a8] sm:$0xff]
      %v613 = vld [vmem:[%s0 + $0x9b0] sm:$0xff]
      %v614 = vld [vmem:[%s0 + $0x9b8] sm:$0xff]
      %v615 = vld [vmem:[%s0 + $0x9c0] sm:$0xff]
      %v616 = vld [vmem:[%s0 + $0x9c8] sm:$0xff]
      %v617 = vld [vmem:[%s0 + $0x9d0] sm:$0xff]
      %v618 = vld [vmem:[%s0 + $0x9d8] sm:$0xff]
      %v619 = vld [vmem:[%s0 + $0x9e0] sm:$0xff]
      %v620 = vld [vmem:[%s0 + $0x9e8] sm:$0xff]
      %v621 = vld [vmem:[%s0 + $0x9f0] sm:$0xff]
      %v622 = vld [vmem:[%s0 + $0x9f8] sm:$0xff]
      %v623 = vld [vmem:[%s0 + $0xa00] sm:$0xff]
      %v624 = vld [vmem:[%s0 + $0xa08] sm:$0xff]
      %v625 = vld [vmem:[%s0 + $0xa10] sm:$0xff]
      %v626 = vld [vmem:[%s0 + $0xa18] sm:$0xff]
      %v627 = vld [vmem:[%s0 + $0xa20] sm:$0xff]
      %v628 = vld [vmem:[%s0 + $0xa28] sm:$0xff]
      %v629 = vld [vmem:[%s0 + $0xa30] sm:$0xff]
      %v630 = vld [vmem:[%s0 + $0xa38] sm:$0xff]
      %v631 = vld [vmem:[%s0 + $0xa40] sm:$0xff]
      %v632 = vld [vmem:[%s0 + $0xa48] sm:$0xff]
      %v633 = vld [vmem:[%s0 + $0xa50] sm:$0xff]
      %v634 = vld [vmem:[%s0 + $0xa58] sm:$0xff]
      %v635 = vld [vmem:[%s0 + $0xa60] sm:$0xff]
      %v636 = vld [vmem:[%s0 + $0xa68] sm:$0xff]
      %v637 = vld [vmem:[%s0 + $0xa70] sm:$0xff]
      %v638 = vld [vmem:[%s0 + $0xa78] sm:$0xff]
      %v639 = vld [vmem:[%s0 + $0xa80] sm:$0xff]
      %v640 = vld [vmem:[%s0 + $0xa88] sm:$0xff]
      %v641 = vld [vmem:[%s0 + $0xa90] sm:$0xff]
      %v642 = vld [vmem:[%s0 + $0xa98] sm:$0xff]
      %v643 = vld [vmem:[%s0 + $0xaa0] sm:$0xff]
      %v644 = vld [vmem:[%s0 + $0xaa8] sm:$0xff]
      %v645 = vld [vmem:[%s0 + $0xab0] sm:$0xff]
      %v646 = vld [vmem:[%s0 + $0xab8] sm:$0xff]
      %v647 = vld [vmem:[%s0 + $0xac0] sm:$0xff]
      %v648 = vld [vmem:[%s0 + $0xac8] sm:$0xff]
      %v649 = vld [vmem:[%s0 + $0xad0] sm:$0xff]
      %v650 = vld [vmem:[%s0 + $0xad8] sm:$0xff]
      %v651 = vpack.c.bf16 %v305, %v303
      %v652 = vpack.c.bf16 %v306, %v304
      %v653 = vpack.c.bf16 %v309, %v307
      %v654 = vpack.c.bf16 %v310, %v308
      %v655 = vpack.c.bf16 %v313, %v311
      %v656 = vpack.c.bf16 %v314, %v312
      %v657 = vpack.c.bf16 %v317, %v315
      %v658 = vpack.c.bf16 %v318, %v316
      %v659 = vpack.c.bf16 %v321, %v319
      %v660 = vpack.c.bf16 %v322, %v320
      %v661 = vpack.c.bf16 %v325, %v323
      %v662 = vpack.c.bf16 %v326, %v324
      %v663 = vpack.c.bf16 %v329, %v327
      %v664 = vpack.c.bf16 %v330, %v328
      %v665 = vpack.c.bf16 %v333, %v331
      %v666 = vpack.c.bf16 %v334, %v332
      %v667 = vpack.c.bf16 %v337, %v335
      %v668 = vpack.c.bf16 %v338, %v336
      %v669 = vpack.c.bf16 %v341, %v339
      %v670 = vpack.c.bf16 %v342, %v340
      %v671 = vpack.c.bf16 %v345, %v343
      %v672 = vpack.c.bf16 %v346, %v344
      %v673 = vpack.c.bf16 %v349, %v347
      %v674 = vpack.c.bf16 %v350, %v348
      %v675 = vpack.c.bf16 %v353, %v351
      %v676 = vpack.c.bf16 %v354, %v352
      %v677 = vpack.c.bf16 %v357, %v355
      %v678 = vpack.c.bf16 %v358, %v356
      %v679 = vpack.c.bf16 %v361, %v359
      %v680 = vpack.c.bf16 %v362, %v360
      %v681 = vpack.c.bf16 %v365, %v363
      %v682 = vpack.c.bf16 %v366, %v364
      %v683 = vpack.c.bf16 %v369, %v367
      %v684 = vpack.c.bf16 %v370, %v368
      %v685 = vpack.c.bf16 %v373, %v371
      %v686 = vpack.c.bf16 %v374, %v372
      %v687 = vpack.c.bf16 %v377, %v375
      %v688 = vpack.c.bf16 %v378, %v376
      %v689 = vpack.c.bf16 %v381, %v379
      %v690 = vpack.c.bf16 %v382, %v380
      %v691 = vpack.c.bf16 %v385, %v383
      %v692 = vpack.c.bf16 %v386, %v384
      %v693 = vpack.c.bf16 %v389, %v387
      %v694 = vpack.c.bf16 %v390, %v388
      %v695 = vpack.c.bf16 %v393, %v391
      %v696 = vpack.c.bf16 %v394, %v392
      %v697 = vpack.c.bf16 %v397, %v395
      %v698 = vpack.c.bf16 %v398, %v396
      %v699 = vpack.c.bf16 %v401, %v399
      %v700 = vpack.c.bf16 %v402, %v400
      %v701 = vpack.c.bf16 %v405, %v403
      %v702 = vpack.c.bf16 %v406, %v404
      %v703 = vpack.c.bf16 %v409, %v407
      %v704 = vpack.c.bf16 %v410, %v408
      %v705 = vpack.c.bf16 %v413, %v411
      %v706 = vpack.c.bf16 %v414, %v412
      %v707 = vpack.c.bf16 %v417, %v415
      %v708 = vpack.c.bf16 %v418, %v416
      %v709 = vpack.c.bf16 %v421, %v419
      %v710 = vpack.c.bf16 %v422, %v420
      %v711 = vpack.c.bf16 %v425, %v423
      %v712 = vpack.c.bf16 %v426, %v424
      %v713 = vpack.c.bf16 %v429, %v427
      %v714 = vpack.c.bf16 %v430, %v428
      %v715 = vpack.c.bf16 %v433, %v431
      %v716 = vpack.c.bf16 %v434, %v432
      %v717 = vpack.c.bf16 %v437, %v435
      %v718 = vpack.c.bf16 %v438, %v436
      %v719 = vpack.c.bf16 %v441, %v439
      %v720 = vpack.c.bf16 %v442, %v440
      %v721 = vpack.c.bf16 %v445, %v443
      %v722 = vpack.c.bf16 %v446, %v444
      %v723 = vpack.c.bf16 %v449, %v447
      %v724 = vpack.c.bf16 %v450, %v448
      %v725 = vpack.c.bf16 %v453, %v451
      %v726 = vpack.c.bf16 %v454, %v452
      %v727 = vpack.c.bf16 %v457, %v455
      %v728 = vpack.c.bf16 %v458, %v456
      %v729 = vpack.c.bf16 %v461, %v459
      %v730 = vpack.c.bf16 %v462, %v460
      %v731 = vpack.c.bf16 %v465, %v463
      %v732 = vpack.c.bf16 %v466, %v464
      %v733 = vpack.c.bf16 %v469, %v467
      %v734 = vpack.c.bf16 %v470, %v468
      %v735 = vpack.c.bf16 %v473, %v471
      %v736 = vpack.c.bf16 %v474, %v472
      %v737 = vpack.c.bf16 %v477, %v475
      %v738 = vpack.c.bf16 %v478, %v476
      %v739 = vpack.c.bf16 %v481, %v479
      %v740 = vpack.c.bf16 %v482, %v480
      %v741 = vpack.c.bf16 %v485, %v483
      %v742 = vpack.c.bf16 %v486, %v484
      %v743 = vpack.c.bf16 %v489, %v487
      %v744 = vpack.c.bf16 %v490, %v488
      %v745 = vpack.c.bf16 %v493, %v491
      %v746 = vpack.c.bf16 %v494, %v492
      %v747 = vpack.c.bf16 %v497, %v495
      %v748 = vpack.c.bf16 %v498, %v496
      %v749 = vpack.c.bf16 %v501, %v499
      %v750 = vpack.c.bf16 %v502, %v500
      %v751 = vpack.c.bf16 %v505, %v503
      %v752 = vpack.c.bf16 %v506, %v504
      %v753 = vpack.c.bf16 %v509, %v507
      %v754 = vpack.c.bf16 %v510, %v508
      %v755 = vpack.c.bf16 %v513, %v511
      %v756 = vpack.c.bf16 %v514, %v512
      %v757 = vpack.c.bf16 %v517, %v515
      %v758 = vpack.c.bf16 %v518, %v516
      %v759 = vpack.c.bf16 %v521, %v519
      %v760 = vpack.c.bf16 %v522, %v520
      %v761 = vpack.c.bf16 %v525, %v523
      %v762 = vpack.c.bf16 %v526, %v524
      %v763 = vpack.c.bf16 %v529, %v527
      %v764 = vpack.c.bf16 %v530, %v528
      %v765 = vpack.c.bf16 %v533, %v531
      %v766 = vpack.c.bf16 %v534, %v532
      %v767 = vpack.c.bf16 %v537, %v535
      %v768 = vpack.c.bf16 %v538, %v536
      %v769 = vpack.c.bf16 %v541, %v539
      %v770 = vpack.c.bf16 %v542, %v540
      %v771 = vpack.c.bf16 %v545, %v543
      %v772 = vpack.c.bf16 %v546, %v544
      %v773 = vpack.c.bf16 %v549, %v547
      %v774 = vpack.c.bf16 %v550, %v548
      %v775 = vpack.c.bf16 %v553, %v551
      %v776 = vpack.c.bf16 %v554, %v552
      %v777 = vpack.c.bf16 %v557, %v555
      %v778 = vpack.c.bf16 %v558, %v556
      %v779 = vpack.c.bf16 %v561, %v559
      %v780 = vpack.c.bf16 %v562, %v560
      %v781 = vpack.c.bf16 %v565, %v563
      %v782 = vpack.c.bf16 %v566, %v564
      %v783 = vpack.c.bf16 %v569, %v567
      %v784 = vpack.c.bf16 %v570, %v568
      %v785 = vpack.c.bf16 %v573, %v571
      %v786 = vpack.c.bf16 %v574, %v572
      %v787 = vpack.c.bf16 %v577, %v575
      %v788 = vpack.c.bf16 %v578, %v576
      %v789 = vpack.c.bf16 %v581, %v579
      %v790 = vpack.c.bf16 %v582, %v580
      %v791 = vpack.c.bf16 %v585, %v583
      %v792 = vpack.c.bf16 %v586, %v584
      %v793 = vpack.c.bf16 %v589, %v587
      %v794 = vpack.c.bf16 %v590, %v588
      %v795 = vpack.c.bf16 %v593, %v591
      %v796 = vpack.c.bf16 %v594, %v592
      %v797 = vpack.c.bf16 %v597, %v595
      %v798 = vpack.c.bf16 %v598, %v596
      %v799 = vpack.c.bf16 %v601, %v599
      %v800 = vpack.c.bf16 %v602, %v600
      %v801 = vpack.c.bf16 %v605, %v603
      %v802 = vpack.c.bf16 %v606, %v604
      %v803 = vpack.c.bf16 %v609, %v607
      %v804 = vpack.c.bf16 %v610, %v608
      %v805 = vpack.c.bf16 %v613, %v611
      %v806 = vpack.c.bf16 %v614, %v612
      %v807 = vpack.c.bf16 %v617, %v615
      %v808 = vpack.c.bf16 %v618, %v616
      %v809 = vpack.c.bf16 %v621, %v619
      %v810 = vpack.c.bf16 %v622, %v620
      %v811 = vpack.c.bf16 %v625, %v623
      %v812 = vpack.c.bf16 %v626, %v624
      %v813 = vpack.c.bf16 %v629, %v627
      %v814 = vpack.c.bf16 %v630, %v628
      %v815 = vpack.c.bf16 %v633, %v631
      %v816 = vpack.c.bf16 %v634, %v632
      %v817 = vpack.c.bf16 %v637, %v635
      %v818 = vpack.c.bf16 %v638, %v636
      %v819 = vpack.c.bf16 %v641, %v639
      %v820 = vpack.c.bf16 %v642, %v640
      %v821 = vpack.c.bf16 %v645, %v643
      %v822 = vpack.c.bf16 %v646, %v644
      %v823 = vpack.c.bf16 %v649, %v647
      %v824 = vpack.c.bf16 %v650, %v648
      %v825 = vld [vmem:[%s274] sm:$0xff]
      %v826 = vld [vmem:[%s274 + $0x8] sm:$0xff]
      %v827 = vld [vmem:[%s274 + $0x10] sm:$0xff]
      %v828 = vld [vmem:[%s274 + $0x18] sm:$0xff]
      %v829 = vld [vmem:[%s274 + $0x20] sm:$0xff]
      %v830 = vld [vmem:[%s274 + $0x28] sm:$0xf]
      %v831 = vld [vmem:[%s274 + $0x2c] sm:$0xff]
      %v832 = vld [vmem:[%s274 + $0x34] sm:$0xff]
      %v833 = vld [vmem:[%s274 + $0x3c] sm:$0xff]
      %v834 = vld [vmem:[%s274 + $0x44] sm:$0xff]
      %v835 = vld [vmem:[%s274 + $0x4c] sm:$0xff]
      %v836 = vld [vmem:[%s274 + $0x54] sm:$0xf]
      %v837 = vld [vmem:[%s274 + $0x58] sm:$0xff]
      %v838 = vld [vmem:[%s274 + $0x60] sm:$0xff]
      %v839 = vld [vmem:[%s274 + $0x68] sm:$0xff]
      %v840 = vld [vmem:[%s274 + $0x70] sm:$0xff]
      %v841 = vld [vmem:[%s274 + $0x78] sm:$0xff]
      %v842 = vld [vmem:[%s274 + $0x80] sm:$0xf]
      %v843 = vld [vmem:[%s274 + $0x84] sm:$0xff]
      %v844 = vld [vmem:[%s274 + $0x8c] sm:$0xff]
      %v845 = vld [vmem:[%s274 + $0x94] sm:$0xff]
      %v846 = vld [vmem:[%s274 + $0x9c] sm:$0xff]
      %v847 = vld [vmem:[%s274 + $0xa4] sm:$0xff]
      %v848 = vld [vmem:[%s274 + $0xac] sm:$0xf]
      %v849 = vld [vmem:[%s274 + $0xb0] sm:$0xff]
      %v850 = vld [vmem:[%s274 + $0xb8] sm:$0xff]
      %v851 = vld [vmem:[%s274 + $0xc0] sm:$0xff]
      %v852 = vld [vmem:[%s274 + $0xc8] sm:$0xff]
      %v853 = vld [vmem:[%s274 + $0xd0] sm:$0xff]
      %v854 = vld [vmem:[%s274 + $0xd8] sm:$0xf]
      %v855 = vld [vmem:[%s274 + $0xdc] sm:$0xff]
      %v856 = vld [vmem:[%s274 + $0xe4] sm:$0xff]
      %v857 = vld [vmem:[%s274 + $0xec] sm:$0xff]
      %v858 = vld [vmem:[%s274 + $0xf4] sm:$0xff]
      %v859 = vld [vmem:[%s274 + $0xfc] sm:$0xff]
      %v860 = vld [vmem:[%s274 + $0x104] sm:$0xf]
      %v861 = vld [vmem:[%s274 + $0x108] sm:$0xff]
      %v862 = vld [vmem:[%s274 + $0x110] sm:$0xff]
      %v863 = vld [vmem:[%s274 + $0x118] sm:$0xff]
      %v864 = vld [vmem:[%s274 + $0x120] sm:$0xff]
      %v865 = vld [vmem:[%s274 + $0x128] sm:$0xff]
      %v866 = vld [vmem:[%s274 + $0x130] sm:$0xf]
      %v867 = vld [vmem:[%s274 + $0x134] sm:$0xff]
      %v868 = vld [vmem:[%s274 + $0x13c] sm:$0xff]
      %v869 = vld [vmem:[%s274 + $0x144] sm:$0xff]
      %v870 = vld [vmem:[%s274 + $0x14c] sm:$0xff]
      %v871 = vld [vmem:[%s274 + $0x154] sm:$0xff]
      %v872 = vld [vmem:[%s274 + $0x15c] sm:$0xf]
      %v873 = vld [vmem:[%s274 + $0x160] sm:$0xff]
      %v874 = vld [vmem:[%s274 + $0x168] sm:$0xff]
      %v875 = vld [vmem:[%s274 + $0x170] sm:$0xff]
      %v876 = vld [vmem:[%s274 + $0x178] sm:$0xff]
      %v877 = vld [vmem:[%s274 + $0x180] sm:$0xff]
      %v878 = vld [vmem:[%s274 + $0x188] sm:$0xf]
      %v879 = vld [vmem:[%s274 + $0x18c] sm:$0xff]
      %v880 = vld [vmem:[%s274 + $0x194] sm:$0xff]
      %v881 = vld [vmem:[%s274 + $0x19c] sm:$0xff]
      %v882 = vld [vmem:[%s274 + $0x1a4] sm:$0xff]
      %v883 = vld [vmem:[%s274 + $0x1ac] sm:$0xff]
      %v884 = vld [vmem:[%s274 + $0x1b4] sm:$0xf]
      %v885 = vld [vmem:[%s274 + $0x1b8] sm:$0xff]
      %v886 = vld [vmem:[%s274 + $0x1c0] sm:$0xff]
      %v887 = vld [vmem:[%s274 + $0x1c8] sm:$0xff]
      %v888 = vld [vmem:[%s274 + $0x1d0] sm:$0xff]
      %v889 = vld [vmem:[%s274 + $0x1d8] sm:$0xff]
      %v890 = vld [vmem:[%s274 + $0x1e0] sm:$0xf]
      %v891 = vld [vmem:[%s274 + $0x1e4] sm:$0xff]
      %v892 = vld [vmem:[%s274 + $0x1ec] sm:$0xff]
      %v893 = vld [vmem:[%s274 + $0x1f4] sm:$0xff]
      %v894 = vld [vmem:[%s274 + $0x1fc] sm:$0xff]
      %v895 = vld [vmem:[%s274 + $0x204] sm:$0xff]
      %v896 = vld [vmem:[%s274 + $0x20c] sm:$0xf]
      %v897 = vld [vmem:[%s274 + $0x210] sm:$0xff]
      %v898 = vld [vmem:[%s274 + $0x218] sm:$0xff]
      %v899 = vld [vmem:[%s274 + $0x220] sm:$0xff]
      %v900 = vld [vmem:[%s274 + $0x228] sm:$0xff]
      %v901 = vld [vmem:[%s274 + $0x230] sm:$0xff]
      %v902 = vld [vmem:[%s274 + $0x238] sm:$0xf]
      %v903 = vld [vmem:[%s274 + $0x23c] sm:$0xff]
      %v904 = vld [vmem:[%s274 + $0x244] sm:$0xff]
      %v905 = vld [vmem:[%s274 + $0x24c] sm:$0xff]
      %v906 = vld [vmem:[%s274 + $0x254] sm:$0xff]
      %v907 = vld [vmem:[%s274 + $0x25c] sm:$0xff]
      %v908 = vld [vmem:[%s274 + $0x264] sm:$0xf]
      %v909 = vld [vmem:[%s274 + $0x268] sm:$0xff]
      %v910 = vld [vmem:[%s274 + $0x270] sm:$0xff]
      %v911 = vld [vmem:[%s274 + $0x278] sm:$0xff]
      %v912 = vld [vmem:[%s274 + $0x280] sm:$0xff]
      %v913 = vld [vmem:[%s274 + $0x288] sm:$0xff]
      %v914 = vld [vmem:[%s274 + $0x290] sm:$0xf]
      %v915 = vld [vmem:[%s274 + $0x294] sm:$0xff]
      %v916 = vld [vmem:[%s274 + $0x29c] sm:$0xff]
      %v917 = vld [vmem:[%s274 + $0x2a4] sm:$0xff]
      %v918 = vld [vmem:[%s274 + $0x2ac] sm:$0xff]
      %v919 = vld [vmem:[%s274 + $0x2b4] sm:$0xff]
      %v920 = vld [vmem:[%s274 + $0x2bc] sm:$0xf]
      %v921 = vld [vmem:[%s274 + $0x2c0] sm:$0xff]
      %v922 = vld [vmem:[%s274 + $0x2c8] sm:$0xff]
      %v923 = vld [vmem:[%s274 + $0x2d0] sm:$0xff]
      %v924 = vld [vmem:[%s274 + $0x2d8] sm:$0xff]
      %v925 = vld [vmem:[%s274 + $0x2e0] sm:$0xff]
      %v926 = vld [vmem:[%s274 + $0x2e8] sm:$0xf]
      %v927 = vld [vmem:[%s274 + $0x2ec] sm:$0xff]
      %v928 = vld [vmem:[%s274 + $0x2f4] sm:$0xff]
      %v929 = vld [vmem:[%s274 + $0x2fc] sm:$0xff]
      %v930 = vld [vmem:[%s274 + $0x304] sm:$0xff]
      %v931 = vld [vmem:[%s274 + $0x30c] sm:$0xff]
      %v932 = vld [vmem:[%s274 + $0x314] sm:$0xf]
      %v933 = vld [vmem:[%s274 + $0x318] sm:$0xff]
      %v934 = vld [vmem:[%s274 + $0x320] sm:$0xff]
      %v935 = vld [vmem:[%s274 + $0x328] sm:$0xff]
      %v936 = vld [vmem:[%s274 + $0x330] sm:$0xff]
      %v937 = vld [vmem:[%s274 + $0x338] sm:$0xff]
      %v938 = vld [vmem:[%s274 + $0x340] sm:$0xf]
      %v939 = vld [vmem:[%s274 + $0x344] sm:$0xff]
      %v940 = vld [vmem:[%s274 + $0x34c] sm:$0xff]
      %v941 = vld [vmem:[%s274 + $0x354] sm:$0xff]
      %v942 = vld [vmem:[%s274 + $0x35c] sm:$0xff]
      %v943 = vld [vmem:[%s274 + $0x364] sm:$0xff]
      %v944 = vld [vmem:[%s274 + $0x36c] sm:$0xf]
      %v945 = vld [vmem:[%s274 + $0x370] sm:$0xff]
      %v946 = vld [vmem:[%s274 + $0x378] sm:$0xff]
      %v947 = vld [vmem:[%s274 + $0x380] sm:$0xff]
      %v948 = vld [vmem:[%s274 + $0x388] sm:$0xff]
      %v949 = vld [vmem:[%s274 + $0x390] sm:$0xff]
      %v950 = vld [vmem:[%s274 + $0x398] sm:$0xf]
      %v951 = vld [vmem:[%s274 + $0x39c] sm:$0xff]
      %v952 = vld [vmem:[%s274 + $0x3a4] sm:$0xff]
      %v953 = vld [vmem:[%s274 + $0x3ac] sm:$0xff]
      %v954 = vld [vmem:[%s274 + $0x3b4] sm:$0xff]
      %v955 = vld [vmem:[%s274 + $0x3bc] sm:$0xff]
      %v956 = vld [vmem:[%s274 + $0x3c4] sm:$0xf]
      %v957 = vld [vmem:[%s274 + $0x3c8] sm:$0xff]
      %v958 = vld [vmem:[%s274 + $0x3d0] sm:$0xff]
      %v959 = vld [vmem:[%s274 + $0x3d8] sm:$0xff]
      %v960 = vld [vmem:[%s274 + $0x3e0] sm:$0xff]
      %v961 = vld [vmem:[%s274 + $0x3e8] sm:$0xff]
      %v962 = vld [vmem:[%s274 + $0x3f0] sm:$0xf]
      %v963 = vld [vmem:[%s274 + $0x3f4] sm:$0xff]
      %v964 = vld [vmem:[%s274 + $0x3fc] sm:$0xff]
      %v965 = vld [vmem:[%s274 + $0x404] sm:$0xff]
      %v966 = vld [vmem:[%s274 + $0x40c] sm:$0xff]
      %v967 = vld [vmem:[%s274 + $0x414] sm:$0xff]
      %v968 = vld [vmem:[%s274 + $0x41c] sm:$0xf]
      %v969 = vld [vmem:[%s274 + $0x420] sm:$0xff]
      %v970 = vld [vmem:[%s274 + $0x428] sm:$0xff]
      %v971 = vld [vmem:[%s274 + $0x430] sm:$0xff]
      %v972 = vld [vmem:[%s274 + $0x438] sm:$0xff]
      %v973 = vld [vmem:[%s274 + $0x440] sm:$0xff]
      %v974 = vld [vmem:[%s274 + $0x448] sm:$0xf]
      %v975 = vld [vmem:[%s274 + $0x44c] sm:$0xff]
      %v976 = vld [vmem:[%s274 + $0x454] sm:$0xff]
      %v977 = vld [vmem:[%s274 + $0x45c] sm:$0xff]
      %v978 = vld [vmem:[%s274 + $0x464] sm:$0xff]
      %v979 = vld [vmem:[%s274 + $0x46c] sm:$0xff]
      %v980 = vld [vmem:[%s274 + $0x474] sm:$0xf]
      %v981 = vld [vmem:[%s274 + $0x478] sm:$0xff]
      %v982 = vld [vmem:[%s274 + $0x480] sm:$0xff]
      %v983 = vld [vmem:[%s274 + $0x488] sm:$0xff]
      %v984 = vld [vmem:[%s274 + $0x490] sm:$0xff]
      %v985 = vld [vmem:[%s274 + $0x498] sm:$0xff]
      %v986 = vld [vmem:[%s274 + $0x4a0] sm:$0xf]
      %v987 = vld [vmem:[%s274 + $0x4a4] sm:$0xff]
      %v988 = vld [vmem:[%s274 + $0x4ac] sm:$0xff]
      %v989 = vld [vmem:[%s274 + $0x4b4] sm:$0xff]
      %v990 = vld [vmem:[%s274 + $0x4bc] sm:$0xff]
      %v991 = vld [vmem:[%s274 + $0x4c4] sm:$0xff]
      %v992 = vld [vmem:[%s274 + $0x4cc] sm:$0xf]
      %v993 = vld [vmem:[%s274 + $0x4d0] sm:$0xff]
      %v994 = vld [vmem:[%s274 + $0x4d8] sm:$0xff]
      %v995 = vld [vmem:[%s274 + $0x4e0] sm:$0xff]
      %v996 = vld [vmem:[%s274 + $0x4e8] sm:$0xff]
      %v997 = vld [vmem:[%s274 + $0x4f0] sm:$0xff]
      %v998 = vld [vmem:[%s274 + $0x4f8] sm:$0xf]
      %v999 = vld [vmem:[%s274 + $0x4fc] sm:$0xff]
      %v1000 = vld [vmem:[%s274 + $0x504] sm:$0xff]
      %v1001 = vld [vmem:[%s274 + $0x50c] sm:$0xff]
      %v1002 = vld [vmem:[%s274 + $0x514] sm:$0xff]
      %v1003 = vld [vmem:[%s274 + $0x51c] sm:$0xff]
      %v1004 = vld [vmem:[%s274 + $0x524] sm:$0xf]
      %v1005 = vld [vmem:[%s274 + $0x528] sm:$0xff]
      %v1006 = vld [vmem:[%s274 + $0x530] sm:$0xff]
      %v1007 = vld [vmem:[%s274 + $0x538] sm:$0xff]
      %v1008 = vld [vmem:[%s274 + $0x540] sm:$0xff]
      %v1009 = vld [vmem:[%s274 + $0x548] sm:$0xff]
      %v1010 = vld [vmem:[%s274 + $0x550] sm:$0xf]
      %v1011 = vld [vmem:[%s274 + $0x554] sm:$0xff]
      %v1012 = vld [vmem:[%s274 + $0x55c] sm:$0xff]
      %v1013 = vld [vmem:[%s274 + $0x564] sm:$0xff]
      %v1014 = vld [vmem:[%s274 + $0x56c] sm:$0xff]
      %v1015 = vld [vmem:[%s274 + $0x574] sm:$0xff]
      %v1016 = vld [vmem:[%s274 + $0x57c] sm:$0xf]
      %v1017 = vld [vmem:[%s274 + $0x580] sm:$0xff]
      %v1018 = vld [vmem:[%s274 + $0x588] sm:$0xff]
      %v1019 = vld [vmem:[%s274 + $0x590] sm:$0xff]
      %v1020 = vld [vmem:[%s274 + $0x598] sm:$0xff]
      %v1021 = vld [vmem:[%s274 + $0x5a0] sm:$0xff]
      %v1022 = vld [vmem:[%s274 + $0x5a8] sm:$0xf]
      %v1023 = vld [vmem:[%s274 + $0x5ac] sm:$0xff]
      %v1024 = vld [vmem:[%s274 + $0x5b4] sm:$0xff]
      %v1025 = vld [vmem:[%s274 + $0x5bc] sm:$0xff]
      %v1026 = vld [vmem:[%s274 + $0x5c4] sm:$0xff]
      %v1027 = vld [vmem:[%s274 + $0x5cc] sm:$0xff]
      %v1028 = vld [vmem:[%s274 + $0x5d4] sm:$0xf]
      %v1029 = vld [vmem:[%s274 + $0x5d8] sm:$0xff]
      %v1030 = vld [vmem:[%s274 + $0x5e0] sm:$0xff]
      %v1031 = vld [vmem:[%s274 + $0x5e8] sm:$0xff]
      %v1032 = vld [vmem:[%s274 + $0x5f0] sm:$0xff]
      %v1033 = vld [vmem:[%s274 + $0x5f8] sm:$0xff]
      %v1034 = vld [vmem:[%s274 + $0x600] sm:$0xf]
      %v1035 = vld [vmem:[%s274 + $0x604] sm:$0xff]
      %v1036 = vld [vmem:[%s274 + $0x60c] sm:$0xff]
      %v1037 = vld [vmem:[%s274 + $0x614] sm:$0xff]
      %v1038 = vld [vmem:[%s274 + $0x61c] sm:$0xff]
      %v1039 = vld [vmem:[%s274 + $0x624] sm:$0xff]
      %v1040 = vld [vmem:[%s274 + $0x62c] sm:$0xf]
      %v1041 = vld [vmem:[%s274 + $0x630] sm:$0xff]
      %v1042 = vld [vmem:[%s274 + $0x638] sm:$0xff]
      %v1043 = vld [vmem:[%s274 + $0x640] sm:$0xff]
      %v1044 = vld [vmem:[%s274 + $0x648] sm:$0xff]
      %v1045 = vld [vmem:[%s274 + $0x650] sm:$0xff]
      %v1046 = vld [vmem:[%s274 + $0x658] sm:$0xf]
      %v1047 = vld [vmem:[%s274 + $0x65c] sm:$0xff]
      %v1048 = vld [vmem:[%s274 + $0x664] sm:$0xff]
      %v1049 = vld [vmem:[%s274 + $0x66c] sm:$0xff]
      %v1050 = vld [vmem:[%s274 + $0x674] sm:$0xff]
      %v1051 = vld [vmem:[%s274 + $0x67c] sm:$0xff]
      %v1052 = vld [vmem:[%s274 + $0x684] sm:$0xf]
      %v1053 = vld [vmem:[%s274 + $0x688] sm:$0xff]
      %v1054 = vld [vmem:[%s274 + $0x690] sm:$0xff]
      %v1055 = vld [vmem:[%s274 + $0x698] sm:$0xff]
      %v1056 = vld [vmem:[%s274 + $0x6a0] sm:$0xff]
      %v1057 = vld [vmem:[%s274 + $0x6a8] sm:$0xff]
      %v1058 = vld [vmem:[%s274 + $0x6b0] sm:$0xf]
      %v1059 = vld [vmem:[%s274 + $0x6b4] sm:$0xff]
      %v1060 = vld [vmem:[%s274 + $0x6bc] sm:$0xff]
      %v1061 = vld [vmem:[%s274 + $0x6c4] sm:$0xff]
      %v1062 = vld [vmem:[%s274 + $0x6cc] sm:$0xff]
      %v1063 = vld [vmem:[%s274 + $0x6d4] sm:$0xff]
      %v1064 = vld [vmem:[%s274 + $0x6dc] sm:$0xf]
      %v1065 = vld [vmem:[%s274 + $0x6e0] sm:$0xff]
      %v1066 = vld [vmem:[%s274 + $0x6e8] sm:$0xff]
      %v1067 = vld [vmem:[%s274 + $0x6f0] sm:$0xff]
      %v1068 = vld [vmem:[%s274 + $0x6f8] sm:$0xff]
      %v1069 = vld [vmem:[%s274 + $0x700] sm:$0xff]
      %v1070 = vld [vmem:[%s274 + $0x708] sm:$0xf]
      %v1071 = vld [vmem:[%s274 + $0x70c] sm:$0xff]
      %v1072 = vld [vmem:[%s274 + $0x714] sm:$0xff]
      %v1073 = vld [vmem:[%s274 + $0x71c] sm:$0xff]
      %v1074 = vld [vmem:[%s274 + $0x724] sm:$0xff]
      %v1075 = vld [vmem:[%s274 + $0x72c] sm:$0xff]
      %v1076 = vld [vmem:[%s274 + $0x734] sm:$0xf]
      %v1077 = vld [vmem:[%s274 + $0x738] sm:$0xff]
      %v1078 = vld [vmem:[%s274 + $0x740] sm:$0xff]
      %v1079 = vld [vmem:[%s274 + $0x748] sm:$0xff]
      %v1080 = vld [vmem:[%s274 + $0x750] sm:$0xff]
      %v1081 = vld [vmem:[%s274 + $0x758] sm:$0xff]
      %v1082 = vld [vmem:[%s274 + $0x760] sm:$0xf]
      %v1083 = vld [vmem:[%s274 + $0x764] sm:$0xff]
      %v1084 = vld [vmem:[%s274 + $0x76c] sm:$0xff]
      %v1085 = vld [vmem:[%s274 + $0x774] sm:$0xff]
      %v1086 = vld [vmem:[%s274 + $0x77c] sm:$0xff]
      %v1087 = vld [vmem:[%s274 + $0x784] sm:$0xff]
      %v1088 = vld [vmem:[%s274 + $0x78c] sm:$0xf]
      %v1089 = vld [vmem:[%s274 + $0x790] sm:$0xff]
      %v1090 = vld [vmem:[%s274 + $0x798] sm:$0xff]
      %v1091 = vld [vmem:[%s274 + $0x7a0] sm:$0xff]
      %v1092 = vld [vmem:[%s274 + $0x7a8] sm:$0xff]
      %v1093 = vld [vmem:[%s274 + $0x7b0] sm:$0xff]
      %v1094 = vld [vmem:[%s274 + $0x7b8] sm:$0xf]
      %v1095 = vld [vmem:[%s274 + $0x7bc] sm:$0xff]
      %v1096 = vld [vmem:[%s274 + $0x7c4] sm:$0xff]
      %v1097 = vld [vmem:[%s274 + $0x7cc] sm:$0xff]
      %v1098 = vld [vmem:[%s274 + $0x7d4] sm:$0xff]
      %v1099 = vld [vmem:[%s274 + $0x7dc] sm:$0xff]
      %v1100 = vld [vmem:[%s274 + $0x7e4] sm:$0xf]
      %v1101 = vld [vmem:[%s274 + $0x7e8] sm:$0xff]
      %v1102 = vld [vmem:[%s274 + $0x7f0] sm:$0xff]
      %v1103 = vld [vmem:[%s274 + $0x7f8] sm:$0xff]
      %v1104 = vld [vmem:[%s274 + $0x800] sm:$0xff]
      %v1105 = vld [vmem:[%s274 + $0x808] sm:$0xff]
      %v1106 = vld [vmem:[%s274 + $0x810] sm:$0xf]
      %v1107 = vld [vmem:[%s274 + $0x814] sm:$0xff]
      %v1108 = vld [vmem:[%s274 + $0x81c] sm:$0xff]
      %v1109 = vld [vmem:[%s274 + $0x824] sm:$0xff]
      %v1110 = vld [vmem:[%s274 + $0x82c] sm:$0xff]
      %v1111 = vld [vmem:[%s274 + $0x834] sm:$0xff]
      %v1112 = vld [vmem:[%s274 + $0x83c] sm:$0xf]
      %v1113 = vld [vmem:[%s274 + $0x840] sm:$0xff]
      %v1114 = vld [vmem:[%s274 + $0x848] sm:$0xff]
      %v1115 = vld [vmem:[%s274 + $0x850] sm:$0xff]
      %v1116 = vld [vmem:[%s274 + $0x858] sm:$0xff]
      %v1117 = vld [vmem:[%s274 + $0x860] sm:$0xff]
      %v1118 = vld [vmem:[%s274 + $0x868] sm:$0xf]
      %v1119 = vld [vmem:[%s274 + $0x86c] sm:$0xff]
      %v1120 = vld [vmem:[%s274 + $0x874] sm:$0xff]
      %v1121 = vld [vmem:[%s274 + $0x87c] sm:$0xff]
      %v1122 = vld [vmem:[%s274 + $0x884] sm:$0xff]
      %v1123 = vld [vmem:[%s274 + $0x88c] sm:$0xff]
      %v1124 = vld [vmem:[%s274 + $0x894] sm:$0xf]
      %v1125 = vld [vmem:[%s274 + $0x898] sm:$0xff]
      %v1126 = vld [vmem:[%s274 + $0x8a0] sm:$0xff]
      %v1127 = vld [vmem:[%s274 + $0x8a8] sm:$0xff]
      %v1128 = vld [vmem:[%s274 + $0x8b0] sm:$0xff]
      %v1129 = vld [vmem:[%s274 + $0x8b8] sm:$0xff]
      %v1130 = vld [vmem:[%s274 + $0x8c0] sm:$0xf]
      %v1131 = vld [vmem:[%s274 + $0x8c4] sm:$0xff]
      %v1132 = vld [vmem:[%s274 + $0x8cc] sm:$0xff]
      %v1133 = vld [vmem:[%s274 + $0x8d4] sm:$0xff]
      %v1134 = vld [vmem:[%s274 + $0x8dc] sm:$0xff]
      %v1135 = vld [vmem:[%s274 + $0x8e4] sm:$0xff]
      %v1136 = vld [vmem:[%s274 + $0x8ec] sm:$0xf]
      %v1137 = vld [vmem:[%s274 + $0x8f0] sm:$0xff]
      %v1138 = vld [vmem:[%s274 + $0x8f8] sm:$0xff]
      %v1139 = vld [vmem:[%s274 + $0x900] sm:$0xff]
      %v1140 = vld [vmem:[%s274 + $0x908] sm:$0xff]
      %v1141 = vld [vmem:[%s274 + $0x910] sm:$0xff]
      %v1142 = vld [vmem:[%s274 + $0x918] sm:$0xf]
      %v1143 = vld [vmem:[%s274 + $0x91c] sm:$0xff]
      %v1144 = vld [vmem:[%s274 + $0x924] sm:$0xff]
      %v1145 = vld [vmem:[%s274 + $0x92c] sm:$0xff]
      %v1146 = vld [vmem:[%s274 + $0x934] sm:$0xff]
      %v1147 = vld [vmem:[%s274 + $0x93c] sm:$0xff]
      %v1148 = vld [vmem:[%s274 + $0x944] sm:$0xf]
      %v1149 = vld [vmem:[%s274 + $0x948] sm:$0xff]
      %v1150 = vld [vmem:[%s274 + $0x950] sm:$0xff]
      %v1151 = vld [vmem:[%s274 + $0x958] sm:$0xff]
      %v1152 = vld [vmem:[%s274 + $0x960] sm:$0xff]
      %v1153 = vld [vmem:[%s274 + $0x968] sm:$0xff]
      %v1154 = vld [vmem:[%s274 + $0x970] sm:$0xf]
      %v1155 = vld [vmem:[%s274 + $0x974] sm:$0xff]
      %v1156 = vld [vmem:[%s274 + $0x97c] sm:$0xff]
      %v1157 = vld [vmem:[%s274 + $0x984] sm:$0xff]
      %v1158 = vld [vmem:[%s274 + $0x98c] sm:$0xff]
      %v1159 = vld [vmem:[%s274 + $0x994] sm:$0xff]
      %v1160 = vld [vmem:[%s274 + $0x99c] sm:$0xf]
      %v1161 = vld [vmem:[%s274 + $0x9a0] sm:$0xff]
      %v1162 = vld [vmem:[%s274 + $0x9a8] sm:$0xff]
      %v1163 = vld [vmem:[%s274 + $0x9b0] sm:$0xff]
      %v1164 = vld [vmem:[%s274 + $0x9b8] sm:$0xff]
      %v1165 = vld [vmem:[%s274 + $0x9c0] sm:$0xff]
      %v1166 = vld [vmem:[%s274 + $0x9c8] sm:$0xf]
      %v1167 = vld [vmem:[%s274 + $0x9cc] sm:$0xff]
      %v1168 = vld [vmem:[%s274 + $0x9d4] sm:$0xff]
      %v1169 = vld [vmem:[%s274 + $0x9dc] sm:$0xff]
      %v1170 = vld [vmem:[%s274 + $0x9e4] sm:$0xff]
      %v1171 = vld [vmem:[%s274 + $0x9ec] sm:$0xff]
      %v1172 = vld [vmem:[%s274 + $0x9f4] sm:$0xf]
      %v1173 = vld [vmem:[%s274 + $0x9f8] sm:$0xff]
      %v1174 = vld [vmem:[%s274 + $0xa00] sm:$0xff]
      %v1175 = vld [vmem:[%s274 + $0xa08] sm:$0xff]
      %v1176 = vld [vmem:[%s274 + $0xa10] sm:$0xff]
      %v1177 = vld [vmem:[%s274 + $0xa18] sm:$0xff]
      %v1178 = vld [vmem:[%s274 + $0xa20] sm:$0xf]
      %v1179 = vld [vmem:[%s274 + $0xa24] sm:$0xff]
      %v1180 = vld [vmem:[%s274 + $0xa2c] sm:$0xff]
      %v1181 = vld [vmem:[%s274 + $0xa34] sm:$0xff]
      %v1182 = vld [vmem:[%s274 + $0xa3c] sm:$0xff]
      %v1183 = vld [vmem:[%s274 + $0xa44] sm:$0xff]
      %v1184 = vld [vmem:[%s274 + $0xa4c] sm:$0xf]
      %v1185 = vld [vmem:[%s274 + $0xa50] sm:$0xff]
      %v1186 = vld [vmem:[%s274 + $0xa58] sm:$0xff]
      %v1187 = vld [vmem:[%s274 + $0xa60] sm:$0xff]
      %v1188 = vld [vmem:[%s274 + $0xa68] sm:$0xff]
      %v1189 = vld [vmem:[%s274 + $0xa70] sm:$0xff]
      %v1190 = vld [vmem:[%s274 + $0xa78] sm:$0xf]
      %v1191 = vld [vmem:[%s274 + $0xa7c] sm:$0xff]
      %v1192 = vld [vmem:[%s274 + $0xa84] sm:$0xff]
      %v1193 = vld [vmem:[%s274 + $0xa8c] sm:$0xff]
      %v1194 = vld [vmem:[%s274 + $0xa94] sm:$0xff]
      %v1195 = vld [vmem:[%s274 + $0xa9c] sm:$0xff]
      %v1196 = vld [vmem:[%s274 + $0xaa4] sm:$0xf]
      %v1197 = vld [vmem:[%s274 + $0xaa8] sm:$0xff]
      %v1198 = vld [vmem:[%s274 + $0xab0] sm:$0xff]
      %v1199 = vld [vmem:[%s274 + $0xab8] sm:$0xff]
      %v1200 = vld [vmem:[%s274 + $0xac0] sm:$0xff]
      %v1201 = vld [vmem:[%s274 + $0xac8] sm:$0xff]
      %v1202 = vld [vmem:[%s274 + $0xad0] sm:$0xf]
      %v1203 = vld [vmem:[%s274 + $0xad4] sm:$0xff]
      %v1204 = vld [vmem:[%s274 + $0xadc] sm:$0xff]
      %v1205 = vld [vmem:[%s274 + $0xae4] sm:$0xff]
      %v1206 = vld [vmem:[%s274 + $0xaec] sm:$0xff]
      %v1207 = vld [vmem:[%s274 + $0xaf4] sm:$0xff]
      %v1208 = vld [vmem:[%s274 + $0xafc] sm:$0xf]
      %v1209 = vld [vmem:[%s274 + $0xb00] sm:$0xff]
      %v1210 = vld [vmem:[%s274 + $0xb08] sm:$0xff]
      %v1211 = vld [vmem:[%s274 + $0xb10] sm:$0xff]
      %v1212 = vld [vmem:[%s274 + $0xb18] sm:$0xff]
      %v1213 = vld [vmem:[%s274 + $0xb20] sm:$0xff]
      %v1214 = vld [vmem:[%s274 + $0xb28] sm:$0xf]
      %v1215 = vld [vmem:[%s274 + $0xb2c] sm:$0xff]
      %v1216 = vld [vmem:[%s274 + $0xb34] sm:$0xff]
      %v1217 = vld [vmem:[%s274 + $0xb3c] sm:$0xff]
      %v1218 = vld [vmem:[%s274 + $0xb44] sm:$0xff]
      %v1219 = vld [vmem:[%s274 + $0xb4c] sm:$0xff]
      %v1220 = vld [vmem:[%s274 + $0xb54] sm:$0xf]
      %v1221 = vld [vmem:[%s274 + $0xb58] sm:$0xff]
      %v1222 = vld [vmem:[%s274 + $0xb60] sm:$0xff]
      %v1223 = vld [vmem:[%s274 + $0xb68] sm:$0xff]
      %v1224 = vld [vmem:[%s274 + $0xb70] sm:$0xff]
      %v1225 = vld [vmem:[%s274 + $0xb78] sm:$0xff]
      %v1226 = vld [vmem:[%s274 + $0xb80] sm:$0xf]
      %v1227 = vld [vmem:[%s274 + $0xb84] sm:$0xff]
      %v1228 = vld [vmem:[%s274 + $0xb8c] sm:$0xff]
      %v1229 = vld [vmem:[%s274 + $0xb94] sm:$0xff]
      %v1230 = vld [vmem:[%s274 + $0xb9c] sm:$0xff]
      %v1231 = vld [vmem:[%s274 + $0xba4] sm:$0xff]
      %v1232 = vld [vmem:[%s274 + $0xbac] sm:$0xf]
      %v1233 = vld [vmem:[%s274 + $0xbb0] sm:$0xff]
      %v1234 = vld [vmem:[%s274 + $0xbb8] sm:$0xff]
      %v1235 = vld [vmem:[%s274 + $0xbc0] sm:$0xff]
      %v1236 = vld [vmem:[%s274 + $0xbc8] sm:$0xff]
      %v1237 = vld [vmem:[%s274 + $0xbd0] sm:$0xff]
      %v1238 = vld [vmem:[%s274 + $0xbd8] sm:$0xf]
      %v1239 = vld [vmem:[%s274 + $0xbdc] sm:$0xff]
      %v1240 = vld [vmem:[%s274 + $0xbe4] sm:$0xff]
      %v1241 = vld [vmem:[%s274 + $0xbec] sm:$0xff]
      %v1242 = vld [vmem:[%s274 + $0xbf4] sm:$0xff]
      %v1243 = vld [vmem:[%s274 + $0xbfc] sm:$0xff]
      %v1244 = vld [vmem:[%s274 + $0xc04] sm:$0xf]
      %v1245 = vld [vmem:[%s274 + $0xc08] sm:$0xff]
      %v1246 = vld [vmem:[%s274 + $0xc10] sm:$0xff]
      %v1247 = vld [vmem:[%s274 + $0xc18] sm:$0xff]
      %v1248 = vld [vmem:[%s274 + $0xc20] sm:$0xff]
      %v1249 = vld [vmem:[%s274 + $0xc28] sm:$0xff]
      %v1250 = vld [vmem:[%s274 + $0xc30] sm:$0xf]
      %v1251 = vld [vmem:[%s274 + $0xc34] sm:$0xff]
      %v1252 = vld [vmem:[%s274 + $0xc3c] sm:$0xff]
      %v1253 = vld [vmem:[%s274 + $0xc44] sm:$0xff]
      %v1254 = vld [vmem:[%s274 + $0xc4c] sm:$0xff]
      %v1255 = vld [vmem:[%s274 + $0xc54] sm:$0xff]
      %v1256 = vld [vmem:[%s274 + $0xc5c] sm:$0xf]
      %v1257 = vld [vmem:[%s274 + $0xc60] sm:$0xff]
      %v1258 = vld [vmem:[%s274 + $0xc68] sm:$0xff]
      %v1259 = vld [vmem:[%s274 + $0xc70] sm:$0xff]
      %v1260 = vld [vmem:[%s274 + $0xc78] sm:$0xff]
      %v1261 = vld [vmem:[%s274 + $0xc80] sm:$0xff]
      %v1262 = vld [vmem:[%s274 + $0xc88] sm:$0xf]
      %v1263 = vld [vmem:[%s274 + $0xc8c] sm:$0xff]
      %v1264 = vld [vmem:[%s274 + $0xc94] sm:$0xff]
      %v1265 = vld [vmem:[%s274 + $0xc9c] sm:$0xff]
      %v1266 = vld [vmem:[%s274 + $0xca4] sm:$0xff]
      %v1267 = vld [vmem:[%s274 + $0xcac] sm:$0xff]
      %v1268 = vld [vmem:[%s274 + $0xcb4] sm:$0xf]
      %v1269 = vld [vmem:[%s274 + $0xcb8] sm:$0xff]
      %v1270 = vld [vmem:[%s274 + $0xcc0] sm:$0xff]
      %v1271 = vld [vmem:[%s274 + $0xcc8] sm:$0xff]
      %v1272 = vld [vmem:[%s274 + $0xcd0] sm:$0xff]
      %v1273 = vld [vmem:[%s274 + $0xcd8] sm:$0xff]
      %v1274 = vld [vmem:[%s274 + $0xce0] sm:$0xf]
      %v1275 = vld [vmem:[%s274 + $0xce4] sm:$0xff]
      %v1276 = vld [vmem:[%s274 + $0xcec] sm:$0xff]
      %v1277 = vld [vmem:[%s274 + $0xcf4] sm:$0xff]
      %v1278 = vld [vmem:[%s274 + $0xcfc] sm:$0xff]
      %v1279 = vld [vmem:[%s274 + $0xd04] sm:$0xff]
      %v1280 = vld [vmem:[%s274 + $0xd0c] sm:$0xf]
      %v1281 = vld [vmem:[%s274 + $0xd10] sm:$0xff]
      %v1282 = vld [vmem:[%s274 + $0xd18] sm:$0xff]
      %v1283 = vld [vmem:[%s274 + $0xd20] sm:$0xff]
      %v1284 = vld [vmem:[%s274 + $0xd28] sm:$0xff]
      %v1285 = vld [vmem:[%s274 + $0xd30] sm:$0xff]
      %v1286 = vld [vmem:[%s274 + $0xd38] sm:$0xf]
      %v1287 = vld [vmem:[%s274 + $0xd3c] sm:$0xff]
      %v1288 = vld [vmem:[%s274 + $0xd44] sm:$0xff]
      %v1289 = vld [vmem:[%s274 + $0xd4c] sm:$0xff]
      %v1290 = vld [vmem:[%s274 + $0xd54] sm:$0xff]
      %v1291 = vld [vmem:[%s274 + $0xd5c] sm:$0xff]
      %v1292 = vld [vmem:[%s274 + $0xd64] sm:$0xf]
      %v1293 = vld [vmem:[%s274 + $0xd68] sm:$0xff]
      %v1294 = vld [vmem:[%s274 + $0xd70] sm:$0xff]
      %v1295 = vld [vmem:[%s274 + $0xd78] sm:$0xff]
      %v1296 = vld [vmem:[%s274 + $0xd80] sm:$0xff]
      %v1297 = vld [vmem:[%s274 + $0xd88] sm:$0xff]
      %v1298 = vld [vmem:[%s274 + $0xd90] sm:$0xf]
      %v1299 = vld [vmem:[%s274 + $0xd94] sm:$0xff]
      %v1300 = vld [vmem:[%s274 + $0xd9c] sm:$0xff]
      %v1301 = vld [vmem:[%s274 + $0xda4] sm:$0xff]
      %v1302 = vld [vmem:[%s274 + $0xdac] sm:$0xff]
      %v1303 = vld [vmem:[%s274 + $0xdb4] sm:$0xff]
      %v1304 = vld [vmem:[%s274 + $0xdbc] sm:$0xf]
      %v1305 = vld [vmem:[%s274 + $0xdc0] sm:$0xff]
      %v1306 = vld [vmem:[%s274 + $0xdc8] sm:$0xff]
      %v1307 = vld [vmem:[%s274 + $0xdd0] sm:$0xff]
      %v1308 = vld [vmem:[%s274 + $0xdd8] sm:$0xff]
      %v1309 = vld [vmem:[%s274 + $0xde0] sm:$0xff]
      %v1310 = vld [vmem:[%s274 + $0xde8] sm:$0xf]
      %v1311 = vld [vmem:[%s274 + $0xdec] sm:$0xff]
      %v1312 = vld [vmem:[%s274 + $0xdf4] sm:$0xff]
      %v1313 = vld [vmem:[%s274 + $0xdfc] sm:$0xff]
      %v1314 = vld [vmem:[%s274 + $0xe04] sm:$0xff]
      %v1315 = vld [vmem:[%s274 + $0xe0c] sm:$0xff]
      %v1316 = vld [vmem:[%s274 + $0xe14] sm:$0xf]
      %v1317 = vld [vmem:[%s274 + $0xe18] sm:$0xff]
      %v1318 = vld [vmem:[%s274 + $0xe20] sm:$0xff]
      %v1319 = vld [vmem:[%s274 + $0xe28] sm:$0xff]
      %v1320 = vld [vmem:[%s274 + $0xe30] sm:$0xff]
      %v1321 = vld [vmem:[%s274 + $0xe38] sm:$0xff]
      %v1322 = vld [vmem:[%s274 + $0xe40] sm:$0xf]
      %v1323 = vld [vmem:[%s274 + $0xe44] sm:$0xff]
      %v1324 = vld [vmem:[%s274 + $0xe4c] sm:$0xff]
      %v1325 = vld [vmem:[%s274 + $0xe54] sm:$0xff]
      %v1326 = vld [vmem:[%s274 + $0xe5c] sm:$0xff]
      %v1327 = vld [vmem:[%s274 + $0xe64] sm:$0xff]
      %v1328 = vld [vmem:[%s274 + $0xe6c] sm:$0xf]
      %v1329 = vld [vmem:[%s274 + $0xe70] sm:$0xff]
      %v1330 = vld [vmem:[%s274 + $0xe78] sm:$0xff]
      %v1331 = vld [vmem:[%s274 + $0xe80] sm:$0xff]
      %v1332 = vld [vmem:[%s274 + $0xe88] sm:$0xff]
      %v1333 = vld [vmem:[%s274 + $0xe90] sm:$0xff]
      %v1334 = vld [vmem:[%s274 + $0xe98] sm:$0xf]
      %v1335 = vld [vmem:[%s274 + $0xe9c] sm:$0xff]
      %v1336 = vld [vmem:[%s274 + $0xea4] sm:$0xff]
      %v1337 = vld [vmem:[%s274 + $0xeac] sm:$0xff]
      %v1338 = vld [vmem:[%s274 + $0xeb4] sm:$0xff]
      %v1339 = vld [vmem:[%s274 + $0xebc] sm:$0xff]
      %v1340 = vld [vmem:[%s274 + $0xec4] sm:$0xf]
      %v1341 = vld [vmem:[%s274 + $0xec8] sm:$0xff]
      %v1342 = vld [vmem:[%s274 + $0xed0] sm:$0xff]
      %v1343 = vld [vmem:[%s274 + $0xed8] sm:$0xff]
      %v1344 = vld [vmem:[%s274 + $0xee0] sm:$0xff]
      %v1345 = vld [vmem:[%s274 + $0xee8] sm:$0xff]
      %v1346 = vld [vmem:[%s274 + $0xef0] sm:$0xf]
      %v1869 = vunpack.c.l.b16 %v825
      %v1870 = vunpack.c.h.b16 %v825
      %v1871 = vunpack.c.l.b16 %v826
      %v1872 = vunpack.c.h.b16 %v826
      %v1873 = vunpack.c.l.b16 %v827
      %v1874 = vunpack.c.h.b16 %v827
      %v1875 = vunpack.c.l.b16 %v828
      %v1876 = vunpack.c.h.b16 %v828
      %v1877 = vunpack.c.l.b16 %v829
      %v1878 = vunpack.c.h.b16 %v829
      %v1879 = vunpack.c.l.b16 %v830
      %v1880 = vunpack.c.l.b16 %v831
      %v1881 = vunpack.c.h.b16 %v831
      %v1882 = vunpack.c.l.b16 %v832
      %v1883 = vunpack.c.h.b16 %v832
      %v1884 = vunpack.c.l.b16 %v833
      %v1885 = vunpack.c.h.b16 %v833
      %v1886 = vunpack.c.l.b16 %v834
      %v1887 = vunpack.c.h.b16 %v834
      %v1888 = vunpack.c.l.b16 %v835
      %v1889 = vunpack.c.h.b16 %v835
      %v1890 = vunpack.c.l.b16 %v836
      %v1891 = vunpack.c.l.b16 %v837
      %v1892 = vunpack.c.h.b16 %v837
      %v1893 = vunpack.c.l.b16 %v838
      %v1894 = vunpack.c.h.b16 %v838
      %v1895 = vunpack.c.l.b16 %v839
      %v1896 = vunpack.c.h.b16 %v839
      %v1897 = vunpack.c.l.b16 %v840
      %v1898 = vunpack.c.h.b16 %v840
      %v1899 = vunpack.c.l.b16 %v841
      %v1900 = vunpack.c.h.b16 %v841
      %v1901 = vunpack.c.l.b16 %v842
      %v1902 = vunpack.c.l.b16 %v843
      %v1903 = vunpack.c.h.b16 %v843
      %v1904 = vunpack.c.l.b16 %v844
      %v1905 = vunpack.c.h.b16 %v844
      %v1906 = vunpack.c.l.b16 %v845
      %v1907 = vunpack.c.h.b16 %v845
      %v1908 = vunpack.c.l.b16 %v846
      %v1909 = vunpack.c.h.b16 %v846
      %v1910 = vunpack.c.l.b16 %v847
      %v1911 = vunpack.c.h.b16 %v847
      %v1912 = vunpack.c.l.b16 %v848
      %v1913 = vunpack.c.l.b16 %v849
      %v1914 = vunpack.c.h.b16 %v849
      %v1915 = vunpack.c.l.b16 %v850
      %v1916 = vunpack.c.h.b16 %v850
      %v1917 = vunpack.c.l.b16 %v851
      %v1918 = vunpack.c.h.b16 %v851
      %v1919 = vunpack.c.l.b16 %v852
      %v1920 = vunpack.c.h.b16 %v852
      %v1921 = vunpack.c.l.b16 %v853
      %v1922 = vunpack.c.h.b16 %v853
      %v1923 = vunpack.c.l.b16 %v854
      %v1924 = vunpack.c.l.b16 %v855
      %v1925 = vunpack.c.h.b16 %v855
      %v1926 = vunpack.c.l.b16 %v856
      %v1927 = vunpack.c.h.b16 %v856
      %v1928 = vunpack.c.l.b16 %v857
      %v1929 = vunpack.c.h.b16 %v857
      %v1930 = vunpack.c.l.b16 %v858
      %v1931 = vunpack.c.h.b16 %v858
      %v1932 = vunpack.c.l.b16 %v859
      %v1933 = vunpack.c.h.b16 %v859
      %v1934 = vunpack.c.l.b16 %v860
      %v1935 = vunpack.c.l.b16 %v861
      %v1936 = vunpack.c.h.b16 %v861
      %v1937 = vunpack.c.l.b16 %v862
      %v1938 = vunpack.c.h.b16 %v862
      %v1939 = vunpack.c.l.b16 %v863
      %v1940 = vunpack.c.h.b16 %v863
      %v1941 = vunpack.c.l.b16 %v864
      %v1942 = vunpack.c.h.b16 %v864
      %v1943 = vunpack.c.l.b16 %v865
      %v1944 = vunpack.c.h.b16 %v865
      %v1945 = vunpack.c.l.b16 %v866
      %v1946 = vunpack.c.l.b16 %v867
      %v1947 = vunpack.c.h.b16 %v867
      %v1948 = vunpack.c.l.b16 %v868
      %v1949 = vunpack.c.h.b16 %v868
      %v1950 = vunpack.c.l.b16 %v869
      %v1951 = vunpack.c.h.b16 %v869
      %v1952 = vunpack.c.l.b16 %v870
      %v1953 = vunpack.c.h.b16 %v870
      %v1954 = vunpack.c.l.b16 %v871
      %v1955 = vunpack.c.h.b16 %v871
      %v1956 = vunpack.c.l.b16 %v872
      %v1957 = vunpack.c.l.b16 %v873
      %v1958 = vunpack.c.h.b16 %v873
      %v1959 = vunpack.c.l.b16 %v874
      %v1960 = vunpack.c.h.b16 %v874
      %v1961 = vunpack.c.l.b16 %v875
      %v1962 = vunpack.c.h.b16 %v875
      %v1963 = vunpack.c.l.b16 %v876
      %v1964 = vunpack.c.h.b16 %v876
      %v1965 = vunpack.c.l.b16 %v877
      %v1966 = vunpack.c.h.b16 %v877
      %v1967 = vunpack.c.l.b16 %v878
      %v1968 = vunpack.c.l.b16 %v879
      %v1969 = vunpack.c.h.b16 %v879
      %v1970 = vunpack.c.l.b16 %v880
      %v1971 = vunpack.c.h.b16 %v880
      %v1972 = vunpack.c.l.b16 %v881
      %v1973 = vunpack.c.h.b16 %v881
      %v1974 = vunpack.c.l.b16 %v882
      %v1975 = vunpack.c.h.b16 %v882
      %v1976 = vunpack.c.l.b16 %v883
      %v1977 = vunpack.c.h.b16 %v883
      %v1978 = vunpack.c.l.b16 %v884
      %v1979 = vunpack.c.l.b16 %v885
      %v1980 = vunpack.c.h.b16 %v885
      %v1981 = vunpack.c.l.b16 %v886
      %v1982 = vunpack.c.h.b16 %v886
      %v1983 = vunpack.c.l.b16 %v887
      %v1984 = vunpack.c.h.b16 %v887
      %v1985 = vunpack.c.l.b16 %v888
      %v1986 = vunpack.c.h.b16 %v888
      %v1987 = vunpack.c.l.b16 %v889
      %v1988 = vunpack.c.h.b16 %v889
      %v1989 = vunpack.c.l.b16 %v890
      %v1990 = vunpack.c.l.b16 %v891
      %v1991 = vunpack.c.h.b16 %v891
      %v1992 = vunpack.c.l.b16 %v892
      %v1993 = vunpack.c.h.b16 %v892
      %v1994 = vunpack.c.l.b16 %v893
      %v1995 = vunpack.c.h.b16 %v893
      %v1996 = vunpack.c.l.b16 %v894
      %v1997 = vunpack.c.h.b16 %v894
      %v1998 = vunpack.c.l.b16 %v895
      %v1999 = vunpack.c.h.b16 %v895
      %v2000 = vunpack.c.l.b16 %v896
      %v2001 = vunpack.c.l.b16 %v897
      %v2002 = vunpack.c.h.b16 %v897
      %v2003 = vunpack.c.l.b16 %v898
      %v2004 = vunpack.c.h.b16 %v898
      %v2005 = vunpack.c.l.b16 %v899
      %v2006 = vunpack.c.h.b16 %v899
      %v2007 = vunpack.c.l.b16 %v900
      %v2008 = vunpack.c.h.b16 %v900
      %v2009 = vunpack.c.l.b16 %v901
      %v2010 = vunpack.c.h.b16 %v901
      %v2011 = vunpack.c.l.b16 %v902
      %v2012 = vunpack.c.l.b16 %v903
      %v2013 = vunpack.c.h.b16 %v903
      %v2014 = vunpack.c.l.b16 %v904
      %v2015 = vunpack.c.h.b16 %v904
      %v2016 = vunpack.c.l.b16 %v905
      %v2017 = vunpack.c.h.b16 %v905
      %v2018 = vunpack.c.l.b16 %v906
      %v2019 = vunpack.c.h.b16 %v906
      %v2020 = vunpack.c.l.b16 %v907
      %v2021 = vunpack.c.h.b16 %v907
      %v2022 = vunpack.c.l.b16 %v908
      %v2023 = vunpack.c.l.b16 %v909
      %v2024 = vunpack.c.h.b16 %v909
      %v2025 = vunpack.c.l.b16 %v910
      %v2026 = vunpack.c.h.b16 %v910
      %v2027 = vunpack.c.l.b16 %v911
      %v2028 = vunpack.c.h.b16 %v911
      %v2029 = vunpack.c.l.b16 %v912
      %v2030 = vunpack.c.h.b16 %v912
      %v2031 = vunpack.c.l.b16 %v913
      %v2032 = vunpack.c.h.b16 %v913
      %v2033 = vunpack.c.l.b16 %v914
      %v2034 = vunpack.c.l.b16 %v915
      %v2035 = vunpack.c.h.b16 %v915
      %v2036 = vunpack.c.l.b16 %v916
      %v2037 = vunpack.c.h.b16 %v916
      %v2038 = vunpack.c.l.b16 %v917
      %v2039 = vunpack.c.h.b16 %v917
      %v2040 = vunpack.c.l.b16 %v918
      %v2041 = vunpack.c.h.b16 %v918
      %v2042 = vunpack.c.l.b16 %v919
      %v2043 = vunpack.c.h.b16 %v919
      %v2044 = vunpack.c.l.b16 %v920
      %v2045 = vunpack.c.l.b16 %v921
      %v2046 = vunpack.c.h.b16 %v921
      %v2047 = vunpack.c.l.b16 %v922
      %v2048 = vunpack.c.h.b16 %v922
      %v2049 = vunpack.c.l.b16 %v923
      %v2050 = vunpack.c.h.b16 %v923
      %v2051 = vunpack.c.l.b16 %v924
      %v2052 = vunpack.c.h.b16 %v924
      %v2053 = vunpack.c.l.b16 %v925
      %v2054 = vunpack.c.h.b16 %v925
      %v2055 = vunpack.c.l.b16 %v926
      %v2056 = vunpack.c.l.b16 %v927
      %v2057 = vunpack.c.h.b16 %v927
      %v2058 = vunpack.c.l.b16 %v928
      %v2059 = vunpack.c.h.b16 %v928
      %v2060 = vunpack.c.l.b16 %v929
      %v2061 = vunpack.c.h.b16 %v929
      %v2062 = vunpack.c.l.b16 %v930
      %v2063 = vunpack.c.h.b16 %v930
      %v2064 = vunpack.c.l.b16 %v931
      %v2065 = vunpack.c.h.b16 %v931
      %v2066 = vunpack.c.l.b16 %v932
      %v2067 = vunpack.c.l.b16 %v933
      %v2068 = vunpack.c.h.b16 %v933
      %v2069 = vunpack.c.l.b16 %v934
      %v2070 = vunpack.c.h.b16 %v934
      %v2071 = vunpack.c.l.b16 %v935
      %v2072 = vunpack.c.h.b16 %v935
      %v2073 = vunpack.c.l.b16 %v936
      %v2074 = vunpack.c.h.b16 %v936
      %v2075 = vunpack.c.l.b16 %v937
      %v2076 = vunpack.c.h.b16 %v937
      %v2077 = vunpack.c.l.b16 %v938
      %v2078 = vunpack.c.l.b16 %v939
      %v2079 = vunpack.c.h.b16 %v939
      %v2080 = vunpack.c.l.b16 %v940
      %v2081 = vunpack.c.h.b16 %v940
      %v2082 = vunpack.c.l.b16 %v941
      %v2083 = vunpack.c.h.b16 %v941
      %v2084 = vunpack.c.l.b16 %v942
      %v2085 = vunpack.c.h.b16 %v942
      %v2086 = vunpack.c.l.b16 %v943
      %v2087 = vunpack.c.h.b16 %v943
      %v2088 = vunpack.c.l.b16 %v944
      %v2089 = vunpack.c.l.b16 %v945
      %v2090 = vunpack.c.h.b16 %v945
      %v2091 = vunpack.c.l.b16 %v946
      %v2092 = vunpack.c.h.b16 %v946
      %v2093 = vunpack.c.l.b16 %v947
      %v2094 = vunpack.c.h.b16 %v947
      %v2095 = vunpack.c.l.b16 %v948
      %v2096 = vunpack.c.h.b16 %v948
      %v2097 = vunpack.c.l.b16 %v949
      %v2098 = vunpack.c.h.b16 %v949
      %v2099 = vunpack.c.l.b16 %v950
      %v2100 = vunpack.c.l.b16 %v951
      %v2101 = vunpack.c.h.b16 %v951
      %v2102 = vunpack.c.l.b16 %v952
      %v2103 = vunpack.c.h.b16 %v952
      %v2104 = vunpack.c.l.b16 %v953
      %v2105 = vunpack.c.h.b16 %v953
      %v2106 = vunpack.c.l.b16 %v954
      %v2107 = vunpack.c.h.b16 %v954
      %v2108 = vunpack.c.l.b16 %v955
      %v2109 = vunpack.c.h.b16 %v955
      %v2110 = vunpack.c.l.b16 %v956
      %v2111 = vunpack.c.l.b16 %v957
      %v2112 = vunpack.c.h.b16 %v957
      %v2113 = vunpack.c.l.b16 %v958
      %v2114 = vunpack.c.h.b16 %v958
      %v2115 = vunpack.c.l.b16 %v959
      %v2116 = vunpack.c.h.b16 %v959
      %v2117 = vunpack.c.l.b16 %v960
      %v2118 = vunpack.c.h.b16 %v960
      %v2119 = vunpack.c.l.b16 %v961
      %v2120 = vunpack.c.h.b16 %v961
      %v2121 = vunpack.c.l.b16 %v962
      %v2122 = vunpack.c.l.b16 %v963
      %v2123 = vunpack.c.h.b16 %v963
      %v2124 = vunpack.c.l.b16 %v964
      %v2125 = vunpack.c.h.b16 %v964
      %v2126 = vunpack.c.l.b16 %v965
      %v2127 = vunpack.c.h.b16 %v965
      %v2128 = vunpack.c.l.b16 %v966
      %v2129 = vunpack.c.h.b16 %v966
      %v2130 = vunpack.c.l.b16 %v967
      %v2131 = vunpack.c.h.b16 %v967
      %v2132 = vunpack.c.l.b16 %v968
      %v2133 = vunpack.c.l.b16 %v969
      %v2134 = vunpack.c.h.b16 %v969
      %v2135 = vunpack.c.l.b16 %v970
      %v2136 = vunpack.c.h.b16 %v970
      %v2137 = vunpack.c.l.b16 %v971
      %v2138 = vunpack.c.h.b16 %v971
      %v2139 = vunpack.c.l.b16 %v972
      %v2140 = vunpack.c.h.b16 %v972
      %v2141 = vunpack.c.l.b16 %v973
      %v2142 = vunpack.c.h.b16 %v973
      %v2143 = vunpack.c.l.b16 %v974
      %v2144 = vunpack.c.l.b16 %v975
      %v2145 = vunpack.c.h.b16 %v975
      %v2146 = vunpack.c.l.b16 %v976
      %v2147 = vunpack.c.h.b16 %v976
      %v2148 = vunpack.c.l.b16 %v977
      %v2149 = vunpack.c.h.b16 %v977
      %v2150 = vunpack.c.l.b16 %v978
      %v2151 = vunpack.c.h.b16 %v978
      %v2152 = vunpack.c.l.b16 %v979
      %v2153 = vunpack.c.h.b16 %v979
      %v2154 = vunpack.c.l.b16 %v980
      %v2155 = vunpack.c.l.b16 %v981
      %v2156 = vunpack.c.h.b16 %v981
      %v2157 = vunpack.c.l.b16 %v982
      %v2158 = vunpack.c.h.b16 %v982
      %v2159 = vunpack.c.l.b16 %v983
      %v2160 = vunpack.c.h.b16 %v983
      %v2161 = vunpack.c.l.b16 %v984
      %v2162 = vunpack.c.h.b16 %v984
      %v2163 = vunpack.c.l.b16 %v985
      %v2164 = vunpack.c.h.b16 %v985
      %v2165 = vunpack.c.l.b16 %v986
      %v2166 = vunpack.c.l.b16 %v987
      %v2167 = vunpack.c.h.b16 %v987
      %v2168 = vunpack.c.l.b16 %v988
      %v2169 = vunpack.c.h.b16 %v988
      %v2170 = vunpack.c.l.b16 %v989
      %v2171 = vunpack.c.h.b16 %v989
      %v2172 = vunpack.c.l.b16 %v990
      %v2173 = vunpack.c.h.b16 %v990
      %v2174 = vunpack.c.l.b16 %v991
      %v2175 = vunpack.c.h.b16 %v991
      %v2176 = vunpack.c.l.b16 %v992
      %v2177 = vunpack.c.l.b16 %v993
      %v2178 = vunpack.c.h.b16 %v993
      %v2179 = vunpack.c.l.b16 %v994
      %v2180 = vunpack.c.h.b16 %v994
      %v2181 = vunpack.c.l.b16 %v995
      %v2182 = vunpack.c.h.b16 %v995
      %v2183 = vunpack.c.l.b16 %v996
      %v2184 = vunpack.c.h.b16 %v996
      %v2185 = vunpack.c.l.b16 %v997
      %v2186 = vunpack.c.h.b16 %v997
      %v2187 = vunpack.c.l.b16 %v998
      %v2188 = vunpack.c.l.b16 %v999
      %v2189 = vunpack.c.h.b16 %v999
      %v2190 = vunpack.c.l.b16 %v1000
      %v2191 = vunpack.c.h.b16 %v1000
      %v2192 = vunpack.c.l.b16 %v1001
      %v2193 = vunpack.c.h.b16 %v1001
      %v2194 = vunpack.c.l.b16 %v1002
      %v2195 = vunpack.c.h.b16 %v1002
      %v2196 = vunpack.c.l.b16 %v1003
      %v2197 = vunpack.c.h.b16 %v1003
      %v2198 = vunpack.c.l.b16 %v1004
      %v2199 = vunpack.c.l.b16 %v1005
      %v2200 = vunpack.c.h.b16 %v1005
      %v2201 = vunpack.c.l.b16 %v1006
      %v2202 = vunpack.c.h.b16 %v1006
      %v2203 = vunpack.c.l.b16 %v1007
      %v2204 = vunpack.c.h.b16 %v1007
      %v2205 = vunpack.c.l.b16 %v1008
      %v2206 = vunpack.c.h.b16 %v1008
      %v2207 = vunpack.c.l.b16 %v1009
      %v2208 = vunpack.c.h.b16 %v1009
      %v2209 = vunpack.c.l.b16 %v1010
      %v2210 = vunpack.c.l.b16 %v1011
      %v2211 = vunpack.c.h.b16 %v1011
      %v2212 = vunpack.c.l.b16 %v1012
      %v2213 = vunpack.c.h.b16 %v1012
      %v2214 = vunpack.c.l.b16 %v1013
      %v2215 = vunpack.c.h.b16 %v1013
      %v2216 = vunpack.c.l.b16 %v1014
      %v2217 = vunpack.c.h.b16 %v1014
      %v2218 = vunpack.c.l.b16 %v1015
      %v2219 = vunpack.c.h.b16 %v1015
      %v2220 = vunpack.c.l.b16 %v1016
      %v2221 = vunpack.c.l.b16 %v1017
      %v2222 = vunpack.c.h.b16 %v1017
      %v2223 = vunpack.c.l.b16 %v1018
      %v2224 = vunpack.c.h.b16 %v1018
      %v2225 = vunpack.c.l.b16 %v1019
      %v2226 = vunpack.c.h.b16 %v1019
      %v2227 = vunpack.c.l.b16 %v1020
      %v2228 = vunpack.c.h.b16 %v1020
      %v2229 = vunpack.c.l.b16 %v1021
      %v2230 = vunpack.c.h.b16 %v1021
      %v2231 = vunpack.c.l.b16 %v1022
      %v2232 = vunpack.c.l.b16 %v1023
      %v2233 = vunpack.c.h.b16 %v1023
      %v2234 = vunpack.c.l.b16 %v1024
      %v2235 = vunpack.c.h.b16 %v1024
      %v2236 = vunpack.c.l.b16 %v1025
      %v2237 = vunpack.c.h.b16 %v1025
      %v2238 = vunpack.c.l.b16 %v1026
      %v2239 = vunpack.c.h.b16 %v1026
      %v2240 = vunpack.c.l.b16 %v1027
      %v2241 = vunpack.c.h.b16 %v1027
      %v2242 = vunpack.c.l.b16 %v1028
      %v2243 = vunpack.c.l.b16 %v1029
      %v2244 = vunpack.c.h.b16 %v1029
      %v2245 = vunpack.c.l.b16 %v1030
      %v2246 = vunpack.c.h.b16 %v1030
      %v2247 = vunpack.c.l.b16 %v1031
      %v2248 = vunpack.c.h.b16 %v1031
      %v2249 = vunpack.c.l.b16 %v1032
      %v2250 = vunpack.c.h.b16 %v1032
      %v2251 = vunpack.c.l.b16 %v1033
      %v2252 = vunpack.c.h.b16 %v1033
      %v2253 = vunpack.c.l.b16 %v1034
      %v2254 = vunpack.c.l.b16 %v1035
      %v2255 = vunpack.c.h.b16 %v1035
      %v2256 = vunpack.c.l.b16 %v1036
      %v2257 = vunpack.c.h.b16 %v1036
      %v2258 = vunpack.c.l.b16 %v1037
      %v2259 = vunpack.c.h.b16 %v1037
      %v2260 = vunpack.c.l.b16 %v1038
      %v2261 = vunpack.c.h.b16 %v1038
      %v2262 = vunpack.c.l.b16 %v1039
      %v2263 = vunpack.c.h.b16 %v1039
      %v2264 = vunpack.c.l.b16 %v1040
      %v2265 = vunpack.c.l.b16 %v1041
      %v2266 = vunpack.c.h.b16 %v1041
      %v2267 = vunpack.c.l.b16 %v1042
      %v2268 = vunpack.c.h.b16 %v1042
      %v2269 = vunpack.c.l.b16 %v1043
      %v2270 = vunpack.c.h.b16 %v1043
      %v2271 = vunpack.c.l.b16 %v1044
      %v2272 = vunpack.c.h.b16 %v1044
      %v2273 = vunpack.c.l.b16 %v1045
      %v2274 = vunpack.c.h.b16 %v1045
      %v2275 = vunpack.c.l.b16 %v1046
      %v2276 = vunpack.c.l.b16 %v1047
      %v2277 = vunpack.c.h.b16 %v1047
      %v2278 = vunpack.c.l.b16 %v1048
      %v2279 = vunpack.c.h.b16 %v1048
      %v2280 = vunpack.c.l.b16 %v1049
      %v2281 = vunpack.c.h.b16 %v1049
      %v2282 = vunpack.c.l.b16 %v1050
      %v2283 = vunpack.c.h.b16 %v1050
      %v2284 = vunpack.c.l.b16 %v1051
      %v2285 = vunpack.c.h.b16 %v1051
      %v2286 = vunpack.c.l.b16 %v1052
      %v2287 = vunpack.c.l.b16 %v1053
      %v2288 = vunpack.c.h.b16 %v1053
      %v2289 = vunpack.c.l.b16 %v1054
      %v2290 = vunpack.c.h.b16 %v1054
      %v2291 = vunpack.c.l.b16 %v1055
      %v2292 = vunpack.c.h.b16 %v1055
      %v2293 = vunpack.c.l.b16 %v1056
      %v2294 = vunpack.c.h.b16 %v1056
      %v2295 = vunpack.c.l.b16 %v1057
      %v2296 = vunpack.c.h.b16 %v1057
      %v2297 = vunpack.c.l.b16 %v1058
      %v2298 = vunpack.c.l.b16 %v1059
      %v2299 = vunpack.c.h.b16 %v1059
      %v2300 = vunpack.c.l.b16 %v1060
      %v2301 = vunpack.c.h.b16 %v1060
      %v2302 = vunpack.c.l.b16 %v1061
      %v2303 = vunpack.c.h.b16 %v1061
      %v2304 = vunpack.c.l.b16 %v1062
      %v2305 = vunpack.c.h.b16 %v1062
      %v2306 = vunpack.c.l.b16 %v1063
      %v2307 = vunpack.c.h.b16 %v1063
      %v2308 = vunpack.c.l.b16 %v1064
      %v2309 = vunpack.c.l.b16 %v1065
      %v2310 = vunpack.c.h.b16 %v1065
      %v2311 = vunpack.c.l.b16 %v1066
      %v2312 = vunpack.c.h.b16 %v1066
      %v2313 = vunpack.c.l.b16 %v1067
      %v2314 = vunpack.c.h.b16 %v1067
      %v2315 = vunpack.c.l.b16 %v1068
      %v2316 = vunpack.c.h.b16 %v1068
      %v2317 = vunpack.c.l.b16 %v1069
      %v2318 = vunpack.c.h.b16 %v1069
      %v2319 = vunpack.c.l.b16 %v1070
      %v2320 = vunpack.c.l.b16 %v1071
      %v2321 = vunpack.c.h.b16 %v1071
      %v2322 = vunpack.c.l.b16 %v1072
      %v2323 = vunpack.c.h.b16 %v1072
      %v2324 = vunpack.c.l.b16 %v1073
      %v2325 = vunpack.c.h.b16 %v1073
      %v2326 = vunpack.c.l.b16 %v1074
      %v2327 = vunpack.c.h.b16 %v1074
      %v2328 = vunpack.c.l.b16 %v1075
      %v2329 = vunpack.c.h.b16 %v1075
      %v2330 = vunpack.c.l.b16 %v1076
      %v2331 = vunpack.c.l.b16 %v1077
      %v2332 = vunpack.c.h.b16 %v1077
      %v2333 = vunpack.c.l.b16 %v1078
      %v2334 = vunpack.c.h.b16 %v1078
      %v2335 = vunpack.c.l.b16 %v1079
      %v2336 = vunpack.c.h.b16 %v1079
      %v2337 = vunpack.c.l.b16 %v1080
      %v2338 = vunpack.c.h.b16 %v1080
      %v2339 = vunpack.c.l.b16 %v1081
      %v2340 = vunpack.c.h.b16 %v1081
      %v2341 = vunpack.c.l.b16 %v1082
      %v2342 = vunpack.c.l.b16 %v1083
      %v2343 = vunpack.c.h.b16 %v1083
      %v2344 = vunpack.c.l.b16 %v1084
      %v2345 = vunpack.c.h.b16 %v1084
      %v2346 = vunpack.c.l.b16 %v1085
      %v2347 = vunpack.c.h.b16 %v1085
      %v2348 = vunpack.c.l.b16 %v1086
      %v2349 = vunpack.c.h.b16 %v1086
      %v2350 = vunpack.c.l.b16 %v1087
      %v2351 = vunpack.c.h.b16 %v1087
      %v2352 = vunpack.c.l.b16 %v1088
      %v2353 = vunpack.c.l.b16 %v1089
      %v2354 = vunpack.c.h.b16 %v1089
      %v2355 = vunpack.c.l.b16 %v1090
      %v2356 = vunpack.c.h.b16 %v1090
      %v2357 = vunpack.c.l.b16 %v1091
      %v2358 = vunpack.c.h.b16 %v1091
      %v2359 = vunpack.c.l.b16 %v1092
      %v2360 = vunpack.c.h.b16 %v1092
      %v2361 = vunpack.c.l.b16 %v1093
      %v2362 = vunpack.c.h.b16 %v1093
      %v2363 = vunpack.c.l.b16 %v1094
      %v2364 = vunpack.c.l.b16 %v1095
      %v2365 = vunpack.c.h.b16 %v1095
      %v2366 = vunpack.c.l.b16 %v1096
      %v2367 = vunpack.c.h.b16 %v1096
      %v2368 = vunpack.c.l.b16 %v1097
      %v2369 = vunpack.c.h.b16 %v1097
      %v2370 = vunpack.c.l.b16 %v1098
      %v2371 = vunpack.c.h.b16 %v1098
      %v2372 = vunpack.c.l.b16 %v1099
      %v2373 = vunpack.c.h.b16 %v1099
      %v2374 = vunpack.c.l.b16 %v1100
      %v2375 = vunpack.c.l.b16 %v1101
      %v2376 = vunpack.c.h.b16 %v1101
      %v2377 = vunpack.c.l.b16 %v1102
      %v2378 = vunpack.c.h.b16 %v1102
      %v2379 = vunpack.c.l.b16 %v1103
      %v2380 = vunpack.c.h.b16 %v1103
      %v2381 = vunpack.c.l.b16 %v1104
      %v2382 = vunpack.c.h.b16 %v1104
      %v2383 = vunpack.c.l.b16 %v1105
      %v2384 = vunpack.c.h.b16 %v1105
      %v2385 = vunpack.c.l.b16 %v1106
      %v2386 = vunpack.c.l.b16 %v1107
      %v2387 = vunpack.c.h.b16 %v1107
      %v2388 = vunpack.c.l.b16 %v1108
      %v2389 = vunpack.c.h.b16 %v1108
      %v2390 = vunpack.c.l.b16 %v1109
      %v2391 = vunpack.c.h.b16 %v1109
      %v2392 = vunpack.c.l.b16 %v1110
      %v2393 = vunpack.c.h.b16 %v1110
      %v2394 = vunpack.c.l.b16 %v1111
      %v2395 = vunpack.c.h.b16 %v1111
      %v2396 = vunpack.c.l.b16 %v1112
      %v2397 = vunpack.c.l.b16 %v1113
      %v2398 = vunpack.c.h.b16 %v1113
      %v2399 = vunpack.c.l.b16 %v1114
      %v2400 = vunpack.c.h.b16 %v1114
      %v2401 = vunpack.c.l.b16 %v1115
      %v2402 = vunpack.c.h.b16 %v1115
      %v2403 = vunpack.c.l.b16 %v1116
      %v2404 = vunpack.c.h.b16 %v1116
      %v2405 = vunpack.c.l.b16 %v1117
      %v2406 = vunpack.c.h.b16 %v1117
      %v2407 = vunpack.c.l.b16 %v1118
      %v2408 = vunpack.c.l.b16 %v1119
      %v2409 = vunpack.c.h.b16 %v1119
      %v2410 = vunpack.c.l.b16 %v1120
      %v2411 = vunpack.c.h.b16 %v1120
      %v2412 = vunpack.c.l.b16 %v1121
      %v2413 = vunpack.c.h.b16 %v1121
      %v2414 = vunpack.c.l.b16 %v1122
      %v2415 = vunpack.c.h.b16 %v1122
      %v2416 = vunpack.c.l.b16 %v1123
      %v2417 = vunpack.c.h.b16 %v1123
      %v2418 = vunpack.c.l.b16 %v1124
      %v2419 = vunpack.c.l.b16 %v1125
      %v2420 = vunpack.c.h.b16 %v1125
      %v2421 = vunpack.c.l.b16 %v1126
      %v2422 = vunpack.c.h.b16 %v1126
      %v2423 = vunpack.c.l.b16 %v1127
      %v2424 = vunpack.c.h.b16 %v1127
      %v2425 = vunpack.c.l.b16 %v1128
      %v2426 = vunpack.c.h.b16 %v1128
      %v2427 = vunpack.c.l.b16 %v1129
      %v2428 = vunpack.c.h.b16 %v1129
      %v2429 = vunpack.c.l.b16 %v1130
      %v2430 = vunpack.c.l.b16 %v1131
      %v2431 = vunpack.c.h.b16 %v1131
      %v2432 = vunpack.c.l.b16 %v1132
      %v2433 = vunpack.c.h.b16 %v1132
      %v2434 = vunpack.c.l.b16 %v1133
      %v2435 = vunpack.c.h.b16 %v1133
      %v2436 = vunpack.c.l.b16 %v1134
      %v2437 = vunpack.c.h.b16 %v1134
      %v2438 = vunpack.c.l.b16 %v1135
      %v2439 = vunpack.c.h.b16 %v1135
      %v2440 = vunpack.c.l.b16 %v1136
      %v2441 = vunpack.c.l.b16 %v1137
      %v2442 = vunpack.c.h.b16 %v1137
      %v2443 = vunpack.c.l.b16 %v1138
      %v2444 = vunpack.c.h.b16 %v1138
      %v2445 = vunpack.c.l.b16 %v1139
      %v2446 = vunpack.c.h.b16 %v1139
      %v2447 = vunpack.c.l.b16 %v1140
      %v2448 = vunpack.c.h.b16 %v1140
      %v2449 = vunpack.c.l.b16 %v1141
      %v2450 = vunpack.c.h.b16 %v1141
      %v2451 = vunpack.c.l.b16 %v1142
      %v2452 = vunpack.c.l.b16 %v1143
      %v2453 = vunpack.c.h.b16 %v1143
      %v2454 = vunpack.c.l.b16 %v1144
      %v2455 = vunpack.c.h.b16 %v1144
      %v2456 = vunpack.c.l.b16 %v1145
      %v2457 = vunpack.c.h.b16 %v1145
      %v2458 = vunpack.c.l.b16 %v1146
      %v2459 = vunpack.c.h.b16 %v1146
      %v2460 = vunpack.c.l.b16 %v1147
      %v2461 = vunpack.c.h.b16 %v1147
      %v2462 = vunpack.c.l.b16 %v1148
      %v2463 = vunpack.c.l.b16 %v1149
      %v2464 = vunpack.c.h.b16 %v1149
      %v2465 = vunpack.c.l.b16 %v1150
      %v2466 = vunpack.c.h.b16 %v1150
      %v2467 = vunpack.c.l.b16 %v1151
      %v2468 = vunpack.c.h.b16 %v1151
      %v2469 = vunpack.c.l.b16 %v1152
      %v2470 = vunpack.c.h.b16 %v1152
      %v2471 = vunpack.c.l.b16 %v1153
      %v2472 = vunpack.c.h.b16 %v1153
      %v2473 = vunpack.c.l.b16 %v1154
      %v2474 = vunpack.c.l.b16 %v1155
      %v2475 = vunpack.c.h.b16 %v1155
      %v2476 = vunpack.c.l.b16 %v1156
      %v2477 = vunpack.c.h.b16 %v1156
      %v2478 = vunpack.c.l.b16 %v1157
      %v2479 = vunpack.c.h.b16 %v1157
      %v2480 = vunpack.c.l.b16 %v1158
      %v2481 = vunpack.c.h.b16 %v1158
      %v2482 = vunpack.c.l.b16 %v1159
      %v2483 = vunpack.c.h.b16 %v1159
      %v2484 = vunpack.c.l.b16 %v1160
      %v2485 = vunpack.c.l.b16 %v1161
      %v2486 = vunpack.c.h.b16 %v1161
      %v2487 = vunpack.c.l.b16 %v1162
      %v2488 = vunpack.c.h.b16 %v1162
      %v2489 = vunpack.c.l.b16 %v1163
      %v2490 = vunpack.c.h.b16 %v1163
      %v2491 = vunpack.c.l.b16 %v1164
      %v2492 = vunpack.c.h.b16 %v1164
      %v2493 = vunpack.c.l.b16 %v1165
      %v2494 = vunpack.c.h.b16 %v1165
      %v2495 = vunpack.c.l.b16 %v1166
      %v2496 = vunpack.c.l.b16 %v1167
      %v2497 = vunpack.c.h.b16 %v1167
      %v2498 = vunpack.c.l.b16 %v1168
      %v2499 = vunpack.c.h.b16 %v1168
      %v2500 = vunpack.c.l.b16 %v1169
      %v2501 = vunpack.c.h.b16 %v1169
      %v2502 = vunpack.c.l.b16 %v1170
      %v2503 = vunpack.c.h.b16 %v1170
      %v2504 = vunpack.c.l.b16 %v1171
      %v2505 = vunpack.c.h.b16 %v1171
      %v2506 = vunpack.c.l.b16 %v1172
      %v2507 = vunpack.c.l.b16 %v1173
      %v2508 = vunpack.c.h.b16 %v1173
      %v2509 = vunpack.c.l.b16 %v1174
      %v2510 = vunpack.c.h.b16 %v1174
      %v2511 = vunpack.c.l.b16 %v1175
      %v2512 = vunpack.c.h.b16 %v1175
      %v2513 = vunpack.c.l.b16 %v1176
      %v2514 = vunpack.c.h.b16 %v1176
      %v2515 = vunpack.c.l.b16 %v1177
      %v2516 = vunpack.c.h.b16 %v1177
      %v2517 = vunpack.c.l.b16 %v1178
      %v2518 = vunpack.c.l.b16 %v1179
      %v2519 = vunpack.c.h.b16 %v1179
      %v2520 = vunpack.c.l.b16 %v1180
      %v2521 = vunpack.c.h.b16 %v1180
      %v2522 = vunpack.c.l.b16 %v1181
      %v2523 = vunpack.c.h.b16 %v1181
      %v2524 = vunpack.c.l.b16 %v1182
      %v2525 = vunpack.c.h.b16 %v1182
      %v2526 = vunpack.c.l.b16 %v1183
      %v2527 = vunpack.c.h.b16 %v1183
      %v2528 = vunpack.c.l.b16 %v1184
      %v2529 = vunpack.c.l.b16 %v1185
      %v2530 = vunpack.c.h.b16 %v1185
      %v2531 = vunpack.c.l.b16 %v1186
      %v2532 = vunpack.c.h.b16 %v1186
      %v2533 = vunpack.c.l.b16 %v1187
      %v2534 = vunpack.c.h.b16 %v1187
      %v2535 = vunpack.c.l.b16 %v1188
      %v2536 = vunpack.c.h.b16 %v1188
      %v2537 = vunpack.c.l.b16 %v1189
      %v2538 = vunpack.c.h.b16 %v1189
      %v2539 = vunpack.c.l.b16 %v1190
      %v2540 = vunpack.c.l.b16 %v1191
      %v2541 = vunpack.c.h.b16 %v1191
      %v2542 = vunpack.c.l.b16 %v1192
      %v2543 = vunpack.c.h.b16 %v1192
      %v2544 = vunpack.c.l.b16 %v1193
      %v2545 = vunpack.c.h.b16 %v1193
      %v2546 = vunpack.c.l.b16 %v1194
      %v2547 = vunpack.c.h.b16 %v1194
      %v2548 = vunpack.c.l.b16 %v1195
      %v2549 = vunpack.c.h.b16 %v1195
      %v2550 = vunpack.c.l.b16 %v1196
      %v2551 = vunpack.c.l.b16 %v1197
      %v2552 = vunpack.c.h.b16 %v1197
      %v2553 = vunpack.c.l.b16 %v1198
      %v2554 = vunpack.c.h.b16 %v1198
      %v2555 = vunpack.c.l.b16 %v1199
      %v2556 = vunpack.c.h.b16 %v1199
      %v2557 = vunpack.c.l.b16 %v1200
      %v2558 = vunpack.c.h.b16 %v1200
      %v2559 = vunpack.c.l.b16 %v1201
      %v2560 = vunpack.c.h.b16 %v1201
      %v2561 = vunpack.c.l.b16 %v1202
      %v2562 = vunpack.c.l.b16 %v1203
      %v2563 = vunpack.c.h.b16 %v1203
      %v2564 = vunpack.c.l.b16 %v1204
      %v2565 = vunpack.c.h.b16 %v1204
      %v2566 = vunpack.c.l.b16 %v1205
      %v2567 = vunpack.c.h.b16 %v1205
      %v2568 = vunpack.c.l.b16 %v1206
      %v2569 = vunpack.c.h.b16 %v1206
      %v2570 = vunpack.c.l.b16 %v1207
      %v2571 = vunpack.c.h.b16 %v1207
      %v2572 = vunpack.c.l.b16 %v1208
      %v2573 = vunpack.c.l.b16 %v1209
      %v2574 = vunpack.c.h.b16 %v1209
      %v2575 = vunpack.c.l.b16 %v1210
      %v2576 = vunpack.c.h.b16 %v1210
      %v2577 = vunpack.c.l.b16 %v1211
      %v2578 = vunpack.c.h.b16 %v1211
      %v2579 = vunpack.c.l.b16 %v1212
      %v2580 = vunpack.c.h.b16 %v1212
      %v2581 = vunpack.c.l.b16 %v1213
      %v2582 = vunpack.c.h.b16 %v1213
      %v2583 = vunpack.c.l.b16 %v1214
      %v2584 = vunpack.c.l.b16 %v1215
      %v2585 = vunpack.c.h.b16 %v1215
      %v2586 = vunpack.c.l.b16 %v1216
      %v2587 = vunpack.c.h.b16 %v1216
      %v2588 = vunpack.c.l.b16 %v1217
      %v2589 = vunpack.c.h.b16 %v1217
      %v2590 = vunpack.c.l.b16 %v1218
      %v2591 = vunpack.c.h.b16 %v1218
      %v2592 = vunpack.c.l.b16 %v1219
      %v2593 = vunpack.c.h.b16 %v1219
      %v2594 = vunpack.c.l.b16 %v1220
      %v2595 = vunpack.c.l.b16 %v1221
      %v2596 = vunpack.c.h.b16 %v1221
      %v2597 = vunpack.c.l.b16 %v1222
      %v2598 = vunpack.c.h.b16 %v1222
      %v2599 = vunpack.c.l.b16 %v1223
      %v2600 = vunpack.c.h.b16 %v1223
      %v2601 = vunpack.c.l.b16 %v1224
      %v2602 = vunpack.c.h.b16 %v1224
      %v2603 = vunpack.c.l.b16 %v1225
      %v2604 = vunpack.c.h.b16 %v1225
      %v2605 = vunpack.c.l.b16 %v1226
      %v2606 = vunpack.c.l.b16 %v1227
      %v2607 = vunpack.c.h.b16 %v1227
      %v2608 = vunpack.c.l.b16 %v1228
      %v2609 = vunpack.c.h.b16 %v1228
      %v2610 = vunpack.c.l.b16 %v1229
      %v2611 = vunpack.c.h.b16 %v1229
      %v2612 = vunpack.c.l.b16 %v1230
      %v2613 = vunpack.c.h.b16 %v1230
      %v2614 = vunpack.c.l.b16 %v1231
      %v2615 = vunpack.c.h.b16 %v1231
      %v2616 = vunpack.c.l.b16 %v1232
      %v2617 = vunpack.c.l.b16 %v1233
      %v2618 = vunpack.c.h.b16 %v1233
      %v2619 = vunpack.c.l.b16 %v1234
      %v2620 = vunpack.c.h.b16 %v1234
      %v2621 = vunpack.c.l.b16 %v1235
      %v2622 = vunpack.c.h.b16 %v1235
      %v2623 = vunpack.c.l.b16 %v1236
      %v2624 = vunpack.c.h.b16 %v1236
      %v2625 = vunpack.c.l.b16 %v1237
      %v2626 = vunpack.c.h.b16 %v1237
      %v2627 = vunpack.c.l.b16 %v1238
      %v2628 = vunpack.c.l.b16 %v1239
      %v2629 = vunpack.c.h.b16 %v1239
      %v2630 = vunpack.c.l.b16 %v1240
      %v2631 = vunpack.c.h.b16 %v1240
      %v2632 = vunpack.c.l.b16 %v1241
      %v2633 = vunpack.c.h.b16 %v1241
      %v2634 = vunpack.c.l.b16 %v1242
      %v2635 = vunpack.c.h.b16 %v1242
      %v2636 = vunpack.c.l.b16 %v1243
      %v2637 = vunpack.c.h.b16 %v1243
      %v2638 = vunpack.c.l.b16 %v1244
      %v2639 = vunpack.c.l.b16 %v1245
      %v2640 = vunpack.c.h.b16 %v1245
      %v2641 = vunpack.c.l.b16 %v1246
      %v2642 = vunpack.c.h.b16 %v1246
      %v2643 = vunpack.c.l.b16 %v1247
      %v2644 = vunpack.c.h.b16 %v1247
      %v2645 = vunpack.c.l.b16 %v1248
      %v2646 = vunpack.c.h.b16 %v1248
      %v2647 = vunpack.c.l.b16 %v1249
      %v2648 = vunpack.c.h.b16 %v1249
      %v2649 = vunpack.c.l.b16 %v1250
      %v2650 = vunpack.c.l.b16 %v1251
      %v2651 = vunpack.c.h.b16 %v1251
      %v2652 = vunpack.c.l.b16 %v1252
      %v2653 = vunpack.c.h.b16 %v1252
      %v2654 = vunpack.c.l.b16 %v1253
      %v2655 = vunpack.c.h.b16 %v1253
      %v2656 = vunpack.c.l.b16 %v1254
      %v2657 = vunpack.c.h.b16 %v1254
      %v2658 = vunpack.c.l.b16 %v1255
      %v2659 = vunpack.c.h.b16 %v1255
      %v2660 = vunpack.c.l.b16 %v1256
      %v2661 = vunpack.c.l.b16 %v1257
      %v2662 = vunpack.c.h.b16 %v1257
      %v2663 = vunpack.c.l.b16 %v1258
      %v2664 = vunpack.c.h.b16 %v1258
      %v2665 = vunpack.c.l.b16 %v1259
      %v2666 = vunpack.c.h.b16 %v1259
      %v2667 = vunpack.c.l.b16 %v1260
      %v2668 = vunpack.c.h.b16 %v1260
      %v2669 = vunpack.c.l.b16 %v1261
      %v2670 = vunpack.c.h.b16 %v1261
      %v2671 = vunpack.c.l.b16 %v1262
      %v2672 = vunpack.c.l.b16 %v1263
      %v2673 = vunpack.c.h.b16 %v1263
      %v2674 = vunpack.c.l.b16 %v1264
      %v2675 = vunpack.c.h.b16 %v1264
      %v2676 = vunpack.c.l.b16 %v1265
      %v2677 = vunpack.c.h.b16 %v1265
      %v2678 = vunpack.c.l.b16 %v1266
      %v2679 = vunpack.c.h.b16 %v1266
      %v2680 = vunpack.c.l.b16 %v1267
      %v2681 = vunpack.c.h.b16 %v1267
      %v2682 = vunpack.c.l.b16 %v1268
      %v2683 = vunpack.c.l.b16 %v1269
      %v2684 = vunpack.c.h.b16 %v1269
      %v2685 = vunpack.c.l.b16 %v1270
      %v2686 = vunpack.c.h.b16 %v1270
      %v2687 = vunpack.c.l.b16 %v1271
      %v2688 = vunpack.c.h.b16 %v1271
      %v2689 = vunpack.c.l.b16 %v1272
      %v2690 = vunpack.c.h.b16 %v1272
      %v2691 = vunpack.c.l.b16 %v1273
      %v2692 = vunpack.c.h.b16 %v1273
      %v2693 = vunpack.c.l.b16 %v1274
      %v2694 = vunpack.c.l.b16 %v1275
      %v2695 = vunpack.c.h.b16 %v1275
      %v2696 = vunpack.c.l.b16 %v1276
      %v2697 = vunpack.c.h.b16 %v1276
      %v2698 = vunpack.c.l.b16 %v1277
      %v2699 = vunpack.c.h.b16 %v1277
      %v2700 = vunpack.c.l.b16 %v1278
      %v2701 = vunpack.c.h.b16 %v1278
      %v2702 = vunpack.c.l.b16 %v1279
      %v2703 = vunpack.c.h.b16 %v1279
      %v2704 = vunpack.c.l.b16 %v1280
      %v2705 = vunpack.c.l.b16 %v1281
      %v2706 = vunpack.c.h.b16 %v1281
      %v2707 = vunpack.c.l.b16 %v1282
      %v2708 = vunpack.c.h.b16 %v1282
      %v2709 = vunpack.c.l.b16 %v1283
      %v2710 = vunpack.c.h.b16 %v1283
      %v2711 = vunpack.c.l.b16 %v1284
      %v2712 = vunpack.c.h.b16 %v1284
      %v2713 = vunpack.c.l.b16 %v1285
      %v2714 = vunpack.c.h.b16 %v1285
      %v2715 = vunpack.c.l.b16 %v1286
      %v2716 = vunpack.c.l.b16 %v1287
      %v2717 = vunpack.c.h.b16 %v1287
      %v2718 = vunpack.c.l.b16 %v1288
      %v2719 = vunpack.c.h.b16 %v1288
      %v2720 = vunpack.c.l.b16 %v1289
      %v2721 = vunpack.c.h.b16 %v1289
      %v2722 = vunpack.c.l.b16 %v1290
      %v2723 = vunpack.c.h.b16 %v1290
      %v2724 = vunpack.c.l.b16 %v1291
      %v2725 = vunpack.c.h.b16 %v1291
      %v2726 = vunpack.c.l.b16 %v1292
      %v2727 = vunpack.c.l.b16 %v1293
      %v2728 = vunpack.c.h.b16 %v1293
      %v2729 = vunpack.c.l.b16 %v1294
      %v2730 = vunpack.c.h.b16 %v1294
      %v2731 = vunpack.c.l.b16 %v1295
      %v2732 = vunpack.c.h.b16 %v1295
      %v2733 = vunpack.c.l.b16 %v1296
      %v2734 = vunpack.c.h.b16 %v1296
      %v2735 = vunpack.c.l.b16 %v1297
      %v2736 = vunpack.c.h.b16 %v1297
      %v2737 = vunpack.c.l.b16 %v1298
      %v2738 = vunpack.c.l.b16 %v1299
      %v2739 = vunpack.c.h.b16 %v1299
      %v2740 = vunpack.c.l.b16 %v1300
      %v2741 = vunpack.c.h.b16 %v1300
      %v2742 = vunpack.c.l.b16 %v1301
      %v2743 = vunpack.c.h.b16 %v1301
      %v2744 = vunpack.c.l.b16 %v1302
      %v2745 = vunpack.c.h.b16 %v1302
      %v2746 = vunpack.c.l.b16 %v1303
      %v2747 = vunpack.c.h.b16 %v1303
      %v2748 = vunpack.c.l.b16 %v1304
      %v2749 = vunpack.c.l.b16 %v1305
      %v2750 = vunpack.c.h.b16 %v1305
      %v2751 = vunpack.c.l.b16 %v1306
      %v2752 = vunpack.c.h.b16 %v1306
      %v2753 = vunpack.c.l.b16 %v1307
      %v2754 = vunpack.c.h.b16 %v1307
      %v2755 = vunpack.c.l.b16 %v1308
      %v2756 = vunpack.c.h.b16 %v1308
      %v2757 = vunpack.c.l.b16 %v1309
      %v2758 = vunpack.c.h.b16 %v1309
      %v2759 = vunpack.c.l.b16 %v1310
      %v2760 = vunpack.c.l.b16 %v1311
      %v2761 = vunpack.c.h.b16 %v1311
      %v2762 = vunpack.c.l.b16 %v1312
      %v2763 = vunpack.c.h.b16 %v1312
      %v2764 = vunpack.c.l.b16 %v1313
      %v2765 = vunpack.c.h.b16 %v1313
      %v2766 = vunpack.c.l.b16 %v1314
      %v2767 = vunpack.c.h.b16 %v1314
      %v2768 = vunpack.c.l.b16 %v1315
      %v2769 = vunpack.c.h.b16 %v1315
      %v2770 = vunpack.c.l.b16 %v1316
      %v2771 = vunpack.c.l.b16 %v1317
      %v2772 = vunpack.c.h.b16 %v1317
      %v2773 = vunpack.c.l.b16 %v1318
      %v2774 = vunpack.c.h.b16 %v1318
      %v2775 = vunpack.c.l.b16 %v1319
      %v2776 = vunpack.c.h.b16 %v1319
      %v2777 = vunpack.c.l.b16 %v1320
      %v2778 = vunpack.c.h.b16 %v1320
      %v2779 = vunpack.c.l.b16 %v1321
      %v2780 = vunpack.c.h.b16 %v1321
      %v2781 = vunpack.c.l.b16 %v1322
      %v2782 = vunpack.c.l.b16 %v1323
      %v2783 = vunpack.c.h.b16 %v1323
      %v2784 = vunpack.c.l.b16 %v1324
      %v2785 = vunpack.c.h.b16 %v1324
      %v2786 = vunpack.c.l.b16 %v1325
      %v2787 = vunpack.c.h.b16 %v1325
      %v2788 = vunpack.c.l.b16 %v1326
      %v2789 = vunpack.c.h.b16 %v1326
      %v2790 = vunpack.c.l.b16 %v1327
      %v2791 = vunpack.c.h.b16 %v1327
      %v2792 = vunpack.c.l.b16 %v1328
      %v2793 = vunpack.c.l.b16 %v1329
      %v2794 = vunpack.c.h.b16 %v1329
      %v2795 = vunpack.c.l.b16 %v1330
      %v2796 = vunpack.c.h.b16 %v1330
      %v2797 = vunpack.c.l.b16 %v1331
      %v2798 = vunpack.c.h.b16 %v1331
      %v2799 = vunpack.c.l.b16 %v1332
      %v2800 = vunpack.c.h.b16 %v1332
      %v2801 = vunpack.c.l.b16 %v1333
      %v2802 = vunpack.c.h.b16 %v1333
      %v2803 = vunpack.c.l.b16 %v1334
      %v2804 = vunpack.c.l.b16 %v1335
      %v2805 = vunpack.c.h.b16 %v1335
      %v2806 = vunpack.c.l.b16 %v1336
      %v2807 = vunpack.c.h.b16 %v1336
      %v2808 = vunpack.c.l.b16 %v1337
      %v2809 = vunpack.c.h.b16 %v1337
      %v2810 = vunpack.c.l.b16 %v1338
      %v2811 = vunpack.c.h.b16 %v1338
      %v2812 = vunpack.c.l.b16 %v1339
      %v2813 = vunpack.c.h.b16 %v1339
      %v2814 = vunpack.c.l.b16 %v1340
      %v2815 = vunpack.c.l.b16 %v1341
      %v2816 = vunpack.c.h.b16 %v1341
      %v2817 = vunpack.c.l.b16 %v1342
      %v2818 = vunpack.c.h.b16 %v1342
      %v2819 = vunpack.c.l.b16 %v1343
      %v2820 = vunpack.c.h.b16 %v1343
      %v2821 = vunpack.c.l.b16 %v1344
      %v2822 = vunpack.c.h.b16 %v1344
      %v2823 = vunpack.c.l.b16 %v1345
      %v2824 = vunpack.c.h.b16 %v1345
      %v2825 = vunpack.c.l.b16 %v1346
      %v2826 = vpack.c.b16 %v1880, %v1869
      %v2827 = vpack.c.b16 %v1881, %v1870
      %v2828 = vpack.c.b16 %v1882, %v1871
      %v2829 = vpack.c.b16 %v1883, %v1872
      %v2830 = vpack.c.b16 %v1884, %v1873
      %v2831 = vpack.c.b16 %v1885, %v1874
      %v2832 = vpack.c.b16 %v1886, %v1875
      %v2833 = vpack.c.b16 %v1887, %v1876
      %v2834 = vpack.c.b16 %v1888, %v1877
      %v2835 = vpack.c.b16 %v1889, %v1878
      %v2836 = vpack.c.b16 %v1890, %v1879
      %v2837 = vpack.c.b16 %v1902, %v1891
      %v2838 = vpack.c.b16 %v1903, %v1892
      %v2839 = vpack.c.b16 %v1904, %v1893
      %v2840 = vpack.c.b16 %v1905, %v1894
      %v2841 = vpack.c.b16 %v1906, %v1895
      %v2842 = vpack.c.b16 %v1907, %v1896
      %v2843 = vpack.c.b16 %v1908, %v1897
      %v2844 = vpack.c.b16 %v1909, %v1898
      %v2845 = vpack.c.b16 %v1910, %v1899
      %v2846 = vpack.c.b16 %v1911, %v1900
      %v2847 = vpack.c.b16 %v1912, %v1901
      %v2848 = vpack.c.b16 %v1924, %v1913
      %v2849 = vpack.c.b16 %v1925, %v1914
      %v2850 = vpack.c.b16 %v1926, %v1915
      %v2851 = vpack.c.b16 %v1927, %v1916
      %v2852 = vpack.c.b16 %v1928, %v1917
      %v2853 = vpack.c.b16 %v1929, %v1918
      %v2854 = vpack.c.b16 %v1930, %v1919
      %v2855 = vpack.c.b16 %v1931, %v1920
      %v2856 = vpack.c.b16 %v1932, %v1921
      %v2857 = vpack.c.b16 %v1933, %v1922
      %v2858 = vpack.c.b16 %v1934, %v1923
      %v2859 = vpack.c.b16 %v1946, %v1935
      %v2860 = vpack.c.b16 %v1947, %v1936
      %v2861 = vpack.c.b16 %v1948, %v1937
      %v2862 = vpack.c.b16 %v1949, %v1938
      %v2863 = vpack.c.b16 %v1950, %v1939
      %v2864 = vpack.c.b16 %v1951, %v1940
      %v2865 = vpack.c.b16 %v1952, %v1941
      %v2866 = vpack.c.b16 %v1953, %v1942
      %v2867 = vpack.c.b16 %v1954, %v1943
      %v2868 = vpack.c.b16 %v1955, %v1944
      %v2869 = vpack.c.b16 %v1956, %v1945
      %v2870 = vpack.c.b16 %v1968, %v1957
      %v2871 = vpack.c.b16 %v1969, %v1958
      %v2872 = vpack.c.b16 %v1970, %v1959
      %v2873 = vpack.c.b16 %v1971, %v1960
      %v2874 = vpack.c.b16 %v1972, %v1961
      %v2875 = vpack.c.b16 %v1973, %v1962
      %v2876 = vpack.c.b16 %v1974, %v1963
      %v2877 = vpack.c.b16 %v1975, %v1964
      %v2878 = vpack.c.b16 %v1976, %v1965
      %v2879 = vpack.c.b16 %v1977, %v1966
      %v2880 = vpack.c.b16 %v1978, %v1967
      %v2881 = vpack.c.b16 %v1990, %v1979
      %v2882 = vpack.c.b16 %v1991, %v1980
      %v2883 = vpack.c.b16 %v1992, %v1981
      %v2884 = vpack.c.b16 %v1993, %v1982
      %v2885 = vpack.c.b16 %v1994, %v1983
      %v2886 = vpack.c.b16 %v1995, %v1984
      %v2887 = vpack.c.b16 %v1996, %v1985
      %v2888 = vpack.c.b16 %v1997, %v1986
      %v2889 = vpack.c.b16 %v1998, %v1987
      %v2890 = vpack.c.b16 %v1999, %v1988
      %v2891 = vpack.c.b16 %v2000, %v1989
      %v2892 = vpack.c.b16 %v2012, %v2001
      %v2893 = vpack.c.b16 %v2013, %v2002
      %v2894 = vpack.c.b16 %v2014, %v2003
      %v2895 = vpack.c.b16 %v2015, %v2004
      %v2896 = vpack.c.b16 %v2016, %v2005
      %v2897 = vpack.c.b16 %v2017, %v2006
      %v2898 = vpack.c.b16 %v2018, %v2007
      %v2899 = vpack.c.b16 %v2019, %v2008
      %v2900 = vpack.c.b16 %v2020, %v2009
      %v2901 = vpack.c.b16 %v2021, %v2010
      %v2902 = vpack.c.b16 %v2022, %v2011
      %v2903 = vpack.c.b16 %v2034, %v2023
      %v2904 = vpack.c.b16 %v2035, %v2024
      %v2905 = vpack.c.b16 %v2036, %v2025
      %v2906 = vpack.c.b16 %v2037, %v2026
      %v2907 = vpack.c.b16 %v2038, %v2027
      %v2908 = vpack.c.b16 %v2039, %v2028
      %v2909 = vpack.c.b16 %v2040, %v2029
      %v2910 = vpack.c.b16 %v2041, %v2030
      %v2911 = vpack.c.b16 %v2042, %v2031
      %v2912 = vpack.c.b16 %v2043, %v2032
      %v2913 = vpack.c.b16 %v2044, %v2033
      %v2914 = vpack.c.b16 %v2056, %v2045
      %v2915 = vpack.c.b16 %v2057, %v2046
      %v2916 = vpack.c.b16 %v2058, %v2047
      %v2917 = vpack.c.b16 %v2059, %v2048
      %v2918 = vpack.c.b16 %v2060, %v2049
      %v2919 = vpack.c.b16 %v2061, %v2050
      %v2920 = vpack.c.b16 %v2062, %v2051
      %v2921 = vpack.c.b16 %v2063, %v2052
      %v2922 = vpack.c.b16 %v2064, %v2053
      %v2923 = vpack.c.b16 %v2065, %v2054
      %v2924 = vpack.c.b16 %v2066, %v2055
      %v2925 = vpack.c.b16 %v2078, %v2067
      %v2926 = vpack.c.b16 %v2079, %v2068
      %v2927 = vpack.c.b16 %v2080, %v2069
      %v2928 = vpack.c.b16 %v2081, %v2070
      %v2929 = vpack.c.b16 %v2082, %v2071
      %v2930 = vpack.c.b16 %v2083, %v2072
      %v2931 = vpack.c.b16 %v2084, %v2073
      %v2932 = vpack.c.b16 %v2085, %v2074
      %v2933 = vpack.c.b16 %v2086, %v2075
      %v2934 = vpack.c.b16 %v2087, %v2076
      %v2935 = vpack.c.b16 %v2088, %v2077
      %v2936 = vpack.c.b16 %v2100, %v2089
      %v2937 = vpack.c.b16 %v2101, %v2090
      %v2938 = vpack.c.b16 %v2102, %v2091
      %v2939 = vpack.c.b16 %v2103, %v2092
      %v2940 = vpack.c.b16 %v2104, %v2093
      %v2941 = vpack.c.b16 %v2105, %v2094
      %v2942 = vpack.c.b16 %v2106, %v2095
      %v2943 = vpack.c.b16 %v2107, %v2096
      %v2944 = vpack.c.b16 %v2108, %v2097
      %v2945 = vpack.c.b16 %v2109, %v2098
      %v2946 = vpack.c.b16 %v2110, %v2099
      %v2947 = vpack.c.b16 %v2122, %v2111
      %v2948 = vpack.c.b16 %v2123, %v2112
      %v2949 = vpack.c.b16 %v2124, %v2113
      %v2950 = vpack.c.b16 %v2125, %v2114
      %v2951 = vpack.c.b16 %v2126, %v2115
      %v2952 = vpack.c.b16 %v2127, %v2116
      %v2953 = vpack.c.b16 %v2128, %v2117
      %v2954 = vpack.c.b16 %v2129, %v2118
      %v2955 = vpack.c.b16 %v2130, %v2119
      %v2956 = vpack.c.b16 %v2131, %v2120
      %v2957 = vpack.c.b16 %v2132, %v2121
      %v2958 = vpack.c.b16 %v2144, %v2133
      %v2959 = vpack.c.b16 %v2145, %v2134
      %v2960 = vpack.c.b16 %v2146, %v2135
      %v2961 = vpack.c.b16 %v2147, %v2136
      %v2962 = vpack.c.b16 %v2148, %v2137
      %v2963 = vpack.c.b16 %v2149, %v2138
      %v2964 = vpack.c.b16 %v2150, %v2139
      %v2965 = vpack.c.b16 %v2151, %v2140
      %v2966 = vpack.c.b16 %v2152, %v2141
      %v2967 = vpack.c.b16 %v2153, %v2142
      %v2968 = vpack.c.b16 %v2154, %v2143
      %v2969 = vpack.c.b16 %v2166, %v2155
      %v2970 = vpack.c.b16 %v2167, %v2156
      %v2971 = vpack.c.b16 %v2168, %v2157
      %v2972 = vpack.c.b16 %v2169, %v2158
      %v2973 = vpack.c.b16 %v2170, %v2159
      %v2974 = vpack.c.b16 %v2171, %v2160
      %v2975 = vpack.c.b16 %v2172, %v2161
      %v2976 = vpack.c.b16 %v2173, %v2162
      %v2977 = vpack.c.b16 %v2174, %v2163
      %v2978 = vpack.c.b16 %v2175, %v2164
      %v2979 = vpack.c.b16 %v2176, %v2165
      %v2980 = vpack.c.b16 %v2188, %v2177
      %v2981 = vpack.c.b16 %v2189, %v2178
      %v2982 = vpack.c.b16 %v2190, %v2179
      %v2983 = vpack.c.b16 %v2191, %v2180
      %v2984 = vpack.c.b16 %v2192, %v2181
      %v2985 = vpack.c.b16 %v2193, %v2182
      %v2986 = vpack.c.b16 %v2194, %v2183
      %v2987 = vpack.c.b16 %v2195, %v2184
      %v2988 = vpack.c.b16 %v2196, %v2185
      %v2989 = vpack.c.b16 %v2197, %v2186
      %v2990 = vpack.c.b16 %v2198, %v2187
      %v2991 = vpack.c.b16 %v2210, %v2199
      %v2992 = vpack.c.b16 %v2211, %v2200
      %v2993 = vpack.c.b16 %v2212, %v2201
      %v2994 = vpack.c.b16 %v2213, %v2202
      %v2995 = vpack.c.b16 %v2214, %v2203
      %v2996 = vpack.c.b16 %v2215, %v2204
      %v2997 = vpack.c.b16 %v2216, %v2205
      %v2998 = vpack.c.b16 %v2217, %v2206
      %v2999 = vpack.c.b16 %v2218, %v2207
      %v3000 = vpack.c.b16 %v2219, %v2208
      %v3001 = vpack.c.b16 %v2220, %v2209
      %v3002 = vpack.c.b16 %v2232, %v2221
      %v3003 = vpack.c.b16 %v2233, %v2222
      %v3004 = vpack.c.b16 %v2234, %v2223
      %v3005 = vpack.c.b16 %v2235, %v2224
      %v3006 = vpack.c.b16 %v2236, %v2225
      %v3007 = vpack.c.b16 %v2237, %v2226
      %v3008 = vpack.c.b16 %v2238, %v2227
      %v3009 = vpack.c.b16 %v2239, %v2228
      %v3010 = vpack.c.b16 %v2240, %v2229
      %v3011 = vpack.c.b16 %v2241, %v2230
      %v3012 = vpack.c.b16 %v2242, %v2231
      %v3013 = vpack.c.b16 %v2254, %v2243
      %v3014 = vpack.c.b16 %v2255, %v2244
      %v3015 = vpack.c.b16 %v2256, %v2245
      %v3016 = vpack.c.b16 %v2257, %v2246
      %v3017 = vpack.c.b16 %v2258, %v2247
      %v3018 = vpack.c.b16 %v2259, %v2248
      %v3019 = vpack.c.b16 %v2260, %v2249
      %v3020 = vpack.c.b16 %v2261, %v2250
      %v3021 = vpack.c.b16 %v2262, %v2251
      %v3022 = vpack.c.b16 %v2263, %v2252
      %v3023 = vpack.c.b16 %v2264, %v2253
      %v3024 = vpack.c.b16 %v2276, %v2265
      %v3025 = vpack.c.b16 %v2277, %v2266
      %v3026 = vpack.c.b16 %v2278, %v2267
      %v3027 = vpack.c.b16 %v2279, %v2268
      %v3028 = vpack.c.b16 %v2280, %v2269
      %v3029 = vpack.c.b16 %v2281, %v2270
      %v3030 = vpack.c.b16 %v2282, %v2271
      %v3031 = vpack.c.b16 %v2283, %v2272
      %v3032 = vpack.c.b16 %v2284, %v2273
      %v3033 = vpack.c.b16 %v2285, %v2274
      %v3034 = vpack.c.b16 %v2286, %v2275
      %v3035 = vpack.c.b16 %v2298, %v2287
      %v3036 = vpack.c.b16 %v2299, %v2288
      %v3037 = vpack.c.b16 %v2300, %v2289
      %v3038 = vpack.c.b16 %v2301, %v2290
      %v3039 = vpack.c.b16 %v2302, %v2291
      %v3040 = vpack.c.b16 %v2303, %v2292
      %v3041 = vpack.c.b16 %v2304, %v2293
      %v3042 = vpack.c.b16 %v2305, %v2294
      %v3043 = vpack.c.b16 %v2306, %v2295
      %v3044 = vpack.c.b16 %v2307, %v2296
      %v3045 = vpack.c.b16 %v2308, %v2297
      %v3046 = vpack.c.b16 %v2320, %v2309
      %v3047 = vpack.c.b16 %v2321, %v2310
      %v3048 = vpack.c.b16 %v2322, %v2311
      %v3049 = vpack.c.b16 %v2323, %v2312
      %v3050 = vpack.c.b16 %v2324, %v2313
      %v3051 = vpack.c.b16 %v2325, %v2314
      %v3052 = vpack.c.b16 %v2326, %v2315
      %v3053 = vpack.c.b16 %v2327, %v2316
      %v3054 = vpack.c.b16 %v2328, %v2317
      %v3055 = vpack.c.b16 %v2329, %v2318
      %v3056 = vpack.c.b16 %v2330, %v2319
      %v3057 = vpack.c.b16 %v2342, %v2331
      %v3058 = vpack.c.b16 %v2343, %v2332
      %v3059 = vpack.c.b16 %v2344, %v2333
      %v3060 = vpack.c.b16 %v2345, %v2334
      %v3061 = vpack.c.b16 %v2346, %v2335
      %v3062 = vpack.c.b16 %v2347, %v2336
      %v3063 = vpack.c.b16 %v2348, %v2337
      %v3064 = vpack.c.b16 %v2349, %v2338
      %v3065 = vpack.c.b16 %v2350, %v2339
      %v3066 = vpack.c.b16 %v2351, %v2340
      %v3067 = vpack.c.b16 %v2352, %v2341
      %v3068 = vpack.c.b16 %v2364, %v2353
      %v3069 = vpack.c.b16 %v2365, %v2354
      %v3070 = vpack.c.b16 %v2366, %v2355
      %v3071 = vpack.c.b16 %v2367, %v2356
      %v3072 = vpack.c.b16 %v2368, %v2357
      %v3073 = vpack.c.b16 %v2369, %v2358
      %v3074 = vpack.c.b16 %v2370, %v2359
      %v3075 = vpack.c.b16 %v2371, %v2360
      %v3076 = vpack.c.b16 %v2372, %v2361
      %v3077 = vpack.c.b16 %v2373, %v2362
      %v3078 = vpack.c.b16 %v2374, %v2363
      %v3079 = vpack.c.b16 %v2386, %v2375
      %v3080 = vpack.c.b16 %v2387, %v2376
      %v3081 = vpack.c.b16 %v2388, %v2377
      %v3082 = vpack.c.b16 %v2389, %v2378
      %v3083 = vpack.c.b16 %v2390, %v2379
      %v3084 = vpack.c.b16 %v2391, %v2380
      %v3085 = vpack.c.b16 %v2392, %v2381
      %v3086 = vpack.c.b16 %v2393, %v2382
      %v3087 = vpack.c.b16 %v2394, %v2383
      %v3088 = vpack.c.b16 %v2395, %v2384
      %v3089 = vpack.c.b16 %v2396, %v2385
      %v3090 = vpack.c.b16 %v2408, %v2397
      %v3091 = vpack.c.b16 %v2409, %v2398
      %v3092 = vpack.c.b16 %v2410, %v2399
      %v3093 = vpack.c.b16 %v2411, %v2400
      %v3094 = vpack.c.b16 %v2412, %v2401
      %v3095 = vpack.c.b16 %v2413, %v2402
      %v3096 = vpack.c.b16 %v2414, %v2403
      %v3097 = vpack.c.b16 %v2415, %v2404
      %v3098 = vpack.c.b16 %v2416, %v2405
      %v3099 = vpack.c.b16 %v2417, %v2406
      %v3100 = vpack.c.b16 %v2418, %v2407
      %v3101 = vpack.c.b16 %v2430, %v2419
      %v3102 = vpack.c.b16 %v2431, %v2420
      %v3103 = vpack.c.b16 %v2432, %v2421
      %v3104 = vpack.c.b16 %v2433, %v2422
      %v3105 = vpack.c.b16 %v2434, %v2423
      %v3106 = vpack.c.b16 %v2435, %v2424
      %v3107 = vpack.c.b16 %v2436, %v2425
      %v3108 = vpack.c.b16 %v2437, %v2426
      %v3109 = vpack.c.b16 %v2438, %v2427
      %v3110 = vpack.c.b16 %v2439, %v2428
      %v3111 = vpack.c.b16 %v2440, %v2429
      %v3112 = vpack.c.b16 %v2452, %v2441
      %v3113 = vpack.c.b16 %v2453, %v2442
      %v3114 = vpack.c.b16 %v2454, %v2443
      %v3115 = vpack.c.b16 %v2455, %v2444
      %v3116 = vpack.c.b16 %v2456, %v2445
      %v3117 = vpack.c.b16 %v2457, %v2446
      %v3118 = vpack.c.b16 %v2458, %v2447
      %v3119 = vpack.c.b16 %v2459, %v2448
      %v3120 = vpack.c.b16 %v2460, %v2449
      %v3121 = vpack.c.b16 %v2461, %v2450
      %v3122 = vpack.c.b16 %v2462, %v2451
      %v3123 = vpack.c.b16 %v2474, %v2463
      %v3124 = vpack.c.b16 %v2475, %v2464
      %v3125 = vpack.c.b16 %v2476, %v2465
      %v3126 = vpack.c.b16 %v2477, %v2466
      %v3127 = vpack.c.b16 %v2478, %v2467
      %v3128 = vpack.c.b16 %v2479, %v2468
      %v3129 = vpack.c.b16 %v2480, %v2469
      %v3130 = vpack.c.b16 %v2481, %v2470
      %v3131 = vpack.c.b16 %v2482, %v2471
      %v3132 = vpack.c.b16 %v2483, %v2472
      %v3133 = vpack.c.b16 %v2484, %v2473
      %v3134 = vpack.c.b16 %v2496, %v2485
      %v3135 = vpack.c.b16 %v2497, %v2486
      %v3136 = vpack.c.b16 %v2498, %v2487
      %v3137 = vpack.c.b16 %v2499, %v2488
      %v3138 = vpack.c.b16 %v2500, %v2489
      %v3139 = vpack.c.b16 %v2501, %v2490
      %v3140 = vpack.c.b16 %v2502, %v2491
      %v3141 = vpack.c.b16 %v2503, %v2492
      %v3142 = vpack.c.b16 %v2504, %v2493
      %v3143 = vpack.c.b16 %v2505, %v2494
      %v3144 = vpack.c.b16 %v2506, %v2495
      %v3145 = vpack.c.b16 %v2518, %v2507
      %v3146 = vpack.c.b16 %v2519, %v2508
      %v3147 = vpack.c.b16 %v2520, %v2509
      %v3148 = vpack.c.b16 %v2521, %v2510
      %v3149 = vpack.c.b16 %v2522, %v2511
      %v3150 = vpack.c.b16 %v2523, %v2512
      %v3151 = vpack.c.b16 %v2524, %v2513
      %v3152 = vpack.c.b16 %v2525, %v2514
      %v3153 = vpack.c.b16 %v2526, %v2515
      %v3154 = vpack.c.b16 %v2527, %v2516
      %v3155 = vpack.c.b16 %v2528, %v2517
      %v3156 = vpack.c.b16 %v2540, %v2529
      %v3157 = vpack.c.b16 %v2541, %v2530
      %v3158 = vpack.c.b16 %v2542, %v2531
      %v3159 = vpack.c.b16 %v2543, %v2532
      %v3160 = vpack.c.b16 %v2544, %v2533
      %v3161 = vpack.c.b16 %v2545, %v2534
      %v3162 = vpack.c.b16 %v2546, %v2535
      %v3163 = vpack.c.b16 %v2547, %v2536
      %v3164 = vpack.c.b16 %v2548, %v2537
      %v3165 = vpack.c.b16 %v2549, %v2538
      %v3166 = vpack.c.b16 %v2550, %v2539
      %v3167 = vpack.c.b16 %v2562, %v2551
      %v3168 = vpack.c.b16 %v2563, %v2552
      %v3169 = vpack.c.b16 %v2564, %v2553
      %v3170 = vpack.c.b16 %v2565, %v2554
      %v3171 = vpack.c.b16 %v2566, %v2555
      %v3172 = vpack.c.b16 %v2567, %v2556
      %v3173 = vpack.c.b16 %v2568, %v2557
      %v3174 = vpack.c.b16 %v2569, %v2558
      %v3175 = vpack.c.b16 %v2570, %v2559
      %v3176 = vpack.c.b16 %v2571, %v2560
      %v3177 = vpack.c.b16 %v2572, %v2561
      %v3178 = vpack.c.b16 %v2584, %v2573
      %v3179 = vpack.c.b16 %v2585, %v2574
      %v3180 = vpack.c.b16 %v2586, %v2575
      %v3181 = vpack.c.b16 %v2587, %v2576
      %v3182 = vpack.c.b16 %v2588, %v2577
      %v3183 = vpack.c.b16 %v2589, %v2578
      %v3184 = vpack.c.b16 %v2590, %v2579
      %v3185 = vpack.c.b16 %v2591, %v2580
      %v3186 = vpack.c.b16 %v2592, %v2581
      %v3187 = vpack.c.b16 %v2593, %v2582
      %v3188 = vpack.c.b16 %v2594, %v2583
      %v3189 = vpack.c.b16 %v2606, %v2595
      %v3190 = vpack.c.b16 %v2607, %v2596
      %v3191 = vpack.c.b16 %v2608, %v2597
      %v3192 = vpack.c.b16 %v2609, %v2598
      %v3193 = vpack.c.b16 %v2610, %v2599
      %v3194 = vpack.c.b16 %v2611, %v2600
      %v3195 = vpack.c.b16 %v2612, %v2601
      %v3196 = vpack.c.b16 %v2613, %v2602
      %v3197 = vpack.c.b16 %v2614, %v2603
      %v3198 = vpack.c.b16 %v2615, %v2604
      %v3199 = vpack.c.b16 %v2616, %v2605
      %v3200 = vpack.c.b16 %v2628, %v2617
      %v3201 = vpack.c.b16 %v2629, %v2618
      %v3202 = vpack.c.b16 %v2630, %v2619
      %v3203 = vpack.c.b16 %v2631, %v2620
      %v3204 = vpack.c.b16 %v2632, %v2621
      %v3205 = vpack.c.b16 %v2633, %v2622
      %v3206 = vpack.c.b16 %v2634, %v2623
      %v3207 = vpack.c.b16 %v2635, %v2624
      %v3208 = vpack.c.b16 %v2636, %v2625
      %v3209 = vpack.c.b16 %v2637, %v2626
      %v3210 = vpack.c.b16 %v2638, %v2627
      %v3211 = vpack.c.b16 %v2650, %v2639
      %v3212 = vpack.c.b16 %v2651, %v2640
      %v3213 = vpack.c.b16 %v2652, %v2641
      %v3214 = vpack.c.b16 %v2653, %v2642
      %v3215 = vpack.c.b16 %v2654, %v2643
      %v3216 = vpack.c.b16 %v2655, %v2644
      %v3217 = vpack.c.b16 %v2656, %v2645
      %v3218 = vpack.c.b16 %v2657, %v2646
      %v3219 = vpack.c.b16 %v2658, %v2647
      %v3220 = vpack.c.b16 %v2659, %v2648
      %v3221 = vpack.c.b16 %v2660, %v2649
      %v3222 = vpack.c.b16 %v2672, %v2661
      %v3223 = vpack.c.b16 %v2673, %v2662
      %v3224 = vpack.c.b16 %v2674, %v2663
      %v3225 = vpack.c.b16 %v2675, %v2664
      %v3226 = vpack.c.b16 %v2676, %v2665
      %v3227 = vpack.c.b16 %v2677, %v2666
      %v3228 = vpack.c.b16 %v2678, %v2667
      %v3229 = vpack.c.b16 %v2679, %v2668
      %v3230 = vpack.c.b16 %v2680, %v2669
      %v3231 = vpack.c.b16 %v2681, %v2670
      %v3232 = vpack.c.b16 %v2682, %v2671
      %v3233 = vpack.c.b16 %v2694, %v2683
      %v3234 = vpack.c.b16 %v2695, %v2684
      %v3235 = vpack.c.b16 %v2696, %v2685
      %v3236 = vpack.c.b16 %v2697, %v2686
      %v3237 = vpack.c.b16 %v2698, %v2687
      %v3238 = vpack.c.b16 %v2699, %v2688
      %v3239 = vpack.c.b16 %v2700, %v2689
      %v3240 = vpack.c.b16 %v2701, %v2690
      %v3241 = vpack.c.b16 %v2702, %v2691
      %v3242 = vpack.c.b16 %v2703, %v2692
      %v3243 = vpack.c.b16 %v2704, %v2693
      %v3244 = vpack.c.b16 %v2716, %v2705
      %v3245 = vpack.c.b16 %v2717, %v2706
      %v3246 = vpack.c.b16 %v2718, %v2707
      %v3247 = vpack.c.b16 %v2719, %v2708
      %v3248 = vpack.c.b16 %v2720, %v2709
      %v3249 = vpack.c.b16 %v2721, %v2710
      %v3250 = vpack.c.b16 %v2722, %v2711
      %v3251 = vpack.c.b16 %v2723, %v2712
      %v3252 = vpack.c.b16 %v2724, %v2713
      %v3253 = vpack.c.b16 %v2725, %v2714
      %v3254 = vpack.c.b16 %v2726, %v2715
      %v3255 = vpack.c.b16 %v2738, %v2727
      %v3256 = vpack.c.b16 %v2739, %v2728
      %v3257 = vpack.c.b16 %v2740, %v2729
      %v3258 = vpack.c.b16 %v2741, %v2730
      %v3259 = vpack.c.b16 %v2742, %v2731
      %v3260 = vpack.c.b16 %v2743, %v2732
      %v3261 = vpack.c.b16 %v2744, %v2733
      %v3262 = vpack.c.b16 %v2745, %v2734
      %v3263 = vpack.c.b16 %v2746, %v2735
      %v3264 = vpack.c.b16 %v2747, %v2736
      %v3265 = vpack.c.b16 %v2748, %v2737
      %v3266 = vpack.c.b16 %v2760, %v2749
      %v3267 = vpack.c.b16 %v2761, %v2750
      %v3268 = vpack.c.b16 %v2762, %v2751
      %v3269 = vpack.c.b16 %v2763, %v2752
      %v3270 = vpack.c.b16 %v2764, %v2753
      %v3271 = vpack.c.b16 %v2765, %v2754
      %v3272 = vpack.c.b16 %v2766, %v2755
      %v3273 = vpack.c.b16 %v2767, %v2756
      %v3274 = vpack.c.b16 %v2768, %v2757
      %v3275 = vpack.c.b16 %v2769, %v2758
      %v3276 = vpack.c.b16 %v2770, %v2759
      %v3277 = vpack.c.b16 %v2782, %v2771
      %v3278 = vpack.c.b16 %v2783, %v2772
      %v3279 = vpack.c.b16 %v2784, %v2773
      %v3280 = vpack.c.b16 %v2785, %v2774
      %v3281 = vpack.c.b16 %v2786, %v2775
      %v3282 = vpack.c.b16 %v2787, %v2776
      %v3283 = vpack.c.b16 %v2788, %v2777
      %v3284 = vpack.c.b16 %v2789, %v2778
      %v3285 = vpack.c.b16 %v2790, %v2779
      %v3286 = vpack.c.b16 %v2791, %v2780
      %v3287 = vpack.c.b16 %v2792, %v2781
      %v3288 = vpack.c.b16 %v2804, %v2793
      %v3289 = vpack.c.b16 %v2805, %v2794
      %v3290 = vpack.c.b16 %v2806, %v2795
      %v3291 = vpack.c.b16 %v2807, %v2796
      %v3292 = vpack.c.b16 %v2808, %v2797
      %v3293 = vpack.c.b16 %v2809, %v2798
      %v3294 = vpack.c.b16 %v2810, %v2799
      %v3295 = vpack.c.b16 %v2811, %v2800
      %v3296 = vpack.c.b16 %v2812, %v2801
      %v3297 = vpack.c.b16 %v2813, %v2802
      %v3298 = vpack.c.b16 %v2814, %v2803
      %v3299 = vpack.c.b16 %v2815, %v2815
      %v3300 = vpack.c.b16 %v2816, %v2816
      %v3301 = vpack.c.b16 %v2817, %v2817
      %v3302 = vpack.c.b16 %v2818, %v2818
      %v3303 = vpack.c.b16 %v2819, %v2819
      %v3304 = vpack.c.b16 %v2820, %v2820
      %v3305 = vpack.c.b16 %v2821, %v2821
      %v3306 = vpack.c.b16 %v2822, %v2822
      %v3307 = vpack.c.b16 %v2823, %v2823
      %v3308 = vpack.c.b16 %v2824, %v2824
      %v3309 = vpack.c.b16 %v2825, %v2825
      %vm3750 = vcmask 916480
      %v3752 = vsel %vm3750, %v2836, 0
      %v3755 = vsel %vm3750, %v2847, 0
      %v3758 = vsel %vm3750, %v2858, 0
      %v3761 = vsel %vm3750, %v2869, 0
      %v3764 = vsel %vm3750, %v2880, 0
      %v3767 = vsel %vm3750, %v2891, 0
      %v3770 = vsel %vm3750, %v2902, 0
      %v3773 = vsel %vm3750, %v2913, 0
      %v3776 = vsel %vm3750, %v2924, 0
      %v3779 = vsel %vm3750, %v2935, 0
      %v3782 = vsel %vm3750, %v2946, 0
      %v3785 = vsel %vm3750, %v2957, 0
      %v3788 = vsel %vm3750, %v2968, 0
      %v3791 = vsel %vm3750, %v2979, 0
      %v3794 = vsel %vm3750, %v2990, 0
      %v3797 = vsel %vm3750, %v3001, 0
      %v3800 = vsel %vm3750, %v3012, 0
      %v3803 = vsel %vm3750, %v3023, 0
      %v3806 = vsel %vm3750, %v3034, 0
      %v3809 = vsel %vm3750, %v3045, 0
      %v3812 = vsel %vm3750, %v3056, 0
      %v3815 = vsel %vm3750, %v3067, 0
      %v3818 = vsel %vm3750, %v3078, 0
      %v3821 = vsel %vm3750, %v3089, 0
      %v3824 = vsel %vm3750, %v3100, 0
      %v3827 = vsel %vm3750, %v3111, 0
      %v3830 = vsel %vm3750, %v3122, 0
      %v3833 = vsel %vm3750, %v3133, 0
      %v3836 = vsel %vm3750, %v3144, 0
      %v3839 = vsel %vm3750, %v3155, 0
      %v3842 = vsel %vm3750, %v3166, 0
      %v3845 = vsel %vm3750, %v3177, 0
      %v3848 = vsel %vm3750, %v3188, 0
      %v3851 = vsel %vm3750, %v3199, 0
      %v3854 = vsel %vm3750, %v3210, 0
      %v3857 = vsel %vm3750, %v3221, 0
      %v3860 = vsel %vm3750, %v3232, 0
      %v3863 = vsel %vm3750, %v3243, 0
      %v3866 = vsel %vm3750, %v3254, 0
      %v3869 = vsel %vm3750, %v3265, 0
      %v3872 = vsel %vm3750, %v3276, 0
      %v3875 = vsel %vm3750, %v3287, 0
      %v3878 = vsel %vm3750, %v3298, 0
      %v3881 = vsel %vm3750, %v3309, 0
      %3883 = vmatprep.subr.bf16.mxu0 %v652
      %3884 = vmatpush1.bf16.msra.mxu0 %v651
      %3885 = vmatprep.subr.bf16.mxu0 %v654
      %3886 = vmatpush1.bf16.msra.mxu0 %v653
      %3887 = vmatprep.subr.bf16.mxu0 %v656
      %3888 = vmatpush1.bf16.msra.mxu0 %v655
      %3889 = vmatprep.subr.bf16.mxu0 %v658
      %3890 = vmatpush1.bf16.msra.mxu0 %v657
      %3891 = vmatprep.subr.bf16.mxu0 %v660
      %3892 = vmatpush1.bf16.msra.mxu0 %v659
      %3893 = vmatprep.subr.bf16.mxu0 %v662
      %3894 = vmatpush1.bf16.msra.mxu0 %v661
      %3895 = vmatprep.subr.bf16.mxu0 %v664
      %3896 = vmatpush1.bf16.msra.mxu0 %v663
      %3897 = vmatprep.subr.bf16.mxu0 %v666
      %3898 = vmatpush1.bf16.msra.mxu0 %v665
      %3899 = vmatprep.subr.bf16.mxu0 %v668
      %3900 = vmatpush1.bf16.msra.mxu0 %v667
      %3901 = vmatprep.subr.bf16.mxu0 %v670
      %3902 = vmatpush1.bf16.msra.mxu0 %v669
      %3903 = vmatprep.subr.bf16.mxu0 %v672
      %3904 = vmatpush1.bf16.msra.mxu0 %v671
      %3905 = vmatprep.subr.bf16.mxu0 %v674
      %3906 = vmatpush1.bf16.msra.mxu0 %v673
      %3907 = vmatprep.subr.bf16.mxu0 %v676
      %3908 = vmatpush1.bf16.msra.mxu0 %v675
      %3909 = vmatprep.subr.bf16.mxu0 %v678
      %3910 = vmatpush1.bf16.msra.mxu0 %v677
      %3911 = vmatprep.subr.bf16.mxu0 %v680
      %3912 = vmatpush1.bf16.msra.mxu0 %v679
      %3913 = vmatprep.subr.bf16.mxu0 %v682
      %3914 = vmatpush1.bf16.msra.mxu0 %v681
      %3915 = vmatprep.mubr.bf16.mxu0 %v2827
      %3916 = vmatmul.mubr.bf16.gmra.mrb[0].mxu0 %v2826
      %v3917 = vpop.f32.mrb[0].mxu0
      %v3918 = vadd.f32 0.0, %v3917
      %v3919 = vpop.f32.mrb[0].mxu0
      %v3920 = vadd.f32 0.0, %v3919
      %v3921 = vpop.f32.mrb[0].mxu0
      %v3922 = vadd.f32 0.0, %v3921
      %v3923 = vpop.f32.mrb[0].mxu0
      %v3924 = vadd.f32 0.0, %v3923
      %3925 = vmatprep.mubr.bf16.mxu0 %v2838
      %3926 = vmatmul.mubr.bf16.gmra.mrb[0].mxu0 %v2837
      %v3927 = vpop.f32.mrb[0].mxu0
      %v3928 = vadd.f32 0.0, %v3927
      %v3929 = vpop.f32.mrb[0].mxu0
      %v3930 = vadd.f32 0.0, %v3929
      %v3931 = vpop.f32.mrb[0].mxu0
      %v3932 = vadd.f32 0.0, %v3931
      %v3933 = vpop.f32.mrb[0].mxu0
      %v3934 = vadd.f32 0.0, %v3933
      %3935 = vmatprep.mubr.bf16.mxu0 %v2849
      %3936 = vmatmul.mubr.bf16.gmra.mrb[0].mxu0 %v2848
      %v3937 = vpop.f32.mrb[0].mxu0
      %v3938 = vadd.f32 0.0, %v3937
      %v3939 = vpop.f32.mrb[0].mxu0
      %v3940 = vadd.f32 0.0, %v3939
      %v3941 = vpop.f32.mrb[0].mxu0
      %v3942 = vadd.f32 0.0, %v3941
      %v3943 = vpop.f32.mrb[0].mxu0
      %v3944 = vadd.f32 0.0, %v3943
      %3945 = vmatprep.mubr.bf16.mxu0 %v2860
      %3946 = vmatmul.mubr.bf16.gmra.mrb[0].mxu0 %v2859
      %v3947 = vpop.f32.mrb[0].mxu0
      %v3948 = vadd.f32 0.0, %v3947
      %v3949 = vpop.f32.mrb[0].mxu0
      %v3950 = vadd.f32 0.0, %v3949
      %v3951 = vpop.f32.mrb[0].mxu0
      %v3952 = vadd.f32 0.0, %v3951
      %v3953 = vpop.f32.mrb[0].mxu0
      %v3954 = vadd.f32 0.0, %v3953
      %3955 = vmatprep.mubr.bf16.mxu0 %v2871
      %3956 = vmatmul.mubr.bf16.gmra.mrb[0].mxu0 %v2870
      %v3957 = vpop.f32.mrb[0].mxu0
      %v3958 = vadd.f32 0.0, %v3957
      %v3959 = vpop.f32.mrb[0].mxu0
      %v3960 = vadd.f32 0.0, %v3959
      %v3961 = vpop.f32.mrb[0].mxu0
      %v3962 = vadd.f32 0.0, %v3961
      %v3963 = vpop.f32.mrb[0].mxu0
      %v3964 = vadd.f32 0.0, %v3963
      %3965 = vmatprep.mubr.bf16.mxu0 %v2882
      %3966 = vmatmul.mubr.bf16.gmra.mrb[0].mxu0 %v2881
      %v3967 = vpop.f32.mrb[0].mxu0
      %v3968 = vadd.f32 0.0, %v3967
      %v3969 = vpop.f32.mrb[0].mxu0
      %v3970 = vadd.f32 0.0, %v3969
      %v3971 = vpop.f32.mrb[0].mxu0
      %v3972 = vadd.f32 0.0, %v3971
      %v3973 = vpop.f32.mrb[0].mxu0
      %v3974 = vadd.f32 0.0, %v3973
      %3975 = vmatprep.mubr.bf16.mxu0 %v2893
      %3976 = vmatmul.mubr.bf16.gmra.mrb[0].mxu0 %v2892
      %v3977 = vpop.f32.mrb[0].mxu0
      %v3978 = vadd.f32 0.0, %v3977
      %v3979 = vpop.f32.mrb[0].mxu0
      %v3980 = vadd.f32 0.0, %v3979
      %v3981 = vpop.f32.mrb[0].mxu0
      %v3982 = vadd.f32 0.0, %v3981
      %v3983 = vpop.f32.mrb[0].mxu0
      %v3984 = vadd.f32 0.0, %v3983
      %3985 = vmatprep.mubr.bf16.mxu0 %v2904
      %3986 = vmatmul.mubr.bf16.gmra.mrb[0].mxu0 %v2903
      %v3987 = vpop.f32.mrb[0].mxu0
      %v3988 = vadd.f32 0.0, %v3987
      %v3989 = vpop.f32.mrb[0].mxu0
      %v3990 = vadd.f32 0.0, %v3989
      %v3991 = vpop.f32.mrb[0].mxu0
      %v3992 = vadd.f32 0.0, %v3991
      %v3993 = vpop.f32.mrb[0].mxu0
      %v3994 = vadd.f32 0.0, %v3993
      %3995 = vmatprep.mubr.bf16.mxu0 %v2915
      %3996 = vmatmul.mubr.bf16.gmra.mrb[0].mxu0 %v2914
      %v3997 = vpop.f32.mrb[0].mxu0
      %v3998 = vadd.f32 0.0, %v3997
      %v3999 = vpop.f32.mrb[0].mxu0
      %v4000 = vadd.f32 0.0, %v3999
      %v4001 = vpop.f32.mrb[0].mxu0
      %v4002 = vadd.f32 0.0, %v4001
      %v4003 = vpop.f32.mrb[0].mxu0
      %v4004 = vadd.f32 0.0, %v4003
      %4005 = vmatprep.mubr.bf16.mxu0 %v2926
      %4006 = vmatmul.mubr.bf16.gmra.mrb[0].mxu0 %v2925
      %v4007 = vpop.f32.mrb[0].mxu0
      %v4008 = vadd.f32 0.0, %v4007
      %v4009 = vpop.f32.mrb[0].mxu0
      %v4010 = vadd.f32 0.0, %v4009
      %v4011 = vpop.f32.mrb[0].mxu0
      %v4012 = vadd.f32 0.0, %v4011
      %v4013 = vpop.f32.mrb[0].mxu0
      %v4014 = vadd.f32 0.0, %v4013
      %4015 = vmatprep.mubr.bf16.mxu0 %v2937
      %4016 = vmatmul.mubr.bf16.gmra.mrb[0].mxu0 %v2936
      %v4017 = vpop.f32.mrb[0].mxu0
      %v4018 = vadd.f32 0.0, %v4017
      %v4019 = vpop.f32.mrb[0].mxu0
      %v4020 = vadd.f32 0.0, %v4019
      %v4021 = vpop.f32.mrb[0].mxu0
      %v4022 = vadd.f32 0.0, %v4021
      %v4023 = vpop.f32.mrb[0].mxu0
      %v4024 = vadd.f32 0.0, %v4023
      %4025 = vmatprep.mubr.bf16.mxu0 %v2948
      %4026 = vmatmul.mubr.bf16.gmra.mrb[0].mxu0 %v2947
      %v4027 = vpop.f32.mrb[0].mxu0
      %v4028 = vadd.f32 0.0, %v4027
      %v4029 = vpop.f32.mrb[0].mxu0
      %v4030 = vadd.f32 0.0, %v4029
      %v4031 = vpop.f32.mrb[0].mxu0
      %v4032 = vadd.f32 0.0, %v4031
      %v4033 = vpop.f32.mrb[0].mxu0
      %v4034 = vadd.f32 0.0, %v4033
      %4035 = vmatprep.mubr.bf16.mxu0 %v2959
      %4036 = vmatmul.mubr.bf16.gmra.mrb[0].mxu0 %v2958
      %v4037 = vpop.f32.mrb[0].mxu0
      %v4038 = vadd.f32 0.0, %v4037
      %v4039 = vpop.f32.mrb[0].mxu0
      %v4040 = vadd.f32 0.0, %v4039
      %v4041 = vpop.f32.mrb[0].mxu0
      %v4042 = vadd.f32 0.0, %v4041
      %v4043 = vpop.f32.mrb[0].mxu0
      %v4044 = vadd.f32 0.0, %v4043
      %4045 = vmatprep.mubr.bf16.mxu0 %v2970
      %4046 = vmatmul.mubr.bf16.gmra.mrb[0].mxu0 %v2969
      %v4047 = vpop.f32.mrb[0].mxu0
      %v4048 = vadd.f32 0.0, %v4047
      %v4049 = vpop.f32.mrb[0].mxu0
      %v4050 = vadd.f32 0.0, %v4049
      %v4051 = vpop.f32.mrb[0].mxu0
      %v4052 = vadd.f32 0.0, %v4051
      %v4053 = vpop.f32.mrb[0].mxu0
      %v4054 = vadd.f32 0.0, %v4053
      %4055 = vmatprep.mubr.bf16.mxu0 %v2981
      %4056 = vmatmul.mubr.bf16.gmra.mrb[0].mxu0 %v2980
      %v4057 = vpop.f32.mrb[0].mxu0
      %v4058 = vadd.f32 0.0, %v4057
      %v4059 = vpop.f32.mrb[0].mxu0
      %v4060 = vadd.f32 0.0, %v4059
      %v4061 = vpop.f32.mrb[0].mxu0
      %v4062 = vadd.f32 0.0, %v4061
      %v4063 = vpop.f32.mrb[0].mxu0
      %v4064 = vadd.f32 0.0, %v4063
      %4065 = vmatprep.mubr.bf16.mxu0 %v2992
      %4066 = vmatmul.mubr.bf16.gmra.mrb[0].mxu0 %v2991
      %v4067 = vpop.f32.mrb[0].mxu0
      %v4068 = vadd.f32 0.0, %v4067
      %v4069 = vpop.f32.mrb[0].mxu0
      %v4070 = vadd.f32 0.0, %v4069
      %v4071 = vpop.f32.mrb[0].mxu0
      %v4072 = vadd.f32 0.0, %v4071
      %v4073 = vpop.f32.mrb[0].mxu0
      %v4074 = vadd.f32 0.0, %v4073
      %4075 = vmatprep.mubr.bf16.mxu0 %v3003
      %4076 = vmatmul.mubr.bf16.gmra.mrb[0].mxu0 %v3002
      %v4077 = vpop.f32.mrb[0].mxu0
      %v4078 = vadd.f32 0.0, %v4077
      %v4079 = vpop.f32.mrb[0].mxu0
      %v4080 = vadd.f32 0.0, %v4079
      %v4081 = vpop.f32.mrb[0].mxu0
      %v4082 = vadd.f32 0.0, %v4081
      %v4083 = vpop.f32.mrb[0].mxu0
      %v4084 = vadd.f32 0.0, %v4083
      %4085 = vmatprep.mubr.bf16.mxu0 %v3014
      %4086 = vmatmul.mubr.bf16.gmra.mrb[0].mxu0 %v3013
      %v4087 = vpop.f32.mrb[0].mxu0
      %v4088 = vadd.f32 0.0, %v4087
      %v4089 = vpop.f32.mrb[0].mxu0
      %v4090 = vadd.f32 0.0, %v4089
      %v4091 = vpop.f32.mrb[0].mxu0
      %v4092 = vadd.f32 0.0, %v4091
      %v4093 = vpop.f32.mrb[0].mxu0
      %v4094 = vadd.f32 0.0, %v4093
      %4095 = vmatprep.mubr.bf16.mxu0 %v3025
      %4096 = vmatmul.mubr.bf16.gmra.mrb[0].mxu0 %v3024
      %v4097 = vpop.f32.mrb[0].mxu0
      %v4098 = vadd.f32 0.0, %v4097
      %v4099 = vpop.f32.mrb[0].mxu0
      %v4100 = vadd.f32 0.0, %v4099
      %v4101 = vpop.f32.mrb[0].mxu0
      %v4102 = vadd.f32 0.0, %v4101
      %v4103 = vpop.f32.mrb[0].mxu0
      %v4104 = vadd.f32 0.0, %v4103
      %4105 = vmatprep.mubr.bf16.mxu0 %v3036
      %4106 = vmatmul.mubr.bf16.gmra.mrb[0].mxu0 %v3035
      %v4107 = vpop.f32.mrb[0].mxu0
      %v4108 = vadd.f32 0.0, %v4107
      %v4109 = vpop.f32.mrb[0].mxu0
      %v4110 = vadd.f32 0.0, %v4109
      %v4111 = vpop.f32.mrb[0].mxu0
      %v4112 = vadd.f32 0.0, %v4111
      %v4113 = vpop.f32.mrb[0].mxu0
      %v4114 = vadd.f32 0.0, %v4113
      %4115 = vmatprep.mubr.bf16.mxu0 %v3047
      %4116 = vmatmul.mubr.bf16.gmra.mrb[0].mxu0 %v3046
      %v4117 = vpop.f32.mrb[0].mxu0
      %v4118 = vadd.f32 0.0, %v4117
      %v4119 = vpop.f32.mrb[0].mxu0
      %v4120 = vadd.f32 0.0, %v4119
      %v4121 = vpop.f32.mrb[0].mxu0
      %v4122 = vadd.f32 0.0, %v4121
      %v4123 = vpop.f32.mrb[0].mxu0
      %v4124 = vadd.f32 0.0, %v4123
      %4125 = vmatprep.mubr.bf16.mxu0 %v3058
      %4126 = vmatmul.mubr.bf16.gmra.mrb[0].mxu0 %v3057
      %v4127 = vpop.f32.mrb[0].mxu0
      %v4128 = vadd.f32 0.0, %v4127
      %v4129 = vpop.f32.mrb[0].mxu0
      %v4130 = vadd.f32 0.0, %v4129
      %v4131 = vpop.f32.mrb[0].mxu0
      %v4132 = vadd.f32 0.0, %v4131
      %v4133 = vpop.f32.mrb[0].mxu0
      %v4134 = vadd.f32 0.0, %v4133
      %4135 = vmatprep.mubr.bf16.mxu0 %v3069
      %4136 = vmatmul.mubr.bf16.gmra.mrb[0].mxu0 %v3068
      %v4137 = vpop.f32.mrb[0].mxu0
      %v4138 = vadd.f32 0.0, %v4137
      %v4139 = vpop.f32.mrb[0].mxu0
      %v4140 = vadd.f32 0.0, %v4139
      %v4141 = vpop.f32.mrb[0].mxu0
      %v4142 = vadd.f32 0.0, %v4141
      %v4143 = vpop.f32.mrb[0].mxu0
      %v4144 = vadd.f32 0.0, %v4143
      %4145 = vmatprep.mubr.bf16.mxu0 %v3080
      %4146 = vmatmul.mubr.bf16.gmra.mrb[0].mxu0 %v3079
      %v4147 = vpop.f32.mrb[0].mxu0
      %v4148 = vadd.f32 0.0, %v4147
      %v4149 = vpop.f32.mrb[0].mxu0
      %v4150 = vadd.f32 0.0, %v4149
      %v4151 = vpop.f32.mrb[0].mxu0
      %v4152 = vadd.f32 0.0, %v4151
      %v4153 = vpop.f32.mrb[0].mxu0
      %v4154 = vadd.f32 0.0, %v4153
      %4155 = vmatprep.mubr.bf16.mxu0 %v3091
      %4156 = vmatmul.mubr.bf16.gmra.mrb[0].mxu0 %v3090
      %v4157 = vpop.f32.mrb[0].mxu0
      %v4158 = vadd.f32 0.0, %v4157
      %v4159 = vpop.f32.mrb[0].mxu0
      %v4160 = vadd.f32 0.0, %v4159
      %v4161 = vpop.f32.mrb[0].mxu0
      %v4162 = vadd.f32 0.0, %v4161
      %v4163 = vpop.f32.mrb[0].mxu0
      %v4164 = vadd.f32 0.0, %v4163
      %4165 = vmatprep.mubr.bf16.mxu0 %v3102
      %4166 = vmatmul.mubr.bf16.gmra.mrb[0].mxu0 %v3101
      %v4167 = vpop.f32.mrb[0].mxu0
      %v4168 = vadd.f32 0.0, %v4167
      %v4169 = vpop.f32.mrb[0].mxu0
      %v4170 = vadd.f32 0.0, %v4169
      %v4171 = vpop.f32.mrb[0].mxu0
      %v4172 = vadd.f32 0.0, %v4171
      %v4173 = vpop.f32.mrb[0].mxu0
      %v4174 = vadd.f32 0.0, %v4173
      %4175 = vmatprep.mubr.bf16.mxu0 %v3113
      %4176 = vmatmul.mubr.bf16.gmra.mrb[0].mxu0 %v3112
      %v4177 = vpop.f32.mrb[0].mxu0
      %v4178 = vadd.f32 0.0, %v4177
      %v4179 = vpop.f32.mrb[0].mxu0
      %v4180 = vadd.f32 0.0, %v4179
      %v4181 = vpop.f32.mrb[0].mxu0
      %v4182 = vadd.f32 0.0, %v4181
      %v4183 = vpop.f32.mrb[0].mxu0
      %v4184 = vadd.f32 0.0, %v4183
      %4185 = vmatprep.mubr.bf16.mxu0 %v3124
      %4186 = vmatmul.mubr.bf16.gmra.mrb[0].mxu0 %v3123
      %v4187 = vpop.f32.mrb[0].mxu0
      %v4188 = vadd.f32 0.0, %v4187
      %v4189 = vpop.f32.mrb[0].mxu0
      %v4190 = vadd.f32 0.0, %v4189
      %v4191 = vpop.f32.mrb[0].mxu0
      %v4192 = vadd.f32 0.0, %v4191
      %v4193 = vpop.f32.mrb[0].mxu0
      %v4194 = vadd.f32 0.0, %v4193
      %4195 = vmatprep.mubr.bf16.mxu0 %v3135
      %4196 = vmatmul.mubr.bf16.gmra.mrb[0].mxu0 %v3134
      %v4197 = vpop.f32.mrb[0].mxu0
      %v4198 = vadd.f32 0.0, %v4197
      %v4199 = vpop.f32.mrb[0].mxu0
      %v4200 = vadd.f32 0.0, %v4199
      %v4201 = vpop.f32.mrb[0].mxu0
      %v4202 = vadd.f32 0.0, %v4201
      %v4203 = vpop.f32.mrb[0].mxu0
      %v4204 = vadd.f32 0.0, %v4203
      %4205 = vmatprep.mubr.bf16.mxu0 %v3146
      %4206 = vmatmul.mubr.bf16.gmra.mrb[0].mxu0 %v3145
      %v4207 = vpop.f32.mrb[0].mxu0
      %v4208 = vadd.f32 0.0, %v4207
      %v4209 = vpop.f32.mrb[0].mxu0
      %v4210 = vadd.f32 0.0, %v4209
      %v4211 = vpop.f32.mrb[0].mxu0
      %v4212 = vadd.f32 0.0, %v4211
      %v4213 = vpop.f32.mrb[0].mxu0
      %v4214 = vadd.f32 0.0, %v4213
      %4215 = vmatprep.mubr.bf16.mxu0 %v3157
      %4216 = vmatmul.mubr.bf16.gmra.mrb[0].mxu0 %v3156
      %v4217 = vpop.f32.mrb[0].mxu0
      %v4218 = vadd.f32 0.0, %v4217
      %v4219 = vpop.f32.mrb[0].mxu0
      %v4220 = vadd.f32 0.0, %v4219
      %v4221 = vpop.f32.mrb[0].mxu0
      %v4222 = vadd.f32 0.0, %v4221
      %v4223 = vpop.f32.mrb[0].mxu0
      %v4224 = vadd.f32 0.0, %v4223
      %4225 = vmatprep.mubr.bf16.mxu0 %v3168
      %4226 = vmatmul.mubr.bf16.gmra.mrb[0].mxu0 %v3167
      %v4227 = vpop.f32.mrb[0].mxu0
      %v4228 = vadd.f32 0.0, %v4227
      %v4229 = vpop.f32.mrb[0].mxu0
      %v4230 = vadd.f32 0.0, %v4229
      %v4231 = vpop.f32.mrb[0].mxu0
      %v4232 = vadd.f32 0.0, %v4231
      %v4233 = vpop.f32.mrb[0].mxu0
      %v4234 = vadd.f32 0.0, %v4233
      %4235 = vmatprep.mubr.bf16.mxu0 %v3179
      %4236 = vmatmul.mubr.bf16.gmra.mrb[0].mxu0 %v3178
      %v4237 = vpop.f32.mrb[0].mxu0
      %v4238 = vadd.f32 0.0, %v4237
      %v4239 = vpop.f32.mrb[0].mxu0
      %v4240 = vadd.f32 0.0, %v4239
      %v4241 = vpop.f32.mrb[0].mxu0
      %v4242 = vadd.f32 0.0, %v4241
      %v4243 = vpop.f32.mrb[0].mxu0
      %v4244 = vadd.f32 0.0, %v4243
      %4245 = vmatprep.mubr.bf16.mxu0 %v3190
      %4246 = vmatmul.mubr.bf16.gmra.mrb[0].mxu0 %v3189
      %v4247 = vpop.f32.mrb[0].mxu0
      %v4248 = vadd.f32 0.0, %v4247
      %v4249 = vpop.f32.mrb[0].mxu0
      %v4250 = vadd.f32 0.0, %v4249
      %v4251 = vpop.f32.mrb[0].mxu0
      %v4252 = vadd.f32 0.0, %v4251
      %v4253 = vpop.f32.mrb[0].mxu0
      %v4254 = vadd.f32 0.0, %v4253
      %4255 = vmatprep.mubr.bf16.mxu0 %v3201
      %4256 = vmatmul.mubr.bf16.gmra.mrb[0].mxu0 %v3200
      %v4257 = vpop.f32.mrb[0].mxu0
      %v4258 = vadd.f32 0.0, %v4257
      %v4259 = vpop.f32.mrb[0].mxu0
      %v4260 = vadd.f32 0.0, %v4259
      %v4261 = vpop.f32.mrb[0].mxu0
      %v4262 = vadd.f32 0.0, %v4261
      %v4263 = vpop.f32.mrb[0].mxu0
      %v4264 = vadd.f32 0.0, %v4263
      %4265 = vmatprep.mubr.bf16.mxu0 %v3212
      %4266 = vmatmul.mubr.bf16.gmra.mrb[0].mxu0 %v3211
      %v4267 = vpop.f32.mrb[0].mxu0
      %v4268 = vadd.f32 0.0, %v4267
      %v4269 = vpop.f32.mrb[0].mxu0
      %v4270 = vadd.f32 0.0, %v4269
      %v4271 = vpop.f32.mrb[0].mxu0
      %v4272 = vadd.f32 0.0, %v4271
      %v4273 = vpop.f32.mrb[0].mxu0
      %v4274 = vadd.f32 0.0, %v4273
      %4275 = vmatprep.mubr.bf16.mxu0 %v3223
      %4276 = vmatmul.mubr.bf16.gmra.mrb[0].mxu0 %v3222
      %v4277 = vpop.f32.mrb[0].mxu0
      %v4278 = vadd.f32 0.0, %v4277
      %v4279 = vpop.f32.mrb[0].mxu0
      %v4280 = vadd.f32 0.0, %v4279
      %v4281 = vpop.f32.mrb[0].mxu0
      %v4282 = vadd.f32 0.0, %v4281
      %v4283 = vpop.f32.mrb[0].mxu0
      %v4284 = vadd.f32 0.0, %v4283
      %4285 = vmatprep.mubr.bf16.mxu0 %v3234
      %4286 = vmatmul.mubr.bf16.gmra.mrb[0].mxu0 %v3233
      %v4287 = vpop.f32.mrb[0].mxu0
      %v4288 = vadd.f32 0.0, %v4287
      %v4289 = vpop.f32.mrb[0].mxu0
      %v4290 = vadd.f32 0.0, %v4289
      %v4291 = vpop.f32.mrb[0].mxu0
      %v4292 = vadd.f32 0.0, %v4291
      %v4293 = vpop.f32.mrb[0].mxu0
      %v4294 = vadd.f32 0.0, %v4293
      %4295 = vmatprep.mubr.bf16.mxu0 %v3245
      %4296 = vmatmul.mubr.bf16.gmra.mrb[0].mxu0 %v3244
      %v4297 = vpop.f32.mrb[0].mxu0
      %v4298 = vadd.f32 0.0, %v4297
      %v4299 = vpop.f32.mrb[0].mxu0
      %v4300 = vadd.f32 0.0, %v4299
      %v4301 = vpop.f32.mrb[0].mxu0
      %v4302 = vadd.f32 0.0, %v4301
      %v4303 = vpop.f32.mrb[0].mxu0
      %v4304 = vadd.f32 0.0, %v4303
      %4305 = vmatprep.mubr.bf16.mxu0 %v3256
      %4306 = vmatmul.mubr.bf16.gmra.mrb[0].mxu0 %v3255
      %v4307 = vpop.f32.mrb[0].mxu0
      %v4308 = vadd.f32 0.0, %v4307
      %v4309 = vpop.f32.mrb[0].mxu0
      %v4310 = vadd.f32 0.0, %v4309
      %v4311 = vpop.f32.mrb[0].mxu0
      %v4312 = vadd.f32 0.0, %v4311
      %v4313 = vpop.f32.mrb[0].mxu0
      %v4314 = vadd.f32 0.0, %v4313
      %4315 = vmatprep.mubr.bf16.mxu0 %v3267
      %4316 = vmatmul.mubr.bf16.gmra.mrb[0].mxu0 %v3266
      %v4317 = vpop.f32.mrb[0].mxu0
      %v4318 = vadd.f32 0.0, %v4317
      %v4319 = vpop.f32.mrb[0].mxu0
      %v4320 = vadd.f32 0.0, %v4319
      %v4321 = vpop.f32.mrb[0].mxu0
      %v4322 = vadd.f32 0.0, %v4321
      %v4323 = vpop.f32.mrb[0].mxu0
      %v4324 = vadd.f32 0.0, %v4323
      %4325 = vmatprep.mubr.bf16.mxu0 %v3278
      %4326 = vmatmul.mubr.bf16.gmra.mrb[0].mxu0 %v3277
      %v4327 = vpop.f32.mrb[0].mxu0
      %v4328 = vadd.f32 0.0, %v4327
      %v4329 = vpop.f32.mrb[0].mxu0
      %v4330 = vadd.f32 0.0, %v4329
      %v4331 = vpop.f32.mrb[0].mxu0
      %v4332 = vadd.f32 0.0, %v4331
      %v4333 = vpop.f32.mrb[0].mxu0
      %v4334 = vadd.f32 0.0, %v4333
      %4335 = vmatprep.mubr.bf16.mxu0 %v3289
      %4336 = vmatmul.mubr.bf16.gmra.mrb[0].mxu0 %v3288
      %v4337 = vpop.f32.mrb[0].mxu0
      %v4338 = vadd.f32 0.0, %v4337
      %v4339 = vpop.f32.mrb[0].mxu0
      %v4340 = vadd.f32 0.0, %v4339
      %v4341 = vpop.f32.mrb[0].mxu0
      %v4342 = vadd.f32 0.0, %v4341
      %v4343 = vpop.f32.mrb[0].mxu0
      %v4344 = vadd.f32 0.0, %v4343
      %4345 = vmatprep.mubr.bf16.mxu0 %v3300
      %4346 = vmatmul.mubr.bf16.gmra.mrb[0].mxu0 %v3299
      %v4347 = vpop.f32.mrb[0].mxu0
      %v4348 = vadd.f32 0.0, %v4347
      %v4349 = vpop.f32.mrb[0].mxu0
      %v4350 = vadd.f32 0.0, %v4349
      %v4351 = vpop.f32.mrb[0].mxu0
      %v4352 = vpop.f32.mrb[0].mxu0
      %4353 = vdwg.mxu0
      %4354 = vmatprep.subr.bf16.mxu0 %v684
      %4355 = vmatpush1.bf16.msra.mxu0 %v683
      %4356 = vmatprep.subr.bf16.mxu0 %v686
      %4357 = vmatpush1.bf16.msra.mxu0 %v685
      %4358 = vmatprep.subr.bf16.mxu0 %v688
      %4359 = vmatpush1.bf16.msra.mxu0 %v687
      %4360 = vmatprep.subr.bf16.mxu0 %v690
      %4361 = vmatpush1.bf16.msra.mxu0 %v689
      %4362 = vmatprep.subr.bf16.mxu0 %v692
      %4363 = vmatpush1.bf16.msra.mxu0 %v691
      %4364 = vmatprep.subr.bf16.mxu0 %v694
      %4365 = vmatpush1.bf16.msra.mxu0 %v693
      %4366 = vmatprep.subr.bf16.mxu0 %v696
      %4367 = vmatpush1.bf16.msra.mxu0 %v695
      %4368 = vmatprep.subr.bf16.mxu0 %v698
      %4369 = vmatpush1.bf16.msra.mxu0 %v697
      %4370 = vmatprep.subr.bf16.mxu0 %v700
      %4371 = vmatpush1.bf16.msra.mxu0 %v699
      %4372 = vmatprep.subr.bf16.mxu0 %v702
      %4373 = vmatpush1.bf16.msra.mxu0 %v701
      %4374 = vmatprep.subr.bf16.mxu0 %v704
      %4375 = vmatpush1.bf16.msra.mxu0 %v703
      %4376 = vmatprep.subr.bf16.mxu0 %v706
      %4377 = vmatpush1.bf16.msra.mxu0 %v705
      %4378 = vmatprep.subr.bf16.mxu0 %v708
      %4379 = vmatpush1.bf16.msra.mxu0 %v707
      %4380 = vmatprep.subr.bf16.mxu0 %v710
      %4381 = vmatpush1.bf16.msra.mxu0 %v709
      %4382 = vmatprep.subr.bf16.mxu0 %v712
      %4383 = vmatpush1.bf16.msra.mxu0 %v711
      %4384 = vmatprep.subr.bf16.mxu0 %v714
      %4385 = vmatpush1.bf16.msra.mxu0 %v713
      %4386 = vmatprep.mubr.bf16.mxu0 %v2829
      %4387 = vmatmul.mubr.bf16.gmra.mrb[0].mxu0 %v2828
      %v4388 = vpop.f32.mrb[0].mxu0
      %v4389 = vadd.f32 %v3918, %v4388
      %v4390 = vpop.f32.mrb[0].mxu0
      %v4391 = vadd.f32 %v3920, %v4390
      %v4392 = vpop.f32.mrb[0].mxu0
      %v4393 = vadd.f32 %v3922, %v4392
      %v4394 = vpop.f32.mrb[0].mxu0
      %v4395 = vadd.f32 %v3924, %v4394
      %4396 = vmatprep.mubr.bf16.mxu0 %v2840
      %4397 = vmatmul.mubr.bf16.gmra.mrb[0].mxu0 %v2839
      %v4398 = vpop.f32.mrb[0].mxu0
      %v4399 = vadd.f32 %v3928, %v4398
      %v4400 = vpop.f32.mrb[0].mxu0
      %v4401 = vadd.f32 %v3930, %v4400
      %v4402 = vpop.f32.mrb[0].mxu0
      %v4403 = vadd.f32 %v3932, %v4402
      %v4404 = vpop.f32.mrb[0].mxu0
      %v4405 = vadd.f32 %v3934, %v4404
      %4406 = vmatprep.mubr.bf16.mxu0 %v2851
      %4407 = vmatmul.mubr.bf16.gmra.mrb[0].mxu0 %v2850
      %v4408 = vpop.f32.mrb[0].mxu0
      %v4409 = vadd.f32 %v3938, %v4408
      %v4410 = vpop.f32.mrb[0].mxu0
      %v4411 = vadd.f32 %v3940, %v4410
      %v4412 = vpop.f32.mrb[0].mxu0
      %v4413 = vadd.f32 %v3942, %v4412
      %v4414 = vpop.f32.mrb[0].mxu0
      %v4415 = vadd.f32 %v3944, %v4414
      %4416 = vmatprep.mubr.bf16.mxu0 %v2862
      %4417 = vmatmul.mubr.bf16.gmra.mrb[0].mxu0 %v2861
      %v4418 = vpop.f32.mrb[0].mxu0
      %v4419 = vadd.f32 %v3948, %v4418
      %v4420 = vpop.f32.mrb[0].mxu0
      %v4421 = vadd.f32 %v3950, %v4420
      %v4422 = vpop.f32.mrb[0].mxu0
      %v4423 = vadd.f32 %v3952, %v4422
      %v4424 = vpop.f32.mrb[0].mxu0
      %v4425 = vadd.f32 %v3954, %v4424
      %4426 = vmatprep.mubr.bf16.mxu0 %v2873
      %4427 = vmatmul.mubr.bf16.gmra.mrb[0].mxu0 %v2872
      %v4428 = vpop.f32.mrb[0].mxu0
      %v4429 = vadd.f32 %v3958, %v4428
      %v4430 = vpop.f32.mrb[0].mxu0
      %v4431 = vadd.f32 %v3960, %v4430
      %v4432 = vpop.f32.mrb[0].mxu0
      %v4433 = vadd.f32 %v3962, %v4432
      %v4434 = vpop.f32.mrb[0].mxu0
      %v4435 = vadd.f32 %v3964, %v4434
      %4436 = vmatprep.mubr.bf16.mxu0 %v2884
      %4437 = vmatmul.mubr.bf16.gmra.mrb[0].mxu0 %v2883
      %v4438 = vpop.f32.mrb[0].mxu0
      %v4439 = vadd.f32 %v3968, %v4438
      %v4440 = vpop.f32.mrb[0].mxu0
      %v4441 = vadd.f32 %v3970, %v4440
      %v4442 = vpop.f32.mrb[0].mxu0
      %v4443 = vadd.f32 %v3972, %v4442
      %v4444 = vpop.f32.mrb[0].mxu0
      %v4445 = vadd.f32 %v3974, %v4444
      %4446 = vmatprep.mubr.bf16.mxu0 %v2895
      %4447 = vmatmul.mubr.bf16.gmra.mrb[0].mxu0 %v2894
      %v4448 = vpop.f32.mrb[0].mxu0
      %v4449 = vadd.f32 %v3978, %v4448
      %v4450 = vpop.f32.mrb[0].mxu0
      %v4451 = vadd.f32 %v3980, %v4450
      %v4452 = vpop.f32.mrb[0].mxu0
      %v4453 = vadd.f32 %v3982, %v4452
      %v4454 = vpop.f32.mrb[0].mxu0
      %v4455 = vadd.f32 %v3984, %v4454
      %4456 = vmatprep.mubr.bf16.mxu0 %v2906
      %4457 = vmatmul.mubr.bf16.gmra.mrb[0].mxu0 %v2905
      %v4458 = vpop.f32.mrb[0].mxu0
      %v4459 = vadd.f32 %v3988, %v4458
      %v4460 = vpop.f32.mrb[0].mxu0
      %v4461 = vadd.f32 %v3990, %v4460
      %v4462 = vpop.f32.mrb[0].mxu0
      %v4463 = vadd.f32 %v3992, %v4462
      %v4464 = vpop.f32.mrb[0].mxu0
      %v4465 = vadd.f32 %v3994, %v4464
      %4466 = vmatprep.mubr.bf16.mxu0 %v2917
      %4467 = vmatmul.mubr.bf16.gmra.mrb[0].mxu0 %v2916
      %v4468 = vpop.f32.mrb[0].mxu0
      %v4469 = vadd.f32 %v3998, %v4468
      %v4470 = vpop.f32.mrb[0].mxu0
      %v4471 = vadd.f32 %v4000, %v4470
      %v4472 = vpop.f32.mrb[0].mxu0
      %v4473 = vadd.f32 %v4002, %v4472
      %v4474 = vpop.f32.mrb[0].mxu0
      %v4475 = vadd.f32 %v4004, %v4474
      %4476 = vmatprep.mubr.bf16.mxu0 %v2928
      %4477 = vmatmul.mubr.bf16.gmra.mrb[0].mxu0 %v2927
      %v4478 = vpop.f32.mrb[0].mxu0
      %v4479 = vadd.f32 %v4008, %v4478
      %v4480 = vpop.f32.mrb[0].mxu0
      %v4481 = vadd.f32 %v4010, %v4480
      %v4482 = vpop.f32.mrb[0].mxu0
      %v4483 = vadd.f32 %v4012, %v4482
      %v4484 = vpop.f32.mrb[0].mxu0
      %v4485 = vadd.f32 %v4014, %v4484
      %4486 = vmatprep.mubr.bf16.mxu0 %v2939
      %4487 = vmatmul.mubr.bf16.gmra.mrb[0].mxu0 %v2938
      %v4488 = vpop.f32.mrb[0].mxu0
      %v4489 = vadd.f32 %v4018, %v4488
      %v4490 = vpop.f32.mrb[0].mxu0
      %v4491 = vadd.f32 %v4020, %v4490
      %v4492 = vpop.f32.mrb[0].mxu0
      %v4493 = vadd.f32 %v4022, %v4492
      %v4494 = vpop.f32.mrb[0].mxu0
      %v4495 = vadd.f32 %v4024, %v4494
      %4496 = vmatprep.mubr.bf16.mxu0 %v2950
      %4497 = vmatmul.mubr.bf16.gmra.mrb[0].mxu0 %v2949
      %v4498 = vpop.f32.mrb[0].mxu0
      %v4499 = vadd.f32 %v4028, %v4498
      %v4500 = vpop.f32.mrb[0].mxu0
      %v4501 = vadd.f32 %v4030, %v4500
      %v4502 = vpop.f32.mrb[0].mxu0
      %v4503 = vadd.f32 %v4032, %v4502
      %v4504 = vpop.f32.mrb[0].mxu0
      %v4505 = vadd.f32 %v4034, %v4504
      %4506 = vmatprep.mubr.bf16.mxu0 %v2961
      %4507 = vmatmul.mubr.bf16.gmra.mrb[0].mxu0 %v2960
      %v4508 = vpop.f32.mrb[0].mxu0
      %v4509 = vadd.f32 %v4038, %v4508
      %v4510 = vpop.f32.mrb[0].mxu0
      %v4511 = vadd.f32 %v4040, %v4510
      %v4512 = vpop.f32.mrb[0].mxu0
      %v4513 = vadd.f32 %v4042, %v4512
      %v4514 = vpop.f32.mrb[0].mxu0
      %v4515 = vadd.f32 %v4044, %v4514
      %4516 = vmatprep.mubr.bf16.mxu0 %v2972
      %4517 = vmatmul.mubr.bf16.gmra.mrb[0].mxu0 %v2971
      %v4518 = vpop.f32.mrb[0].mxu0
      %v4519 = vadd.f32 %v4048, %v4518
      %v4520 = vpop.f32.mrb[0].mxu0
      %v4521 = vadd.f32 %v4050, %v4520
      %v4522 = vpop.f32.mrb[0].mxu0
      %v4523 = vadd.f32 %v4052, %v4522
      %v4524 = vpop.f32.mrb[0].mxu0
      %v4525 = vadd.f32 %v4054, %v4524
      %4526 = vmatprep.mubr.bf16.mxu0 %v2983
      %4527 = vmatmul.mubr.bf16.gmra.mrb[0].mxu0 %v2982
      %v4528 = vpop.f32.mrb[0].mxu0
      %v4529 = vadd.f32 %v4058, %v4528
      %v4530 = vpop.f32.mrb[0].mxu0
      %v4531 = vadd.f32 %v4060, %v4530
      %v4532 = vpop.f32.mrb[0].mxu0
      %v4533 = vadd.f32 %v4062, %v4532
      %v4534 = vpop.f32.mrb[0].mxu0
      %v4535 = vadd.f32 %v4064, %v4534
      %4536 = vmatprep.mubr.bf16.mxu0 %v2994
      %4537 = vmatmul.mubr.bf16.gmra.mrb[0].mxu0 %v2993
      %v4538 = vpop.f32.mrb[0].mxu0
      %v4539 = vadd.f32 %v4068, %v4538
      %v4540 = vpop.f32.mrb[0].mxu0
      %v4541 = vadd.f32 %v4070, %v4540
      %v4542 = vpop.f32.mrb[0].mxu0
      %v4543 = vadd.f32 %v4072, %v4542
      %v4544 = vpop.f32.mrb[0].mxu0
      %v4545 = vadd.f32 %v4074, %v4544
      %4546 = vmatprep.mubr.bf16.mxu0 %v3005
      %4547 = vmatmul.mubr.bf16.gmra.mrb[0].mxu0 %v3004
      %v4548 = vpop.f32.mrb[0].mxu0
      %v4549 = vadd.f32 %v4078, %v4548
      %v4550 = vpop.f32.mrb[0].mxu0
      %v4551 = vadd.f32 %v4080, %v4550
      %v4552 = vpop.f32.mrb[0].mxu0
      %v4553 = vadd.f32 %v4082, %v4552
      %v4554 = vpop.f32.mrb[0].mxu0
      %v4555 = vadd.f32 %v4084, %v4554
      %4556 = vmatprep.mubr.bf16.mxu0 %v3016
      %4557 = vmatmul.mubr.bf16.gmra.mrb[0].mxu0 %v3015
      %v4558 = vpop.f32.mrb[0].mxu0
      %v4559 = vadd.f32 %v4088, %v4558
      %v4560 = vpop.f32.mrb[0].mxu0
      %v4561 = vadd.f32 %v4090, %v4560
      %v4562 = vpop.f32.mrb[0].mxu0
      %v4563 = vadd.f32 %v4092, %v4562
      %v4564 = vpop.f32.mrb[0].mxu0
      %v4565 = vadd.f32 %v4094, %v4564
      %4566 = vmatprep.mubr.bf16.mxu0 %v3027
      %4567 = vmatmul.mubr.bf16.gmra.mrb[0].mxu0 %v3026
      %v4568 = vpop.f32.mrb[0].mxu0
      %v4569 = vadd.f32 %v4098, %v4568
      %v4570 = vpop.f32.mrb[0].mxu0
      %v4571 = vadd.f32 %v4100, %v4570
      %v4572 = vpop.f32.mrb[0].mxu0
      %v4573 = vadd.f32 %v4102, %v4572
      %v4574 = vpop.f32.mrb[0].mxu0
      %v4575 = vadd.f32 %v4104, %v4574
      %4576 = vmatprep.mubr.bf16.mxu0 %v3038
      %4577 = vmatmul.mubr.bf16.gmra.mrb[0].mxu0 %v3037
      %v4578 = vpop.f32.mrb[0].mxu0
      %v4579 = vadd.f32 %v4108, %v4578
      %v4580 = vpop.f32.mrb[0].mxu0
      %v4581 = vadd.f32 %v4110, %v4580
      %v4582 = vpop.f32.mrb[0].mxu0
      %v4583 = vadd.f32 %v4112, %v4582
      %v4584 = vpop.f32.mrb[0].mxu0
      %v4585 = vadd.f32 %v4114, %v4584
      %4586 = vmatprep.mubr.bf16.mxu0 %v3049
      %4587 = vmatmul.mubr.bf16.gmra.mrb[0].mxu0 %v3048
      %v4588 = vpop.f32.mrb[0].mxu0
      %v4589 = vadd.f32 %v4118, %v4588
      %v4590 = vpop.f32.mrb[0].mxu0
      %v4591 = vadd.f32 %v4120, %v4590
      %v4592 = vpop.f32.mrb[0].mxu0
      %v4593 = vadd.f32 %v4122, %v4592
      %v4594 = vpop.f32.mrb[0].mxu0
      %v4595 = vadd.f32 %v4124, %v4594
      %4596 = vmatprep.mubr.bf16.mxu0 %v3060
      %4597 = vmatmul.mubr.bf16.gmra.mrb[0].mxu0 %v3059
      %v4598 = vpop.f32.mrb[0].mxu0
      %v4599 = vadd.f32 %v4128, %v4598
      %v4600 = vpop.f32.mrb[0].mxu0
      %v4601 = vadd.f32 %v4130, %v4600
      %v4602 = vpop.f32.mrb[0].mxu0
      %v4603 = vadd.f32 %v4132, %v4602
      %v4604 = vpop.f32.mrb[0].mxu0
      %v4605 = vadd.f32 %v4134, %v4604
      %4606 = vmatprep.mubr.bf16.mxu0 %v3071
      %4607 = vmatmul.mubr.bf16.gmra.mrb[0].mxu0 %v3070
      %v4608 = vpop.f32.mrb[0].mxu0
      %v4609 = vadd.f32 %v4138, %v4608
      %v4610 = vpop.f32.mrb[0].mxu0
      %v4611 = vadd.f32 %v4140, %v4610
      %v4612 = vpop.f32.mrb[0].mxu0
      %v4613 = vadd.f32 %v4142, %v4612
      %v4614 = vpop.f32.mrb[0].mxu0
      %v4615 = vadd.f32 %v4144, %v4614
      %4616 = vmatprep.mubr.bf16.mxu0 %v3082
      %4617 = vmatmul.mubr.bf16.gmra.mrb[0].mxu0 %v3081
      %v4618 = vpop.f32.mrb[0].mxu0
      %v4619 = vadd.f32 %v4148, %v4618
      %v4620 = vpop.f32.mrb[0].mxu0
      %v4621 = vadd.f32 %v4150, %v4620
      %v4622 = vpop.f32.mrb[0].mxu0
      %v4623 = vadd.f32 %v4152, %v4622
      %v4624 = vpop.f32.mrb[0].mxu0
      %v4625 = vadd.f32 %v4154, %v4624
      %4626 = vmatprep.mubr.bf16.mxu0 %v3093
      %4627 = vmatmul.mubr.bf16.gmra.mrb[0].mxu0 %v3092
      %v4628 = vpop.f32.mrb[0].mxu0
      %v4629 = vadd.f32 %v4158, %v4628
      %v4630 = vpop.f32.mrb[0].mxu0
      %v4631 = vadd.f32 %v4160, %v4630
      %v4632 = vpop.f32.mrb[0].mxu0
      %v4633 = vadd.f32 %v4162, %v4632
      %v4634 = vpop.f32.mrb[0].mxu0
      %v4635 = vadd.f32 %v4164, %v4634
      %4636 = vmatprep.mubr.bf16.mxu0 %v3104
      %4637 = vmatmul.mubr.bf16.gmra.mrb[0].mxu0 %v3103
      %v4638 = vpop.f32.mrb[0].mxu0
      %v4639 = vadd.f32 %v4168, %v4638
      %v4640 = vpop.f32.mrb[0].mxu0
      %v4641 = vadd.f32 %v4170, %v4640
      %v4642 = vpop.f32.mrb[0].mxu0
      %v4643 = vadd.f32 %v4172, %v4642
      %v4644 = vpop.f32.mrb[0].mxu0
      %v4645 = vadd.f32 %v4174, %v4644
      %4646 = vmatprep.mubr.bf16.mxu0 %v3115
      %4647 = vmatmul.mubr.bf16.gmra.mrb[0].mxu0 %v3114
      %v4648 = vpop.f32.mrb[0].mxu0
      %v4649 = vadd.f32 %v4178, %v4648
      %v4650 = vpop.f32.mrb[0].mxu0
      %v4651 = vadd.f32 %v4180, %v4650
      %v4652 = vpop.f32.mrb[0].mxu0
      %v4653 = vadd.f32 %v4182, %v4652
      %v4654 = vpop.f32.mrb[0].mxu0
      %v4655 = vadd.f32 %v4184, %v4654
      %4656 = vmatprep.mubr.bf16.mxu0 %v3126
      %4657 = vmatmul.mubr.bf16.gmra.mrb[0].mxu0 %v3125
      %v4658 = vpop.f32.mrb[0].mxu0
      %v4659 = vadd.f32 %v4188, %v4658
      %v4660 = vpop.f32.mrb[0].mxu0
      %v4661 = vadd.f32 %v4190, %v4660
      %v4662 = vpop.f32.mrb[0].mxu0
      %v4663 = vadd.f32 %v4192, %v4662
      %v4664 = vpop.f32.mrb[0].mxu0
      %v4665 = vadd.f32 %v4194, %v4664
      %4666 = vmatprep.mubr.bf16.mxu0 %v3137
      %4667 = vmatmul.mubr.bf16.gmra.mrb[0].mxu0 %v3136
      %v4668 = vpop.f32.mrb[0].mxu0
      %v4669 = vadd.f32 %v4198, %v4668
      %v4670 = vpop.f32.mrb[0].mxu0
      %v4671 = vadd.f32 %v4200, %v4670
      %v4672 = vpop.f32.mrb[0].mxu0
      %v4673 = vadd.f32 %v4202, %v4672
      %v4674 = vpop.f32.mrb[0].mxu0
      %v4675 = vadd.f32 %v4204, %v4674
      %4676 = vmatprep.mubr.bf16.mxu0 %v3148
      %4677 = vmatmul.mubr.bf16.gmra.mrb[0].mxu0 %v3147
      %v4678 = vpop.f32.mrb[0].mxu0
      %v4679 = vadd.f32 %v4208, %v4678
      %v4680 = vpop.f32.mrb[0].mxu0
      %v4681 = vadd.f32 %v4210, %v4680
      %v4682 = vpop.f32.mrb[0].mxu0
      %v4683 = vadd.f32 %v4212, %v4682
      %v4684 = vpop.f32.mrb[0].mxu0
      %v4685 = vadd.f32 %v4214, %v4684
      %4686 = vmatprep.mubr.bf16.mxu0 %v3159
      %4687 = vmatmul.mubr.bf16.gmra.mrb[0].mxu0 %v3158
      %v4688 = vpop.f32.mrb[0].mxu0
      %v4689 = vadd.f32 %v4218, %v4688
      %v4690 = vpop.f32.mrb[0].mxu0
      %v4691 = vadd.f32 %v4220, %v4690
      %v4692 = vpop.f32.mrb[0].mxu0
      %v4693 = vadd.f32 %v4222, %v4692
      %v4694 = vpop.f32.mrb[0].mxu0
      %v4695 = vadd.f32 %v4224, %v4694
      %4696 = vmatprep.mubr.bf16.mxu0 %v3170
      %4697 = vmatmul.mubr.bf16.gmra.mrb[0].mxu0 %v3169
      %v4698 = vpop.f32.mrb[0].mxu0
      %v4699 = vadd.f32 %v4228, %v4698
      %v4700 = vpop.f32.mrb[0].mxu0
      %v4701 = vadd.f32 %v4230, %v4700
      %v4702 = vpop.f32.mrb[0].mxu0
      %v4703 = vadd.f32 %v4232, %v4702
      %v4704 = vpop.f32.mrb[0].mxu0
      %v4705 = vadd.f32 %v4234, %v4704
      %4706 = vmatprep.mubr.bf16.mxu0 %v3181
      %4707 = vmatmul.mubr.bf16.gmra.mrb[0].mxu0 %v3180
      %v4708 = vpop.f32.mrb[0].mxu0
      %v4709 = vadd.f32 %v4238, %v4708
      %v4710 = vpop.f32.mrb[0].mxu0
      %v4711 = vadd.f32 %v4240, %v4710
      %v4712 = vpop.f32.mrb[0].mxu0
      %v4713 = vadd.f32 %v4242, %v4712
      %v4714 = vpop.f32.mrb[0].mxu0
      %v4715 = vadd.f32 %v4244, %v4714
      %4716 = vmatprep.mubr.bf16.mxu0 %v3192
      %4717 = vmatmul.mubr.bf16.gmra.mrb[0].mxu0 %v3191
      %v4718 = vpop.f32.mrb[0].mxu0
      %v4719 = vadd.f32 %v4248, %v4718
      %v4720 = vpop.f32.mrb[0].mxu0
      %v4721 = vadd.f32 %v4250, %v4720
      %v4722 = vpop.f32.mrb[0].mxu0
      %v4723 = vadd.f32 %v4252, %v4722
      %v4724 = vpop.f32.mrb[0].mxu0
      %v4725 = vadd.f32 %v4254, %v4724
      %4726 = vmatprep.mubr.bf16.mxu0 %v3203
      %4727 = vmatmul.mubr.bf16.gmra.mrb[0].mxu0 %v3202
      %v4728 = vpop.f32.mrb[0].mxu0
      %v4729 = vadd.f32 %v4258, %v4728
      %v4730 = vpop.f32.mrb[0].mxu0
      %v4731 = vadd.f32 %v4260, %v4730
      %v4732 = vpop.f32.mrb[0].mxu0
      %v4733 = vadd.f32 %v4262, %v4732
      %v4734 = vpop.f32.mrb[0].mxu0
      %v4735 = vadd.f32 %v4264, %v4734
      %4736 = vmatprep.mubr.bf16.mxu0 %v3214
      %4737 = vmatmul.mubr.bf16.gmra.mrb[0].mxu0 %v3213
      %v4738 = vpop.f32.mrb[0].mxu0
      %v4739 = vadd.f32 %v4268, %v4738
      %v4740 = vpop.f32.mrb[0].mxu0
      %v4741 = vadd.f32 %v4270, %v4740
      %v4742 = vpop.f32.mrb[0].mxu0
      %v4743 = vadd.f32 %v4272, %v4742
      %v4744 = vpop.f32.mrb[0].mxu0
      %v4745 = vadd.f32 %v4274, %v4744
      %4746 = vmatprep.mubr.bf16.mxu0 %v3225
      %4747 = vmatmul.mubr.bf16.gmra.mrb[0].mxu0 %v3224
      %v4748 = vpop.f32.mrb[0].mxu0
      %v4749 = vadd.f32 %v4278, %v4748
      %v4750 = vpop.f32.mrb[0].mxu0
      %v4751 = vadd.f32 %v4280, %v4750
      %v4752 = vpop.f32.mrb[0].mxu0
      %v4753 = vadd.f32 %v4282, %v4752
      %v4754 = vpop.f32.mrb[0].mxu0
      %v4755 = vadd.f32 %v4284, %v4754
      %4756 = vmatprep.mubr.bf16.mxu0 %v3236
      %4757 = vmatmul.mubr.bf16.gmra.mrb[0].mxu0 %v3235
      %v4758 = vpop.f32.mrb[0].mxu0
      %v4759 = vadd.f32 %v4288, %v4758
      %v4760 = vpop.f32.mrb[0].mxu0
      %v4761 = vadd.f32 %v4290, %v4760
      %v4762 = vpop.f32.mrb[0].mxu0
      %v4763 = vadd.f32 %v4292, %v4762
      %v4764 = vpop.f32.mrb[0].mxu0
      %v4765 = vadd.f32 %v4294, %v4764
      %4766 = vmatprep.mubr.bf16.mxu0 %v3247
      %4767 = vmatmul.mubr.bf16.gmra.mrb[0].mxu0 %v3246
      %v4768 = vpop.f32.mrb[0].mxu0
      %v4769 = vadd.f32 %v4298, %v4768
      %v4770 = vpop.f32.mrb[0].mxu0
      %v4771 = vadd.f32 %v4300, %v4770
      %v4772 = vpop.f32.mrb[0].mxu0
      %v4773 = vadd.f32 %v4302, %v4772
      %v4774 = vpop.f32.mrb[0].mxu0
      %v4775 = vadd.f32 %v4304, %v4774
      %4776 = vmatprep.mubr.bf16.mxu0 %v3258
      %4777 = vmatmul.mubr.bf16.gmra.mrb[0].mxu0 %v3257
      %v4778 = vpop.f32.mrb[0].mxu0
      %v4779 = vadd.f32 %v4308, %v4778
      %v4780 = vpop.f32.mrb[0].mxu0
      %v4781 = vadd.f32 %v4310, %v4780
      %v4782 = vpop.f32.mrb[0].mxu0
      %v4783 = vadd.f32 %v4312, %v4782
      %v4784 = vpop.f32.mrb[0].mxu0
      %v4785 = vadd.f32 %v4314, %v4784
      %4786 = vmatprep.mubr.bf16.mxu0 %v3269
      %4787 = vmatmul.mubr.bf16.gmra.mrb[0].mxu0 %v3268
      %v4788 = vpop.f32.mrb[0].mxu0
      %v4789 = vadd.f32 %v4318, %v4788
      %v4790 = vpop.f32.mrb[0].mxu0
      %v4791 = vadd.f32 %v4320, %v4790
      %v4792 = vpop.f32.mrb[0].mxu0
      %v4793 = vadd.f32 %v4322, %v4792
      %v4794 = vpop.f32.mrb[0].mxu0
      %v4795 = vadd.f32 %v4324, %v4794
      %4796 = vmatprep.mubr.bf16.mxu0 %v3280
      %4797 = vmatmul.mubr.bf16.gmra.mrb[0].mxu0 %v3279
      %v4798 = vpop.f32.mrb[0].mxu0
      %v4799 = vadd.f32 %v4328, %v4798
      %v4800 = vpop.f32.mrb[0].mxu0
      %v4801 = vadd.f32 %v4330, %v4800
      %v4802 = vpop.f32.mrb[0].mxu0
      %v4803 = vadd.f32 %v4332, %v4802
      %v4804 = vpop.f32.mrb[0].mxu0
      %v4805 = vadd.f32 %v4334, %v4804
      %4806 = vmatprep.mubr.bf16.mxu0 %v3291
      %4807 = vmatmul.mubr.bf16.gmra.mrb[0].mxu0 %v3290
      %v4808 = vpop.f32.mrb[0].mxu0
      %v4809 = vadd.f32 %v4338, %v4808
      %v4810 = vpop.f32.mrb[0].mxu0
      %v4811 = vadd.f32 %v4340, %v4810
      %v4812 = vpop.f32.mrb[0].mxu0
      %v4813 = vadd.f32 %v4342, %v4812
      %v4814 = vpop.f32.mrb[0].mxu0
      %v4815 = vadd.f32 %v4344, %v4814
      %4816 = vmatprep.mubr.bf16.mxu0 %v3302
      %4817 = vmatmul.mubr.bf16.gmra.mrb[0].mxu0 %v3301
      %v4818 = vpop.f32.mrb[0].mxu0
      %v4819 = vadd.f32 %v4348, %v4818
      %v4820 = vpop.f32.mrb[0].mxu0
      %v4821 = vadd.f32 %v4350, %v4820
      %v4822 = vpop.f32.mrb[0].mxu0
      %v4823 = vpop.f32.mrb[0].mxu0
      %4824 = vdwg.mxu0
      %4825 = vmatprep.subr.bf16.mxu0 %v716
      %4826 = vmatpush1.bf16.msra.mxu0 %v715
      %4827 = vmatprep.subr.bf16.mxu0 %v718
      %4828 = vmatpush1.bf16.msra.mxu0 %v717
      %4829 = vmatprep.subr.bf16.mxu0 %v720
      %4830 = vmatpush1.bf16.msra.mxu0 %v719
      %4831 = vmatprep.subr.bf16.mxu0 %v722
      %4832 = vmatpush1.bf16.msra.mxu0 %v721
      %4833 = vmatprep.subr.bf16.mxu0 %v724
      %4834 = vmatpush1.bf16.msra.mxu0 %v723
      %4835 = vmatprep.subr.bf16.mxu0 %v726
      %4836 = vmatpush1.bf16.msra.mxu0 %v725
      %4837 = vmatprep.subr.bf16.mxu0 %v728
      %4838 = vmatpush1.bf16.msra.mxu0 %v727
      %4839 = vmatprep.subr.bf16.mxu0 %v730
      %4840 = vmatpush1.bf16.msra.mxu0 %v729
      %4841 = vmatprep.subr.bf16.mxu0 %v732
      %4842 = vmatpush1.bf16.msra.mxu0 %v731
      %4843 = vmatprep.subr.bf16.mxu0 %v734
      %4844 = vmatpush1.bf16.msra.mxu0 %v733
      %4845 = vmatprep.subr.bf16.mxu0 %v736
      %4846 = vmatpush1.bf16.msra.mxu0 %v735
      %4847 = vmatprep.subr.bf16.mxu0 %v738
      %4848 = vmatpush1.bf16.msra.mxu0 %v737
      %4849 = vmatprep.subr.bf16.mxu0 %v740
      %4850 = vmatpush1.bf16.msra.mxu0 %v739
      %4851 = vmatprep.subr.bf16.mxu0 %v742
      %4852 = vmatpush1.bf16.msra.mxu0 %v741
      %4853 = vmatprep.subr.bf16.mxu0 %v744
      %4854 = vmatpush1.bf16.msra.mxu0 %v743
      %4855 = vmatprep.subr.bf16.mxu0 %v746
      %4856 = vmatpush1.bf16.msra.mxu0 %v745
      %4857 = vmatprep.mubr.bf16.mxu0 %v2831
      %4858 = vmatmul.mubr.bf16.gmra.mrb[0].mxu0 %v2830
      %v4859 = vpop.f32.mrb[0].mxu0
      %v4860 = vadd.f32 %v4389, %v4859
      %v4861 = vpop.f32.mrb[0].mxu0
      %v4862 = vadd.f32 %v4391, %v4861
      %v4863 = vpop.f32.mrb[0].mxu0
      %v4864 = vadd.f32 %v4393, %v4863
      %v4865 = vpop.f32.mrb[0].mxu0
      %v4866 = vadd.f32 %v4395, %v4865
      %4867 = vmatprep.mubr.bf16.mxu0 %v2842
      %4868 = vmatmul.mubr.bf16.gmra.mrb[0].mxu0 %v2841
      %v4869 = vpop.f32.mrb[0].mxu0
      %v4870 = vadd.f32 %v4399, %v4869
      %v4871 = vpop.f32.mrb[0].mxu0
      %v4872 = vadd.f32 %v4401, %v4871
      %v4873 = vpop.f32.mrb[0].mxu0
      %v4874 = vadd.f32 %v4403, %v4873
      %v4875 = vpop.f32.mrb[0].mxu0
      %v4876 = vadd.f32 %v4405, %v4875
      %4877 = vmatprep.mubr.bf16.mxu0 %v2853
      %4878 = vmatmul.mubr.bf16.gmra.mrb[0].mxu0 %v2852
      %v4879 = vpop.f32.mrb[0].mxu0
      %v4880 = vadd.f32 %v4409, %v4879
      %v4881 = vpop.f32.mrb[0].mxu0
      %v4882 = vadd.f32 %v4411, %v4881
      %v4883 = vpop.f32.mrb[0].mxu0
      %v4884 = vadd.f32 %v4413, %v4883
      %v4885 = vpop.f32.mrb[0].mxu0
      %v4886 = vadd.f32 %v4415, %v4885
      %4887 = vmatprep.mubr.bf16.mxu0 %v2864
      %4888 = vmatmul.mubr.bf16.gmra.mrb[0].mxu0 %v2863
      %v4889 = vpop.f32.mrb[0].mxu0
      %v4890 = vadd.f32 %v4419, %v4889
      %v4891 = vpop.f32.mrb[0].mxu0
      %v4892 = vadd.f32 %v4421, %v4891
      %v4893 = vpop.f32.mrb[0].mxu0
      %v4894 = vadd.f32 %v4423, %v4893
      %v4895 = vpop.f32.mrb[0].mxu0
      %v4896 = vadd.f32 %v4425, %v4895
      %4897 = vmatprep.mubr.bf16.mxu0 %v2875
      %4898 = vmatmul.mubr.bf16.gmra.mrb[0].mxu0 %v2874
      %v4899 = vpop.f32.mrb[0].mxu0
      %v4900 = vadd.f32 %v4429, %v4899
      %v4901 = vpop.f32.mrb[0].mxu0
      %v4902 = vadd.f32 %v4431, %v4901
      %v4903 = vpop.f32.mrb[0].mxu0
      %v4904 = vadd.f32 %v4433, %v4903
      %v4905 = vpop.f32.mrb[0].mxu0
      %v4906 = vadd.f32 %v4435, %v4905
      %4907 = vmatprep.mubr.bf16.mxu0 %v2886
      %4908 = vmatmul.mubr.bf16.gmra.mrb[0].mxu0 %v2885
      %v4909 = vpop.f32.mrb[0].mxu0
      %v4910 = vadd.f32 %v4439, %v4909
      %v4911 = vpop.f32.mrb[0].mxu0
      %v4912 = vadd.f32 %v4441, %v4911
      %v4913 = vpop.f32.mrb[0].mxu0
      %v4914 = vadd.f32 %v4443, %v4913
      %v4915 = vpop.f32.mrb[0].mxu0
      %v4916 = vadd.f32 %v4445, %v4915
      %4917 = vmatprep.mubr.bf16.mxu0 %v2897
      %4918 = vmatmul.mubr.bf16.gmra.mrb[0].mxu0 %v2896
      %v4919 = vpop.f32.mrb[0].mxu0
      %v4920 = vadd.f32 %v4449, %v4919
      %v4921 = vpop.f32.mrb[0].mxu0
      %v4922 = vadd.f32 %v4451, %v4921
      %v4923 = vpop.f32.mrb[0].mxu0
      %v4924 = vadd.f32 %v4453, %v4923
      %v4925 = vpop.f32.mrb[0].mxu0
      %v4926 = vadd.f32 %v4455, %v4925
      %4927 = vmatprep.mubr.bf16.mxu0 %v2908
      %4928 = vmatmul.mubr.bf16.gmra.mrb[0].mxu0 %v2907
      %v4929 = vpop.f32.mrb[0].mxu0
      %v4930 = vadd.f32 %v4459, %v4929
      %v4931 = vpop.f32.mrb[0].mxu0
      %v4932 = vadd.f32 %v4461, %v4931
      %v4933 = vpop.f32.mrb[0].mxu0
      %v4934 = vadd.f32 %v4463, %v4933
      %v4935 = vpop.f32.mrb[0].mxu0
      %v4936 = vadd.f32 %v4465, %v4935
      %4937 = vmatprep.mubr.bf16.mxu0 %v2919
      %4938 = vmatmul.mubr.bf16.gmra.mrb[0].mxu0 %v2918
      %v4939 = vpop.f32.mrb[0].mxu0
      %v4940 = vadd.f32 %v4469, %v4939
      %v4941 = vpop.f32.mrb[0].mxu0
      %v4942 = vadd.f32 %v4471, %v4941
      %v4943 = vpop.f32.mrb[0].mxu0
      %v4944 = vadd.f32 %v4473, %v4943
      %v4945 = vpop.f32.mrb[0].mxu0
      %v4946 = vadd.f32 %v4475, %v4945
      %4947 = vmatprep.mubr.bf16.mxu0 %v2930
      %4948 = vmatmul.mubr.bf16.gmra.mrb[0].mxu0 %v2929
      %v4949 = vpop.f32.mrb[0].mxu0
      %v4950 = vadd.f32 %v4479, %v4949
      %v4951 = vpop.f32.mrb[0].mxu0
      %v4952 = vadd.f32 %v4481, %v4951
      %v4953 = vpop.f32.mrb[0].mxu0
      %v4954 = vadd.f32 %v4483, %v4953
      %v4955 = vpop.f32.mrb[0].mxu0
      %v4956 = vadd.f32 %v4485, %v4955
      %4957 = vmatprep.mubr.bf16.mxu0 %v2941
      %4958 = vmatmul.mubr.bf16.gmra.mrb[0].mxu0 %v2940
      %v4959 = vpop.f32.mrb[0].mxu0
      %v4960 = vadd.f32 %v4489, %v4959
      %v4961 = vpop.f32.mrb[0].mxu0
      %v4962 = vadd.f32 %v4491, %v4961
      %v4963 = vpop.f32.mrb[0].mxu0
      %v4964 = vadd.f32 %v4493, %v4963
      %v4965 = vpop.f32.mrb[0].mxu0
      %v4966 = vadd.f32 %v4495, %v4965
      %4967 = vmatprep.mubr.bf16.mxu0 %v2952
      %4968 = vmatmul.mubr.bf16.gmra.mrb[0].mxu0 %v2951
      %v4969 = vpop.f32.mrb[0].mxu0
      %v4970 = vadd.f32 %v4499, %v4969
      %v4971 = vpop.f32.mrb[0].mxu0
      %v4972 = vadd.f32 %v4501, %v4971
      %v4973 = vpop.f32.mrb[0].mxu0
      %v4974 = vadd.f32 %v4503, %v4973
      %v4975 = vpop.f32.mrb[0].mxu0
      %v4976 = vadd.f32 %v4505, %v4975
      %4977 = vmatprep.mubr.bf16.mxu0 %v2963
      %4978 = vmatmul.mubr.bf16.gmra.mrb[0].mxu0 %v2962
      %v4979 = vpop.f32.mrb[0].mxu0
      %v4980 = vadd.f32 %v4509, %v4979
      %v4981 = vpop.f32.mrb[0].mxu0
      %v4982 = vadd.f32 %v4511, %v4981
      %v4983 = vpop.f32.mrb[0].mxu0
      %v4984 = vadd.f32 %v4513, %v4983
      %v4985 = vpop.f32.mrb[0].mxu0
      %v4986 = vadd.f32 %v4515, %v4985
      %4987 = vmatprep.mubr.bf16.mxu0 %v2974
      %4988 = vmatmul.mubr.bf16.gmra.mrb[0].mxu0 %v2973
      %v4989 = vpop.f32.mrb[0].mxu0
      %v4990 = vadd.f32 %v4519, %v4989
      %v4991 = vpop.f32.mrb[0].mxu0
      %v4992 = vadd.f32 %v4521, %v4991
      %v4993 = vpop.f32.mrb[0].mxu0
      %v4994 = vadd.f32 %v4523, %v4993
      %v4995 = vpop.f32.mrb[0].mxu0
      %v4996 = vadd.f32 %v4525, %v4995
      %4997 = vmatprep.mubr.bf16.mxu0 %v2985
      %4998 = vmatmul.mubr.bf16.gmra.mrb[0].mxu0 %v2984
      %v4999 = vpop.f32.mrb[0].mxu0
      %v5000 = vadd.f32 %v4529, %v4999
      %v5001 = vpop.f32.mrb[0].mxu0
      %v5002 = vadd.f32 %v4531, %v5001
      %v5003 = vpop.f32.mrb[0].mxu0
      %v5004 = vadd.f32 %v4533, %v5003
      %v5005 = vpop.f32.mrb[0].mxu0
      %v5006 = vadd.f32 %v4535, %v5005
      %5007 = vmatprep.mubr.bf16.mxu0 %v2996
      %5008 = vmatmul.mubr.bf16.gmra.mrb[0].mxu0 %v2995
      %v5009 = vpop.f32.mrb[0].mxu0
      %v5010 = vadd.f32 %v4539, %v5009
      %v5011 = vpop.f32.mrb[0].mxu0
      %v5012 = vadd.f32 %v4541, %v5011
      %v5013 = vpop.f32.mrb[0].mxu0
      %v5014 = vadd.f32 %v4543, %v5013
      %v5015 = vpop.f32.mrb[0].mxu0
      %v5016 = vadd.f32 %v4545, %v5015
      %5017 = vmatprep.mubr.bf16.mxu0 %v3007
      %5018 = vmatmul.mubr.bf16.gmra.mrb[0].mxu0 %v3006
      %v5019 = vpop.f32.mrb[0].mxu0
      %v5020 = vadd.f32 %v4549, %v5019
      %v5021 = vpop.f32.mrb[0].mxu0
      %v5022 = vadd.f32 %v4551, %v5021
      %v5023 = vpop.f32.mrb[0].mxu0
      %v5024 = vadd.f32 %v4553, %v5023
      %v5025 = vpop.f32.mrb[0].mxu0
      %v5026 = vadd.f32 %v4555, %v5025
      %5027 = vmatprep.mubr.bf16.mxu0 %v3018
      %5028 = vmatmul.mubr.bf16.gmra.mrb[0].mxu0 %v3017
      %v5029 = vpop.f32.mrb[0].mxu0
      %v5030 = vadd.f32 %v4559, %v5029
      %v5031 = vpop.f32.mrb[0].mxu0
      %v5032 = vadd.f32 %v4561, %v5031
      %v5033 = vpop.f32.mrb[0].mxu0
      %v5034 = vadd.f32 %v4563, %v5033
      %v5035 = vpop.f32.mrb[0].mxu0
      %v5036 = vadd.f32 %v4565, %v5035
      %5037 = vmatprep.mubr.bf16.mxu0 %v3029
      %5038 = vmatmul.mubr.bf16.gmra.mrb[0].mxu0 %v3028
      %v5039 = vpop.f32.mrb[0].mxu0
      %v5040 = vadd.f32 %v4569, %v5039
      %v5041 = vpop.f32.mrb[0].mxu0
      %v5042 = vadd.f32 %v4571, %v5041
      %v5043 = vpop.f32.mrb[0].mxu0
      %v5044 = vadd.f32 %v4573, %v5043
      %v5045 = vpop.f32.mrb[0].mxu0
      %v5046 = vadd.f32 %v4575, %v5045
      %5047 = vmatprep.mubr.bf16.mxu0 %v3040
      %5048 = vmatmul.mubr.bf16.gmra.mrb[0].mxu0 %v3039
      %v5049 = vpop.f32.mrb[0].mxu0
      %v5050 = vadd.f32 %v4579, %v5049
      %v5051 = vpop.f32.mrb[0].mxu0
      %v5052 = vadd.f32 %v4581, %v5051
      %v5053 = vpop.f32.mrb[0].mxu0
      %v5054 = vadd.f32 %v4583, %v5053
      %v5055 = vpop.f32.mrb[0].mxu0
      %v5056 = vadd.f32 %v4585, %v5055
      %5057 = vmatprep.mubr.bf16.mxu0 %v3051
      %5058 = vmatmul.mubr.bf16.gmra.mrb[0].mxu0 %v3050
      %v5059 = vpop.f32.mrb[0].mxu0
      %v5060 = vadd.f32 %v4589, %v5059
      %v5061 = vpop.f32.mrb[0].mxu0
      %v5062 = vadd.f32 %v4591, %v5061
      %v5063 = vpop.f32.mrb[0].mxu0
      %v5064 = vadd.f32 %v4593, %v5063
      %v5065 = vpop.f32.mrb[0].mxu0
      %v5066 = vadd.f32 %v4595, %v5065
      %5067 = vmatprep.mubr.bf16.mxu0 %v3062
      %5068 = vmatmul.mubr.bf16.gmra.mrb[0].mxu0 %v3061
      %v5069 = vpop.f32.mrb[0].mxu0
      %v5070 = vadd.f32 %v4599, %v5069
      %v5071 = vpop.f32.mrb[0].mxu0
      %v5072 = vadd.f32 %v4601, %v5071
      %v5073 = vpop.f32.mrb[0].mxu0
      %v5074 = vadd.f32 %v4603, %v5073
      %v5075 = vpop.f32.mrb[0].mxu0
      %v5076 = vadd.f32 %v4605, %v5075
      %5077 = vmatprep.mubr.bf16.mxu0 %v3073
      %5078 = vmatmul.mubr.bf16.gmra.mrb[0].mxu0 %v3072
      %v5079 = vpop.f32.mrb[0].mxu0
      %v5080 = vadd.f32 %v4609, %v5079
      %v5081 = vpop.f32.mrb[0].mxu0
      %v5082 = vadd.f32 %v4611, %v5081
      %v5083 = vpop.f32.mrb[0].mxu0
      %v5084 = vadd.f32 %v4613, %v5083
      %v5085 = vpop.f32.mrb[0].mxu0
      %v5086 = vadd.f32 %v4615, %v5085
      %5087 = vmatprep.mubr.bf16.mxu0 %v3084
      %5088 = vmatmul.mubr.bf16.gmra.mrb[0].mxu0 %v3083
      %v5089 = vpop.f32.mrb[0].mxu0
      %v5090 = vadd.f32 %v4619, %v5089
      %v5091 = vpop.f32.mrb[0].mxu0
      %v5092 = vadd.f32 %v4621, %v5091
      %v5093 = vpop.f32.mrb[0].mxu0
      %v5094 = vadd.f32 %v4623, %v5093
      %v5095 = vpop.f32.mrb[0].mxu0
      %v5096 = vadd.f32 %v4625, %v5095
      %5097 = vmatprep.mubr.bf16.mxu0 %v3095
      %5098 = vmatmul.mubr.bf16.gmra.mrb[0].mxu0 %v3094
      %v5099 = vpop.f32.mrb[0].mxu0
      %v5100 = vadd.f32 %v4629, %v5099
      %v5101 = vpop.f32.mrb[0].mxu0
      %v5102 = vadd.f32 %v4631, %v5101
      %v5103 = vpop.f32.mrb[0].mxu0
      %v5104 = vadd.f32 %v4633, %v5103
      %v5105 = vpop.f32.mrb[0].mxu0
      %v5106 = vadd.f32 %v4635, %v5105
      %5107 = vmatprep.mubr.bf16.mxu0 %v3106
      %5108 = vmatmul.mubr.bf16.gmra.mrb[0].mxu0 %v3105
      %v5109 = vpop.f32.mrb[0].mxu0
      %v5110 = vadd.f32 %v4639, %v5109
      %v5111 = vpop.f32.mrb[0].mxu0
      %v5112 = vadd.f32 %v4641, %v5111
      %v5113 = vpop.f32.mrb[0].mxu0
      %v5114 = vadd.f32 %v4643, %v5113
      %v5115 = vpop.f32.mrb[0].mxu0
      %v5116 = vadd.f32 %v4645, %v5115
      %5117 = vmatprep.mubr.bf16.mxu0 %v3117
      %5118 = vmatmul.mubr.bf16.gmra.mrb[0].mxu0 %v3116
      %v5119 = vpop.f32.mrb[0].mxu0
      %v5120 = vadd.f32 %v4649, %v5119
      %v5121 = vpop.f32.mrb[0].mxu0
      %v5122 = vadd.f32 %v4651, %v5121
      %v5123 = vpop.f32.mrb[0].mxu0
      %v5124 = vadd.f32 %v4653, %v5123
      %v5125 = vpop.f32.mrb[0].mxu0
      %v5126 = vadd.f32 %v4655, %v5125
      %5127 = vmatprep.mubr.bf16.mxu0 %v3128
      %5128 = vmatmul.mubr.bf16.gmra.mrb[0].mxu0 %v3127
      %v5129 = vpop.f32.mrb[0].mxu0
      %v5130 = vadd.f32 %v4659, %v5129
      %v5131 = vpop.f32.mrb[0].mxu0
      %v5132 = vadd.f32 %v4661, %v5131
      %v5133 = vpop.f32.mrb[0].mxu0
      %v5134 = vadd.f32 %v4663, %v5133
      %v5135 = vpop.f32.mrb[0].mxu0
      %v5136 = vadd.f32 %v4665, %v5135
      %5137 = vmatprep.mubr.bf16.mxu0 %v3139
      %5138 = vmatmul.mubr.bf16.gmra.mrb[0].mxu0 %v3138
      %v5139 = vpop.f32.mrb[0].mxu0
      %v5140 = vadd.f32 %v4669, %v5139
      %v5141 = vpop.f32.mrb[0].mxu0
      %v5142 = vadd.f32 %v4671, %v5141
      %v5143 = vpop.f32.mrb[0].mxu0
      %v5144 = vadd.f32 %v4673, %v5143
      %v5145 = vpop.f32.mrb[0].mxu0
      %v5146 = vadd.f32 %v4675, %v5145
      %5147 = vmatprep.mubr.bf16.mxu0 %v3150
      %5148 = vmatmul.mubr.bf16.gmra.mrb[0].mxu0 %v3149
      %v5149 = vpop.f32.mrb[0].mxu0
      %v5150 = vadd.f32 %v4679, %v5149
      %v5151 = vpop.f32.mrb[0].mxu0
      %v5152 = vadd.f32 %v4681, %v5151
      %v5153 = vpop.f32.mrb[0].mxu0
      %v5154 = vadd.f32 %v4683, %v5153
      %v5155 = vpop.f32.mrb[0].mxu0
      %v5156 = vadd.f32 %v4685, %v5155
      %5157 = vmatprep.mubr.bf16.mxu0 %v3161
      %5158 = vmatmul.mubr.bf16.gmra.mrb[0].mxu0 %v3160
      %v5159 = vpop.f32.mrb[0].mxu0
      %v5160 = vadd.f32 %v4689, %v5159
      %v5161 = vpop.f32.mrb[0].mxu0
      %v5162 = vadd.f32 %v4691, %v5161
      %v5163 = vpop.f32.mrb[0].mxu0
      %v5164 = vadd.f32 %v4693, %v5163
      %v5165 = vpop.f32.mrb[0].mxu0
      %v5166 = vadd.f32 %v4695, %v5165
      %5167 = vmatprep.mubr.bf16.mxu0 %v3172
      %5168 = vmatmul.mubr.bf16.gmra.mrb[0].mxu0 %v3171
      %v5169 = vpop.f32.mrb[0].mxu0
      %v5170 = vadd.f32 %v4699, %v5169
      %v5171 = vpop.f32.mrb[0].mxu0
      %v5172 = vadd.f32 %v4701, %v5171
      %v5173 = vpop.f32.mrb[0].mxu0
      %v5174 = vadd.f32 %v4703, %v5173
      %v5175 = vpop.f32.mrb[0].mxu0
      %v5176 = vadd.f32 %v4705, %v5175
      %5177 = vmatprep.mubr.bf16.mxu0 %v3183
      %5178 = vmatmul.mubr.bf16.gmra.mrb[0].mxu0 %v3182
      %v5179 = vpop.f32.mrb[0].mxu0
      %v5180 = vadd.f32 %v4709, %v5179
      %v5181 = vpop.f32.mrb[0].mxu0
      %v5182 = vadd.f32 %v4711, %v5181
      %v5183 = vpop.f32.mrb[0].mxu0
      %v5184 = vadd.f32 %v4713, %v5183
      %v5185 = vpop.f32.mrb[0].mxu0
      %v5186 = vadd.f32 %v4715, %v5185
      %5187 = vmatprep.mubr.bf16.mxu0 %v3194
      %5188 = vmatmul.mubr.bf16.gmra.mrb[0].mxu0 %v3193
      %v5189 = vpop.f32.mrb[0].mxu0
      %v5190 = vadd.f32 %v4719, %v5189
      %v5191 = vpop.f32.mrb[0].mxu0
      %v5192 = vadd.f32 %v4721, %v5191
      %v5193 = vpop.f32.mrb[0].mxu0
      %v5194 = vadd.f32 %v4723, %v5193
      %v5195 = vpop.f32.mrb[0].mxu0
      %v5196 = vadd.f32 %v4725, %v5195
      %5197 = vmatprep.mubr.bf16.mxu0 %v3205
      %5198 = vmatmul.mubr.bf16.gmra.mrb[0].mxu0 %v3204
      %v5199 = vpop.f32.mrb[0].mxu0
      %v5200 = vadd.f32 %v4729, %v5199
      %v5201 = vpop.f32.mrb[0].mxu0
      %v5202 = vadd.f32 %v4731, %v5201
      %v5203 = vpop.f32.mrb[0].mxu0
      %v5204 = vadd.f32 %v4733, %v5203
      %v5205 = vpop.f32.mrb[0].mxu0
      %v5206 = vadd.f32 %v4735, %v5205
      %5207 = vmatprep.mubr.bf16.mxu0 %v3216
      %5208 = vmatmul.mubr.bf16.gmra.mrb[0].mxu0 %v3215
      %v5209 = vpop.f32.mrb[0].mxu0
      %v5210 = vadd.f32 %v4739, %v5209
      %v5211 = vpop.f32.mrb[0].mxu0
      %v5212 = vadd.f32 %v4741, %v5211
      %v5213 = vpop.f32.mrb[0].mxu0
      %v5214 = vadd.f32 %v4743, %v5213
      %v5215 = vpop.f32.mrb[0].mxu0
      %v5216 = vadd.f32 %v4745, %v5215
      %5217 = vmatprep.mubr.bf16.mxu0 %v3227
      %5218 = vmatmul.mubr.bf16.gmra.mrb[0].mxu0 %v3226
      %v5219 = vpop.f32.mrb[0].mxu0
      %v5220 = vadd.f32 %v4749, %v5219
      %v5221 = vpop.f32.mrb[0].mxu0
      %v5222 = vadd.f32 %v4751, %v5221
      %v5223 = vpop.f32.mrb[0].mxu0
      %v5224 = vadd.f32 %v4753, %v5223
      %v5225 = vpop.f32.mrb[0].mxu0
      %v5226 = vadd.f32 %v4755, %v5225
      %5227 = vmatprep.mubr.bf16.mxu0 %v3238
      %5228 = vmatmul.mubr.bf16.gmra.mrb[0].mxu0 %v3237
      %v5229 = vpop.f32.mrb[0].mxu0
      %v5230 = vadd.f32 %v4759, %v5229
      %v5231 = vpop.f32.mrb[0].mxu0
      %v5232 = vadd.f32 %v4761, %v5231
      %v5233 = vpop.f32.mrb[0].mxu0
      %v5234 = vadd.f32 %v4763, %v5233
      %v5235 = vpop.f32.mrb[0].mxu0
      %v5236 = vadd.f32 %v4765, %v5235
      %5237 = vmatprep.mubr.bf16.mxu0 %v3249
      %5238 = vmatmul.mubr.bf16.gmra.mrb[0].mxu0 %v3248
      %v5239 = vpop.f32.mrb[0].mxu0
      %v5240 = vadd.f32 %v4769, %v5239
      %v5241 = vpop.f32.mrb[0].mxu0
      %v5242 = vadd.f32 %v4771, %v5241
      %v5243 = vpop.f32.mrb[0].mxu0
      %v5244 = vadd.f32 %v4773, %v5243
      %v5245 = vpop.f32.mrb[0].mxu0
      %v5246 = vadd.f32 %v4775, %v5245
      %5247 = vmatprep.mubr.bf16.mxu0 %v3260
      %5248 = vmatmul.mubr.bf16.gmra.mrb[0].mxu0 %v3259
      %v5249 = vpop.f32.mrb[0].mxu0
      %v5250 = vadd.f32 %v4779, %v5249
      %v5251 = vpop.f32.mrb[0].mxu0
      %v5252 = vadd.f32 %v4781, %v5251
      %v5253 = vpop.f32.mrb[0].mxu0
      %v5254 = vadd.f32 %v4783, %v5253
      %v5255 = vpop.f32.mrb[0].mxu0
      %v5256 = vadd.f32 %v4785, %v5255
      %5257 = vmatprep.mubr.bf16.mxu0 %v3271
      %5258 = vmatmul.mubr.bf16.gmra.mrb[0].mxu0 %v3270
      %v5259 = vpop.f32.mrb[0].mxu0
      %v5260 = vadd.f32 %v4789, %v5259
      %v5261 = vpop.f32.mrb[0].mxu0
      %v5262 = vadd.f32 %v4791, %v5261
      %v5263 = vpop.f32.mrb[0].mxu0
      %v5264 = vadd.f32 %v4793, %v5263
      %v5265 = vpop.f32.mrb[0].mxu0
      %v5266 = vadd.f32 %v4795, %v5265
      %5267 = vmatprep.mubr.bf16.mxu0 %v3282
      %5268 = vmatmul.mubr.bf16.gmra.mrb[0].mxu0 %v3281
      %v5269 = vpop.f32.mrb[0].mxu0
      %v5270 = vadd.f32 %v4799, %v5269
      %v5271 = vpop.f32.mrb[0].mxu0
      %v5272 = vadd.f32 %v4801, %v5271
      %v5273 = vpop.f32.mrb[0].mxu0
      %v5274 = vadd.f32 %v4803, %v5273
      %v5275 = vpop.f32.mrb[0].mxu0
      %v5276 = vadd.f32 %v4805, %v5275
      %5277 = vmatprep.mubr.bf16.mxu0 %v3293
      %5278 = vmatmul.mubr.bf16.gmra.mrb[0].mxu0 %v3292
      %v5279 = vpop.f32.mrb[0].mxu0
      %v5280 = vadd.f32 %v4809, %v5279
      %v5281 = vpop.f32.mrb[0].mxu0
      %v5282 = vadd.f32 %v4811, %v5281
      %v5283 = vpop.f32.mrb[0].mxu0
      %v5284 = vadd.f32 %v4813, %v5283
      %v5285 = vpop.f32.mrb[0].mxu0
      %v5286 = vadd.f32 %v4815, %v5285
      %5287 = vmatprep.mubr.bf16.mxu0 %v3304
      %5288 = vmatmul.mubr.bf16.gmra.mrb[0].mxu0 %v3303
      %v5289 = vpop.f32.mrb[0].mxu0
      %v5290 = vadd.f32 %v4819, %v5289
      %v5291 = vpop.f32.mrb[0].mxu0
      %v5292 = vadd.f32 %v4821, %v5291
      %v5293 = vpop.f32.mrb[0].mxu0
      %v5294 = vpop.f32.mrb[0].mxu0
      %5295 = vdwg.mxu0
      %5296 = vmatprep.subr.bf16.mxu0 %v748
      %5297 = vmatpush1.bf16.msra.mxu0 %v747
      %5298 = vmatprep.subr.bf16.mxu0 %v750
      %5299 = vmatpush1.bf16.msra.mxu0 %v749
      %5300 = vmatprep.subr.bf16.mxu0 %v752
      %5301 = vmatpush1.bf16.msra.mxu0 %v751
      %5302 = vmatprep.subr.bf16.mxu0 %v754
      %5303 = vmatpush1.bf16.msra.mxu0 %v753
      %5304 = vmatprep.subr.bf16.mxu0 %v756
      %5305 = vmatpush1.bf16.msra.mxu0 %v755
      %5306 = vmatprep.subr.bf16.mxu0 %v758
      %5307 = vmatpush1.bf16.msra.mxu0 %v757
      %5308 = vmatprep.subr.bf16.mxu0 %v760
      %5309 = vmatpush1.bf16.msra.mxu0 %v759
      %5310 = vmatprep.subr.bf16.mxu0 %v762
      %5311 = vmatpush1.bf16.msra.mxu0 %v761
      %5312 = vmatprep.subr.bf16.mxu0 %v764
      %5313 = vmatpush1.bf16.msra.mxu0 %v763
      %5314 = vmatprep.subr.bf16.mxu0 %v766
      %5315 = vmatpush1.bf16.msra.mxu0 %v765
      %5316 = vmatprep.subr.bf16.mxu0 %v768
      %5317 = vmatpush1.bf16.msra.mxu0 %v767
      %5318 = vmatprep.subr.bf16.mxu0 %v770
      %5319 = vmatpush1.bf16.msra.mxu0 %v769
      %5320 = vmatprep.subr.bf16.mxu0 %v772
      %5321 = vmatpush1.bf16.msra.mxu0 %v771
      %5322 = vmatprep.subr.bf16.mxu0 %v774
      %5323 = vmatpush1.bf16.msra.mxu0 %v773
      %5324 = vmatprep.subr.bf16.mxu0 %v776
      %5325 = vmatpush1.bf16.msra.mxu0 %v775
      %5326 = vmatprep.subr.bf16.mxu0 %v778
      %5327 = vmatpush1.bf16.msra.mxu0 %v777
      %5328 = vmatprep.mubr.bf16.mxu0 %v2833
      %5329 = vmatmul.mubr.bf16.gmra.mrb[0].mxu0 %v2832
      %v5330 = vpop.f32.mrb[0].mxu0
      %v5331 = vadd.f32 %v4860, %v5330
      %v5332 = vpop.f32.mrb[0].mxu0
      %v5333 = vadd.f32 %v4862, %v5332
      %v5334 = vpop.f32.mrb[0].mxu0
      %v5335 = vadd.f32 %v4864, %v5334
      %v5336 = vpop.f32.mrb[0].mxu0
      %v5337 = vadd.f32 %v4866, %v5336
      %5338 = vmatprep.mubr.bf16.mxu0 %v2844
      %5339 = vmatmul.mubr.bf16.gmra.mrb[0].mxu0 %v2843
      %v5340 = vpop.f32.mrb[0].mxu0
      %v5341 = vadd.f32 %v4870, %v5340
      %v5342 = vpop.f32.mrb[0].mxu0
      %v5343 = vadd.f32 %v4872, %v5342
      %v5344 = vpop.f32.mrb[0].mxu0
      %v5345 = vadd.f32 %v4874, %v5344
      %v5346 = vpop.f32.mrb[0].mxu0
      %v5347 = vadd.f32 %v4876, %v5346
      %5348 = vmatprep.mubr.bf16.mxu0 %v2855
      %5349 = vmatmul.mubr.bf16.gmra.mrb[0].mxu0 %v2854
      %v5350 = vpop.f32.mrb[0].mxu0
      %v5351 = vadd.f32 %v4880, %v5350
      %v5352 = vpop.f32.mrb[0].mxu0
      %v5353 = vadd.f32 %v4882, %v5352
      %v5354 = vpop.f32.mrb[0].mxu0
      %v5355 = vadd.f32 %v4884, %v5354
      %v5356 = vpop.f32.mrb[0].mxu0
      %v5357 = vadd.f32 %v4886, %v5356
      %5358 = vmatprep.mubr.bf16.mxu0 %v2866
      %5359 = vmatmul.mubr.bf16.gmra.mrb[0].mxu0 %v2865
      %v5360 = vpop.f32.mrb[0].mxu0
      %v5361 = vadd.f32 %v4890, %v5360
      %v5362 = vpop.f32.mrb[0].mxu0
      %v5363 = vadd.f32 %v4892, %v5362
      %v5364 = vpop.f32.mrb[0].mxu0
      %v5365 = vadd.f32 %v4894, %v5364
      %v5366 = vpop.f32.mrb[0].mxu0
      %v5367 = vadd.f32 %v4896, %v5366
      %5368 = vmatprep.mubr.bf16.mxu0 %v2877
      %5369 = vmatmul.mubr.bf16.gmra.mrb[0].mxu0 %v2876
      %v5370 = vpop.f32.mrb[0].mxu0
      %v5371 = vadd.f32 %v4900, %v5370
      %v5372 = vpop.f32.mrb[0].mxu0
      %v5373 = vadd.f32 %v4902, %v5372
      %v5374 = vpop.f32.mrb[0].mxu0
      %v5375 = vadd.f32 %v4904, %v5374
      %v5376 = vpop.f32.mrb[0].mxu0
      %v5377 = vadd.f32 %v4906, %v5376
      %5378 = vmatprep.mubr.bf16.mxu0 %v2888
      %5379 = vmatmul.mubr.bf16.gmra.mrb[0].mxu0 %v2887
      %v5380 = vpop.f32.mrb[0].mxu0
      %v5381 = vadd.f32 %v4910, %v5380
      %v5382 = vpop.f32.mrb[0].mxu0
      %v5383 = vadd.f32 %v4912, %v5382
      %v5384 = vpop.f32.mrb[0].mxu0
      %v5385 = vadd.f32 %v4914, %v5384
      %v5386 = vpop.f32.mrb[0].mxu0
      %v5387 = vadd.f32 %v4916, %v5386
      %5388 = vmatprep.mubr.bf16.mxu0 %v2899
      %5389 = vmatmul.mubr.bf16.gmra.mrb[0].mxu0 %v2898
      %v5390 = vpop.f32.mrb[0].mxu0
      %v5391 = vadd.f32 %v4920, %v5390
      %v5392 = vpop.f32.mrb[0].mxu0
      %v5393 = vadd.f32 %v4922, %v5392
      %v5394 = vpop.f32.mrb[0].mxu0
      %v5395 = vadd.f32 %v4924, %v5394
      %v5396 = vpop.f32.mrb[0].mxu0
      %v5397 = vadd.f32 %v4926, %v5396
      %5398 = vmatprep.mubr.bf16.mxu0 %v2910
      %5399 = vmatmul.mubr.bf16.gmra.mrb[0].mxu0 %v2909
      %v5400 = vpop.f32.mrb[0].mxu0
      %v5401 = vadd.f32 %v4930, %v5400
      %v5402 = vpop.f32.mrb[0].mxu0
      %v5403 = vadd.f32 %v4932, %v5402
      %v5404 = vpop.f32.mrb[0].mxu0
      %v5405 = vadd.f32 %v4934, %v5404
      %v5406 = vpop.f32.mrb[0].mxu0
      %v5407 = vadd.f32 %v4936, %v5406
      %5408 = vmatprep.mubr.bf16.mxu0 %v2921
      %5409 = vmatmul.mubr.bf16.gmra.mrb[0].mxu0 %v2920
      %v5410 = vpop.f32.mrb[0].mxu0
      %v5411 = vadd.f32 %v4940, %v5410
      %v5412 = vpop.f32.mrb[0].mxu0
      %v5413 = vadd.f32 %v4942, %v5412
      %v5414 = vpop.f32.mrb[0].mxu0
      %v5415 = vadd.f32 %v4944, %v5414
      %v5416 = vpop.f32.mrb[0].mxu0
      %v5417 = vadd.f32 %v4946, %v5416
      %5418 = vmatprep.mubr.bf16.mxu0 %v2932
      %5419 = vmatmul.mubr.bf16.gmra.mrb[0].mxu0 %v2931
      %v5420 = vpop.f32.mrb[0].mxu0
      %v5421 = vadd.f32 %v4950, %v5420
      %v5422 = vpop.f32.mrb[0].mxu0
      %v5423 = vadd.f32 %v4952, %v5422
      %v5424 = vpop.f32.mrb[0].mxu0
      %v5425 = vadd.f32 %v4954, %v5424
      %v5426 = vpop.f32.mrb[0].mxu0
      %v5427 = vadd.f32 %v4956, %v5426
      %5428 = vmatprep.mubr.bf16.mxu0 %v2943
      %5429 = vmatmul.mubr.bf16.gmra.mrb[0].mxu0 %v2942
      %v5430 = vpop.f32.mrb[0].mxu0
      %v5431 = vadd.f32 %v4960, %v5430
      %v5432 = vpop.f32.mrb[0].mxu0
      %v5433 = vadd.f32 %v4962, %v5432
      %v5434 = vpop.f32.mrb[0].mxu0
      %v5435 = vadd.f32 %v4964, %v5434
      %v5436 = vpop.f32.mrb[0].mxu0
      %v5437 = vadd.f32 %v4966, %v5436
      %5438 = vmatprep.mubr.bf16.mxu0 %v2954
      %5439 = vmatmul.mubr.bf16.gmra.mrb[0].mxu0 %v2953
      %v5440 = vpop.f32.mrb[0].mxu0
      %v5441 = vadd.f32 %v4970, %v5440
      %v5442 = vpop.f32.mrb[0].mxu0
      %v5443 = vadd.f32 %v4972, %v5442
      %v5444 = vpop.f32.mrb[0].mxu0
      %v5445 = vadd.f32 %v4974, %v5444
      %v5446 = vpop.f32.mrb[0].mxu0
      %v5447 = vadd.f32 %v4976, %v5446
      %5448 = vmatprep.mubr.bf16.mxu0 %v2965
      %5449 = vmatmul.mubr.bf16.gmra.mrb[0].mxu0 %v2964
      %v5450 = vpop.f32.mrb[0].mxu0
      %v5451 = vadd.f32 %v4980, %v5450
      %v5452 = vpop.f32.mrb[0].mxu0
      %v5453 = vadd.f32 %v4982, %v5452
      %v5454 = vpop.f32.mrb[0].mxu0
      %v5455 = vadd.f32 %v4984, %v5454
      %v5456 = vpop.f32.mrb[0].mxu0
      %v5457 = vadd.f32 %v4986, %v5456
      %5458 = vmatprep.mubr.bf16.mxu0 %v2976
      %5459 = vmatmul.mubr.bf16.gmra.mrb[0].mxu0 %v2975
      %v5460 = vpop.f32.mrb[0].mxu0
      %v5461 = vadd.f32 %v4990, %v5460
      %v5462 = vpop.f32.mrb[0].mxu0
      %v5463 = vadd.f32 %v4992, %v5462
      %v5464 = vpop.f32.mrb[0].mxu0
      %v5465 = vadd.f32 %v4994, %v5464
      %v5466 = vpop.f32.mrb[0].mxu0
      %v5467 = vadd.f32 %v4996, %v5466
      %5468 = vmatprep.mubr.bf16.mxu0 %v2987
      %5469 = vmatmul.mubr.bf16.gmra.mrb[0].mxu0 %v2986
      %v5470 = vpop.f32.mrb[0].mxu0
      %v5471 = vadd.f32 %v5000, %v5470
      %v5472 = vpop.f32.mrb[0].mxu0
      %v5473 = vadd.f32 %v5002, %v5472
      %v5474 = vpop.f32.mrb[0].mxu0
      %v5475 = vadd.f32 %v5004, %v5474
      %v5476 = vpop.f32.mrb[0].mxu0
      %v5477 = vadd.f32 %v5006, %v5476
      %5478 = vmatprep.mubr.bf16.mxu0 %v2998
      %5479 = vmatmul.mubr.bf16.gmra.mrb[0].mxu0 %v2997
      %v5480 = vpop.f32.mrb[0].mxu0
      %v5481 = vadd.f32 %v5010, %v5480
      %v5482 = vpop.f32.mrb[0].mxu0
      %v5483 = vadd.f32 %v5012, %v5482
      %v5484 = vpop.f32.mrb[0].mxu0
      %v5485 = vadd.f32 %v5014, %v5484
      %v5486 = vpop.f32.mrb[0].mxu0
      %v5487 = vadd.f32 %v5016, %v5486
      %5488 = vmatprep.mubr.bf16.mxu0 %v3009
      %5489 = vmatmul.mubr.bf16.gmra.mrb[0].mxu0 %v3008
      %v5490 = vpop.f32.mrb[0].mxu0
      %v5491 = vadd.f32 %v5020, %v5490
      %v5492 = vpop.f32.mrb[0].mxu0
      %v5493 = vadd.f32 %v5022, %v5492
      %v5494 = vpop.f32.mrb[0].mxu0
      %v5495 = vadd.f32 %v5024, %v5494
      %v5496 = vpop.f32.mrb[0].mxu0
      %v5497 = vadd.f32 %v5026, %v5496
      %5498 = vmatprep.mubr.bf16.mxu0 %v3020
      %5499 = vmatmul.mubr.bf16.gmra.mrb[0].mxu0 %v3019
      %v5500 = vpop.f32.mrb[0].mxu0
      %v5501 = vadd.f32 %v5030, %v5500
      %v5502 = vpop.f32.mrb[0].mxu0
      %v5503 = vadd.f32 %v5032, %v5502
      %v5504 = vpop.f32.mrb[0].mxu0
      %v5505 = vadd.f32 %v5034, %v5504
      %v5506 = vpop.f32.mrb[0].mxu0
      %v5507 = vadd.f32 %v5036, %v5506
      %5508 = vmatprep.mubr.bf16.mxu0 %v3031
      %5509 = vmatmul.mubr.bf16.gmra.mrb[0].mxu0 %v3030
      %v5510 = vpop.f32.mrb[0].mxu0
      %v5511 = vadd.f32 %v5040, %v5510
      %v5512 = vpop.f32.mrb[0].mxu0
      %v5513 = vadd.f32 %v5042, %v5512
      %v5514 = vpop.f32.mrb[0].mxu0
      %v5515 = vadd.f32 %v5044, %v5514
      %v5516 = vpop.f32.mrb[0].mxu0
      %v5517 = vadd.f32 %v5046, %v5516
      %5518 = vmatprep.mubr.bf16.mxu0 %v3042
      %5519 = vmatmul.mubr.bf16.gmra.mrb[0].mxu0 %v3041
      %v5520 = vpop.f32.mrb[0].mxu0
      %v5521 = vadd.f32 %v5050, %v5520
      %v5522 = vpop.f32.mrb[0].mxu0
      %v5523 = vadd.f32 %v5052, %v5522
      %v5524 = vpop.f32.mrb[0].mxu0
      %v5525 = vadd.f32 %v5054, %v5524
      %v5526 = vpop.f32.mrb[0].mxu0
      %v5527 = vadd.f32 %v5056, %v5526
      %5528 = vmatprep.mubr.bf16.mxu0 %v3053
      %5529 = vmatmul.mubr.bf16.gmra.mrb[0].mxu0 %v3052
      %v5530 = vpop.f32.mrb[0].mxu0
      %v5531 = vadd.f32 %v5060, %v5530
      %v5532 = vpop.f32.mrb[0].mxu0
      %v5533 = vadd.f32 %v5062, %v5532
      %v5534 = vpop.f32.mrb[0].mxu0
      %v5535 = vadd.f32 %v5064, %v5534
      %v5536 = vpop.f32.mrb[0].mxu0
      %v5537 = vadd.f32 %v5066, %v5536
      %5538 = vmatprep.mubr.bf16.mxu0 %v3064
      %5539 = vmatmul.mubr.bf16.gmra.mrb[0].mxu0 %v3063
      %v5540 = vpop.f32.mrb[0].mxu0
      %v5541 = vadd.f32 %v5070, %v5540
      %v5542 = vpop.f32.mrb[0].mxu0
      %v5543 = vadd.f32 %v5072, %v5542
      %v5544 = vpop.f32.mrb[0].mxu0
      %v5545 = vadd.f32 %v5074, %v5544
      %v5546 = vpop.f32.mrb[0].mxu0
      %v5547 = vadd.f32 %v5076, %v5546
      %5548 = vmatprep.mubr.bf16.mxu0 %v3075
      %5549 = vmatmul.mubr.bf16.gmra.mrb[0].mxu0 %v3074
      %v5550 = vpop.f32.mrb[0].mxu0
      %v5551 = vadd.f32 %v5080, %v5550
      %v5552 = vpop.f32.mrb[0].mxu0
      %v5553 = vadd.f32 %v5082, %v5552
      %v5554 = vpop.f32.mrb[0].mxu0
      %v5555 = vadd.f32 %v5084, %v5554
      %v5556 = vpop.f32.mrb[0].mxu0
      %v5557 = vadd.f32 %v5086, %v5556
      %5558 = vmatprep.mubr.bf16.mxu0 %v3086
      %5559 = vmatmul.mubr.bf16.gmra.mrb[0].mxu0 %v3085
      %v5560 = vpop.f32.mrb[0].mxu0
      %v5561 = vadd.f32 %v5090, %v5560
      %v5562 = vpop.f32.mrb[0].mxu0
      %v5563 = vadd.f32 %v5092, %v5562
      %v5564 = vpop.f32.mrb[0].mxu0
      %v5565 = vadd.f32 %v5094, %v5564
      %v5566 = vpop.f32.mrb[0].mxu0
      %v5567 = vadd.f32 %v5096, %v5566
      %5568 = vmatprep.mubr.bf16.mxu0 %v3097
      %5569 = vmatmul.mubr.bf16.gmra.mrb[0].mxu0 %v3096
      %v5570 = vpop.f32.mrb[0].mxu0
      %v5571 = vadd.f32 %v5100, %v5570
      %v5572 = vpop.f32.mrb[0].mxu0
      %v5573 = vadd.f32 %v5102, %v5572
      %v5574 = vpop.f32.mrb[0].mxu0
      %v5575 = vadd.f32 %v5104, %v5574
      %v5576 = vpop.f32.mrb[0].mxu0
      %v5577 = vadd.f32 %v5106, %v5576
      %5578 = vmatprep.mubr.bf16.mxu0 %v3108
      %5579 = vmatmul.mubr.bf16.gmra.mrb[0].mxu0 %v3107
      %v5580 = vpop.f32.mrb[0].mxu0
      %v5581 = vadd.f32 %v5110, %v5580
      %v5582 = vpop.f32.mrb[0].mxu0
      %v5583 = vadd.f32 %v5112, %v5582
      %v5584 = vpop.f32.mrb[0].mxu0
      %v5585 = vadd.f32 %v5114, %v5584
      %v5586 = vpop.f32.mrb[0].mxu0
      %v5587 = vadd.f32 %v5116, %v5586
      %5588 = vmatprep.mubr.bf16.mxu0 %v3119
      %5589 = vmatmul.mubr.bf16.gmra.mrb[0].mxu0 %v3118
      %v5590 = vpop.f32.mrb[0].mxu0
      %v5591 = vadd.f32 %v5120, %v5590
      %v5592 = vpop.f32.mrb[0].mxu0
      %v5593 = vadd.f32 %v5122, %v5592
      %v5594 = vpop.f32.mrb[0].mxu0
      %v5595 = vadd.f32 %v5124, %v5594
      %v5596 = vpop.f32.mrb[0].mxu0
      %v5597 = vadd.f32 %v5126, %v5596
      %5598 = vmatprep.mubr.bf16.mxu0 %v3130
      %5599 = vmatmul.mubr.bf16.gmra.mrb[0].mxu0 %v3129
      %v5600 = vpop.f32.mrb[0].mxu0
      %v5601 = vadd.f32 %v5130, %v5600
      %v5602 = vpop.f32.mrb[0].mxu0
      %v5603 = vadd.f32 %v5132, %v5602
      %v5604 = vpop.f32.mrb[0].mxu0
      %v5605 = vadd.f32 %v5134, %v5604
      %v5606 = vpop.f32.mrb[0].mxu0
      %v5607 = vadd.f32 %v5136, %v5606
      %5608 = vmatprep.mubr.bf16.mxu0 %v3141
      %5609 = vmatmul.mubr.bf16.gmra.mrb[0].mxu0 %v3140
      %v5610 = vpop.f32.mrb[0].mxu0
      %v5611 = vadd.f32 %v5140, %v5610
      %v5612 = vpop.f32.mrb[0].mxu0
      %v5613 = vadd.f32 %v5142, %v5612
      %v5614 = vpop.f32.mrb[0].mxu0
      %v5615 = vadd.f32 %v5144, %v5614
      %v5616 = vpop.f32.mrb[0].mxu0
      %v5617 = vadd.f32 %v5146, %v5616
      %5618 = vmatprep.mubr.bf16.mxu0 %v3152
      %5619 = vmatmul.mubr.bf16.gmra.mrb[0].mxu0 %v3151
      %v5620 = vpop.f32.mrb[0].mxu0
      %v5621 = vadd.f32 %v5150, %v5620
      %v5622 = vpop.f32.mrb[0].mxu0
      %v5623 = vadd.f32 %v5152, %v5622
      %v5624 = vpop.f32.mrb[0].mxu0
      %v5625 = vadd.f32 %v5154, %v5624
      %v5626 = vpop.f32.mrb[0].mxu0
      %v5627 = vadd.f32 %v5156, %v5626
      %5628 = vmatprep.mubr.bf16.mxu0 %v3163
      %5629 = vmatmul.mubr.bf16.gmra.mrb[0].mxu0 %v3162
      %v5630 = vpop.f32.mrb[0].mxu0
      %v5631 = vadd.f32 %v5160, %v5630
      %v5632 = vpop.f32.mrb[0].mxu0
      %v5633 = vadd.f32 %v5162, %v5632
      %v5634 = vpop.f32.mrb[0].mxu0
      %v5635 = vadd.f32 %v5164, %v5634
      %v5636 = vpop.f32.mrb[0].mxu0
      %v5637 = vadd.f32 %v5166, %v5636
      %5638 = vmatprep.mubr.bf16.mxu0 %v3174
      %5639 = vmatmul.mubr.bf16.gmra.mrb[0].mxu0 %v3173
      %v5640 = vpop.f32.mrb[0].mxu0
      %v5641 = vadd.f32 %v5170, %v5640
      %v5642 = vpop.f32.mrb[0].mxu0
      %v5643 = vadd.f32 %v5172, %v5642
      %v5644 = vpop.f32.mrb[0].mxu0
      %v5645 = vadd.f32 %v5174, %v5644
      %v5646 = vpop.f32.mrb[0].mxu0
      %v5647 = vadd.f32 %v5176, %v5646
      %5648 = vmatprep.mubr.bf16.mxu0 %v3185
      %5649 = vmatmul.mubr.bf16.gmra.mrb[0].mxu0 %v3184
      %v5650 = vpop.f32.mrb[0].mxu0
      %v5651 = vadd.f32 %v5180, %v5650
      %v5652 = vpop.f32.mrb[0].mxu0
      %v5653 = vadd.f32 %v5182, %v5652
      %v5654 = vpop.f32.mrb[0].mxu0
      %v5655 = vadd.f32 %v5184, %v5654
      %v5656 = vpop.f32.mrb[0].mxu0
      %v5657 = vadd.f32 %v5186, %v5656
      %5658 = vmatprep.mubr.bf16.mxu0 %v3196
      %5659 = vmatmul.mubr.bf16.gmra.mrb[0].mxu0 %v3195
      %v5660 = vpop.f32.mrb[0].mxu0
      %v5661 = vadd.f32 %v5190, %v5660
      %v5662 = vpop.f32.mrb[0].mxu0
      %v5663 = vadd.f32 %v5192, %v5662
      %v5664 = vpop.f32.mrb[0].mxu0
      %v5665 = vadd.f32 %v5194, %v5664
      %v5666 = vpop.f32.mrb[0].mxu0
      %v5667 = vadd.f32 %v5196, %v5666
      %5668 = vmatprep.mubr.bf16.mxu0 %v3207
      %5669 = vmatmul.mubr.bf16.gmra.mrb[0].mxu0 %v3206
      %v5670 = vpop.f32.mrb[0].mxu0
      %v5671 = vadd.f32 %v5200, %v5670
      %v5672 = vpop.f32.mrb[0].mxu0
      %v5673 = vadd.f32 %v5202, %v5672
      %v5674 = vpop.f32.mrb[0].mxu0
      %v5675 = vadd.f32 %v5204, %v5674
      %v5676 = vpop.f32.mrb[0].mxu0
      %v5677 = vadd.f32 %v5206, %v5676
      %5678 = vmatprep.mubr.bf16.mxu0 %v3218
      %5679 = vmatmul.mubr.bf16.gmra.mrb[0].mxu0 %v3217
      %v5680 = vpop.f32.mrb[0].mxu0
      %v5681 = vadd.f32 %v5210, %v5680
      %v5682 = vpop.f32.mrb[0].mxu0
      %v5683 = vadd.f32 %v5212, %v5682
      %v5684 = vpop.f32.mrb[0].mxu0
      %v5685 = vadd.f32 %v5214, %v5684
      %v5686 = vpop.f32.mrb[0].mxu0
      %v5687 = vadd.f32 %v5216, %v5686
      %5688 = vmatprep.mubr.bf16.mxu0 %v3229
      %5689 = vmatmul.mubr.bf16.gmra.mrb[0].mxu0 %v3228
      %v5690 = vpop.f32.mrb[0].mxu0
      %v5691 = vadd.f32 %v5220, %v5690
      %v5692 = vpop.f32.mrb[0].mxu0
      %v5693 = vadd.f32 %v5222, %v5692
      %v5694 = vpop.f32.mrb[0].mxu0
      %v5695 = vadd.f32 %v5224, %v5694
      %v5696 = vpop.f32.mrb[0].mxu0
      %v5697 = vadd.f32 %v5226, %v5696
      %5698 = vmatprep.mubr.bf16.mxu0 %v3240
      %5699 = vmatmul.mubr.bf16.gmra.mrb[0].mxu0 %v3239
      %v5700 = vpop.f32.mrb[0].mxu0
      %v5701 = vadd.f32 %v5230, %v5700
      %v5702 = vpop.f32.mrb[0].mxu0
      %v5703 = vadd.f32 %v5232, %v5702
      %v5704 = vpop.f32.mrb[0].mxu0
      %v5705 = vadd.f32 %v5234, %v5704
      %v5706 = vpop.f32.mrb[0].mxu0
      %v5707 = vadd.f32 %v5236, %v5706
      %5708 = vmatprep.mubr.bf16.mxu0 %v3251
      %5709 = vmatmul.mubr.bf16.gmra.mrb[0].mxu0 %v3250
      %v5710 = vpop.f32.mrb[0].mxu0
      %v5711 = vadd.f32 %v5240, %v5710
      %v5712 = vpop.f32.mrb[0].mxu0
      %v5713 = vadd.f32 %v5242, %v5712
      %v5714 = vpop.f32.mrb[0].mxu0
      %v5715 = vadd.f32 %v5244, %v5714
      %v5716 = vpop.f32.mrb[0].mxu0
      %v5717 = vadd.f32 %v5246, %v5716
      %5718 = vmatprep.mubr.bf16.mxu0 %v3262
      %5719 = vmatmul.mubr.bf16.gmra.mrb[0].mxu0 %v3261
      %v5720 = vpop.f32.mrb[0].mxu0
      %v5721 = vadd.f32 %v5250, %v5720
      %v5722 = vpop.f32.mrb[0].mxu0
      %v5723 = vadd.f32 %v5252, %v5722
      %v5724 = vpop.f32.mrb[0].mxu0
      %v5725 = vadd.f32 %v5254, %v5724
      %v5726 = vpop.f32.mrb[0].mxu0
      %v5727 = vadd.f32 %v5256, %v5726
      %5728 = vmatprep.mubr.bf16.mxu0 %v3273
      %5729 = vmatmul.mubr.bf16.gmra.mrb[0].mxu0 %v3272
      %v5730 = vpop.f32.mrb[0].mxu0
      %v5731 = vadd.f32 %v5260, %v5730
      %v5732 = vpop.f32.mrb[0].mxu0
      %v5733 = vadd.f32 %v5262, %v5732
      %v5734 = vpop.f32.mrb[0].mxu0
      %v5735 = vadd.f32 %v5264, %v5734
      %v5736 = vpop.f32.mrb[0].mxu0
      %v5737 = vadd.f32 %v5266, %v5736
      %5738 = vmatprep.mubr.bf16.mxu0 %v3284
      %5739 = vmatmul.mubr.bf16.gmra.mrb[0].mxu0 %v3283
      %v5740 = vpop.f32.mrb[0].mxu0
      %v5741 = vadd.f32 %v5270, %v5740
      %v5742 = vpop.f32.mrb[0].mxu0
      %v5743 = vadd.f32 %v5272, %v5742
      %v5744 = vpop.f32.mrb[0].mxu0
      %v5745 = vadd.f32 %v5274, %v5744
      %v5746 = vpop.f32.mrb[0].mxu0
      %v5747 = vadd.f32 %v5276, %v5746
      %5748 = vmatprep.mubr.bf16.mxu0 %v3295
      %5749 = vmatmul.mubr.bf16.gmra.mrb[0].mxu0 %v3294
      %v5750 = vpop.f32.mrb[0].mxu0
      %v5751 = vadd.f32 %v5280, %v5750
      %v5752 = vpop.f32.mrb[0].mxu0
      %v5753 = vadd.f32 %v5282, %v5752
      %v5754 = vpop.f32.mrb[0].mxu0
      %v5755 = vadd.f32 %v5284, %v5754
      %v5756 = vpop.f32.mrb[0].mxu0
      %v5757 = vadd.f32 %v5286, %v5756
      %5758 = vmatprep.mubr.bf16.mxu0 %v3306
      %5759 = vmatmul.mubr.bf16.gmra.mrb[0].mxu0 %v3305
      %v5760 = vpop.f32.mrb[0].mxu0
      %v5761 = vadd.f32 %v5290, %v5760
      %v5762 = vpop.f32.mrb[0].mxu0
      %v5763 = vadd.f32 %v5292, %v5762
      %v5764 = vpop.f32.mrb[0].mxu0
      %v5765 = vpop.f32.mrb[0].mxu0
      %5766 = vdwg.mxu0
      %5767 = vmatprep.subr.bf16.mxu0 %v780
      %5768 = vmatpush1.bf16.msra.mxu0 %v779
      %5769 = vmatprep.subr.bf16.mxu0 %v782
      %5770 = vmatpush1.bf16.msra.mxu0 %v781
      %5771 = vmatprep.subr.bf16.mxu0 %v784
      %5772 = vmatpush1.bf16.msra.mxu0 %v783
      %5773 = vmatprep.subr.bf16.mxu0 %v786
      %5774 = vmatpush1.bf16.msra.mxu0 %v785
      %5775 = vmatprep.subr.bf16.mxu0 %v788
      %5776 = vmatpush1.bf16.msra.mxu0 %v787
      %5777 = vmatprep.subr.bf16.mxu0 %v790
      %5778 = vmatpush1.bf16.msra.mxu0 %v789
      %5779 = vmatprep.subr.bf16.mxu0 %v792
      %5780 = vmatpush1.bf16.msra.mxu0 %v791
      %5781 = vmatprep.subr.bf16.mxu0 %v794
      %5782 = vmatpush1.bf16.msra.mxu0 %v793
      %5783 = vmatprep.subr.bf16.mxu0 %v796
      %5784 = vmatpush1.bf16.msra.mxu0 %v795
      %5785 = vmatprep.subr.bf16.mxu0 %v798
      %5786 = vmatpush1.bf16.msra.mxu0 %v797
      %5787 = vmatprep.subr.bf16.mxu0 %v800
      %5788 = vmatpush1.bf16.msra.mxu0 %v799
      %5789 = vmatprep.subr.bf16.mxu0 %v802
      %5790 = vmatpush1.bf16.msra.mxu0 %v801
      %5791 = vmatprep.subr.bf16.mxu0 %v804
      %5792 = vmatpush1.bf16.msra.mxu0 %v803
      %5793 = vmatprep.subr.bf16.mxu0 %v806
      %5794 = vmatpush1.bf16.msra.mxu0 %v805
      %5795 = vmatprep.subr.bf16.mxu0 %v808
      %5796 = vmatpush1.bf16.msra.mxu0 %v807
      %5797 = vmatprep.subr.bf16.mxu0 %v810
      %5798 = vmatpush1.bf16.msra.mxu0 %v809
      %5799 = vmatprep.mubr.bf16.mxu0 %v2835
      %5800 = vmatmul.mubr.bf16.gmra.mrb[0].mxu0 %v2834
      %v5801 = vpop.f32.mrb[0].mxu0
      %v5802 = vadd.f32 %v5331, %v5801
      %v5803 = vpop.f32.mrb[0].mxu0
      %v5804 = vadd.f32 %v5333, %v5803
      %v5805 = vpop.f32.mrb[0].mxu0
      %v5806 = vadd.f32 %v5335, %v5805
      %v5807 = vpop.f32.mrb[0].mxu0
      %v5808 = vadd.f32 %v5337, %v5807
      %5809 = vmatprep.mubr.bf16.mxu0 %v2846
      %5810 = vmatmul.mubr.bf16.gmra.mrb[0].mxu0 %v2845
      %v5811 = vpop.f32.mrb[0].mxu0
      %v5812 = vadd.f32 %v5341, %v5811
      %v5813 = vpop.f32.mrb[0].mxu0
      %v5814 = vadd.f32 %v5343, %v5813
      %v5815 = vpop.f32.mrb[0].mxu0
      %v5816 = vadd.f32 %v5345, %v5815
      %v5817 = vpop.f32.mrb[0].mxu0
      %v5818 = vadd.f32 %v5347, %v5817
      %5819 = vmatprep.mubr.bf16.mxu0 %v2857
      %5820 = vmatmul.mubr.bf16.gmra.mrb[0].mxu0 %v2856
      %v5821 = vpop.f32.mrb[0].mxu0
      %v5822 = vadd.f32 %v5351, %v5821
      %v5823 = vpop.f32.mrb[0].mxu0
      %v5824 = vadd.f32 %v5353, %v5823
      %v5825 = vpop.f32.mrb[0].mxu0
      %v5826 = vadd.f32 %v5355, %v5825
      %v5827 = vpop.f32.mrb[0].mxu0
      %v5828 = vadd.f32 %v5357, %v5827
      %5829 = vmatprep.mubr.bf16.mxu0 %v2868
      %5830 = vmatmul.mubr.bf16.gmra.mrb[0].mxu0 %v2867
      %v5831 = vpop.f32.mrb[0].mxu0
      %v5832 = vadd.f32 %v5361, %v5831
      %v5833 = vpop.f32.mrb[0].mxu0
      %v5834 = vadd.f32 %v5363, %v5833
      %v5835 = vpop.f32.mrb[0].mxu0
      %v5836 = vadd.f32 %v5365, %v5835
      %v5837 = vpop.f32.mrb[0].mxu0
      %v5838 = vadd.f32 %v5367, %v5837
      %5839 = vmatprep.mubr.bf16.mxu0 %v2879
      %5840 = vmatmul.mubr.bf16.gmra.mrb[0].mxu0 %v2878
      %v5841 = vpop.f32.mrb[0].mxu0
      %v5842 = vadd.f32 %v5371, %v5841
      %v5843 = vpop.f32.mrb[0].mxu0
      %v5844 = vadd.f32 %v5373, %v5843
      %v5845 = vpop.f32.mrb[0].mxu0
      %v5846 = vadd.f32 %v5375, %v5845
      %v5847 = vpop.f32.mrb[0].mxu0
      %v5848 = vadd.f32 %v5377, %v5847
      %5849 = vmatprep.mubr.bf16.mxu0 %v2890
      %5850 = vmatmul.mubr.bf16.gmra.mrb[0].mxu0 %v2889
      %v5851 = vpop.f32.mrb[0].mxu0
      %v5852 = vadd.f32 %v5381, %v5851
      %v5853 = vpop.f32.mrb[0].mxu0
      %v5854 = vadd.f32 %v5383, %v5853
      %v5855 = vpop.f32.mrb[0].mxu0
      %v5856 = vadd.f32 %v5385, %v5855
      %v5857 = vpop.f32.mrb[0].mxu0
      %v5858 = vadd.f32 %v5387, %v5857
      %5859 = vmatprep.mubr.bf16.mxu0 %v2901
      %5860 = vmatmul.mubr.bf16.gmra.mrb[0].mxu0 %v2900
      %v5861 = vpop.f32.mrb[0].mxu0
      %v5862 = vadd.f32 %v5391, %v5861
      %v5863 = vpop.f32.mrb[0].mxu0
      %v5864 = vadd.f32 %v5393, %v5863
      %v5865 = vpop.f32.mrb[0].mxu0
      %v5866 = vadd.f32 %v5395, %v5865
      %v5867 = vpop.f32.mrb[0].mxu0
      %v5868 = vadd.f32 %v5397, %v5867
      %5869 = vmatprep.mubr.bf16.mxu0 %v2912
      %5870 = vmatmul.mubr.bf16.gmra.mrb[0].mxu0 %v2911
      %v5871 = vpop.f32.mrb[0].mxu0
      %v5872 = vadd.f32 %v5401, %v5871
      %v5873 = vpop.f32.mrb[0].mxu0
      %v5874 = vadd.f32 %v5403, %v5873
      %v5875 = vpop.f32.mrb[0].mxu0
      %v5876 = vadd.f32 %v5405, %v5875
      %v5877 = vpop.f32.mrb[0].mxu0
      %v5878 = vadd.f32 %v5407, %v5877
      %5879 = vmatprep.mubr.bf16.mxu0 %v2923
      %5880 = vmatmul.mubr.bf16.gmra.mrb[0].mxu0 %v2922
      %v5881 = vpop.f32.mrb[0].mxu0
      %v5882 = vadd.f32 %v5411, %v5881
      %v5883 = vpop.f32.mrb[0].mxu0
      %v5884 = vadd.f32 %v5413, %v5883
      %v5885 = vpop.f32.mrb[0].mxu0
      %v5886 = vadd.f32 %v5415, %v5885
      %v5887 = vpop.f32.mrb[0].mxu0
      %v5888 = vadd.f32 %v5417, %v5887
      %5889 = vmatprep.mubr.bf16.mxu0 %v2934
      %5890 = vmatmul.mubr.bf16.gmra.mrb[0].mxu0 %v2933
      %v5891 = vpop.f32.mrb[0].mxu0
      %v5892 = vadd.f32 %v5421, %v5891
      %v5893 = vpop.f32.mrb[0].mxu0
      %v5894 = vadd.f32 %v5423, %v5893
      %v5895 = vpop.f32.mrb[0].mxu0
      %v5896 = vadd.f32 %v5425, %v5895
      %v5897 = vpop.f32.mrb[0].mxu0
      %v5898 = vadd.f32 %v5427, %v5897
      %5899 = vmatprep.mubr.bf16.mxu0 %v2945
      %5900 = vmatmul.mubr.bf16.gmra.mrb[0].mxu0 %v2944
      %v5901 = vpop.f32.mrb[0].mxu0
      %v5902 = vadd.f32 %v5431, %v5901
      %v5903 = vpop.f32.mrb[0].mxu0
      %v5904 = vadd.f32 %v5433, %v5903
      %v5905 = vpop.f32.mrb[0].mxu0
      %v5906 = vadd.f32 %v5435, %v5905
      %v5907 = vpop.f32.mrb[0].mxu0
      %v5908 = vadd.f32 %v5437, %v5907
      %5909 = vmatprep.mubr.bf16.mxu0 %v2956
      %5910 = vmatmul.mubr.bf16.gmra.mrb[0].mxu0 %v2955
      %v5911 = vpop.f32.mrb[0].mxu0
      %v5912 = vadd.f32 %v5441, %v5911
      %v5913 = vpop.f32.mrb[0].mxu0
      %v5914 = vadd.f32 %v5443, %v5913
      %v5915 = vpop.f32.mrb[0].mxu0
      %v5916 = vadd.f32 %v5445, %v5915
      %v5917 = vpop.f32.mrb[0].mxu0
      %v5918 = vadd.f32 %v5447, %v5917
      %5919 = vmatprep.mubr.bf16.mxu0 %v2967
      %5920 = vmatmul.mubr.bf16.gmra.mrb[0].mxu0 %v2966
      %v5921 = vpop.f32.mrb[0].mxu0
      %v5922 = vadd.f32 %v5451, %v5921
      %v5923 = vpop.f32.mrb[0].mxu0
      %v5924 = vadd.f32 %v5453, %v5923
      %v5925 = vpop.f32.mrb[0].mxu0
      %v5926 = vadd.f32 %v5455, %v5925
      %v5927 = vpop.f32.mrb[0].mxu0
      %v5928 = vadd.f32 %v5457, %v5927
      %5929 = vmatprep.mubr.bf16.mxu0 %v2978
      %5930 = vmatmul.mubr.bf16.gmra.mrb[0].mxu0 %v2977
      %v5931 = vpop.f32.mrb[0].mxu0
      %v5932 = vadd.f32 %v5461, %v5931
      %v5933 = vpop.f32.mrb[0].mxu0
      %v5934 = vadd.f32 %v5463, %v5933
      %v5935 = vpop.f32.mrb[0].mxu0
      %v5936 = vadd.f32 %v5465, %v5935
      %v5937 = vpop.f32.mrb[0].mxu0
      %v5938 = vadd.f32 %v5467, %v5937
      %5939 = vmatprep.mubr.bf16.mxu0 %v2989
      %5940 = vmatmul.mubr.bf16.gmra.mrb[0].mxu0 %v2988
      %v5941 = vpop.f32.mrb[0].mxu0
      %v5942 = vadd.f32 %v5471, %v5941
      %v5943 = vpop.f32.mrb[0].mxu0
      %v5944 = vadd.f32 %v5473, %v5943
      %v5945 = vpop.f32.mrb[0].mxu0
      %v5946 = vadd.f32 %v5475, %v5945
      %v5947 = vpop.f32.mrb[0].mxu0
      %v5948 = vadd.f32 %v5477, %v5947
      %5949 = vmatprep.mubr.bf16.mxu0 %v3000
      %5950 = vmatmul.mubr.bf16.gmra.mrb[0].mxu0 %v2999
      %v5951 = vpop.f32.mrb[0].mxu0
      %v5952 = vadd.f32 %v5481, %v5951
      %v5953 = vpop.f32.mrb[0].mxu0
      %v5954 = vadd.f32 %v5483, %v5953
      %v5955 = vpop.f32.mrb[0].mxu0
      %v5956 = vadd.f32 %v5485, %v5955
      %v5957 = vpop.f32.mrb[0].mxu0
      %v5958 = vadd.f32 %v5487, %v5957
      %5959 = vmatprep.mubr.bf16.mxu0 %v3011
      %5960 = vmatmul.mubr.bf16.gmra.mrb[0].mxu0 %v3010
      %v5961 = vpop.f32.mrb[0].mxu0
      %v5962 = vadd.f32 %v5491, %v5961
      %v5963 = vpop.f32.mrb[0].mxu0
      %v5964 = vadd.f32 %v5493, %v5963
      %v5965 = vpop.f32.mrb[0].mxu0
      %v5966 = vadd.f32 %v5495, %v5965
      %v5967 = vpop.f32.mrb[0].mxu0
      %v5968 = vadd.f32 %v5497, %v5967
      %5969 = vmatprep.mubr.bf16.mxu0 %v3022
      %5970 = vmatmul.mubr.bf16.gmra.mrb[0].mxu0 %v3021
      %v5971 = vpop.f32.mrb[0].mxu0
      %v5972 = vadd.f32 %v5501, %v5971
      %v5973 = vpop.f32.mrb[0].mxu0
      %v5974 = vadd.f32 %v5503, %v5973
      %v5975 = vpop.f32.mrb[0].mxu0
      %v5976 = vadd.f32 %v5505, %v5975
      %v5977 = vpop.f32.mrb[0].mxu0
      %v5978 = vadd.f32 %v5507, %v5977
      %5979 = vmatprep.mubr.bf16.mxu0 %v3033
      %5980 = vmatmul.mubr.bf16.gmra.mrb[0].mxu0 %v3032
      %v5981 = vpop.f32.mrb[0].mxu0
      %v5982 = vadd.f32 %v5511, %v5981
      %v5983 = vpop.f32.mrb[0].mxu0
      %v5984 = vadd.f32 %v5513, %v5983
      %v5985 = vpop.f32.mrb[0].mxu0
      %v5986 = vadd.f32 %v5515, %v5985
      %v5987 = vpop.f32.mrb[0].mxu0
      %v5988 = vadd.f32 %v5517, %v5987
      %5989 = vmatprep.mubr.bf16.mxu0 %v3044
      %5990 = vmatmul.mubr.bf16.gmra.mrb[0].mxu0 %v3043
      %v5991 = vpop.f32.mrb[0].mxu0
      %v5992 = vadd.f32 %v5521, %v5991
      %v5993 = vpop.f32.mrb[0].mxu0
      %v5994 = vadd.f32 %v5523, %v5993
      %v5995 = vpop.f32.mrb[0].mxu0
      %v5996 = vadd.f32 %v5525, %v5995
      %v5997 = vpop.f32.mrb[0].mxu0
      %v5998 = vadd.f32 %v5527, %v5997
      %5999 = vmatprep.mubr.bf16.mxu0 %v3055
      %6000 = vmatmul.mubr.bf16.gmra.mrb[0].mxu0 %v3054
      %v6001 = vpop.f32.mrb[0].mxu0
      %v6002 = vadd.f32 %v5531, %v6001
      %v6003 = vpop.f32.mrb[0].mxu0
      %v6004 = vadd.f32 %v5533, %v6003
      %v6005 = vpop.f32.mrb[0].mxu0
      %v6006 = vadd.f32 %v5535, %v6005
      %v6007 = vpop.f32.mrb[0].mxu0
      %v6008 = vadd.f32 %v5537, %v6007
      %6009 = vmatprep.mubr.bf16.mxu0 %v3066
      %6010 = vmatmul.mubr.bf16.gmra.mrb[0].mxu0 %v3065
      %v6011 = vpop.f32.mrb[0].mxu0
      %v6012 = vadd.f32 %v5541, %v6011
      %v6013 = vpop.f32.mrb[0].mxu0
      %v6014 = vadd.f32 %v5543, %v6013
      %v6015 = vpop.f32.mrb[0].mxu0
      %v6016 = vadd.f32 %v5545, %v6015
      %v6017 = vpop.f32.mrb[0].mxu0
      %v6018 = vadd.f32 %v5547, %v6017
      %6019 = vmatprep.mubr.bf16.mxu0 %v3077
      %6020 = vmatmul.mubr.bf16.gmra.mrb[0].mxu0 %v3076
      %v6021 = vpop.f32.mrb[0].mxu0
      %v6022 = vadd.f32 %v5551, %v6021
      %v6023 = vpop.f32.mrb[0].mxu0
      %v6024 = vadd.f32 %v5553, %v6023
      %v6025 = vpop.f32.mrb[0].mxu0
      %v6026 = vadd.f32 %v5555, %v6025
      %v6027 = vpop.f32.mrb[0].mxu0
      %v6028 = vadd.f32 %v5557, %v6027
      %6029 = vmatprep.mubr.bf16.mxu0 %v3088
      %6030 = vmatmul.mubr.bf16.gmra.mrb[0].mxu0 %v3087
      %v6031 = vpop.f32.mrb[0].mxu0
      %v6032 = vadd.f32 %v5561, %v6031
      %v6033 = vpop.f32.mrb[0].mxu0
      %v6034 = vadd.f32 %v5563, %v6033
      %v6035 = vpop.f32.mrb[0].mxu0
      %v6036 = vadd.f32 %v5565, %v6035
      %v6037 = vpop.f32.mrb[0].mxu0
      %v6038 = vadd.f32 %v5567, %v6037
      %6039 = vmatprep.mubr.bf16.mxu0 %v3099
      %6040 = vmatmul.mubr.bf16.gmra.mrb[0].mxu0 %v3098
      %v6041 = vpop.f32.mrb[0].mxu0
      %v6042 = vadd.f32 %v5571, %v6041
      %v6043 = vpop.f32.mrb[0].mxu0
      %v6044 = vadd.f32 %v5573, %v6043
      %v6045 = vpop.f32.mrb[0].mxu0
      %v6046 = vadd.f32 %v5575, %v6045
      %v6047 = vpop.f32.mrb[0].mxu0
      %v6048 = vadd.f32 %v5577, %v6047
      %6049 = vmatprep.mubr.bf16.mxu0 %v3110
      %6050 = vmatmul.mubr.bf16.gmra.mrb[0].mxu0 %v3109
      %v6051 = vpop.f32.mrb[0].mxu0
      %v6052 = vadd.f32 %v5581, %v6051
      %v6053 = vpop.f32.mrb[0].mxu0
      %v6054 = vadd.f32 %v5583, %v6053
      %v6055 = vpop.f32.mrb[0].mxu0
      %v6056 = vadd.f32 %v5585, %v6055
      %v6057 = vpop.f32.mrb[0].mxu0
      %v6058 = vadd.f32 %v5587, %v6057
      %6059 = vmatprep.mubr.bf16.mxu0 %v3121
      %6060 = vmatmul.mubr.bf16.gmra.mrb[0].mxu0 %v3120
      %v6061 = vpop.f32.mrb[0].mxu0
      %v6062 = vadd.f32 %v5591, %v6061
      %v6063 = vpop.f32.mrb[0].mxu0
      %v6064 = vadd.f32 %v5593, %v6063
      %v6065 = vpop.f32.mrb[0].mxu0
      %v6066 = vadd.f32 %v5595, %v6065
      %v6067 = vpop.f32.mrb[0].mxu0
      %v6068 = vadd.f32 %v5597, %v6067
      %6069 = vmatprep.mubr.bf16.mxu0 %v3132
      %6070 = vmatmul.mubr.bf16.gmra.mrb[0].mxu0 %v3131
      %v6071 = vpop.f32.mrb[0].mxu0
      %v6072 = vadd.f32 %v5601, %v6071
      %v6073 = vpop.f32.mrb[0].mxu0
      %v6074 = vadd.f32 %v5603, %v6073
      %v6075 = vpop.f32.mrb[0].mxu0
      %v6076 = vadd.f32 %v5605, %v6075
      %v6077 = vpop.f32.mrb[0].mxu0
      %v6078 = vadd.f32 %v5607, %v6077
      %6079 = vmatprep.mubr.bf16.mxu0 %v3143
      %6080 = vmatmul.mubr.bf16.gmra.mrb[0].mxu0 %v3142
      %v6081 = vpop.f32.mrb[0].mxu0
      %v6082 = vadd.f32 %v5611, %v6081
      %v6083 = vpop.f32.mrb[0].mxu0
      %v6084 = vadd.f32 %v5613, %v6083
      %v6085 = vpop.f32.mrb[0].mxu0
      %v6086 = vadd.f32 %v5615, %v6085
      %v6087 = vpop.f32.mrb[0].mxu0
      %v6088 = vadd.f32 %v5617, %v6087
      %6089 = vmatprep.mubr.bf16.mxu0 %v3154
      %6090 = vmatmul.mubr.bf16.gmra.mrb[0].mxu0 %v3153
      %v6091 = vpop.f32.mrb[0].mxu0
      %v6092 = vadd.f32 %v5621, %v6091
      %v6093 = vpop.f32.mrb[0].mxu0
      %v6094 = vadd.f32 %v5623, %v6093
      %v6095 = vpop.f32.mrb[0].mxu0
      %v6096 = vadd.f32 %v5625, %v6095
      %v6097 = vpop.f32.mrb[0].mxu0
      %v6098 = vadd.f32 %v5627, %v6097
      %6099 = vmatprep.mubr.bf16.mxu0 %v3165
      %6100 = vmatmul.mubr.bf16.gmra.mrb[0].mxu0 %v3164
      %v6101 = vpop.f32.mrb[0].mxu0
      %v6102 = vadd.f32 %v5631, %v6101
      %v6103 = vpop.f32.mrb[0].mxu0
      %v6104 = vadd.f32 %v5633, %v6103
      %v6105 = vpop.f32.mrb[0].mxu0
      %v6106 = vadd.f32 %v5635, %v6105
      %v6107 = vpop.f32.mrb[0].mxu0
      %v6108 = vadd.f32 %v5637, %v6107
      %6109 = vmatprep.mubr.bf16.mxu0 %v3176
      %6110 = vmatmul.mubr.bf16.gmra.mrb[0].mxu0 %v3175
      %v6111 = vpop.f32.mrb[0].mxu0
      %v6112 = vadd.f32 %v5641, %v6111
      %v6113 = vpop.f32.mrb[0].mxu0
      %v6114 = vadd.f32 %v5643, %v6113
      %v6115 = vpop.f32.mrb[0].mxu0
      %v6116 = vadd.f32 %v5645, %v6115
      %v6117 = vpop.f32.mrb[0].mxu0
      %v6118 = vadd.f32 %v5647, %v6117
      %6119 = vmatprep.mubr.bf16.mxu0 %v3187
      %6120 = vmatmul.mubr.bf16.gmra.mrb[0].mxu0 %v3186
      %v6121 = vpop.f32.mrb[0].mxu0
      %v6122 = vadd.f32 %v5651, %v6121
      %v6123 = vpop.f32.mrb[0].mxu0
      %v6124 = vadd.f32 %v5653, %v6123
      %v6125 = vpop.f32.mrb[0].mxu0
      %v6126 = vadd.f32 %v5655, %v6125
      %v6127 = vpop.f32.mrb[0].mxu0
      %v6128 = vadd.f32 %v5657, %v6127
      %6129 = vmatprep.mubr.bf16.mxu0 %v3198
      %6130 = vmatmul.mubr.bf16.gmra.mrb[0].mxu0 %v3197
      %v6131 = vpop.f32.mrb[0].mxu0
      %v6132 = vadd.f32 %v5661, %v6131
      %v6133 = vpop.f32.mrb[0].mxu0
      %v6134 = vadd.f32 %v5663, %v6133
      %v6135 = vpop.f32.mrb[0].mxu0
      %v6136 = vadd.f32 %v5665, %v6135
      %v6137 = vpop.f32.mrb[0].mxu0
      %v6138 = vadd.f32 %v5667, %v6137
      %6139 = vmatprep.mubr.bf16.mxu0 %v3209
      %6140 = vmatmul.mubr.bf16.gmra.mrb[0].mxu0 %v3208
      %v6141 = vpop.f32.mrb[0].mxu0
      %v6142 = vadd.f32 %v5671, %v6141
      %v6143 = vpop.f32.mrb[0].mxu0
      %v6144 = vadd.f32 %v5673, %v6143
      %v6145 = vpop.f32.mrb[0].mxu0
      %v6146 = vadd.f32 %v5675, %v6145
      %v6147 = vpop.f32.mrb[0].mxu0
      %v6148 = vadd.f32 %v5677, %v6147
      %6149 = vmatprep.mubr.bf16.mxu0 %v3220
      %6150 = vmatmul.mubr.bf16.gmra.mrb[0].mxu0 %v3219
      %v6151 = vpop.f32.mrb[0].mxu0
      %v6152 = vadd.f32 %v5681, %v6151
      %v6153 = vpop.f32.mrb[0].mxu0
      %v6154 = vadd.f32 %v5683, %v6153
      %v6155 = vpop.f32.mrb[0].mxu0
      %v6156 = vadd.f32 %v5685, %v6155
      %v6157 = vpop.f32.mrb[0].mxu0
      %v6158 = vadd.f32 %v5687, %v6157
      %6159 = vmatprep.mubr.bf16.mxu0 %v3231
      %6160 = vmatmul.mubr.bf16.gmra.mrb[0].mxu0 %v3230
      %v6161 = vpop.f32.mrb[0].mxu0
      %v6162 = vadd.f32 %v5691, %v6161
      %v6163 = vpop.f32.mrb[0].mxu0
      %v6164 = vadd.f32 %v5693, %v6163
      %v6165 = vpop.f32.mrb[0].mxu0
      %v6166 = vadd.f32 %v5695, %v6165
      %v6167 = vpop.f32.mrb[0].mxu0
      %v6168 = vadd.f32 %v5697, %v6167
      %6169 = vmatprep.mubr.bf16.mxu0 %v3242
      %6170 = vmatmul.mubr.bf16.gmra.mrb[0].mxu0 %v3241
      %v6171 = vpop.f32.mrb[0].mxu0
      %v6172 = vadd.f32 %v5701, %v6171
      %v6173 = vpop.f32.mrb[0].mxu0
      %v6174 = vadd.f32 %v5703, %v6173
      %v6175 = vpop.f32.mrb[0].mxu0
      %v6176 = vadd.f32 %v5705, %v6175
      %v6177 = vpop.f32.mrb[0].mxu0
      %v6178 = vadd.f32 %v5707, %v6177
      %6179 = vmatprep.mubr.bf16.mxu0 %v3253
      %6180 = vmatmul.mubr.bf16.gmra.mrb[0].mxu0 %v3252
      %v6181 = vpop.f32.mrb[0].mxu0
      %v6182 = vadd.f32 %v5711, %v6181
      %v6183 = vpop.f32.mrb[0].mxu0
      %v6184 = vadd.f32 %v5713, %v6183
      %v6185 = vpop.f32.mrb[0].mxu0
      %v6186 = vadd.f32 %v5715, %v6185
      %v6187 = vpop.f32.mrb[0].mxu0
      %v6188 = vadd.f32 %v5717, %v6187
      %6189 = vmatprep.mubr.bf16.mxu0 %v3264
      %6190 = vmatmul.mubr.bf16.gmra.mrb[0].mxu0 %v3263
      %v6191 = vpop.f32.mrb[0].mxu0
      %v6192 = vadd.f32 %v5721, %v6191
      %v6193 = vpop.f32.mrb[0].mxu0
      %v6194 = vadd.f32 %v5723, %v6193
      %v6195 = vpop.f32.mrb[0].mxu0
      %v6196 = vadd.f32 %v5725, %v6195
      %v6197 = vpop.f32.mrb[0].mxu0
      %v6198 = vadd.f32 %v5727, %v6197
      %6199 = vmatprep.mubr.bf16.mxu0 %v3275
      %6200 = vmatmul.mubr.bf16.gmra.mrb[0].mxu0 %v3274
      %v6201 = vpop.f32.mrb[0].mxu0
      %v6202 = vadd.f32 %v5731, %v6201
      %v6203 = vpop.f32.mrb[0].mxu0
      %v6204 = vadd.f32 %v5733, %v6203
      %v6205 = vpop.f32.mrb[0].mxu0
      %v6206 = vadd.f32 %v5735, %v6205
      %v6207 = vpop.f32.mrb[0].mxu0
      %v6208 = vadd.f32 %v5737, %v6207
      %6209 = vmatprep.mubr.bf16.mxu0 %v3286
      %6210 = vmatmul.mubr.bf16.gmra.mrb[0].mxu0 %v3285
      %v6211 = vpop.f32.mrb[0].mxu0
      %v6212 = vadd.f32 %v5741, %v6211
      %v6213 = vpop.f32.mrb[0].mxu0
      %v6214 = vadd.f32 %v5743, %v6213
      %v6215 = vpop.f32.mrb[0].mxu0
      %v6216 = vadd.f32 %v5745, %v6215
      %v6217 = vpop.f32.mrb[0].mxu0
      %v6218 = vadd.f32 %v5747, %v6217
      %6219 = vmatprep.mubr.bf16.mxu0 %v3297
      %6220 = vmatmul.mubr.bf16.gmra.mrb[0].mxu0 %v3296
      %v6221 = vpop.f32.mrb[0].mxu0
      %v6222 = vadd.f32 %v5751, %v6221
      %v6223 = vpop.f32.mrb[0].mxu0
      %v6224 = vadd.f32 %v5753, %v6223
      %v6225 = vpop.f32.mrb[0].mxu0
      %v6226 = vadd.f32 %v5755, %v6225
      %v6227 = vpop.f32.mrb[0].mxu0
      %v6228 = vadd.f32 %v5757, %v6227
      %6229 = vmatprep.mubr.bf16.mxu0 %v3308
      %6230 = vmatmul.mubr.bf16.gmra.mrb[0].mxu0 %v3307
      %v6231 = vpop.f32.mrb[0].mxu0
      %v6232 = vadd.f32 %v5761, %v6231
      %v6233 = vpop.f32.mrb[0].mxu0
      %v6234 = vadd.f32 %v5763, %v6233
      %v6235 = vpop.f32.mrb[0].mxu0
      %v6236 = vpop.f32.mrb[0].mxu0
      %6237 = vdwg.mxu0
      %6238 = vmatprep.subr.bf16.mxu0 %v812
      %6239 = vmatpush1.bf16.msra.mxu0 %v811
      %6240 = vmatprep.subr.bf16.mxu0 %v814
      %6241 = vmatpush1.bf16.msra.mxu0 %v813
      %6242 = vmatprep.subr.bf16.mxu0 %v816
      %6243 = vmatpush1.bf16.msra.mxu0 %v815
      %6244 = vmatprep.subr.bf16.mxu0 %v818
      %6245 = vmatpush1.bf16.msra.mxu0 %v817
      %6246 = vmatprep.subr.bf16.mxu0 %v820
      %6247 = vmatpush1.bf16.msra.mxu0 %v819
      %6248 = vmatprep.subr.bf16.mxu0 %v822
      %6249 = vmatpush1.bf16.msra.mxu0 %v821
      %6250 = vmatprep.subr.bf16.mxu0 %v824
      %6251 = vmatpush1.bf16.msra.mxu0 %v823
      %6252 = vmatprep.subr.bf16.mxu0 0
      %6253 = vmatpush1.bf16.msra.mxu0 0
      %6254 = vmatprep.subr.bf16.mxu0 0
      %6255 = vmatpush1.bf16.msra.mxu0 0
      %6256 = vmatprep.subr.bf16.mxu0 0
      %6257 = vmatpush1.bf16.msra.mxu0 0
      %6258 = vmatprep.subr.bf16.mxu0 0
      %6259 = vmatpush1.bf16.msra.mxu0 0
      %6260 = vmatprep.subr.bf16.mxu0 0
      %6261 = vmatpush1.bf16.msra.mxu0 0
      %6262 = vmatprep.subr.bf16.mxu0 0
      %6263 = vmatpush1.bf16.msra.mxu0 0
      %6264 = vmatprep.subr.bf16.mxu0 0
      %6265 = vmatpush1.bf16.msra.mxu0 0
      %6266 = vmatprep.subr.bf16.mxu0 0
      %6267 = vmatpush1.bf16.msra.mxu0 0
      %6268 = vmatprep.subr.bf16.mxu0 0
      %6269 = vmatpush1.bf16.msra.mxu0 0
      %6270 = vmatprep.mubr.bf16.mxu0 0
      %6271 = vmatmul.mubr.bf16.gmra.mrb[0].mxu0 %v3752
      %v6272 = vpop.f32.mrb[0].mxu0
      %v6273 = vadd.f32 %v5802, %v6272
      %v6274 = vpop.f32.mrb[0].mxu0
      %v6275 = vadd.f32 %v5804, %v6274
      %v6276 = vpop.f32.mrb[0].mxu0
      %v6277 = vadd.f32 %v5806, %v6276
      %v6278 = vpop.f32.mrb[0].mxu0
      %v6279 = vadd.f32 %v5808, %v6278
      %6280 = vmatprep.mubr.bf16.mxu0 0
      %6281 = vmatmul.mubr.bf16.gmra.mrb[0].mxu0 %v3755
      %v6282 = vpop.f32.mrb[0].mxu0
      %v6283 = vadd.f32 %v5812, %v6282
      %v6284 = vpop.f32.mrb[0].mxu0
      %v6285 = vadd.f32 %v5814, %v6284
      %v6286 = vpop.f32.mrb[0].mxu0
      %v6287 = vadd.f32 %v5816, %v6286
      %v6288 = vpop.f32.mrb[0].mxu0
      %v6289 = vadd.f32 %v5818, %v6288
      %6290 = vmatprep.mubr.bf16.mxu0 0
      %6291 = vmatmul.mubr.bf16.gmra.mrb[0].mxu0 %v3758
      %v6292 = vpop.f32.mrb[0].mxu0
      %v6293 = vadd.f32 %v5822, %v6292
      %v6294 = vpop.f32.mrb[0].mxu0
      %v6295 = vadd.f32 %v5824, %v6294
      %v6296 = vpop.f32.mrb[0].mxu0
      %v6297 = vadd.f32 %v5826, %v6296
      %v6298 = vpop.f32.mrb[0].mxu0
      %v6299 = vadd.f32 %v5828, %v6298
      %6300 = vmatprep.mubr.bf16.mxu0 0
      %6301 = vmatmul.mubr.bf16.gmra.mrb[0].mxu0 %v3761
      %v6302 = vpop.f32.mrb[0].mxu0
      %v6303 = vadd.f32 %v5832, %v6302
      %v6304 = vpop.f32.mrb[0].mxu0
      %v6305 = vadd.f32 %v5834, %v6304
      %v6306 = vpop.f32.mrb[0].mxu0
      %v6307 = vadd.f32 %v5836, %v6306
      %v6308 = vpop.f32.mrb[0].mxu0
      %v6309 = vadd.f32 %v5838, %v6308
      %6310 = vmatprep.mubr.bf16.mxu0 0
      %6311 = vmatmul.mubr.bf16.gmra.mrb[0].mxu0 %v3764
      %v6312 = vpop.f32.mrb[0].mxu0
      %v6313 = vadd.f32 %v5842, %v6312
      %v6314 = vpop.f32.mrb[0].mxu0
      %v6315 = vadd.f32 %v5844, %v6314
      %v6316 = vpop.f32.mrb[0].mxu0
      %v6317 = vadd.f32 %v5846, %v6316
      %v6318 = vpop.f32.mrb[0].mxu0
      %v6319 = vadd.f32 %v5848, %v6318
      %6320 = vmatprep.mubr.bf16.mxu0 0
      %6321 = vmatmul.mubr.bf16.gmra.mrb[0].mxu0 %v3767
      %v6322 = vpop.f32.mrb[0].mxu0
      %v6323 = vadd.f32 %v5852, %v6322
      %v6324 = vpop.f32.mrb[0].mxu0
      %v6325 = vadd.f32 %v5854, %v6324
      %v6326 = vpop.f32.mrb[0].mxu0
      %v6327 = vadd.f32 %v5856, %v6326
      %v6328 = vpop.f32.mrb[0].mxu0
      %v6329 = vadd.f32 %v5858, %v6328
      %6330 = vmatprep.mubr.bf16.mxu0 0
      %6331 = vmatmul.mubr.bf16.gmra.mrb[0].mxu0 %v3770
      %v6332 = vpop.f32.mrb[0].mxu0
      %v6333 = vadd.f32 %v5862, %v6332
      %v6334 = vpop.f32.mrb[0].mxu0
      %v6335 = vadd.f32 %v5864, %v6334
      %v6336 = vpop.f32.mrb[0].mxu0
      %v6337 = vadd.f32 %v5866, %v6336
      %v6338 = vpop.f32.mrb[0].mxu0
      %v6339 = vadd.f32 %v5868, %v6338
      %6340 = vmatprep.mubr.bf16.mxu0 0
      %6341 = vmatmul.mubr.bf16.gmra.mrb[0].mxu0 %v3773
      %v6342 = vpop.f32.mrb[0].mxu0
      %v6343 = vadd.f32 %v5872, %v6342
      %v6344 = vpop.f32.mrb[0].mxu0
      %v6345 = vadd.f32 %v5874, %v6344
      %v6346 = vpop.f32.mrb[0].mxu0
      %v6347 = vadd.f32 %v5876, %v6346
      %v6348 = vpop.f32.mrb[0].mxu0
      %v6349 = vadd.f32 %v5878, %v6348
      %6350 = vmatprep.mubr.bf16.mxu0 0
      %6351 = vmatmul.mubr.bf16.gmra.mrb[0].mxu0 %v3776
      %v6352 = vpop.f32.mrb[0].mxu0
      %v6353 = vadd.f32 %v5882, %v6352
      %v6354 = vpop.f32.mrb[0].mxu0
      %v6355 = vadd.f32 %v5884, %v6354
      %v6356 = vpop.f32.mrb[0].mxu0
      %v6357 = vadd.f32 %v5886, %v6356
      %v6358 = vpop.f32.mrb[0].mxu0
      %v6359 = vadd.f32 %v5888, %v6358
      %6360 = vmatprep.mubr.bf16.mxu0 0
      %6361 = vmatmul.mubr.bf16.gmra.mrb[0].mxu0 %v3779
      %v6362 = vpop.f32.mrb[0].mxu0
      %v6363 = vadd.f32 %v5892, %v6362
      %v6364 = vpop.f32.mrb[0].mxu0
      %v6365 = vadd.f32 %v5894, %v6364
      %v6366 = vpop.f32.mrb[0].mxu0
      %v6367 = vadd.f32 %v5896, %v6366
      %v6368 = vpop.f32.mrb[0].mxu0
      %v6369 = vadd.f32 %v5898, %v6368
      %6370 = vmatprep.mubr.bf16.mxu0 0
      %6371 = vmatmul.mubr.bf16.gmra.mrb[0].mxu0 %v3782
      %v6372 = vpop.f32.mrb[0].mxu0
      %v6373 = vadd.f32 %v5902, %v6372
      %v6374 = vpop.f32.mrb[0].mxu0
      %v6375 = vadd.f32 %v5904, %v6374
      %v6376 = vpop.f32.mrb[0].mxu0
      %v6377 = vadd.f32 %v5906, %v6376
      %v6378 = vpop.f32.mrb[0].mxu0
      %v6379 = vadd.f32 %v5908, %v6378
      %6380 = vmatprep.mubr.bf16.mxu0 0
      %6381 = vmatmul.mubr.bf16.gmra.mrb[0].mxu0 %v3785
      %v6382 = vpop.f32.mrb[0].mxu0
      %v6383 = vadd.f32 %v5912, %v6382
      %v6384 = vpop.f32.mrb[0].mxu0
      %v6385 = vadd.f32 %v5914, %v6384
      %v6386 = vpop.f32.mrb[0].mxu0
      %v6387 = vadd.f32 %v5916, %v6386
      %v6388 = vpop.f32.mrb[0].mxu0
      %v6389 = vadd.f32 %v5918, %v6388
      %6390 = vmatprep.mubr.bf16.mxu0 0
      %6391 = vmatmul.mubr.bf16.gmra.mrb[0].mxu0 %v3788
      %v6392 = vpop.f32.mrb[0].mxu0
      %v6393 = vadd.f32 %v5922, %v6392
      %v6394 = vpop.f32.mrb[0].mxu0
      %v6395 = vadd.f32 %v5924, %v6394
      %v6396 = vpop.f32.mrb[0].mxu0
      %v6397 = vadd.f32 %v5926, %v6396
      %v6398 = vpop.f32.mrb[0].mxu0
      %v6399 = vadd.f32 %v5928, %v6398
      %6400 = vmatprep.mubr.bf16.mxu0 0
      %6401 = vmatmul.mubr.bf16.gmra.mrb[0].mxu0 %v3791
      %v6402 = vpop.f32.mrb[0].mxu0
      %v6403 = vadd.f32 %v5932, %v6402
      %v6404 = vpop.f32.mrb[0].mxu0
      %v6405 = vadd.f32 %v5934, %v6404
      %v6406 = vpop.f32.mrb[0].mxu0
      %v6407 = vadd.f32 %v5936, %v6406
      %v6408 = vpop.f32.mrb[0].mxu0
      %v6409 = vadd.f32 %v5938, %v6408
      %6410 = vmatprep.mubr.bf16.mxu0 0
      %6411 = vmatmul.mubr.bf16.gmra.mrb[0].mxu0 %v3794
      %v6412 = vpop.f32.mrb[0].mxu0
      %v6413 = vadd.f32 %v5942, %v6412
      %v6414 = vpop.f32.mrb[0].mxu0
      %v6415 = vadd.f32 %v5944, %v6414
      %v6416 = vpop.f32.mrb[0].mxu0
      %v6417 = vadd.f32 %v5946, %v6416
      %v6418 = vpop.f32.mrb[0].mxu0
      %v6419 = vadd.f32 %v5948, %v6418
      %6420 = vmatprep.mubr.bf16.mxu0 0
      %6421 = vmatmul.mubr.bf16.gmra.mrb[0].mxu0 %v3797
      %v6422 = vpop.f32.mrb[0].mxu0
      %v6423 = vadd.f32 %v5952, %v6422
      %v6424 = vpop.f32.mrb[0].mxu0
      %v6425 = vadd.f32 %v5954, %v6424
      %v6426 = vpop.f32.mrb[0].mxu0
      %v6427 = vadd.f32 %v5956, %v6426
      %v6428 = vpop.f32.mrb[0].mxu0
      %v6429 = vadd.f32 %v5958, %v6428
      %6430 = vmatprep.mubr.bf16.mxu0 0
      %6431 = vmatmul.mubr.bf16.gmra.mrb[0].mxu0 %v3800
      %v6432 = vpop.f32.mrb[0].mxu0
      %v6433 = vadd.f32 %v5962, %v6432
      %v6434 = vpop.f32.mrb[0].mxu0
      %v6435 = vadd.f32 %v5964, %v6434
      %v6436 = vpop.f32.mrb[0].mxu0
      %v6437 = vadd.f32 %v5966, %v6436
      %v6438 = vpop.f32.mrb[0].mxu0
      %v6439 = vadd.f32 %v5968, %v6438
      %6440 = vmatprep.mubr.bf16.mxu0 0
      %6441 = vmatmul.mubr.bf16.gmra.mrb[0].mxu0 %v3803
      %v6442 = vpop.f32.mrb[0].mxu0
      %v6443 = vadd.f32 %v5972, %v6442
      %v6444 = vpop.f32.mrb[0].mxu0
      %v6445 = vadd.f32 %v5974, %v6444
      %v6446 = vpop.f32.mrb[0].mxu0
      %v6447 = vadd.f32 %v5976, %v6446
      %v6448 = vpop.f32.mrb[0].mxu0
      %v6449 = vadd.f32 %v5978, %v6448
      %6450 = vmatprep.mubr.bf16.mxu0 0
      %6451 = vmatmul.mubr.bf16.gmra.mrb[0].mxu0 %v3806
      %v6452 = vpop.f32.mrb[0].mxu0
      %v6453 = vadd.f32 %v5982, %v6452
      %v6454 = vpop.f32.mrb[0].mxu0
      %v6455 = vadd.f32 %v5984, %v6454
      %v6456 = vpop.f32.mrb[0].mxu0
      %v6457 = vadd.f32 %v5986, %v6456
      %v6458 = vpop.f32.mrb[0].mxu0
      %v6459 = vadd.f32 %v5988, %v6458
      %6460 = vmatprep.mubr.bf16.mxu0 0
      %6461 = vmatmul.mubr.bf16.gmra.mrb[0].mxu0 %v3809
      %v6462 = vpop.f32.mrb[0].mxu0
      %v6463 = vadd.f32 %v5992, %v6462
      %v6464 = vpop.f32.mrb[0].mxu0
      %v6465 = vadd.f32 %v5994, %v6464
      %v6466 = vpop.f32.mrb[0].mxu0
      %v6467 = vadd.f32 %v5996, %v6466
      %v6468 = vpop.f32.mrb[0].mxu0
      %v6469 = vadd.f32 %v5998, %v6468
      %6470 = vmatprep.mubr.bf16.mxu0 0
      %6471 = vmatmul.mubr.bf16.gmra.mrb[0].mxu0 %v3812
      %v6472 = vpop.f32.mrb[0].mxu0
      %v6473 = vadd.f32 %v6002, %v6472
      %v6474 = vpop.f32.mrb[0].mxu0
      %v6475 = vadd.f32 %v6004, %v6474
      %v6476 = vpop.f32.mrb[0].mxu0
      %v6477 = vadd.f32 %v6006, %v6476
      %v6478 = vpop.f32.mrb[0].mxu0
      %v6479 = vadd.f32 %v6008, %v6478
      %6480 = vmatprep.mubr.bf16.mxu0 0
      %6481 = vmatmul.mubr.bf16.gmra.mrb[0].mxu0 %v3815
      %v6482 = vpop.f32.mrb[0].mxu0
      %v6483 = vadd.f32 %v6012, %v6482
      %v6484 = vpop.f32.mrb[0].mxu0
      %v6485 = vadd.f32 %v6014, %v6484
      %v6486 = vpop.f32.mrb[0].mxu0
      %v6487 = vadd.f32 %v6016, %v6486
      %v6488 = vpop.f32.mrb[0].mxu0
      %v6489 = vadd.f32 %v6018, %v6488
      %6490 = vmatprep.mubr.bf16.mxu0 0
      %6491 = vmatmul.mubr.bf16.gmra.mrb[0].mxu0 %v3818
      %v6492 = vpop.f32.mrb[0].mxu0
      %v6493 = vadd.f32 %v6022, %v6492
      %v6494 = vpop.f32.mrb[0].mxu0
      %v6495 = vadd.f32 %v6024, %v6494
      %v6496 = vpop.f32.mrb[0].mxu0
      %v6497 = vadd.f32 %v6026, %v6496
      %v6498 = vpop.f32.mrb[0].mxu0
      %v6499 = vadd.f32 %v6028, %v6498
      %6500 = vmatprep.mubr.bf16.mxu0 0
      %6501 = vmatmul.mubr.bf16.gmra.mrb[0].mxu0 %v3821
      %v6502 = vpop.f32.mrb[0].mxu0
      %v6503 = vadd.f32 %v6032, %v6502
      %v6504 = vpop.f32.mrb[0].mxu0
      %v6505 = vadd.f32 %v6034, %v6504
      %v6506 = vpop.f32.mrb[0].mxu0
      %v6507 = vadd.f32 %v6036, %v6506
      %v6508 = vpop.f32.mrb[0].mxu0
      %v6509 = vadd.f32 %v6038, %v6508
      %6510 = vmatprep.mubr.bf16.mxu0 0
      %6511 = vmatmul.mubr.bf16.gmra.mrb[0].mxu0 %v3824
      %v6512 = vpop.f32.mrb[0].mxu0
      %v6513 = vadd.f32 %v6042, %v6512
      %v6514 = vpop.f32.mrb[0].mxu0
      %v6515 = vadd.f32 %v6044, %v6514
      %v6516 = vpop.f32.mrb[0].mxu0
      %v6517 = vadd.f32 %v6046, %v6516
      %v6518 = vpop.f32.mrb[0].mxu0
      %v6519 = vadd.f32 %v6048, %v6518
      %6520 = vmatprep.mubr.bf16.mxu0 0
      %6521 = vmatmul.mubr.bf16.gmra.mrb[0].mxu0 %v3827
      %v6522 = vpop.f32.mrb[0].mxu0
      %v6523 = vadd.f32 %v6052, %v6522
      %v6524 = vpop.f32.mrb[0].mxu0
      %v6525 = vadd.f32 %v6054, %v6524
      %v6526 = vpop.f32.mrb[0].mxu0
      %v6527 = vadd.f32 %v6056, %v6526
      %v6528 = vpop.f32.mrb[0].mxu0
      %v6529 = vadd.f32 %v6058, %v6528
      %6530 = vmatprep.mubr.bf16.mxu0 0
      %6531 = vmatmul.mubr.bf16.gmra.mrb[0].mxu0 %v3830
      %v6532 = vpop.f32.mrb[0].mxu0
      %v6533 = vadd.f32 %v6062, %v6532
      %v6534 = vpop.f32.mrb[0].mxu0
      %v6535 = vadd.f32 %v6064, %v6534
      %v6536 = vpop.f32.mrb[0].mxu0
      %v6537 = vadd.f32 %v6066, %v6536
      %v6538 = vpop.f32.mrb[0].mxu0
      %v6539 = vadd.f32 %v6068, %v6538
      %6540 = vmatprep.mubr.bf16.mxu0 0
      %6541 = vmatmul.mubr.bf16.gmra.mrb[0].mxu0 %v3833
      %v6542 = vpop.f32.mrb[0].mxu0
      %v6543 = vadd.f32 %v6072, %v6542
      %v6544 = vpop.f32.mrb[0].mxu0
      %v6545 = vadd.f32 %v6074, %v6544
      %v6546 = vpop.f32.mrb[0].mxu0
      %v6547 = vadd.f32 %v6076, %v6546
      %v6548 = vpop.f32.mrb[0].mxu0
      %v6549 = vadd.f32 %v6078, %v6548
      %6550 = vmatprep.mubr.bf16.mxu0 0
      %6551 = vmatmul.mubr.bf16.gmra.mrb[0].mxu0 %v3836
      %v6552 = vpop.f32.mrb[0].mxu0
      %v6553 = vadd.f32 %v6082, %v6552
      %v6554 = vpop.f32.mrb[0].mxu0
      %v6555 = vadd.f32 %v6084, %v6554
      %v6556 = vpop.f32.mrb[0].mxu0
      %v6557 = vadd.f32 %v6086, %v6556
      %v6558 = vpop.f32.mrb[0].mxu0
      %v6559 = vadd.f32 %v6088, %v6558
      %6560 = vmatprep.mubr.bf16.mxu0 0
      %6561 = vmatmul.mubr.bf16.gmra.mrb[0].mxu0 %v3839
      %v6562 = vpop.f32.mrb[0].mxu0
      %v6563 = vadd.f32 %v6092, %v6562
      %v6564 = vpop.f32.mrb[0].mxu0
      %v6565 = vadd.f32 %v6094, %v6564
      %v6566 = vpop.f32.mrb[0].mxu0
      %v6567 = vadd.f32 %v6096, %v6566
      %v6568 = vpop.f32.mrb[0].mxu0
      %v6569 = vadd.f32 %v6098, %v6568
      %6570 = vmatprep.mubr.bf16.mxu0 0
      %6571 = vmatmul.mubr.bf16.gmra.mrb[0].mxu0 %v3842
      %v6572 = vpop.f32.mrb[0].mxu0
      %v6573 = vadd.f32 %v6102, %v6572
      %v6574 = vpop.f32.mrb[0].mxu0
      %v6575 = vadd.f32 %v6104, %v6574
      %v6576 = vpop.f32.mrb[0].mxu0
      %v6577 = vadd.f32 %v6106, %v6576
      %v6578 = vpop.f32.mrb[0].mxu0
      %v6579 = vadd.f32 %v6108, %v6578
      %6580 = vmatprep.mubr.bf16.mxu0 0
      %6581 = vmatmul.mubr.bf16.gmra.mrb[0].mxu0 %v3845
      %v6582 = vpop.f32.mrb[0].mxu0
      %v6583 = vadd.f32 %v6112, %v6582
      %v6584 = vpop.f32.mrb[0].mxu0
      %v6585 = vadd.f32 %v6114, %v6584
      %v6586 = vpop.f32.mrb[0].mxu0
      %v6587 = vadd.f32 %v6116, %v6586
      %v6588 = vpop.f32.mrb[0].mxu0
      %v6589 = vadd.f32 %v6118, %v6588
      %6590 = vmatprep.mubr.bf16.mxu0 0
      %6591 = vmatmul.mubr.bf16.gmra.mrb[0].mxu0 %v3848
      %v6592 = vpop.f32.mrb[0].mxu0
      %v6593 = vadd.f32 %v6122, %v6592
      %v6594 = vpop.f32.mrb[0].mxu0
      %v6595 = vadd.f32 %v6124, %v6594
      %v6596 = vpop.f32.mrb[0].mxu0
      %v6597 = vadd.f32 %v6126, %v6596
      %v6598 = vpop.f32.mrb[0].mxu0
      %v6599 = vadd.f32 %v6128, %v6598
      %6600 = vmatprep.mubr.bf16.mxu0 0
      %6601 = vmatmul.mubr.bf16.gmra.mrb[0].mxu0 %v3851
      %v6602 = vpop.f32.mrb[0].mxu0
      %v6603 = vadd.f32 %v6132, %v6602
      %v6604 = vpop.f32.mrb[0].mxu0
      %v6605 = vadd.f32 %v6134, %v6604
      %v6606 = vpop.f32.mrb[0].mxu0
      %v6607 = vadd.f32 %v6136, %v6606
      %v6608 = vpop.f32.mrb[0].mxu0
      %v6609 = vadd.f32 %v6138, %v6608
      %6610 = vmatprep.mubr.bf16.mxu0 0
      %6611 = vmatmul.mubr.bf16.gmra.mrb[0].mxu0 %v3854
      %v6612 = vpop.f32.mrb[0].mxu0
      %v6613 = vadd.f32 %v6142, %v6612
      %v6614 = vpop.f32.mrb[0].mxu0
      %v6615 = vadd.f32 %v6144, %v6614
      %v6616 = vpop.f32.mrb[0].mxu0
      %v6617 = vadd.f32 %v6146, %v6616
      %v6618 = vpop.f32.mrb[0].mxu0
      %v6619 = vadd.f32 %v6148, %v6618
      %6620 = vmatprep.mubr.bf16.mxu0 0
      %6621 = vmatmul.mubr.bf16.gmra.mrb[0].mxu0 %v3857
      %v6622 = vpop.f32.mrb[0].mxu0
      %v6623 = vadd.f32 %v6152, %v6622
      %v6624 = vpop.f32.mrb[0].mxu0
      %v6625 = vadd.f32 %v6154, %v6624
      %v6626 = vpop.f32.mrb[0].mxu0
      %v6627 = vadd.f32 %v6156, %v6626
      %v6628 = vpop.f32.mrb[0].mxu0
      %v6629 = vadd.f32 %v6158, %v6628
      %6630 = vmatprep.mubr.bf16.mxu0 0
      %6631 = vmatmul.mubr.bf16.gmra.mrb[0].mxu0 %v3860
      %v6632 = vpop.f32.mrb[0].mxu0
      %v6633 = vadd.f32 %v6162, %v6632
      %v6634 = vpop.f32.mrb[0].mxu0
      %v6635 = vadd.f32 %v6164, %v6634
      %v6636 = vpop.f32.mrb[0].mxu0
      %v6637 = vadd.f32 %v6166, %v6636
      %v6638 = vpop.f32.mrb[0].mxu0
      %v6639 = vadd.f32 %v6168, %v6638
      %6640 = vmatprep.mubr.bf16.mxu0 0
      %6641 = vmatmul.mubr.bf16.gmra.mrb[0].mxu0 %v3863
      %v6642 = vpop.f32.mrb[0].mxu0
      %v6643 = vadd.f32 %v6172, %v6642
      %v6644 = vpop.f32.mrb[0].mxu0
      %v6645 = vadd.f32 %v6174, %v6644
      %v6646 = vpop.f32.mrb[0].mxu0
      %v6647 = vadd.f32 %v6176, %v6646
      %v6648 = vpop.f32.mrb[0].mxu0
      %v6649 = vadd.f32 %v6178, %v6648
      %6650 = vmatprep.mubr.bf16.mxu0 0
      %6651 = vmatmul.mubr.bf16.gmra.mrb[0].mxu0 %v3866
      %v6652 = vpop.f32.mrb[0].mxu0
      %v6653 = vadd.f32 %v6182, %v6652
      %v6654 = vpop.f32.mrb[0].mxu0
      %v6655 = vadd.f32 %v6184, %v6654
      %v6656 = vpop.f32.mrb[0].mxu0
      %v6657 = vadd.f32 %v6186, %v6656
      %v6658 = vpop.f32.mrb[0].mxu0
      %v6659 = vadd.f32 %v6188, %v6658
      %6660 = vmatprep.mubr.bf16.mxu0 0
      %6661 = vmatmul.mubr.bf16.gmra.mrb[0].mxu0 %v3869
      %v6662 = vpop.f32.mrb[0].mxu0
      %v6663 = vadd.f32 %v6192, %v6662
      %v6664 = vpop.f32.mrb[0].mxu0
      %v6665 = vadd.f32 %v6194, %v6664
      %v6666 = vpop.f32.mrb[0].mxu0
      %v6667 = vadd.f32 %v6196, %v6666
      %v6668 = vpop.f32.mrb[0].mxu0
      %v6669 = vadd.f32 %v6198, %v6668
      %6670 = vmatprep.mubr.bf16.mxu0 0
      %6671 = vmatmul.mubr.bf16.gmra.mrb[0].mxu0 %v3872
      %v6672 = vpop.f32.mrb[0].mxu0
      %v6673 = vadd.f32 %v6202, %v6672
      %v6674 = vpop.f32.mrb[0].mxu0
      %v6675 = vadd.f32 %v6204, %v6674
      %v6676 = vpop.f32.mrb[0].mxu0
      %v6677 = vadd.f32 %v6206, %v6676
      %v6678 = vpop.f32.mrb[0].mxu0
      %v6679 = vadd.f32 %v6208, %v6678
      %6680 = vmatprep.mubr.bf16.mxu0 0
      %6681 = vmatmul.mubr.bf16.gmra.mrb[0].mxu0 %v3875
      %v6682 = vpop.f32.mrb[0].mxu0
      %v6683 = vadd.f32 %v6212, %v6682
      %v6684 = vpop.f32.mrb[0].mxu0
      %v6685 = vadd.f32 %v6214, %v6684
      %v6686 = vpop.f32.mrb[0].mxu0
      %v6687 = vadd.f32 %v6216, %v6686
      %v6688 = vpop.f32.mrb[0].mxu0
      %v6689 = vadd.f32 %v6218, %v6688
      %6690 = vmatprep.mubr.bf16.mxu0 0
      %6691 = vmatmul.mubr.bf16.gmra.mrb[0].mxu0 %v3878
      %v6692 = vpop.f32.mrb[0].mxu0
      %v6693 = vadd.f32 %v6222, %v6692
      %v6694 = vpop.f32.mrb[0].mxu0
      %v6695 = vadd.f32 %v6224, %v6694
      %v6696 = vpop.f32.mrb[0].mxu0
      %v6697 = vadd.f32 %v6226, %v6696
      %v6698 = vpop.f32.mrb[0].mxu0
      %v6699 = vadd.f32 %v6228, %v6698
      %6700 = vmatprep.mubr.bf16.mxu0 0
      %6701 = vmatmul.mubr.bf16.gmra.mrb[0].mxu0 %v3881
      %v6702 = vpop.f32.mrb[0].mxu0
      %v6703 = vadd.f32 %v6232, %v6702
      %v6704 = vpop.f32.mrb[0].mxu0
      %v6705 = vadd.f32 %v6234, %v6704
      %v6706 = vpop.f32.mrb[0].mxu0
      %v6707 = vpop.f32.mrb[0].mxu0
      %6708 = vdwg.mxu0
      %vm6709 = vcmask 556032
      %v6710 = vsel %vm6709, %v6275, 0.0
      %v6711 = vadd.f32 %v6273, %v6710
      %6712 = vadd.xlane.f32.xlu0 %v6711
      %v6713 = vpop.xlane.xlu0 %6712
      %v6714 = vsel %vm6709, %v6279, 0.0
      %v6715 = vadd.f32 %v6277, %v6714
      %6716 = vadd.xlane.f32.xlu0 %v6715
      %v6717 = vpop.xlane.xlu0 %6716
      %v6718 = vsel %vm6709, %v6285, 0.0
      %v6719 = vadd.f32 %v6283, %v6718
      %6720 = vadd.xlane.f32.xlu0 %v6719
      %v6721 = vpop.xlane.xlu0 %6720
      %v6722 = vsel %vm6709, %v6289, 0.0
      %v6723 = vadd.f32 %v6287, %v6722
      %6724 = vadd.xlane.f32.xlu0 %v6723
      %v6725 = vpop.xlane.xlu0 %6724
      %v6726 = vsel %vm6709, %v6295, 0.0
      %v6727 = vadd.f32 %v6293, %v6726
      %6728 = vadd.xlane.f32.xlu0 %v6727
      %v6729 = vpop.xlane.xlu0 %6728
      %v6730 = vsel %vm6709, %v6299, 0.0
      %v6731 = vadd.f32 %v6297, %v6730
      %6732 = vadd.xlane.f32.xlu0 %v6731
      %v6733 = vpop.xlane.xlu0 %6732
      %v6734 = vsel %vm6709, %v6305, 0.0
      %v6735 = vadd.f32 %v6303, %v6734
      %6736 = vadd.xlane.f32.xlu0 %v6735
      %v6737 = vpop.xlane.xlu0 %6736
      %v6738 = vsel %vm6709, %v6309, 0.0
      %v6739 = vadd.f32 %v6307, %v6738
      %6740 = vadd.xlane.f32.xlu0 %v6739
      %v6741 = vpop.xlane.xlu0 %6740
      %v6742 = vsel %vm6709, %v6315, 0.0
      %v6743 = vadd.f32 %v6313, %v6742
      %6744 = vadd.xlane.f32.xlu0 %v6743
      %v6745 = vpop.xlane.xlu0 %6744
      %v6746 = vsel %vm6709, %v6319, 0.0
      %v6747 = vadd.f32 %v6317, %v6746
      %6748 = vadd.xlane.f32.xlu0 %v6747
      %v6749 = vpop.xlane.xlu0 %6748
      %v6750 = vsel %vm6709, %v6325, 0.0
      %v6751 = vadd.f32 %v6323, %v6750
      %6752 = vadd.xlane.f32.xlu0 %v6751
      %v6753 = vpop.xlane.xlu0 %6752
      %v6754 = vsel %vm6709, %v6329, 0.0
      %v6755 = vadd.f32 %v6327, %v6754
      %6756 = vadd.xlane.f32.xlu0 %v6755
      %v6757 = vpop.xlane.xlu0 %6756
      %v6758 = vsel %vm6709, %v6335, 0.0
      %v6759 = vadd.f32 %v6333, %v6758
      %6760 = vadd.xlane.f32.xlu0 %v6759
      %v6761 = vpop.xlane.xlu0 %6760
      %v6762 = vsel %vm6709, %v6339, 0.0
      %v6763 = vadd.f32 %v6337, %v6762
      %6764 = vadd.xlane.f32.xlu0 %v6763
      %v6765 = vpop.xlane.xlu0 %6764
      %v6766 = vsel %vm6709, %v6345, 0.0
      %v6767 = vadd.f32 %v6343, %v6766
      %6768 = vadd.xlane.f32.xlu0 %v6767
      %v6769 = vpop.xlane.xlu0 %6768
      %v6770 = vsel %vm6709, %v6349, 0.0
      %v6771 = vadd.f32 %v6347, %v6770
      %6772 = vadd.xlane.f32.xlu0 %v6771
      %v6773 = vpop.xlane.xlu0 %6772
      %v6774 = vsel %vm6709, %v6355, 0.0
      %v6775 = vadd.f32 %v6353, %v6774
      %6776 = vadd.xlane.f32.xlu0 %v6775
      %v6777 = vpop.xlane.xlu0 %6776
      %v6778 = vsel %vm6709, %v6359, 0.0
      %v6779 = vadd.f32 %v6357, %v6778
      %6780 = vadd.xlane.f32.xlu0 %v6779
      %v6781 = vpop.xlane.xlu0 %6780
      %v6782 = vsel %vm6709, %v6365, 0.0
      %v6783 = vadd.f32 %v6363, %v6782
      %6784 = vadd.xlane.f32.xlu0 %v6783
      %v6785 = vpop.xlane.xlu0 %6784
      %v6786 = vsel %vm6709, %v6369, 0.0
      %v6787 = vadd.f32 %v6367, %v6786
      %6788 = vadd.xlane.f32.xlu0 %v6787
      %v6789 = vpop.xlane.xlu0 %6788
      %v6790 = vsel %vm6709, %v6375, 0.0
      %v6791 = vadd.f32 %v6373, %v6790
      %6792 = vadd.xlane.f32.xlu0 %v6791
      %v6793 = vpop.xlane.xlu0 %6792
      %v6794 = vsel %vm6709, %v6379, 0.0
      %v6795 = vadd.f32 %v6377, %v6794
      %6796 = vadd.xlane.f32.xlu0 %v6795
      %v6797 = vpop.xlane.xlu0 %6796
      %v6798 = vsel %vm6709, %v6385, 0.0
      %v6799 = vadd.f32 %v6383, %v6798
      %6800 = vadd.xlane.f32.xlu0 %v6799
      %v6801 = vpop.xlane.xlu0 %6800
      %v6802 = vsel %vm6709, %v6389, 0.0
      %v6803 = vadd.f32 %v6387, %v6802
      %6804 = vadd.xlane.f32.xlu0 %v6803
      %v6805 = vpop.xlane.xlu0 %6804
      %v6806 = vsel %vm6709, %v6395, 0.0
      %v6807 = vadd.f32 %v6393, %v6806
      %6808 = vadd.xlane.f32.xlu0 %v6807
      %v6809 = vpop.xlane.xlu0 %6808
      %v6810 = vsel %vm6709, %v6399, 0.0
      %v6811 = vadd.f32 %v6397, %v6810
      %6812 = vadd.xlane.f32.xlu0 %v6811
      %v6813 = vpop.xlane.xlu0 %6812
      %v6814 = vsel %vm6709, %v6405, 0.0
      %v6815 = vadd.f32 %v6403, %v6814
      %6816 = vadd.xlane.f32.xlu0 %v6815
      %v6817 = vpop.xlane.xlu0 %6816
      %v6818 = vsel %vm6709, %v6409, 0.0
      %v6819 = vadd.f32 %v6407, %v6818
      %6820 = vadd.xlane.f32.xlu0 %v6819
      %v6821 = vpop.xlane.xlu0 %6820
      %v6822 = vsel %vm6709, %v6415, 0.0
      %v6823 = vadd.f32 %v6413, %v6822
      %6824 = vadd.xlane.f32.xlu0 %v6823
      %v6825 = vpop.xlane.xlu0 %6824
      %v6826 = vsel %vm6709, %v6419, 0.0
      %v6827 = vadd.f32 %v6417, %v6826
      %6828 = vadd.xlane.f32.xlu0 %v6827
      %v6829 = vpop.xlane.xlu0 %6828
      %v6830 = vsel %vm6709, %v6425, 0.0
      %v6831 = vadd.f32 %v6423, %v6830
      %6832 = vadd.xlane.f32.xlu0 %v6831
      %v6833 = vpop.xlane.xlu0 %6832
      %v6834 = vsel %vm6709, %v6429, 0.0
      %v6835 = vadd.f32 %v6427, %v6834
      %6836 = vadd.xlane.f32.xlu0 %v6835
      %v6837 = vpop.xlane.xlu0 %6836
      %v6838 = vsel %vm6709, %v6435, 0.0
      %v6839 = vadd.f32 %v6433, %v6838
      %6840 = vadd.xlane.f32.xlu0 %v6839
      %v6841 = vpop.xlane.xlu0 %6840
      %v6842 = vsel %vm6709, %v6439, 0.0
      %v6843 = vadd.f32 %v6437, %v6842
      %6844 = vadd.xlane.f32.xlu0 %v6843
      %v6845 = vpop.xlane.xlu0 %6844
      %v6846 = vsel %vm6709, %v6445, 0.0
      %v6847 = vadd.f32 %v6443, %v6846
      %6848 = vadd.xlane.f32.xlu0 %v6847
      %v6849 = vpop.xlane.xlu0 %6848
      %v6850 = vsel %vm6709, %v6449, 0.0
      %v6851 = vadd.f32 %v6447, %v6850
      %6852 = vadd.xlane.f32.xlu0 %v6851
      %v6853 = vpop.xlane.xlu0 %6852
      %v6854 = vsel %vm6709, %v6455, 0.0
      %v6855 = vadd.f32 %v6453, %v6854
      %6856 = vadd.xlane.f32.xlu0 %v6855
      %v6857 = vpop.xlane.xlu0 %6856
      %v6858 = vsel %vm6709, %v6459, 0.0
      %v6859 = vadd.f32 %v6457, %v6858
      %6860 = vadd.xlane.f32.xlu0 %v6859
      %v6861 = vpop.xlane.xlu0 %6860
      %v6862 = vsel %vm6709, %v6465, 0.0
      %v6863 = vadd.f32 %v6463, %v6862
      %6864 = vadd.xlane.f32.xlu0 %v6863
      %v6865 = vpop.xlane.xlu0 %6864
      %v6866 = vsel %vm6709, %v6469, 0.0
      %v6867 = vadd.f32 %v6467, %v6866
      %6868 = vadd.xlane.f32.xlu0 %v6867
      %v6869 = vpop.xlane.xlu0 %6868
      %v6870 = vsel %vm6709, %v6475, 0.0
      %v6871 = vadd.f32 %v6473, %v6870
      %6872 = vadd.xlane.f32.xlu0 %v6871
      %v6873 = vpop.xlane.xlu0 %6872
      %v6874 = vsel %vm6709, %v6479, 0.0
      %v6875 = vadd.f32 %v6477, %v6874
      %6876 = vadd.xlane.f32.xlu0 %v6875
      %v6877 = vpop.xlane.xlu0 %6876
      %v6878 = vsel %vm6709, %v6485, 0.0
      %v6879 = vadd.f32 %v6483, %v6878
      %6880 = vadd.xlane.f32.xlu0 %v6879
      %v6881 = vpop.xlane.xlu0 %6880
      %v6882 = vsel %vm6709, %v6489, 0.0
      %v6883 = vadd.f32 %v6487, %v6882
      %6884 = vadd.xlane.f32.xlu0 %v6883
      %v6885 = vpop.xlane.xlu0 %6884
      %v6886 = vsel %vm6709, %v6495, 0.0
      %v6887 = vadd.f32 %v6493, %v6886
      %6888 = vadd.xlane.f32.xlu0 %v6887
      %v6889 = vpop.xlane.xlu0 %6888
      %v6890 = vsel %vm6709, %v6499, 0.0
      %v6891 = vadd.f32 %v6497, %v6890
      %6892 = vadd.xlane.f32.xlu0 %v6891
      %v6893 = vpop.xlane.xlu0 %6892
      %v6894 = vsel %vm6709, %v6505, 0.0
      %v6895 = vadd.f32 %v6503, %v6894
      %6896 = vadd.xlane.f32.xlu0 %v6895
      %v6897 = vpop.xlane.xlu0 %6896
      %v6898 = vsel %vm6709, %v6509, 0.0
      %v6899 = vadd.f32 %v6507, %v6898
      %6900 = vadd.xlane.f32.xlu0 %v6899
      %v6901 = vpop.xlane.xlu0 %6900
      %v6902 = vsel %vm6709, %v6515, 0.0
      %v6903 = vadd.f32 %v6513, %v6902
      %6904 = vadd.xlane.f32.xlu0 %v6903
      %v6905 = vpop.xlane.xlu0 %6904
      %v6906 = vsel %vm6709, %v6519, 0.0
      %v6907 = vadd.f32 %v6517, %v6906
      %6908 = vadd.xlane.f32.xlu0 %v6907
      %v6909 = vpop.xlane.xlu0 %6908
      %v6910 = vsel %vm6709, %v6525, 0.0
      %v6911 = vadd.f32 %v6523, %v6910
      %6912 = vadd.xlane.f32.xlu0 %v6911
      %v6913 = vpop.xlane.xlu0 %6912
      %v6914 = vsel %vm6709, %v6529, 0.0
      %v6915 = vadd.f32 %v6527, %v6914
      %6916 = vadd.xlane.f32.xlu0 %v6915
      %v6917 = vpop.xlane.xlu0 %6916
      %v6918 = vsel %vm6709, %v6535, 0.0
      %v6919 = vadd.f32 %v6533, %v6918
      %6920 = vadd.xlane.f32.xlu0 %v6919
      %v6921 = vpop.xlane.xlu0 %6920
      %v6922 = vsel %vm6709, %v6539, 0.0
      %v6923 = vadd.f32 %v6537, %v6922
      %6924 = vadd.xlane.f32.xlu0 %v6923
      %v6925 = vpop.xlane.xlu0 %6924
      %v6926 = vsel %vm6709, %v6545, 0.0
      %v6927 = vadd.f32 %v6543, %v6926
      %6928 = vadd.xlane.f32.xlu0 %v6927
      %v6929 = vpop.xlane.xlu0 %6928
      %v6930 = vsel %vm6709, %v6549, 0.0
      %v6931 = vadd.f32 %v6547, %v6930
      %6932 = vadd.xlane.f32.xlu0 %v6931
      %v6933 = vpop.xlane.xlu0 %6932
      %v6934 = vsel %vm6709, %v6555, 0.0
      %v6935 = vadd.f32 %v6553, %v6934
      %6936 = vadd.xlane.f32.xlu0 %v6935
      %v6937 = vpop.xlane.xlu0 %6936
      %v6938 = vsel %vm6709, %v6559, 0.0
      %v6939 = vadd.f32 %v6557, %v6938
      %6940 = vadd.xlane.f32.xlu0 %v6939
      %v6941 = vpop.xlane.xlu0 %6940
      %v6942 = vsel %vm6709, %v6565, 0.0
      %v6943 = vadd.f32 %v6563, %v6942
      %6944 = vadd.xlane.f32.xlu0 %v6943
      %v6945 = vpop.xlane.xlu0 %6944
      %v6946 = vsel %vm6709, %v6569, 0.0
      %v6947 = vadd.f32 %v6567, %v6946
      %6948 = vadd.xlane.f32.xlu0 %v6947
      %v6949 = vpop.xlane.xlu0 %6948
      %v6950 = vsel %vm6709, %v6575, 0.0
      %v6951 = vadd.f32 %v6573, %v6950
      %6952 = vadd.xlane.f32.xlu0 %v6951
      %v6953 = vpop.xlane.xlu0 %6952
      %v6954 = vsel %vm6709, %v6579, 0.0
      %v6955 = vadd.f32 %v6577, %v6954
      %6956 = vadd.xlane.f32.xlu0 %v6955
      %v6957 = vpop.xlane.xlu0 %6956
      %v6958 = vsel %vm6709, %v6585, 0.0
      %v6959 = vadd.f32 %v6583, %v6958
      %6960 = vadd.xlane.f32.xlu0 %v6959
      %v6961 = vpop.xlane.xlu0 %6960
      %v6962 = vsel %vm6709, %v6589, 0.0
      %v6963 = vadd.f32 %v6587, %v6962
      %6964 = vadd.xlane.f32.xlu0 %v6963
      %v6965 = vpop.xlane.xlu0 %6964
      %v6966 = vsel %vm6709, %v6595, 0.0
      %v6967 = vadd.f32 %v6593, %v6966
      %6968 = vadd.xlane.f32.xlu0 %v6967
      %v6969 = vpop.xlane.xlu0 %6968
      %v6970 = vsel %vm6709, %v6599, 0.0
      %v6971 = vadd.f32 %v6597, %v6970
      %6972 = vadd.xlane.f32.xlu0 %v6971
      %v6973 = vpop.xlane.xlu0 %6972
      %v6974 = vsel %vm6709, %v6605, 0.0
      %v6975 = vadd.f32 %v6603, %v6974
      %6976 = vadd.xlane.f32.xlu0 %v6975
      %v6977 = vpop.xlane.xlu0 %6976
      %v6978 = vsel %vm6709, %v6609, 0.0
      %v6979 = vadd.f32 %v6607, %v6978
      %6980 = vadd.xlane.f32.xlu0 %v6979
      %v6981 = vpop.xlane.xlu0 %6980
      %v6982 = vsel %vm6709, %v6615, 0.0
      %v6983 = vadd.f32 %v6613, %v6982
      %6984 = vadd.xlane.f32.xlu0 %v6983
      %v6985 = vpop.xlane.xlu0 %6984
      %v6986 = vsel %vm6709, %v6619, 0.0
      %v6987 = vadd.f32 %v6617, %v6986
      %6988 = vadd.xlane.f32.xlu0 %v6987
      %v6989 = vpop.xlane.xlu0 %6988
      %v6990 = vsel %vm6709, %v6625, 0.0
      %v6991 = vadd.f32 %v6623, %v6990
      %6992 = vadd.xlane.f32.xlu0 %v6991
      %v6993 = vpop.xlane.xlu0 %6992
      %v6994 = vsel %vm6709, %v6629, 0.0
      %v6995 = vadd.f32 %v6627, %v6994
      %6996 = vadd.xlane.f32.xlu0 %v6995
      %v6997 = vpop.xlane.xlu0 %6996
      %v6998 = vsel %vm6709, %v6635, 0.0
      %v6999 = vadd.f32 %v6633, %v6998
      %7000 = vadd.xlane.f32.xlu0 %v6999
      %v7001 = vpop.xlane.xlu0 %7000
      %v7002 = vsel %vm6709, %v6639, 0.0
      %v7003 = vadd.f32 %v6637, %v7002
      %7004 = vadd.xlane.f32.xlu0 %v7003
      %v7005 = vpop.xlane.xlu0 %7004
      %v7006 = vsel %vm6709, %v6645, 0.0
      %v7007 = vadd.f32 %v6643, %v7006
      %7008 = vadd.xlane.f32.xlu0 %v7007
      %v7009 = vpop.xlane.xlu0 %7008
      %v7010 = vsel %vm6709, %v6649, 0.0
      %v7011 = vadd.f32 %v6647, %v7010
      %7012 = vadd.xlane.f32.xlu0 %v7011
      %v7013 = vpop.xlane.xlu0 %7012
      %v7014 = vsel %vm6709, %v6655, 0.0
      %v7015 = vadd.f32 %v6653, %v7014
      %7016 = vadd.xlane.f32.xlu0 %v7015
      %v7017 = vpop.xlane.xlu0 %7016
      %v7018 = vsel %vm6709, %v6659, 0.0
      %v7019 = vadd.f32 %v6657, %v7018
      %7020 = vadd.xlane.f32.xlu0 %v7019
      %v7021 = vpop.xlane.xlu0 %7020
      %v7022 = vsel %vm6709, %v6665, 0.0
      %v7023 = vadd.f32 %v6663, %v7022
      %7024 = vadd.xlane.f32.xlu0 %v7023
      %v7025 = vpop.xlane.xlu0 %7024
      %v7026 = vsel %vm6709, %v6669, 0.0
      %v7027 = vadd.f32 %v6667, %v7026
      %7028 = vadd.xlane.f32.xlu0 %v7027
      %v7029 = vpop.xlane.xlu0 %7028
      %v7030 = vsel %vm6709, %v6675, 0.0
      %v7031 = vadd.f32 %v6673, %v7030
      %7032 = vadd.xlane.f32.xlu0 %v7031
      %v7033 = vpop.xlane.xlu0 %7032
      %v7034 = vsel %vm6709, %v6679, 0.0
      %v7035 = vadd.f32 %v6677, %v7034
      %7036 = vadd.xlane.f32.xlu0 %v7035
      %v7037 = vpop.xlane.xlu0 %7036
      %v7038 = vsel %vm6709, %v6685, 0.0
      %v7039 = vadd.f32 %v6683, %v7038
      %7040 = vadd.xlane.f32.xlu0 %v7039
      %v7041 = vpop.xlane.xlu0 %7040
      %v7042 = vsel %vm6709, %v6689, 0.0
      %v7043 = vadd.f32 %v6687, %v7042
      %7044 = vadd.xlane.f32.xlu0 %v7043
      %v7045 = vpop.xlane.xlu0 %7044
      %v7046 = vsel %vm6709, %v6695, 0.0
      %v7047 = vadd.f32 %v6693, %v7046
      %7048 = vadd.xlane.f32.xlu0 %v7047
      %v7049 = vpop.xlane.xlu0 %7048
      %v7050 = vsel %vm6709, %v6699, 0.0
      %v7051 = vadd.f32 %v6697, %v7050
      %7052 = vadd.xlane.f32.xlu0 %v7051
      %v7053 = vpop.xlane.xlu0 %7052
      %v7054 = vsel %vm6709, %v6705, 0.0
      %v7055 = vadd.f32 %v6703, %v7054
      %7056 = vadd.xlane.f32.xlu0 %v7055
      %v7057 = vpop.xlane.xlu0 %7056
      %v7058 = vmul.f32 %v6713, 0.0051020407
      %v7059 = vmul.f32 %v6717, 0.0051020407
      %v7060 = vmul.f32 %v6721, 0.0051020407
      %v7061 = vmul.f32 %v6725, 0.0051020407
      %v7062 = vmul.f32 %v6729, 0.0051020407
      %v7063 = vmul.f32 %v6733, 0.0051020407
      %v7064 = vmul.f32 %v6737, 0.0051020407
      %v7065 = vmul.f32 %v6741, 0.0051020407
      %v7066 = vmul.f32 %v6745, 0.0051020407
      %v7067 = vmul.f32 %v6749, 0.0051020407
      %v7068 = vmul.f32 %v6753, 0.0051020407
      %v7069 = vmul.f32 %v6757, 0.0051020407
      %v7070 = vmul.f32 %v6761, 0.0051020407
      %v7071 = vmul.f32 %v6765, 0.0051020407
      %v7072 = vmul.f32 %v6769, 0.0051020407
      %v7073 = vmul.f32 %v6773, 0.0051020407
      %v7074 = vmul.f32 %v6777, 0.0051020407
      %v7075 = vmul.f32 %v6781, 0.0051020407
      %v7076 = vmul.f32 %v6785, 0.0051020407
      %v7077 = vmul.f32 %v6789, 0.0051020407
      %v7078 = vmul.f32 %v6793, 0.0051020407
      %v7079 = vmul.f32 %v6797, 0.0051020407
      %v7080 = vmul.f32 %v6801, 0.0051020407
      %v7081 = vmul.f32 %v6805, 0.0051020407
      %v7082 = vmul.f32 %v6809, 0.0051020407
      %v7083 = vmul.f32 %v6813, 0.0051020407
      %v7084 = vmul.f32 %v6817, 0.0051020407
      %v7085 = vmul.f32 %v6821, 0.0051020407
      %v7086 = vmul.f32 %v6825, 0.0051020407
      %v7087 = vmul.f32 %v6829, 0.0051020407
      %v7088 = vmul.f32 %v6833, 0.0051020407
      %v7089 = vmul.f32 %v6837, 0.0051020407
      %v7090 = vmul.f32 %v6841, 0.0051020407
      %v7091 = vmul.f32 %v6845, 0.0051020407
      %v7092 = vmul.f32 %v6849, 0.0051020407
      %v7093 = vmul.f32 %v6853, 0.0051020407
      %v7094 = vmul.f32 %v6857, 0.0051020407
      %v7095 = vmul.f32 %v6861, 0.0051020407
      %v7096 = vmul.f32 %v6865, 0.0051020407
      %v7097 = vmul.f32 %v6869, 0.0051020407
      %v7098 = vmul.f32 %v6873, 0.0051020407
      %v7099 = vmul.f32 %v6877, 0.0051020407
      %v7100 = vmul.f32 %v6881, 0.0051020407
      %v7101 = vmul.f32 %v6885, 0.0051020407
      %v7102 = vmul.f32 %v6889, 0.0051020407
      %v7103 = vmul.f32 %v6893, 0.0051020407
      %v7104 = vmul.f32 %v6897, 0.0051020407
      %v7105 = vmul.f32 %v6901, 0.0051020407
      %v7106 = vmul.f32 %v6905, 0.0051020407
      %v7107 = vmul.f32 %v6909, 0.0051020407
      %v7108 = vmul.f32 %v6913, 0.0051020407
      %v7109 = vmul.f32 %v6917, 0.0051020407
      %v7110 = vmul.f32 %v6921, 0.0051020407
      %v7111 = vmul.f32 %v6925, 0.0051020407
      %v7112 = vmul.f32 %v6929, 0.0051020407
      %v7113 = vmul.f32 %v6933, 0.0051020407
      %v7114 = vmul.f32 %v6937, 0.0051020407
      %v7115 = vmul.f32 %v6941, 0.0051020407
      %v7116 = vmul.f32 %v6945, 0.0051020407
      %v7117 = vmul.f32 %v6949, 0.0051020407
      %v7118 = vmul.f32 %v6953, 0.0051020407
      %v7119 = vmul.f32 %v6957, 0.0051020407
      %v7120 = vmul.f32 %v6961, 0.0051020407
      %v7121 = vmul.f32 %v6965, 0.0051020407
      %v7122 = vmul.f32 %v6969, 0.0051020407
      %v7123 = vmul.f32 %v6973, 0.0051020407
      %v7124 = vmul.f32 %v6977, 0.0051020407
      %v7125 = vmul.f32 %v6981, 0.0051020407
      %v7126 = vmul.f32 %v6985, 0.0051020407
      %v7127 = vmul.f32 %v6989, 0.0051020407
      %v7128 = vmul.f32 %v6993, 0.0051020407
      %v7129 = vmul.f32 %v6997, 0.0051020407
      %v7130 = vmul.f32 %v7001, 0.0051020407
      %v7131 = vmul.f32 %v7005, 0.0051020407
      %v7132 = vmul.f32 %v7009, 0.0051020407
      %v7133 = vmul.f32 %v7013, 0.0051020407
      %v7134 = vmul.f32 %v7017, 0.0051020407
      %v7135 = vmul.f32 %v7021, 0.0051020407
      %v7136 = vmul.f32 %v7025, 0.0051020407
      %v7137 = vmul.f32 %v7029, 0.0051020407
      %v7138 = vmul.f32 %v7033, 0.0051020407
      %v7139 = vmul.f32 %v7037, 0.0051020407
      %v7140 = vmul.f32 %v7041, 0.0051020407
      %v7141 = vmul.f32 %v7045, 0.0051020407
      %v7142 = vmul.f32 %v7049, 0.0051020407
      %v7143 = vmul.f32 %v7053, 0.0051020407
      %v7144 = vmul.f32 %v7057, 0.0051020407
      %v7145 = vsub.f32 %v6273, %v7058
      %v7146 = vsub.f32 %v6275, %v7058
      %v7147 = vsub.f32 %v6277, %v7059
      %v7148 = vsub.f32 %v6279, %v7059
      %v7149 = vsub.f32 %v6283, %v7060
      %v7150 = vsub.f32 %v6285, %v7060
      %v7151 = vsub.f32 %v6287, %v7061
      %v7152 = vsub.f32 %v6289, %v7061
      %v7153 = vsub.f32 %v6293, %v7062
      %v7154 = vsub.f32 %v6295, %v7062
      %v7155 = vsub.f32 %v6297, %v7063
      %v7156 = vsub.f32 %v6299, %v7063
      %v7157 = vsub.f32 %v6303, %v7064
      %v7158 = vsub.f32 %v6305, %v7064
      %v7159 = vsub.f32 %v6307, %v7065
      %v7160 = vsub.f32 %v6309, %v7065
      %v7161 = vsub.f32 %v6313, %v7066
      %v7162 = vsub.f32 %v6315, %v7066
      %v7163 = vsub.f32 %v6317, %v7067
      %v7164 = vsub.f32 %v6319, %v7067
      %v7165 = vsub.f32 %v6323, %v7068
      %v7166 = vsub.f32 %v6325, %v7068
      %v7167 = vsub.f32 %v6327, %v7069
      %v7168 = vsub.f32 %v6329, %v7069
      %v7169 = vsub.f32 %v6333, %v7070
      %v7170 = vsub.f32 %v6335, %v7070
      %v7171 = vsub.f32 %v6337, %v7071
      %v7172 = vsub.f32 %v6339, %v7071
      %v7173 = vsub.f32 %v6343, %v7072
      %v7174 = vsub.f32 %v6345, %v7072
      %v7175 = vsub.f32 %v6347, %v7073
      %v7176 = vsub.f32 %v6349, %v7073
      %v7177 = vsub.f32 %v6353, %v7074
      %v7178 = vsub.f32 %v6355, %v7074
      %v7179 = vsub.f32 %v6357, %v7075
      %v7180 = vsub.f32 %v6359, %v7075
      %v7181 = vsub.f32 %v6363, %v7076
      %v7182 = vsub.f32 %v6365, %v7076
      %v7183 = vsub.f32 %v6367, %v7077
      %v7184 = vsub.f32 %v6369, %v7077
      %v7185 = vsub.f32 %v6373, %v7078
      %v7186 = vsub.f32 %v6375, %v7078
      %v7187 = vsub.f32 %v6377, %v7079
      %v7188 = vsub.f32 %v6379, %v7079
      %v7189 = vsub.f32 %v6383, %v7080
      %v7190 = vsub.f32 %v6385, %v7080
      %v7191 = vsub.f32 %v6387, %v7081
      %v7192 = vsub.f32 %v6389, %v7081
      %v7193 = vsub.f32 %v6393, %v7082
      %v7194 = vsub.f32 %v6395, %v7082
      %v7195 = vsub.f32 %v6397, %v7083
      %v7196 = vsub.f32 %v6399, %v7083
      %v7197 = vsub.f32 %v6403, %v7084
      %v7198 = vsub.f32 %v6405, %v7084
      %v7199 = vsub.f32 %v6407, %v7085
      %v7200 = vsub.f32 %v6409, %v7085
      %v7201 = vsub.f32 %v6413, %v7086
      %v7202 = vsub.f32 %v6415, %v7086
      %v7203 = vsub.f32 %v6417, %v7087
      %v7204 = vsub.f32 %v6419, %v7087
      %v7205 = vsub.f32 %v6423, %v7088
      %v7206 = vsub.f32 %v6425, %v7088
      %v7207 = vsub.f32 %v6427, %v7089
      %v7208 = vsub.f32 %v6429, %v7089
      %v7209 = vsub.f32 %v6433, %v7090
      %v7210 = vsub.f32 %v6435, %v7090
      %v7211 = vsub.f32 %v6437, %v7091
      %v7212 = vsub.f32 %v6439, %v7091
      %v7213 = vsub.f32 %v6443, %v7092
      %v7214 = vsub.f32 %v6445, %v7092
      %v7215 = vsub.f32 %v6447, %v7093
      %v7216 = vsub.f32 %v6449, %v7093
      %v7217 = vsub.f32 %v6453, %v7094
      %v7218 = vsub.f32 %v6455, %v7094
      %v7219 = vsub.f32 %v6457, %v7095
      %v7220 = vsub.f32 %v6459, %v7095
      %v7221 = vsub.f32 %v6463, %v7096
      %v7222 = vsub.f32 %v6465, %v7096
      %v7223 = vsub.f32 %v6467, %v7097
      %v7224 = vsub.f32 %v6469, %v7097
      %v7225 = vsub.f32 %v6473, %v7098
      %v7226 = vsub.f32 %v6475, %v7098
      %v7227 = vsub.f32 %v6477, %v7099
      %v7228 = vsub.f32 %v6479, %v7099
      %v7229 = vsub.f32 %v6483, %v7100
      %v7230 = vsub.f32 %v6485, %v7100
      %v7231 = vsub.f32 %v6487, %v7101
      %v7232 = vsub.f32 %v6489, %v7101
      %v7233 = vsub.f32 %v6493, %v7102
      %v7234 = vsub.f32 %v6495, %v7102
      %v7235 = vsub.f32 %v6497, %v7103
      %v7236 = vsub.f32 %v6499, %v7103
      %v7237 = vsub.f32 %v6503, %v7104
      %v7238 = vsub.f32 %v6505, %v7104
      %v7239 = vsub.f32 %v6507, %v7105
      %v7240 = vsub.f32 %v6509, %v7105
      %v7241 = vsub.f32 %v6513, %v7106
      %v7242 = vsub.f32 %v6515, %v7106
      %v7243 = vsub.f32 %v6517, %v7107
      %v7244 = vsub.f32 %v6519, %v7107
      %v7245 = vsub.f32 %v6523, %v7108
      %v7246 = vsub.f32 %v6525, %v7108
      %v7247 = vsub.f32 %v6527, %v7109
      %v7248 = vsub.f32 %v6529, %v7109
      %v7249 = vsub.f32 %v6533, %v7110
      %v7250 = vsub.f32 %v6535, %v7110
      %v7251 = vsub.f32 %v6537, %v7111
      %v7252 = vsub.f32 %v6539, %v7111
      %v7253 = vsub.f32 %v6543, %v7112
      %v7254 = vsub.f32 %v6545, %v7112
      %v7255 = vsub.f32 %v6547, %v7113
      %v7256 = vsub.f32 %v6549, %v7113
      %v7257 = vsub.f32 %v6553, %v7114
      %v7258 = vsub.f32 %v6555, %v7114
      %v7259 = vsub.f32 %v6557, %v7115
      %v7260 = vsub.f32 %v6559, %v7115
      %v7261 = vsub.f32 %v6563, %v7116
      %v7262 = vsub.f32 %v6565, %v7116
      %v7263 = vsub.f32 %v6567, %v7117
      %v7264 = vsub.f32 %v6569, %v7117
      %v7265 = vsub.f32 %v6573, %v7118
      %v7266 = vsub.f32 %v6575, %v7118
      %v7267 = vsub.f32 %v6577, %v7119
      %v7268 = vsub.f32 %v6579, %v7119
      %v7269 = vsub.f32 %v6583, %v7120
      %v7270 = vsub.f32 %v6585, %v7120
      %v7271 = vsub.f32 %v6587, %v7121
      %v7272 = vsub.f32 %v6589, %v7121
      %v7273 = vsub.f32 %v6593, %v7122
      %v7274 = vsub.f32 %v6595, %v7122
      %v7275 = vsub.f32 %v6597, %v7123
      %v7276 = vsub.f32 %v6599, %v7123
      %v7277 = vsub.f32 %v6603, %v7124
      %v7278 = vsub.f32 %v6605, %v7124
      %v7279 = vsub.f32 %v6607, %v7125
      %v7280 = vsub.f32 %v6609, %v7125
      %v7281 = vsub.f32 %v6613, %v7126
      %v7282 = vsub.f32 %v6615, %v7126
      %v7283 = vsub.f32 %v6617, %v7127
      %v7284 = vsub.f32 %v6619, %v7127
      %v7285 = vsub.f32 %v6623, %v7128
      %v7286 = vsub.f32 %v6625, %v7128
      %v7287 = vsub.f32 %v6627, %v7129
      %v7288 = vsub.f32 %v6629, %v7129
      %v7289 = vsub.f32 %v6633, %v7130
      %v7290 = vsub.f32 %v6635, %v7130
      %v7291 = vsub.f32 %v6637, %v7131
      %v7292 = vsub.f32 %v6639, %v7131
      %v7293 = vsub.f32 %v6643, %v7132
      %v7294 = vsub.f32 %v6645, %v7132
      %v7295 = vsub.f32 %v6647, %v7133
      %v7296 = vsub.f32 %v6649, %v7133
      %v7297 = vsub.f32 %v6653, %v7134
      %v7298 = vsub.f32 %v6655, %v7134
      %v7299 = vsub.f32 %v6657, %v7135
      %v7300 = vsub.f32 %v6659, %v7135
      %v7301 = vsub.f32 %v6663, %v7136
      %v7302 = vsub.f32 %v6665, %v7136
      %v7303 = vsub.f32 %v6667, %v7137
      %v7304 = vsub.f32 %v6669, %v7137
      %v7305 = vsub.f32 %v6673, %v7138
      %v7306 = vsub.f32 %v6675, %v7138
      %v7307 = vsub.f32 %v6677, %v7139
      %v7308 = vsub.f32 %v6679, %v7139
      %v7309 = vsub.f32 %v6683, %v7140
      %v7310 = vsub.f32 %v6685, %v7140
      %v7311 = vsub.f32 %v6687, %v7141
      %v7312 = vsub.f32 %v6689, %v7141
      %v7313 = vsub.f32 %v6693, %v7142
      %v7314 = vsub.f32 %v6695, %v7142
      %v7315 = vsub.f32 %v6697, %v7143
      %v7316 = vsub.f32 %v6699, %v7143
      %v7317 = vsub.f32 %v6703, %v7144
      %v7318 = vsub.f32 %v6705, %v7144
      %v7319 = vmul.f32 %v7145, %v7145
      %v7320 = vmul.f32 %v7146, %v7146
      %v7321 = vmul.f32 %v7147, %v7147
      %v7322 = vmul.f32 %v7148, %v7148
      %v7323 = vmul.f32 %v7149, %v7149
      %v7324 = vmul.f32 %v7150, %v7150
      %v7325 = vmul.f32 %v7151, %v7151
      %v7326 = vmul.f32 %v7152, %v7152
      %v7327 = vmul.f32 %v7153, %v7153
      %v7328 = vmul.f32 %v7154, %v7154
      %v7329 = vmul.f32 %v7155, %v7155
      %v7330 = vmul.f32 %v7156, %v7156
      %v7331 = vmul.f32 %v7157, %v7157
      %v7332 = vmul.f32 %v7158, %v7158
      %v7333 = vmul.f32 %v7159, %v7159
      %v7334 = vmul.f32 %v7160, %v7160
      %v7335 = vmul.f32 %v7161, %v7161
      %v7336 = vmul.f32 %v7162, %v7162
      %v7337 = vmul.f32 %v7163, %v7163
      %v7338 = vmul.f32 %v7164, %v7164
      %v7339 = vmul.f32 %v7165, %v7165
      %v7340 = vmul.f32 %v7166, %v7166
      %v7341 = vmul.f32 %v7167, %v7167
      %v7342 = vmul.f32 %v7168, %v7168
      %v7343 = vmul.f32 %v7169, %v7169
      %v7344 = vmul.f32 %v7170, %v7170
      %v7345 = vmul.f32 %v7171, %v7171
      %v7346 = vmul.f32 %v7172, %v7172
      %v7347 = vmul.f32 %v7173, %v7173
      %v7348 = vmul.f32 %v7174, %v7174
      %v7349 = vmul.f32 %v7175, %v7175
      %v7350 = vmul.f32 %v7176, %v7176
      %v7351 = vmul.f32 %v7177, %v7177
      %v7352 = vmul.f32 %v7178, %v7178
      %v7353 = vmul.f32 %v7179, %v7179
      %v7354 = vmul.f32 %v7180, %v7180
      %v7355 = vmul.f32 %v7181, %v7181
      %v7356 = vmul.f32 %v7182, %v7182
      %v7357 = vmul.f32 %v7183, %v7183
      %v7358 = vmul.f32 %v7184, %v7184
      %v7359 = vmul.f32 %v7185, %v7185
      %v7360 = vmul.f32 %v7186, %v7186
      %v7361 = vmul.f32 %v7187, %v7187
      %v7362 = vmul.f32 %v7188, %v7188
      %v7363 = vmul.f32 %v7189, %v7189
      %v7364 = vmul.f32 %v7190, %v7190
      %v7365 = vmul.f32 %v7191, %v7191
      %v7366 = vmul.f32 %v7192, %v7192
      %v7367 = vmul.f32 %v7193, %v7193
      %v7368 = vmul.f32 %v7194, %v7194
      %v7369 = vmul.f32 %v7195, %v7195
      %v7370 = vmul.f32 %v7196, %v7196
      %v7371 = vmul.f32 %v7197, %v7197
      %v7372 = vmul.f32 %v7198, %v7198
      %v7373 = vmul.f32 %v7199, %v7199
      %v7374 = vmul.f32 %v7200, %v7200
      %v7375 = vmul.f32 %v7201, %v7201
      %v7376 = vmul.f32 %v7202, %v7202
      %v7377 = vmul.f32 %v7203, %v7203
      %v7378 = vmul.f32 %v7204, %v7204
      %v7379 = vmul.f32 %v7205, %v7205
      %v7380 = vmul.f32 %v7206, %v7206
      %v7381 = vmul.f32 %v7207, %v7207
      %v7382 = vmul.f32 %v7208, %v7208
      %v7383 = vmul.f32 %v7209, %v7209
      %v7384 = vmul.f32 %v7210, %v7210
      %v7385 = vmul.f32 %v7211, %v7211
      %v7386 = vmul.f32 %v7212, %v7212
      %v7387 = vmul.f32 %v7213, %v7213
      %v7388 = vmul.f32 %v7214, %v7214
      %v7389 = vmul.f32 %v7215, %v7215
      %v7390 = vmul.f32 %v7216, %v7216
      %v7391 = vmul.f32 %v7217, %v7217
      %v7392 = vmul.f32 %v7218, %v7218
      %v7393 = vmul.f32 %v7219, %v7219
      %v7394 = vmul.f32 %v7220, %v7220
      %v7395 = vmul.f32 %v7221, %v7221
      %v7396 = vmul.f32 %v7222, %v7222
      %v7397 = vmul.f32 %v7223, %v7223
      %v7398 = vmul.f32 %v7224, %v7224
      %v7399 = vmul.f32 %v7225, %v7225
      %v7400 = vmul.f32 %v7226, %v7226
      %v7401 = vmul.f32 %v7227, %v7227
      %v7402 = vmul.f32 %v7228, %v7228
      %v7403 = vmul.f32 %v7229, %v7229
      %v7404 = vmul.f32 %v7230, %v7230
      %v7405 = vmul.f32 %v7231, %v7231
      %v7406 = vmul.f32 %v7232, %v7232
      %v7407 = vmul.f32 %v7233, %v7233
      %v7408 = vmul.f32 %v7234, %v7234
      %v7409 = vmul.f32 %v7235, %v7235
      %v7410 = vmul.f32 %v7236, %v7236
      %v7411 = vmul.f32 %v7237, %v7237
      %v7412 = vmul.f32 %v7238, %v7238
      %v7413 = vmul.f32 %v7239, %v7239
      %v7414 = vmul.f32 %v7240, %v7240
      %v7415 = vmul.f32 %v7241, %v7241
      %v7416 = vmul.f32 %v7242, %v7242
      %v7417 = vmul.f32 %v7243, %v7243
      %v7418 = vmul.f32 %v7244, %v7244
      %v7419 = vmul.f32 %v7245, %v7245
      %v7420 = vmul.f32 %v7246, %v7246
      %v7421 = vmul.f32 %v7247, %v7247
      %v7422 = vmul.f32 %v7248, %v7248
      %v7423 = vmul.f32 %v7249, %v7249
      %v7424 = vmul.f32 %v7250, %v7250
      %v7425 = vmul.f32 %v7251, %v7251
      %v7426 = vmul.f32 %v7252, %v7252
      %v7427 = vmul.f32 %v7253, %v7253
      %v7428 = vmul.f32 %v7254, %v7254
      %v7429 = vmul.f32 %v7255, %v7255
      %v7430 = vmul.f32 %v7256, %v7256
      %v7431 = vmul.f32 %v7257, %v7257
      %v7432 = vmul.f32 %v7258, %v7258
      %v7433 = vmul.f32 %v7259, %v7259
      %v7434 = vmul.f32 %v7260, %v7260
      %v7435 = vmul.f32 %v7261, %v7261
      %v7436 = vmul.f32 %v7262, %v7262
      %v7437 = vmul.f32 %v7263, %v7263
      %v7438 = vmul.f32 %v7264, %v7264
      %v7439 = vmul.f32 %v7265, %v7265
      %v7440 = vmul.f32 %v7266, %v7266
      %v7441 = vmul.f32 %v7267, %v7267
      %v7442 = vmul.f32 %v7268, %v7268
      %v7443 = vmul.f32 %v7269, %v7269
      %v7444 = vmul.f32 %v7270, %v7270
      %v7445 = vmul.f32 %v7271, %v7271
      %v7446 = vmul.f32 %v7272, %v7272
      %v7447 = vmul.f32 %v7273, %v7273
      %v7448 = vmul.f32 %v7274, %v7274
      %v7449 = vmul.f32 %v7275, %v7275
      %v7450 = vmul.f32 %v7276, %v7276
      %v7451 = vmul.f32 %v7277, %v7277
      %v7452 = vmul.f32 %v7278, %v7278
      %v7453 = vmul.f32 %v7279, %v7279
      %v7454 = vmul.f32 %v7280, %v7280
      %v7455 = vmul.f32 %v7281, %v7281
      %v7456 = vmul.f32 %v7282, %v7282
      %v7457 = vmul.f32 %v7283, %v7283
      %v7458 = vmul.f32 %v7284, %v7284
      %v7459 = vmul.f32 %v7285, %v7285
      %v7460 = vmul.f32 %v7286, %v7286
      %v7461 = vmul.f32 %v7287, %v7287
      %v7462 = vmul.f32 %v7288, %v7288
      %v7463 = vmul.f32 %v7289, %v7289
      %v7464 = vmul.f32 %v7290, %v7290
      %v7465 = vmul.f32 %v7291, %v7291
      %v7466 = vmul.f32 %v7292, %v7292
      %v7467 = vmul.f32 %v7293, %v7293
      %v7468 = vmul.f32 %v7294, %v7294
      %v7469 = vmul.f32 %v7295, %v7295
      %v7470 = vmul.f32 %v7296, %v7296
      %v7471 = vmul.f32 %v7297, %v7297
      %v7472 = vmul.f32 %v7298, %v7298
      %v7473 = vmul.f32 %v7299, %v7299
      %v7474 = vmul.f32 %v7300, %v7300
      %v7475 = vmul.f32 %v7301, %v7301
      %v7476 = vmul.f32 %v7302, %v7302
      %v7477 = vmul.f32 %v7303, %v7303
      %v7478 = vmul.f32 %v7304, %v7304
      %v7479 = vmul.f32 %v7305, %v7305
      %v7480 = vmul.f32 %v7306, %v7306
      %v7481 = vmul.f32 %v7307, %v7307
      %v7482 = vmul.f32 %v7308, %v7308
      %v7483 = vmul.f32 %v7309, %v7309
      %v7484 = vmul.f32 %v7310, %v7310
      %v7485 = vmul.f32 %v7311, %v7311
      %v7486 = vmul.f32 %v7312, %v7312
      %v7487 = vmul.f32 %v7313, %v7313
      %v7488 = vmul.f32 %v7314, %v7314
      %v7489 = vmul.f32 %v7315, %v7315
      %v7490 = vmul.f32 %v7316, %v7316
      %v7491 = vmul.f32 %v7317, %v7317
      %v7492 = vmul.f32 %v7318, %v7318
      %v7493 = vsel %vm6709, %v7320, 0.0
      %v7494 = vadd.f32 %v7319, %v7493
      %7495 = vadd.xlane.f32.xlu0 %v7494
      %v7496 = vpop.xlane.xlu0 %7495
      %v7497 = vsel %vm6709, %v7322, 0.0
      %v7498 = vadd.f32 %v7321, %v7497
      %7499 = vadd.xlane.f32.xlu0 %v7498
      %v7500 = vpop.xlane.xlu0 %7499
      %v7501 = vsel %vm6709, %v7324, 0.0
      %v7502 = vadd.f32 %v7323, %v7501
      %7503 = vadd.xlane.f32.xlu0 %v7502
      %v7504 = vpop.xlane.xlu0 %7503
      %v7505 = vsel %vm6709, %v7326, 0.0
      %v7506 = vadd.f32 %v7325, %v7505
      %7507 = vadd.xlane.f32.xlu0 %v7506
      %v7508 = vpop.xlane.xlu0 %7507
      %v7509 = vsel %vm6709, %v7328, 0.0
      %v7510 = vadd.f32 %v7327, %v7509
      %7511 = vadd.xlane.f32.xlu0 %v7510
      %v7512 = vpop.xlane.xlu0 %7511
      %v7513 = vsel %vm6709, %v7330, 0.0
      %v7514 = vadd.f32 %v7329, %v7513
      %7515 = vadd.xlane.f32.xlu0 %v7514
      %v7516 = vpop.xlane.xlu0 %7515
      %v7517 = vsel %vm6709, %v7332, 0.0
      %v7518 = vadd.f32 %v7331, %v7517
      %7519 = vadd.xlane.f32.xlu0 %v7518
      %v7520 = vpop.xlane.xlu0 %7519
      %v7521 = vsel %vm6709, %v7334, 0.0
      %v7522 = vadd.f32 %v7333, %v7521
      %7523 = vadd.xlane.f32.xlu0 %v7522
      %v7524 = vpop.xlane.xlu0 %7523
      %v7525 = vsel %vm6709, %v7336, 0.0
      %v7526 = vadd.f32 %v7335, %v7525
      %7527 = vadd.xlane.f32.xlu0 %v7526
      %v7528 = vpop.xlane.xlu0 %7527
      %v7529 = vsel %vm6709, %v7338, 0.0
      %v7530 = vadd.f32 %v7337, %v7529
      %7531 = vadd.xlane.f32.xlu0 %v7530
      %v7532 = vpop.xlane.xlu0 %7531
      %v7533 = vsel %vm6709, %v7340, 0.0
      %v7534 = vadd.f32 %v7339, %v7533
      %7535 = vadd.xlane.f32.xlu0 %v7534
      %v7536 = vpop.xlane.xlu0 %7535
      %v7537 = vsel %vm6709, %v7342, 0.0
      %v7538 = vadd.f32 %v7341, %v7537
      %7539 = vadd.xlane.f32.xlu0 %v7538
      %v7540 = vpop.xlane.xlu0 %7539
      %v7541 = vsel %vm6709, %v7344, 0.0
      %v7542 = vadd.f32 %v7343, %v7541
      %7543 = vadd.xlane.f32.xlu0 %v7542
      %v7544 = vpop.xlane.xlu0 %7543
      %v7545 = vsel %vm6709, %v7346, 0.0
      %v7546 = vadd.f32 %v7345, %v7545
      %7547 = vadd.xlane.f32.xlu0 %v7546
      %v7548 = vpop.xlane.xlu0 %7547
      %v7549 = vsel %vm6709, %v7348, 0.0
      %v7550 = vadd.f32 %v7347, %v7549
      %7551 = vadd.xlane.f32.xlu0 %v7550
      %v7552 = vpop.xlane.xlu0 %7551
      %v7553 = vsel %vm6709, %v7350, 0.0
      %v7554 = vadd.f32 %v7349, %v7553
      %7555 = vadd.xlane.f32.xlu0 %v7554
      %v7556 = vpop.xlane.xlu0 %7555
      %v7557 = vsel %vm6709, %v7352, 0.0
      %v7558 = vadd.f32 %v7351, %v7557
      %7559 = vadd.xlane.f32.xlu0 %v7558
      %v7560 = vpop.xlane.xlu0 %7559
      %v7561 = vsel %vm6709, %v7354, 0.0
      %v7562 = vadd.f32 %v7353, %v7561
      %7563 = vadd.xlane.f32.xlu0 %v7562
      %v7564 = vpop.xlane.xlu0 %7563
      %v7565 = vsel %vm6709, %v7356, 0.0
      %v7566 = vadd.f32 %v7355, %v7565
      %7567 = vadd.xlane.f32.xlu0 %v7566
      %v7568 = vpop.xlane.xlu0 %7567
      %v7569 = vsel %vm6709, %v7358, 0.0
      %v7570 = vadd.f32 %v7357, %v7569
      %7571 = vadd.xlane.f32.xlu0 %v7570
      %v7572 = vpop.xlane.xlu0 %7571
      %v7573 = vsel %vm6709, %v7360, 0.0
      %v7574 = vadd.f32 %v7359, %v7573
      %7575 = vadd.xlane.f32.xlu0 %v7574
      %v7576 = vpop.xlane.xlu0 %7575
      %v7577 = vsel %vm6709, %v7362, 0.0
      %v7578 = vadd.f32 %v7361, %v7577
      %7579 = vadd.xlane.f32.xlu0 %v7578
      %v7580 = vpop.xlane.xlu0 %7579
      %v7581 = vsel %vm6709, %v7364, 0.0
      %v7582 = vadd.f32 %v7363, %v7581
      %7583 = vadd.xlane.f32.xlu0 %v7582
      %v7584 = vpop.xlane.xlu0 %7583
      %v7585 = vsel %vm6709, %v7366, 0.0
      %v7586 = vadd.f32 %v7365, %v7585
      %7587 = vadd.xlane.f32.xlu0 %v7586
      %v7588 = vpop.xlane.xlu0 %7587
      %v7589 = vsel %vm6709, %v7368, 0.0
      %v7590 = vadd.f32 %v7367, %v7589
      %7591 = vadd.xlane.f32.xlu0 %v7590
      %v7592 = vpop.xlane.xlu0 %7591
      %v7593 = vsel %vm6709, %v7370, 0.0
      %v7594 = vadd.f32 %v7369, %v7593
      %7595 = vadd.xlane.f32.xlu0 %v7594
      %v7596 = vpop.xlane.xlu0 %7595
      %v7597 = vsel %vm6709, %v7372, 0.0
      %v7598 = vadd.f32 %v7371, %v7597
      %7599 = vadd.xlane.f32.xlu0 %v7598
      %v7600 = vpop.xlane.xlu0 %7599
      %v7601 = vsel %vm6709, %v7374, 0.0
      %v7602 = vadd.f32 %v7373, %v7601
      %7603 = vadd.xlane.f32.xlu0 %v7602
      %v7604 = vpop.xlane.xlu0 %7603
      %v7605 = vsel %vm6709, %v7376, 0.0
      %v7606 = vadd.f32 %v7375, %v7605
      %7607 = vadd.xlane.f32.xlu0 %v7606
      %v7608 = vpop.xlane.xlu0 %7607
      %v7609 = vsel %vm6709, %v7378, 0.0
      %v7610 = vadd.f32 %v7377, %v7609
      %7611 = vadd.xlane.f32.xlu0 %v7610
      %v7612 = vpop.xlane.xlu0 %7611
      %v7613 = vsel %vm6709, %v7380, 0.0
      %v7614 = vadd.f32 %v7379, %v7613
      %7615 = vadd.xlane.f32.xlu0 %v7614
      %v7616 = vpop.xlane.xlu0 %7615
      %v7617 = vsel %vm6709, %v7382, 0.0
      %v7618 = vadd.f32 %v7381, %v7617
      %7619 = vadd.xlane.f32.xlu0 %v7618
      %v7620 = vpop.xlane.xlu0 %7619
      %v7621 = vsel %vm6709, %v7384, 0.0
      %v7622 = vadd.f32 %v7383, %v7621
      %7623 = vadd.xlane.f32.xlu0 %v7622
      %v7624 = vpop.xlane.xlu0 %7623
      %v7625 = vsel %vm6709, %v7386, 0.0
      %v7626 = vadd.f32 %v7385, %v7625
      %7627 = vadd.xlane.f32.xlu0 %v7626
      %v7628 = vpop.xlane.xlu0 %7627
      %v7629 = vsel %vm6709, %v7388, 0.0
      %v7630 = vadd.f32 %v7387, %v7629
      %7631 = vadd.xlane.f32.xlu0 %v7630
      %v7632 = vpop.xlane.xlu0 %7631
      %v7633 = vsel %vm6709, %v7390, 0.0
      %v7634 = vadd.f32 %v7389, %v7633
      %7635 = vadd.xlane.f32.xlu0 %v7634
      %v7636 = vpop.xlane.xlu0 %7635
      %v7637 = vsel %vm6709, %v7392, 0.0
      %v7638 = vadd.f32 %v7391, %v7637
      %7639 = vadd.xlane.f32.xlu0 %v7638
      %v7640 = vpop.xlane.xlu0 %7639
      %v7641 = vsel %vm6709, %v7394, 0.0
      %v7642 = vadd.f32 %v7393, %v7641
      %7643 = vadd.xlane.f32.xlu0 %v7642
      %v7644 = vpop.xlane.xlu0 %7643
      %v7645 = vsel %vm6709, %v7396, 0.0
      %v7646 = vadd.f32 %v7395, %v7645
      %7647 = vadd.xlane.f32.xlu0 %v7646
      %v7648 = vpop.xlane.xlu0 %7647
      %v7649 = vsel %vm6709, %v7398, 0.0
      %v7650 = vadd.f32 %v7397, %v7649
      %7651 = vadd.xlane.f32.xlu0 %v7650
      %v7652 = vpop.xlane.xlu0 %7651
      %v7653 = vsel %vm6709, %v7400, 0.0
      %v7654 = vadd.f32 %v7399, %v7653
      %7655 = vadd.xlane.f32.xlu0 %v7654
      %v7656 = vpop.xlane.xlu0 %7655
      %v7657 = vsel %vm6709, %v7402, 0.0
      %v7658 = vadd.f32 %v7401, %v7657
      %7659 = vadd.xlane.f32.xlu0 %v7658
      %v7660 = vpop.xlane.xlu0 %7659
      %v7661 = vsel %vm6709, %v7404, 0.0
      %v7662 = vadd.f32 %v7403, %v7661
      %7663 = vadd.xlane.f32.xlu0 %v7662
      %v7664 = vpop.xlane.xlu0 %7663
      %v7665 = vsel %vm6709, %v7406, 0.0
      %v7666 = vadd.f32 %v7405, %v7665
      %7667 = vadd.xlane.f32.xlu0 %v7666
      %v7668 = vpop.xlane.xlu0 %7667
      %v7669 = vsel %vm6709, %v7408, 0.0
      %v7670 = vadd.f32 %v7407, %v7669
      %7671 = vadd.xlane.f32.xlu0 %v7670
      %v7672 = vpop.xlane.xlu0 %7671
      %v7673 = vsel %vm6709, %v7410, 0.0
      %v7674 = vadd.f32 %v7409, %v7673
      %7675 = vadd.xlane.f32.xlu0 %v7674
      %v7676 = vpop.xlane.xlu0 %7675
      %v7677 = vsel %vm6709, %v7412, 0.0
      %v7678 = vadd.f32 %v7411, %v7677
      %7679 = vadd.xlane.f32.xlu0 %v7678
      %v7680 = vpop.xlane.xlu0 %7679
      %v7681 = vsel %vm6709, %v7414, 0.0
      %v7682 = vadd.f32 %v7413, %v7681
      %7683 = vadd.xlane.f32.xlu0 %v7682
      %v7684 = vpop.xlane.xlu0 %7683
      %v7685 = vsel %vm6709, %v7416, 0.0
      %v7686 = vadd.f32 %v7415, %v7685
      %7687 = vadd.xlane.f32.xlu0 %v7686
      %v7688 = vpop.xlane.xlu0 %7687
      %v7689 = vsel %vm6709, %v7418, 0.0
      %v7690 = vadd.f32 %v7417, %v7689
      %7691 = vadd.xlane.f32.xlu0 %v7690
      %v7692 = vpop.xlane.xlu0 %7691
      %v7693 = vsel %vm6709, %v7420, 0.0
      %v7694 = vadd.f32 %v7419, %v7693
      %7695 = vadd.xlane.f32.xlu0 %v7694
      %v7696 = vpop.xlane.xlu0 %7695
      %v7697 = vsel %vm6709, %v7422, 0.0
      %v7698 = vadd.f32 %v7421, %v7697
      %7699 = vadd.xlane.f32.xlu0 %v7698
      %v7700 = vpop.xlane.xlu0 %7699
      %v7701 = vsel %vm6709, %v7424, 0.0
      %v7702 = vadd.f32 %v7423, %v7701
      %7703 = vadd.xlane.f32.xlu0 %v7702
      %v7704 = vpop.xlane.xlu0 %7703
      %v7705 = vsel %vm6709, %v7426, 0.0
      %v7706 = vadd.f32 %v7425, %v7705
      %7707 = vadd.xlane.f32.xlu0 %v7706
      %v7708 = vpop.xlane.xlu0 %7707
      %v7709 = vsel %vm6709, %v7428, 0.0
      %v7710 = vadd.f32 %v7427, %v7709
      %7711 = vadd.xlane.f32.xlu0 %v7710
      %v7712 = vpop.xlane.xlu0 %7711
      %v7713 = vsel %vm6709, %v7430, 0.0
      %v7714 = vadd.f32 %v7429, %v7713
      %7715 = vadd.xlane.f32.xlu0 %v7714
      %v7716 = vpop.xlane.xlu0 %7715
      %v7717 = vsel %vm6709, %v7432, 0.0
      %v7718 = vadd.f32 %v7431, %v7717
      %7719 = vadd.xlane.f32.xlu0 %v7718
      %v7720 = vpop.xlane.xlu0 %7719
      %v7721 = vsel %vm6709, %v7434, 0.0
      %v7722 = vadd.f32 %v7433, %v7721
      %7723 = vadd.xlane.f32.xlu0 %v7722
      %v7724 = vpop.xlane.xlu0 %7723
      %v7725 = vsel %vm6709, %v7436, 0.0
      %v7726 = vadd.f32 %v7435, %v7725
      %7727 = vadd.xlane.f32.xlu0 %v7726
      %v7728 = vpop.xlane.xlu0 %7727
      %v7729 = vsel %vm6709, %v7438, 0.0
      %v7730 = vadd.f32 %v7437, %v7729
      %7731 = vadd.xlane.f32.xlu0 %v7730
      %v7732 = vpop.xlane.xlu0 %7731
      %v7733 = vsel %vm6709, %v7440, 0.0
      %v7734 = vadd.f32 %v7439, %v7733
      %7735 = vadd.xlane.f32.xlu0 %v7734
      %v7736 = vpop.xlane.xlu0 %7735
      %v7737 = vsel %vm6709, %v7442, 0.0
      %v7738 = vadd.f32 %v7441, %v7737
      %7739 = vadd.xlane.f32.xlu0 %v7738
      %v7740 = vpop.xlane.xlu0 %7739
      %v7741 = vsel %vm6709, %v7444, 0.0
      %v7742 = vadd.f32 %v7443, %v7741
      %7743 = vadd.xlane.f32.xlu0 %v7742
      %v7744 = vpop.xlane.xlu0 %7743
      %v7745 = vsel %vm6709, %v7446, 0.0
      %v7746 = vadd.f32 %v7445, %v7745
      %7747 = vadd.xlane.f32.xlu0 %v7746
      %v7748 = vpop.xlane.xlu0 %7747
      %v7749 = vsel %vm6709, %v7448, 0.0
      %v7750 = vadd.f32 %v7447, %v7749
      %7751 = vadd.xlane.f32.xlu0 %v7750
      %v7752 = vpop.xlane.xlu0 %7751
      %v7753 = vsel %vm6709, %v7450, 0.0
      %v7754 = vadd.f32 %v7449, %v7753
      %7755 = vadd.xlane.f32.xlu0 %v7754
      %v7756 = vpop.xlane.xlu0 %7755
      %v7757 = vsel %vm6709, %v7452, 0.0
      %v7758 = vadd.f32 %v7451, %v7757
      %7759 = vadd.xlane.f32.xlu0 %v7758
      %v7760 = vpop.xlane.xlu0 %7759
      %v7761 = vsel %vm6709, %v7454, 0.0
      %v7762 = vadd.f32 %v7453, %v7761
      %7763 = vadd.xlane.f32.xlu0 %v7762
      %v7764 = vpop.xlane.xlu0 %7763
      %v7765 = vsel %vm6709, %v7456, 0.0
      %v7766 = vadd.f32 %v7455, %v7765
      %7767 = vadd.xlane.f32.xlu0 %v7766
      %v7768 = vpop.xlane.xlu0 %7767
      %v7769 = vsel %vm6709, %v7458, 0.0
      %v7770 = vadd.f32 %v7457, %v7769
      %7771 = vadd.xlane.f32.xlu0 %v7770
      %v7772 = vpop.xlane.xlu0 %7771
      %v7773 = vsel %vm6709, %v7460, 0.0
      %v7774 = vadd.f32 %v7459, %v7773
      %7775 = vadd.xlane.f32.xlu0 %v7774
      %v7776 = vpop.xlane.xlu0 %7775
      %v7777 = vsel %vm6709, %v7462, 0.0
      %v7778 = vadd.f32 %v7461, %v7777
      %7779 = vadd.xlane.f32.xlu0 %v7778
      %v7780 = vpop.xlane.xlu0 %7779
      %v7781 = vsel %vm6709, %v7464, 0.0
      %v7782 = vadd.f32 %v7463, %v7781
      %7783 = vadd.xlane.f32.xlu0 %v7782
      %v7784 = vpop.xlane.xlu0 %7783
      %v7785 = vsel %vm6709, %v7466, 0.0
      %v7786 = vadd.f32 %v7465, %v7785
      %7787 = vadd.xlane.f32.xlu0 %v7786
      %v7788 = vpop.xlane.xlu0 %7787
      %v7789 = vsel %vm6709, %v7468, 0.0
      %v7790 = vadd.f32 %v7467, %v7789
      %7791 = vadd.xlane.f32.xlu0 %v7790
      %v7792 = vpop.xlane.xlu0 %7791
      %v7793 = vsel %vm6709, %v7470, 0.0
      %v7794 = vadd.f32 %v7469, %v7793
      %7795 = vadd.xlane.f32.xlu0 %v7794
      %v7796 = vpop.xlane.xlu0 %7795
      %v7797 = vsel %vm6709, %v7472, 0.0
      %v7798 = vadd.f32 %v7471, %v7797
      %7799 = vadd.xlane.f32.xlu0 %v7798
      %v7800 = vpop.xlane.xlu0 %7799
      %v7801 = vsel %vm6709, %v7474, 0.0
      %v7802 = vadd.f32 %v7473, %v7801
      %7803 = vadd.xlane.f32.xlu0 %v7802
      %v7804 = vpop.xlane.xlu0 %7803
      %v7805 = vsel %vm6709, %v7476, 0.0
      %v7806 = vadd.f32 %v7475, %v7805
      %7807 = vadd.xlane.f32.xlu0 %v7806
      %v7808 = vpop.xlane.xlu0 %7807
      %v7809 = vsel %vm6709, %v7478, 0.0
      %v7810 = vadd.f32 %v7477, %v7809
      %7811 = vadd.xlane.f32.xlu0 %v7810
      %v7812 = vpop.xlane.xlu0 %7811
      %v7813 = vsel %vm6709, %v7480, 0.0
      %v7814 = vadd.f32 %v7479, %v7813
      %7815 = vadd.xlane.f32.xlu0 %v7814
      %v7816 = vpop.xlane.xlu0 %7815
      %v7817 = vsel %vm6709, %v7482, 0.0
      %v7818 = vadd.f32 %v7481, %v7817
      %7819 = vadd.xlane.f32.xlu0 %v7818
      %v7820 = vpop.xlane.xlu0 %7819
      %v7821 = vsel %vm6709, %v7484, 0.0
      %v7822 = vadd.f32 %v7483, %v7821
      %7823 = vadd.xlane.f32.xlu0 %v7822
      %v7824 = vpop.xlane.xlu0 %7823
      %v7825 = vsel %vm6709, %v7486, 0.0
      %v7826 = vadd.f32 %v7485, %v7825
      %7827 = vadd.xlane.f32.xlu0 %v7826
      %v7828 = vpop.xlane.xlu0 %7827
      %v7829 = vsel %vm6709, %v7488, 0.0
      %v7830 = vadd.f32 %v7487, %v7829
      %7831 = vadd.xlane.f32.xlu0 %v7830
      %v7832 = vpop.xlane.xlu0 %7831
      %v7833 = vsel %vm6709, %v7490, 0.0
      %v7834 = vadd.f32 %v7489, %v7833
      %7835 = vadd.xlane.f32.xlu0 %v7834
      %v7836 = vpop.xlane.xlu0 %7835
      %v7837 = vsel %vm6709, %v7492, 0.0
      %v7838 = vadd.f32 %v7491, %v7837
      %7839 = vadd.xlane.f32.xlu0 %v7838
      %v7840 = vpop.xlane.xlu0 %7839
      %v7841 = vmul.f32 %v7496, 0.0051020407
      %v7842 = vmul.f32 %v7500, 0.0051020407
      %v7843 = vmul.f32 %v7504, 0.0051020407
      %v7844 = vmul.f32 %v7508, 0.0051020407
      %v7845 = vmul.f32 %v7512, 0.0051020407
      %v7846 = vmul.f32 %v7516, 0.0051020407
      %v7847 = vmul.f32 %v7520, 0.0051020407
      %v7848 = vmul.f32 %v7524, 0.0051020407
      %v7849 = vmul.f32 %v7528, 0.0051020407
      %v7850 = vmul.f32 %v7532, 0.0051020407
      %v7851 = vmul.f32 %v7536, 0.0051020407
      %v7852 = vmul.f32 %v7540, 0.0051020407
      %v7853 = vmul.f32 %v7544, 0.0051020407
      %v7854 = vmul.f32 %v7548, 0.0051020407
      %v7855 = vmul.f32 %v7552, 0.0051020407
      %v7856 = vmul.f32 %v7556, 0.0051020407
      %v7857 = vmul.f32 %v7560, 0.0051020407
      %v7858 = vmul.f32 %v7564, 0.0051020407
      %v7859 = vmul.f32 %v7568, 0.0051020407
      %v7860 = vmul.f32 %v7572, 0.0051020407
      %v7861 = vmul.f32 %v7576, 0.0051020407
      %v7862 = vmul.f32 %v7580, 0.0051020407
      %v7863 = vmul.f32 %v7584, 0.0051020407
      %v7864 = vmul.f32 %v7588, 0.0051020407
      %v7865 = vmul.f32 %v7592, 0.0051020407
      %v7866 = vmul.f32 %v7596, 0.0051020407
      %v7867 = vmul.f32 %v7600, 0.0051020407
      %v7868 = vmul.f32 %v7604, 0.0051020407
      %v7869 = vmul.f32 %v7608, 0.0051020407
      %v7870 = vmul.f32 %v7612, 0.0051020407
      %v7871 = vmul.f32 %v7616, 0.0051020407
      %v7872 = vmul.f32 %v7620, 0.0051020407
      %v7873 = vmul.f32 %v7624, 0.0051020407
      %v7874 = vmul.f32 %v7628, 0.0051020407
      %v7875 = vmul.f32 %v7632, 0.0051020407
      %v7876 = vmul.f32 %v7636, 0.0051020407
      %v7877 = vmul.f32 %v7640, 0.0051020407
      %v7878 = vmul.f32 %v7644, 0.0051020407
      %v7879 = vmul.f32 %v7648, 0.0051020407
      %v7880 = vmul.f32 %v7652, 0.0051020407
      %v7881 = vmul.f32 %v7656, 0.0051020407
      %v7882 = vmul.f32 %v7660, 0.0051020407
      %v7883 = vmul.f32 %v7664, 0.0051020407
      %v7884 = vmul.f32 %v7668, 0.0051020407
      %v7885 = vmul.f32 %v7672, 0.0051020407
      %v7886 = vmul.f32 %v7676, 0.0051020407
      %v7887 = vmul.f32 %v7680, 0.0051020407
      %v7888 = vmul.f32 %v7684, 0.0051020407
      %v7889 = vmul.f32 %v7688, 0.0051020407
      %v7890 = vmul.f32 %v7692, 0.0051020407
      %v7891 = vmul.f32 %v7696, 0.0051020407
      %v7892 = vmul.f32 %v7700, 0.0051020407
      %v7893 = vmul.f32 %v7704, 0.0051020407
      %v7894 = vmul.f32 %v7708, 0.0051020407
      %v7895 = vmul.f32 %v7712, 0.0051020407
      %v7896 = vmul.f32 %v7716, 0.0051020407
      %v7897 = vmul.f32 %v7720, 0.0051020407
      %v7898 = vmul.f32 %v7724, 0.0051020407
      %v7899 = vmul.f32 %v7728, 0.0051020407
      %v7900 = vmul.f32 %v7732, 0.0051020407
      %v7901 = vmul.f32 %v7736, 0.0051020407
      %v7902 = vmul.f32 %v7740, 0.0051020407
      %v7903 = vmul.f32 %v7744, 0.0051020407
      %v7904 = vmul.f32 %v7748, 0.0051020407
      %v7905 = vmul.f32 %v7752, 0.0051020407
      %v7906 = vmul.f32 %v7756, 0.0051020407
      %v7907 = vmul.f32 %v7760, 0.0051020407
      %v7908 = vmul.f32 %v7764, 0.0051020407
      %v7909 = vmul.f32 %v7768, 0.0051020407
      %v7910 = vmul.f32 %v7772, 0.0051020407
      %v7911 = vmul.f32 %v7776, 0.0051020407
      %v7912 = vmul.f32 %v7780, 0.0051020407
      %v7913 = vmul.f32 %v7784, 0.0051020407
      %v7914 = vmul.f32 %v7788, 0.0051020407
      %v7915 = vmul.f32 %v7792, 0.0051020407
      %v7916 = vmul.f32 %v7796, 0.0051020407
      %v7917 = vmul.f32 %v7800, 0.0051020407
      %v7918 = vmul.f32 %v7804, 0.0051020407
      %v7919 = vmul.f32 %v7808, 0.0051020407
      %v7920 = vmul.f32 %v7812, 0.0051020407
      %v7921 = vmul.f32 %v7816, 0.0051020407
      %v7922 = vmul.f32 %v7820, 0.0051020407
      %v7923 = vmul.f32 %v7824, 0.0051020407
      %v7924 = vmul.f32 %v7828, 0.0051020407
      %v7925 = vmul.f32 %v7832, 0.0051020407
      %v7926 = vmul.f32 %v7836, 0.0051020407
      %v7927 = vmul.f32 %v7840, 0.0051020407
      %v7928 = vadd.f32 %v7841, 1e-05
      %v7929 = vadd.f32 %v7842, 1e-05
      %v7930 = vadd.f32 %v7843, 1e-05
      %v7931 = vadd.f32 %v7844, 1e-05
      %v7932 = vadd.f32 %v7845, 1e-05
      %v7933 = vadd.f32 %v7846, 1e-05
      %v7934 = vadd.f32 %v7847, 1e-05
      %v7935 = vadd.f32 %v7848, 1e-05
      %v7936 = vadd.f32 %v7849, 1e-05
      %v7937 = vadd.f32 %v7850, 1e-05
      %v7938 = vadd.f32 %v7851, 1e-05
      %v7939 = vadd.f32 %v7852, 1e-05
      %v7940 = vadd.f32 %v7853, 1e-05
      %v7941 = vadd.f32 %v7854, 1e-05
      %v7942 = vadd.f32 %v7855, 1e-05
      %v7943 = vadd.f32 %v7856, 1e-05
      %v7944 = vadd.f32 %v7857, 1e-05
      %v7945 = vadd.f32 %v7858, 1e-05
      %v7946 = vadd.f32 %v7859, 1e-05
      %v7947 = vadd.f32 %v7860, 1e-05
      %v7948 = vadd.f32 %v7861, 1e-05
      %v7949 = vadd.f32 %v7862, 1e-05
      %v7950 = vadd.f32 %v7863, 1e-05
      %v7951 = vadd.f32 %v7864, 1e-05
      %v7952 = vadd.f32 %v7865, 1e-05
      %v7953 = vadd.f32 %v7866, 1e-05
      %v7954 = vadd.f32 %v7867, 1e-05
      %v7955 = vadd.f32 %v7868, 1e-05
      %v7956 = vadd.f32 %v7869, 1e-05
      %v7957 = vadd.f32 %v7870, 1e-05
      %v7958 = vadd.f32 %v7871, 1e-05
      %v7959 = vadd.f32 %v7872, 1e-05
      %v7960 = vadd.f32 %v7873, 1e-05
      %v7961 = vadd.f32 %v7874, 1e-05
      %v7962 = vadd.f32 %v7875, 1e-05
      %v7963 = vadd.f32 %v7876, 1e-05
      %v7964 = vadd.f32 %v7877, 1e-05
      %v7965 = vadd.f32 %v7878, 1e-05
      %v7966 = vadd.f32 %v7879, 1e-05
      %v7967 = vadd.f32 %v7880, 1e-05
      %v7968 = vadd.f32 %v7881, 1e-05
      %v7969 = vadd.f32 %v7882, 1e-05
      %v7970 = vadd.f32 %v7883, 1e-05
      %v7971 = vadd.f32 %v7884, 1e-05
      %v7972 = vadd.f32 %v7885, 1e-05
      %v7973 = vadd.f32 %v7886, 1e-05
      %v7974 = vadd.f32 %v7887, 1e-05
      %v7975 = vadd.f32 %v7888, 1e-05
      %v7976 = vadd.f32 %v7889, 1e-05
      %v7977 = vadd.f32 %v7890, 1e-05
      %v7978 = vadd.f32 %v7891, 1e-05
      %v7979 = vadd.f32 %v7892, 1e-05
      %v7980 = vadd.f32 %v7893, 1e-05
      %v7981 = vadd.f32 %v7894, 1e-05
      %v7982 = vadd.f32 %v7895, 1e-05
      %v7983 = vadd.f32 %v7896, 1e-05
      %v7984 = vadd.f32 %v7897, 1e-05
      %v7985 = vadd.f32 %v7898, 1e-05
      %v7986 = vadd.f32 %v7899, 1e-05
      %v7987 = vadd.f32 %v7900, 1e-05
      %v7988 = vadd.f32 %v7901, 1e-05
      %v7989 = vadd.f32 %v7902, 1e-05
      %v7990 = vadd.f32 %v7903, 1e-05
      %v7991 = vadd.f32 %v7904, 1e-05
      %v7992 = vadd.f32 %v7905, 1e-05
      %v7993 = vadd.f32 %v7906, 1e-05
      %v7994 = vadd.f32 %v7907, 1e-05
      %v7995 = vadd.f32 %v7908, 1e-05
      %v7996 = vadd.f32 %v7909, 1e-05
      %v7997 = vadd.f32 %v7910, 1e-05
      %v7998 = vadd.f32 %v7911, 1e-05
      %v7999 = vadd.f32 %v7912, 1e-05
      %v8000 = vadd.f32 %v7913, 1e-05
      %v8001 = vadd.f32 %v7914, 1e-05
      %v8002 = vadd.f32 %v7915, 1e-05
      %v8003 = vadd.f32 %v7916, 1e-05
      %v8004 = vadd.f32 %v7917, 1e-05
      %v8005 = vadd.f32 %v7918, 1e-05
      %v8006 = vadd.f32 %v7919, 1e-05
      %v8007 = vadd.f32 %v7920, 1e-05
      %v8008 = vadd.f32 %v7921, 1e-05
      %v8009 = vadd.f32 %v7922, 1e-05
      %v8010 = vadd.f32 %v7923, 1e-05
      %v8011 = vadd.f32 %v7924, 1e-05
      %v8012 = vadd.f32 %v7925, 1e-05
      %v8013 = vadd.f32 %v7926, 1e-05
      %v8014 = vadd.f32 %v7927, 1e-05
      %v8015 = vrsqrt.pop %v7928
      %v8016 = vrsqrt.pop %v7929
      %v8017 = vrsqrt.pop %v7930
      %v8018 = vrsqrt.pop %v7931
      %v8019 = vrsqrt.pop %v7932
      %v8020 = vrsqrt.pop %v7933
      %v8021 = vrsqrt.pop %v7934
      %v8022 = vrsqrt.pop %v7935
      %v8023 = vrsqrt.pop %v7936
      %v8024 = vrsqrt.pop %v7937
      %v8025 = vrsqrt.pop %v7938
      %v8026 = vrsqrt.pop %v7939
      %v8027 = vrsqrt.pop %v7940
      %v8028 = vrsqrt.pop %v7941
      %v8029 = vrsqrt.pop %v7942
      %v8030 = vrsqrt.pop %v7943
      %v8031 = vrsqrt.pop %v7944
      %v8032 = vrsqrt.pop %v7945
      %v8033 = vrsqrt.pop %v7946
      %v8034 = vrsqrt.pop %v7947
      %v8035 = vrsqrt.pop %v7948
      %v8036 = vrsqrt.pop %v7949
      %v8037 = vrsqrt.pop %v7950
      %v8038 = vrsqrt.pop %v7951
      %v8039 = vrsqrt.pop %v7952
      %v8040 = vrsqrt.pop %v7953
      %v8041 = vrsqrt.pop %v7954
      %v8042 = vrsqrt.pop %v7955
      %v8043 = vrsqrt.pop %v7956
      %v8044 = vrsqrt.pop %v7957
      %v8045 = vrsqrt.pop %v7958
      %v8046 = vrsqrt.pop %v7959
      %v8047 = vrsqrt.pop %v7960
      %v8048 = vrsqrt.pop %v7961
      %v8049 = vrsqrt.pop %v7962
      %v8050 = vrsqrt.pop %v7963
      %v8051 = vrsqrt.pop %v7964
      %v8052 = vrsqrt.pop %v7965
      %v8053 = vrsqrt.pop %v7966
      %v8054 = vrsqrt.pop %v7967
      %v8055 = vrsqrt.pop %v7968
      %v8056 = vrsqrt.pop %v7969
      %v8057 = vrsqrt.pop %v7970
      %v8058 = vrsqrt.pop %v7971
      %v8059 = vrsqrt.pop %v7972
      %v8060 = vrsqrt.pop %v7973
      %v8061 = vrsqrt.pop %v7974
      %v8062 = vrsqrt.pop %v7975
      %v8063 = vrsqrt.pop %v7976
      %v8064 = vrsqrt.pop %v7977
      %v8065 = vrsqrt.pop %v7978
      %v8066 = vrsqrt.pop %v7979
      %v8067 = vrsqrt.pop %v7980
      %v8068 = vrsqrt.pop %v7981
      %v8069 = vrsqrt.pop %v7982
      %v8070 = vrsqrt.pop %v7983
      %v8071 = vrsqrt.pop %v7984
      %v8072 = vrsqrt.pop %v7985
      %v8073 = vrsqrt.pop %v7986
      %v8074 = vrsqrt.pop %v7987
      %v8075 = vrsqrt.pop %v7988
      %v8076 = vrsqrt.pop %v7989
      %v8077 = vrsqrt.pop %v7990
      %v8078 = vrsqrt.pop %v7991
      %v8079 = vrsqrt.pop %v7992
      %v8080 = vrsqrt.pop %v7993
      %v8081 = vrsqrt.pop %v7994
      %v8082 = vrsqrt.pop %v7995
      %v8083 = vrsqrt.pop %v7996
      %v8084 = vrsqrt.pop %v7997
      %v8085 = vrsqrt.pop %v7998
      %v8086 = vrsqrt.pop %v7999
      %v8087 = vrsqrt.pop %v8000
      %v8088 = vrsqrt.pop %v8001
      %v8089 = vrsqrt.pop %v8002
      %v8090 = vrsqrt.pop %v8003
      %v8091 = vrsqrt.pop %v8004
      %v8092 = vrsqrt.pop %v8005
      %v8093 = vrsqrt.pop %v8006
      %v8094 = vrsqrt.pop %v8007
      %v8095 = vrsqrt.pop %v8008
      %v8096 = vrsqrt.pop %v8009
      %v8097 = vrsqrt.pop %v8010
      %v8098 = vrsqrt.pop %v8011
      %v8099 = vrsqrt.pop %v8012
      %v8100 = vrsqrt.pop %v8013
      %v8101 = vrsqrt.pop %v8014
      %v8102 = vld [vmem:[%s280] sm:$0xff]
      %v8103 = vld [vmem:[%s280 + $0x8] sm:$0xff]
      %v8104 = vld [vmem:[%s280 + $0x10] sm:$0xff]
      %v8105 = vld [vmem:[%s280 + $0x18] sm:$0xff]
      %v8106 = vld [vmem:[%s280 + $0x20] sm:$0xff]
      %v8107 = vld [vmem:[%s280 + $0x28] sm:$0xff]
      %v8108 = vld [vmem:[%s280 + $0x30] sm:$0xff]
      %v8109 = vld [vmem:[%s280 + $0x38] sm:$0xff]
      %v8110 = vld [vmem:[%s280 + $0x40] sm:$0xff]
      %v8111 = vld [vmem:[%s280 + $0x48] sm:$0xff]
      %v8112 = vld [vmem:[%s280 + $0x50] sm:$0xff]
      %v8113 = vld [vmem:[%s280 + $0x58] sm:$0xff]
      %v8114 = vld [vmem:[%s280 + $0x60] sm:$0xff]
      %v8115 = vld [vmem:[%s280 + $0x68] sm:$0xff]
      %v8116 = vld [vmem:[%s280 + $0x70] sm:$0xff]
      %v8117 = vld [vmem:[%s280 + $0x78] sm:$0xff]
      %v8118 = vld [vmem:[%s280 + $0x80] sm:$0xff]
      %v8119 = vld [vmem:[%s280 + $0x88] sm:$0xff]
      %v8120 = vld [vmem:[%s280 + $0x90] sm:$0xff]
      %v8121 = vld [vmem:[%s280 + $0x98] sm:$0xff]
      %v8122 = vld [vmem:[%s280 + $0xa0] sm:$0xff]
      %v8123 = vld [vmem:[%s280 + $0xa8] sm:$0xff]
      %v8124 = vld [vmem:[%s280 + $0xb0] sm:$0xff]
      %v8125 = vld [vmem:[%s280 + $0xb8] sm:$0xff]
      %v8126 = vld [vmem:[%s280 + $0xc0] sm:$0xff]
      %v8127 = vld [vmem:[%s280 + $0xc8] sm:$0xff]
      %v8128 = vld [vmem:[%s280 + $0xd0] sm:$0xff]
      %v8129 = vld [vmem:[%s280 + $0xd8] sm:$0xff]
      %v8130 = vld [vmem:[%s280 + $0xe0] sm:$0xff]
      %v8131 = vld [vmem:[%s280 + $0xe8] sm:$0xff]
      %v8132 = vld [vmem:[%s280 + $0xf0] sm:$0xff]
      %v8133 = vld [vmem:[%s280 + $0xf8] sm:$0xff]
      %v8134 = vld [vmem:[%s280 + $0x100] sm:$0xff]
      %v8135 = vld [vmem:[%s280 + $0x108] sm:$0xff]
      %v8136 = vld [vmem:[%s280 + $0x110] sm:$0xff]
      %v8137 = vld [vmem:[%s280 + $0x118] sm:$0xff]
      %v8138 = vld [vmem:[%s280 + $0x120] sm:$0xff]
      %v8139 = vld [vmem:[%s280 + $0x128] sm:$0xff]
      %v8140 = vld [vmem:[%s280 + $0x130] sm:$0xff]
      %v8141 = vld [vmem:[%s280 + $0x138] sm:$0xff]
      %v8142 = vld [vmem:[%s280 + $0x140] sm:$0xff]
      %v8143 = vld [vmem:[%s280 + $0x148] sm:$0xff]
      %v8144 = vld [vmem:[%s280 + $0x150] sm:$0xff]
      %v8145 = vld [vmem:[%s280 + $0x158] sm:$0xff]
      %v8146 = vld [vmem:[%s280 + $0x160] sm:$0xff]
      %v8147 = vld [vmem:[%s280 + $0x168] sm:$0xff]
      %v8148 = vld [vmem:[%s280 + $0x170] sm:$0xff]
      %v8149 = vld [vmem:[%s280 + $0x178] sm:$0xff]
      %v8150 = vld [vmem:[%s280 + $0x180] sm:$0xff]
      %v8151 = vld [vmem:[%s280 + $0x188] sm:$0xff]
      %v8152 = vld [vmem:[%s280 + $0x190] sm:$0xff]
      %v8153 = vld [vmem:[%s280 + $0x198] sm:$0xff]
      %v8154 = vld [vmem:[%s280 + $0x1a0] sm:$0xff]
      %v8155 = vld [vmem:[%s280 + $0x1a8] sm:$0xff]
      %v8156 = vld [vmem:[%s280 + $0x1b0] sm:$0xff]
      %v8157 = vld [vmem:[%s280 + $0x1b8] sm:$0xff]
      %v8158 = vld [vmem:[%s280 + $0x1c0] sm:$0xff]
      %v8159 = vld [vmem:[%s280 + $0x1c8] sm:$0xff]
      %v8160 = vld [vmem:[%s280 + $0x1d0] sm:$0xff]
      %v8161 = vld [vmem:[%s280 + $0x1d8] sm:$0xff]
      %v8162 = vld [vmem:[%s280 + $0x1e0] sm:$0xff]
      %v8163 = vld [vmem:[%s280 + $0x1e8] sm:$0xff]
      %v8164 = vld [vmem:[%s280 + $0x1f0] sm:$0xff]
      %v8165 = vld [vmem:[%s280 + $0x1f8] sm:$0xff]
      %v8166 = vld [vmem:[%s280 + $0x200] sm:$0xff]
      %v8167 = vld [vmem:[%s280 + $0x208] sm:$0xff]
      %v8168 = vld [vmem:[%s280 + $0x210] sm:$0xff]
      %v8169 = vld [vmem:[%s280 + $0x218] sm:$0xff]
      %v8170 = vld [vmem:[%s280 + $0x220] sm:$0xff]
      %v8171 = vld [vmem:[%s280 + $0x228] sm:$0xff]
      %v8172 = vld [vmem:[%s280 + $0x230] sm:$0xff]
      %v8173 = vld [vmem:[%s280 + $0x238] sm:$0xff]
      %v8174 = vld [vmem:[%s280 + $0x240] sm:$0xff]
      %v8175 = vld [vmem:[%s280 + $0x248] sm:$0xff]
      %v8176 = vld [vmem:[%s280 + $0x250] sm:$0xff]
      %v8177 = vld [vmem:[%s280 + $0x258] sm:$0xff]
      %v8178 = vld [vmem:[%s280 + $0x260] sm:$0xff]
      %v8179 = vld [vmem:[%s280 + $0x268] sm:$0xff]
      %v8180 = vld [vmem:[%s280 + $0x270] sm:$0xff]
      %v8181 = vld [vmem:[%s280 + $0x278] sm:$0xff]
      %v8182 = vld [vmem:[%s280 + $0x280] sm:$0xff]
      %v8183 = vld [vmem:[%s280 + $0x288] sm:$0xff]
      %v8184 = vld [vmem:[%s280 + $0x290] sm:$0xff]
      %v8185 = vld [vmem:[%s280 + $0x298] sm:$0xff]
      %v8186 = vld [vmem:[%s280 + $0x2a0] sm:$0xff]
      %v8187 = vld [vmem:[%s280 + $0x2a8] sm:$0xff]
      %v8188 = vld [vmem:[%s280 + $0x2b0] sm:$0xff]
      %v8189 = vmul.f32 %v8015, %v8102
      %v8190 = vmul.f32 %v8016, %v8103
      %v8191 = vmul.f32 %v8017, %v8104
      %v8192 = vmul.f32 %v8018, %v8105
      %v8193 = vmul.f32 %v8019, %v8106
      %v8194 = vmul.f32 %v8020, %v8107
      %v8195 = vmul.f32 %v8021, %v8108
      %v8196 = vmul.f32 %v8022, %v8109
      %v8197 = vmul.f32 %v8023, %v8110
      %v8198 = vmul.f32 %v8024, %v8111
      %v8199 = vmul.f32 %v8025, %v8112
      %v8200 = vmul.f32 %v8026, %v8113
      %v8201 = vmul.f32 %v8027, %v8114
      %v8202 = vmul.f32 %v8028, %v8115
      %v8203 = vmul.f32 %v8029, %v8116
      %v8204 = vmul.f32 %v8030, %v8117
      %v8205 = vmul.f32 %v8031, %v8118
      %v8206 = vmul.f32 %v8032, %v8119
      %v8207 = vmul.f32 %v8033, %v8120
      %v8208 = vmul.f32 %v8034, %v8121
      %v8209 = vmul.f32 %v8035, %v8122
      %v8210 = vmul.f32 %v8036, %v8123
      %v8211 = vmul.f32 %v8037, %v8124
      %v8212 = vmul.f32 %v8038, %v8125
      %v8213 = vmul.f32 %v8039, %v8126
      %v8214 = vmul.f32 %v8040, %v8127
      %v8215 = vmul.f32 %v8041, %v8128
      %v8216 = vmul.f32 %v8042, %v8129
      %v8217 = vmul.f32 %v8043, %v8130
      %v8218 = vmul.f32 %v8044, %v8131
      %v8219 = vmul.f32 %v8045, %v8132
      %v8220 = vmul.f32 %v8046, %v8133
      %v8221 = vmul.f32 %v8047, %v8134
      %v8222 = vmul.f32 %v8048, %v8135
      %v8223 = vmul.f32 %v8049, %v8136
      %v8224 = vmul.f32 %v8050, %v8137
      %v8225 = vmul.f32 %v8051, %v8138
      %v8226 = vmul.f32 %v8052, %v8139
      %v8227 = vmul.f32 %v8053, %v8140
      %v8228 = vmul.f32 %v8054, %v8141
      %v8229 = vmul.f32 %v8055, %v8142
      %v8230 = vmul.f32 %v8056, %v8143
      %v8231 = vmul.f32 %v8057, %v8144
      %v8232 = vmul.f32 %v8058, %v8145
      %v8233 = vmul.f32 %v8059, %v8146
      %v8234 = vmul.f32 %v8060, %v8147
      %v8235 = vmul.f32 %v8061, %v8148
      %v8236 = vmul.f32 %v8062, %v8149
      %v8237 = vmul.f32 %v8063, %v8150
      %v8238 = vmul.f32 %v8064, %v8151
      %v8239 = vmul.f32 %v8065, %v8152
      %v8240 = vmul.f32 %v8066, %v8153
      %v8241 = vmul.f32 %v8067, %v8154
      %v8242 = vmul.f32 %v8068, %v8155
      %v8243 = vmul.f32 %v8069, %v8156
      %v8244 = vmul.f32 %v8070, %v8157
      %v8245 = vmul.f32 %v8071, %v8158
      %v8246 = vmul.f32 %v8072, %v8159
      %v8247 = vmul.f32 %v8073, %v8160
      %v8248 = vmul.f32 %v8074, %v8161
      %v8249 = vmul.f32 %v8075, %v8162
      %v8250 = vmul.f32 %v8076, %v8163
      %v8251 = vmul.f32 %v8077, %v8164
      %v8252 = vmul.f32 %v8078, %v8165
      %v8253 = vmul.f32 %v8079, %v8166
      %v8254 = vmul.f32 %v8080, %v8167
      %v8255 = vmul.f32 %v8081, %v8168
      %v8256 = vmul.f32 %v8082, %v8169
      %v8257 = vmul.f32 %v8083, %v8170
      %v8258 = vmul.f32 %v8084, %v8171
      %v8259 = vmul.f32 %v8085, %v8172
      %v8260 = vmul.f32 %v8086, %v8173
      %v8261 = vmul.f32 %v8087, %v8174
      %v8262 = vmul.f32 %v8088, %v8175
      %v8263 = vmul.f32 %v8089, %v8176
      %v8264 = vmul.f32 %v8090, %v8177
      %v8265 = vmul.f32 %v8091, %v8178
      %v8266 = vmul.f32 %v8092, %v8179
      %v8267 = vmul.f32 %v8093, %v8180
      %v8268 = vmul.f32 %v8094, %v8181
      %v8269 = vmul.f32 %v8095, %v8182
      %v8270 = vmul.f32 %v8096, %v8183
      %v8271 = vmul.f32 %v8097, %v8184
      %v8272 = vmul.f32 %v8098, %v8185
      %v8273 = vmul.f32 %v8099, %v8186
      %v8274 = vmul.f32 %v8100, %v8187
      %v8275 = vmul.f32 %v8101, %v8188
      %v8276 = vld [vmem:[%s293] sm:$0xff]
      %v8277 = vld [vmem:[%s293 + $0x8] sm:$0xff]
      %v8278 = vld [vmem:[%s293 + $0x10] sm:$0xff]
      %v8279 = vld [vmem:[%s293 + $0x18] sm:$0xff]
      %v8280 = vld [vmem:[%s293 + $0x20] sm:$0xff]
      %v8281 = vld [vmem:[%s293 + $0x28] sm:$0xff]
      %v8282 = vld [vmem:[%s293 + $0x30] sm:$0xff]
      %v8283 = vld [vmem:[%s293 + $0x38] sm:$0xff]
      %v8284 = vld [vmem:[%s293 + $0x40] sm:$0xff]
      %v8285 = vld [vmem:[%s293 + $0x48] sm:$0xff]
      %v8286 = vld [vmem:[%s293 + $0x50] sm:$0xff]
      %v8287 = vld [vmem:[%s293 + $0x58] sm:$0xff]
      %v8288 = vld [vmem:[%s293 + $0x60] sm:$0xff]
      %v8289 = vld [vmem:[%s293 + $0x68] sm:$0xff]
      %v8290 = vld [vmem:[%s293 + $0x70] sm:$0xff]
      %v8291 = vld [vmem:[%s293 + $0x78] sm:$0xff]
      %v8292 = vld [vmem:[%s293 + $0x80] sm:$0xff]
      %v8293 = vld [vmem:[%s293 + $0x88] sm:$0xff]
      %v8294 = vld [vmem:[%s293 + $0x90] sm:$0xff]
      %v8295 = vld [vmem:[%s293 + $0x98] sm:$0xff]
      %v8296 = vld [vmem:[%s293 + $0xa0] sm:$0xff]
      %v8297 = vld [vmem:[%s293 + $0xa8] sm:$0xff]
      %v8298 = vld [vmem:[%s293 + $0xb0] sm:$0xff]
      %v8299 = vld [vmem:[%s293 + $0xb8] sm:$0xff]
      %v8300 = vld [vmem:[%s293 + $0xc0] sm:$0xff]
      %v8301 = vld [vmem:[%s293 + $0xc8] sm:$0xff]
      %v8302 = vld [vmem:[%s293 + $0xd0] sm:$0xff]
      %v8303 = vld [vmem:[%s293 + $0xd8] sm:$0xff]
      %v8304 = vld [vmem:[%s293 + $0xe0] sm:$0xff]
      %v8305 = vld [vmem:[%s293 + $0xe8] sm:$0xff]
      %v8306 = vld [vmem:[%s293 + $0xf0] sm:$0xff]
      %v8307 = vld [vmem:[%s293 + $0xf8] sm:$0xff]
      %v8308 = vld [vmem:[%s293 + $0x100] sm:$0xff]
      %v8309 = vld [vmem:[%s293 + $0x108] sm:$0xff]
      %v8310 = vld [vmem:[%s293 + $0x110] sm:$0xff]
      %v8311 = vld [vmem:[%s293 + $0x118] sm:$0xff]
      %v8312 = vld [vmem:[%s293 + $0x120] sm:$0xff]
      %v8313 = vld [vmem:[%s293 + $0x128] sm:$0xff]
      %v8314 = vld [vmem:[%s293 + $0x130] sm:$0xff]
      %v8315 = vld [vmem:[%s293 + $0x138] sm:$0xff]
      %v8316 = vld [vmem:[%s293 + $0x140] sm:$0xff]
      %v8317 = vld [vmem:[%s293 + $0x148] sm:$0xff]
      %v8318 = vld [vmem:[%s293 + $0x150] sm:$0xff]
      %v8319 = vld [vmem:[%s293 + $0x158] sm:$0xff]
      %v8320 = vld [vmem:[%s293 + $0x160] sm:$0xff]
      %v8321 = vld [vmem:[%s293 + $0x168] sm:$0xff]
      %v8322 = vld [vmem:[%s293 + $0x170] sm:$0xff]
      %v8323 = vld [vmem:[%s293 + $0x178] sm:$0xff]
      %v8324 = vld [vmem:[%s293 + $0x180] sm:$0xff]
      %v8325 = vld [vmem:[%s293 + $0x188] sm:$0xff]
      %v8326 = vld [vmem:[%s293 + $0x190] sm:$0xff]
      %v8327 = vld [vmem:[%s293 + $0x198] sm:$0xff]
      %v8328 = vld [vmem:[%s293 + $0x1a0] sm:$0xff]
      %v8329 = vld [vmem:[%s293 + $0x1a8] sm:$0xff]
      %v8330 = vld [vmem:[%s293 + $0x1b0] sm:$0xff]
      %v8331 = vld [vmem:[%s293 + $0x1b8] sm:$0xff]
      %v8332 = vld [vmem:[%s293 + $0x1c0] sm:$0xff]
      %v8333 = vld [vmem:[%s293 + $0x1c8] sm:$0xff]
      %v8334 = vld [vmem:[%s293 + $0x1d0] sm:$0xff]
      %v8335 = vld [vmem:[%s293 + $0x1d8] sm:$0xff]
      %v8336 = vld [vmem:[%s293 + $0x1e0] sm:$0xff]
      %v8337 = vld [vmem:[%s293 + $0x1e8] sm:$0xff]
      %v8338 = vld [vmem:[%s293 + $0x1f0] sm:$0xff]
      %v8339 = vld [vmem:[%s293 + $0x1f8] sm:$0xff]
      %v8340 = vld [vmem:[%s293 + $0x200] sm:$0xff]
      %v8341 = vld [vmem:[%s293 + $0x208] sm:$0xff]
      %v8342 = vld [vmem:[%s293 + $0x210] sm:$0xff]
      %v8343 = vld [vmem:[%s293 + $0x218] sm:$0xff]
      %v8344 = vld [vmem:[%s293 + $0x220] sm:$0xff]
      %v8345 = vld [vmem:[%s293 + $0x228] sm:$0xff]
      %v8346 = vld [vmem:[%s293 + $0x230] sm:$0xff]
      %v8347 = vld [vmem:[%s293 + $0x238] sm:$0xff]
      %v8348 = vld [vmem:[%s293 + $0x240] sm:$0xff]
      %v8349 = vld [vmem:[%s293 + $0x248] sm:$0xff]
      %v8350 = vld [vmem:[%s293 + $0x250] sm:$0xff]
      %v8351 = vld [vmem:[%s293 + $0x258] sm:$0xff]
      %v8352 = vld [vmem:[%s293 + $0x260] sm:$0xff]
      %v8353 = vld [vmem:[%s293 + $0x268] sm:$0xff]
      %v8354 = vld [vmem:[%s293 + $0x270] sm:$0xff]
      %v8355 = vld [vmem:[%s293 + $0x278] sm:$0xff]
      %v8356 = vld [vmem:[%s293 + $0x280] sm:$0xff]
      %v8357 = vld [vmem:[%s293 + $0x288] sm:$0xff]
      %v8358 = vld [vmem:[%s293 + $0x290] sm:$0xff]
      %v8359 = vld [vmem:[%s293 + $0x298] sm:$0xff]
      %v8360 = vld [vmem:[%s293 + $0x2a0] sm:$0xff]
      %v8361 = vld [vmem:[%s293 + $0x2a8] sm:$0xff]
      %v8362 = vld [vmem:[%s293 + $0x2b0] sm:$0xff]
      %v8363 = vld [vmem:[%s293 + $0x2b8] sm:$0xff]
      %v8364 = vld [vmem:[%s293 + $0x2c0] sm:$0xff]
      %v8365 = vld [vmem:[%s293 + $0x2c8] sm:$0xff]
      %v8366 = vld [vmem:[%s293 + $0x2d0] sm:$0xff]
      %v8367 = vld [vmem:[%s293 + $0x2d8] sm:$0xff]
      %v8368 = vld [vmem:[%s293 + $0x2e0] sm:$0xff]
      %v8369 = vld [vmem:[%s293 + $0x2e8] sm:$0xff]
      %v8370 = vld [vmem:[%s293 + $0x2f0] sm:$0xff]
      %v8371 = vld [vmem:[%s293 + $0x2f8] sm:$0xff]
      %v8372 = vld [vmem:[%s293 + $0x300] sm:$0xff]
      %v8373 = vld [vmem:[%s293 + $0x308] sm:$0xff]
      %v8374 = vld [vmem:[%s293 + $0x310] sm:$0xff]
      %v8375 = vld [vmem:[%s293 + $0x318] sm:$0xff]
      %v8376 = vld [vmem:[%s293 + $0x320] sm:$0xff]
      %v8377 = vld [vmem:[%s293 + $0x328] sm:$0xff]
      %v8378 = vld [vmem:[%s293 + $0x330] sm:$0xff]
      %v8379 = vld [vmem:[%s293 + $0x338] sm:$0xff]
      %v8380 = vld [vmem:[%s293 + $0x340] sm:$0xff]
      %v8381 = vld [vmem:[%s293 + $0x348] sm:$0xff]
      %v8382 = vld [vmem:[%s293 + $0x350] sm:$0xff]
      %v8383 = vld [vmem:[%s293 + $0x358] sm:$0xff]
      %v8384 = vld [vmem:[%s293 + $0x360] sm:$0xff]
      %v8385 = vld [vmem:[%s293 + $0x368] sm:$0xff]
      %v8386 = vld [vmem:[%s293 + $0x370] sm:$0xff]
      %v8387 = vld [vmem:[%s293 + $0x378] sm:$0xff]
      %v8388 = vld [vmem:[%s293 + $0x380] sm:$0xff]
      %v8389 = vld [vmem:[%s293 + $0x388] sm:$0xff]
      %v8390 = vld [vmem:[%s293 + $0x390] sm:$0xff]
      %v8391 = vld [vmem:[%s293 + $0x398] sm:$0xff]
      %v8392 = vld [vmem:[%s293 + $0x3a0] sm:$0xff]
      %v8393 = vld [vmem:[%s293 + $0x3a8] sm:$0xff]
      %v8394 = vld [vmem:[%s293 + $0x3b0] sm:$0xff]
      %v8395 = vld [vmem:[%s293 + $0x3b8] sm:$0xff]
      %v8396 = vld [vmem:[%s293 + $0x3c0] sm:$0xff]
      %v8397 = vld [vmem:[%s293 + $0x3c8] sm:$0xff]
      %v8398 = vld [vmem:[%s293 + $0x3d0] sm:$0xff]
      %v8399 = vld [vmem:[%s293 + $0x3d8] sm:$0xff]
      %v8400 = vld [vmem:[%s293 + $0x3e0] sm:$0xff]
      %v8401 = vld [vmem:[%s293 + $0x3e8] sm:$0xff]
      %v8402 = vld [vmem:[%s293 + $0x3f0] sm:$0xff]
      %v8403 = vld [vmem:[%s293 + $0x3f8] sm:$0xff]
      %v8404 = vld [vmem:[%s293 + $0x400] sm:$0xff]
      %v8405 = vld [vmem:[%s293 + $0x408] sm:$0xff]
      %v8406 = vld [vmem:[%s293 + $0x410] sm:$0xff]
      %v8407 = vld [vmem:[%s293 + $0x418] sm:$0xff]
      %v8408 = vld [vmem:[%s293 + $0x420] sm:$0xff]
      %v8409 = vld [vmem:[%s293 + $0x428] sm:$0xff]
      %v8410 = vld [vmem:[%s293 + $0x430] sm:$0xff]
      %v8411 = vld [vmem:[%s293 + $0x438] sm:$0xff]
      %v8412 = vld [vmem:[%s293 + $0x440] sm:$0xff]
      %v8413 = vld [vmem:[%s293 + $0x448] sm:$0xff]
      %v8414 = vld [vmem:[%s293 + $0x450] sm:$0xff]
      %v8415 = vld [vmem:[%s293 + $0x458] sm:$0xff]
      %v8416 = vld [vmem:[%s293 + $0x460] sm:$0xff]
      %v8417 = vld [vmem:[%s293 + $0x468] sm:$0xff]
      %v8418 = vld [vmem:[%s293 + $0x470] sm:$0xff]
      %v8419 = vld [vmem:[%s293 + $0x478] sm:$0xff]
      %v8420 = vld [vmem:[%s293 + $0x480] sm:$0xff]
      %v8421 = vld [vmem:[%s293 + $0x488] sm:$0xff]
      %v8422 = vld [vmem:[%s293 + $0x490] sm:$0xff]
      %v8423 = vld [vmem:[%s293 + $0x498] sm:$0xff]
      %v8424 = vld [vmem:[%s293 + $0x4a0] sm:$0xff]
      %v8425 = vld [vmem:[%s293 + $0x4a8] sm:$0xff]
      %v8426 = vld [vmem:[%s293 + $0x4b0] sm:$0xff]
      %v8427 = vld [vmem:[%s293 + $0x4b8] sm:$0xff]
      %v8428 = vld [vmem:[%s293 + $0x4c0] sm:$0xff]
      %v8429 = vld [vmem:[%s293 + $0x4c8] sm:$0xff]
      %v8430 = vld [vmem:[%s293 + $0x4d0] sm:$0xff]
      %v8431 = vld [vmem:[%s293 + $0x4d8] sm:$0xff]
      %v8432 = vld [vmem:[%s293 + $0x4e0] sm:$0xff]
      %v8433 = vld [vmem:[%s293 + $0x4e8] sm:$0xff]
      %v8434 = vld [vmem:[%s293 + $0x4f0] sm:$0xff]
      %v8435 = vld [vmem:[%s293 + $0x4f8] sm:$0xff]
      %v8436 = vld [vmem:[%s293 + $0x500] sm:$0xff]
      %v8437 = vld [vmem:[%s293 + $0x508] sm:$0xff]
      %v8438 = vld [vmem:[%s293 + $0x510] sm:$0xff]
      %v8439 = vld [vmem:[%s293 + $0x518] sm:$0xff]
      %v8440 = vld [vmem:[%s293 + $0x520] sm:$0xff]
      %v8441 = vld [vmem:[%s293 + $0x528] sm:$0xff]
      %v8442 = vld [vmem:[%s293 + $0x530] sm:$0xff]
      %v8443 = vld [vmem:[%s293 + $0x538] sm:$0xff]
      %v8444 = vld [vmem:[%s293 + $0x540] sm:$0xff]
      %v8445 = vld [vmem:[%s293 + $0x548] sm:$0xff]
      %v8446 = vld [vmem:[%s293 + $0x550] sm:$0xff]
      %v8447 = vld [vmem:[%s293 + $0x558] sm:$0xff]
      %v8448 = vld [vmem:[%s293 + $0x560] sm:$0xff]
      %v8449 = vld [vmem:[%s293 + $0x568] sm:$0xff]
      %8451 = vset.pattern.permute.xlu0 0
      %8452 = vperm.xlu0 %8451, %v8189
      %v8453 = vpop.permute.xlu0 %8452
      %8456 = vset.pattern.permute.xlu0 0
      %8457 = vperm.xlu0 %8456, %v8190
      %v8458 = vpop.permute.xlu0 %8457
      %8461 = vset.pattern.permute.xlu0 0
      %8462 = vperm.xlu0 %8461, %v8191
      %v8463 = vpop.permute.xlu0 %8462
      %8466 = vset.pattern.permute.xlu0 0
      %8467 = vperm.xlu0 %8466, %v8192
      %v8468 = vpop.permute.xlu0 %8467
      %8471 = vset.pattern.permute.xlu0 0
      %8472 = vperm.xlu0 %8471, %v8193
      %v8473 = vpop.permute.xlu0 %8472
      %8476 = vset.pattern.permute.xlu0 0
      %8477 = vperm.xlu0 %8476, %v8194
      %v8478 = vpop.permute.xlu0 %8477
      %8481 = vset.pattern.permute.xlu0 0
      %8482 = vperm.xlu0 %8481, %v8195
      %v8483 = vpop.permute.xlu0 %8482
      %8486 = vset.pattern.permute.xlu0 0
      %8487 = vperm.xlu0 %8486, %v8196
      %v8488 = vpop.permute.xlu0 %8487
      %8491 = vset.pattern.permute.xlu0 0
      %8492 = vperm.xlu0 %8491, %v8197
      %v8493 = vpop.permute.xlu0 %8492
      %8496 = vset.pattern.permute.xlu0 0
      %8497 = vperm.xlu0 %8496, %v8198
      %v8498 = vpop.permute.xlu0 %8497
      %8501 = vset.pattern.permute.xlu0 0
      %8502 = vperm.xlu0 %8501, %v8199
      %v8503 = vpop.permute.xlu0 %8502
      %8506 = vset.pattern.permute.xlu0 0
      %8507 = vperm.xlu0 %8506, %v8200
      %v8508 = vpop.permute.xlu0 %8507
      %8511 = vset.pattern.permute.xlu0 0
      %8512 = vperm.xlu0 %8511, %v8201
      %v8513 = vpop.permute.xlu0 %8512
      %8516 = vset.pattern.permute.xlu0 0
      %8517 = vperm.xlu0 %8516, %v8202
      %v8518 = vpop.permute.xlu0 %8517
      %8521 = vset.pattern.permute.xlu0 0
      %8522 = vperm.xlu0 %8521, %v8203
      %v8523 = vpop.permute.xlu0 %8522
      %8526 = vset.pattern.permute.xlu0 0
      %8527 = vperm.xlu0 %8526, %v8204
      %v8528 = vpop.permute.xlu0 %8527
      %8531 = vset.pattern.permute.xlu0 0
      %8532 = vperm.xlu0 %8531, %v8205
      %v8533 = vpop.permute.xlu0 %8532
      %8536 = vset.pattern.permute.xlu0 0
      %8537 = vperm.xlu0 %8536, %v8206
      %v8538 = vpop.permute.xlu0 %8537
      %8541 = vset.pattern.permute.xlu0 0
      %8542 = vperm.xlu0 %8541, %v8207
      %v8543 = vpop.permute.xlu0 %8542
      %8546 = vset.pattern.permute.xlu0 0
      %8547 = vperm.xlu0 %8546, %v8208
      %v8548 = vpop.permute.xlu0 %8547
      %8551 = vset.pattern.permute.xlu0 0
      %8552 = vperm.xlu0 %8551, %v8209
      %v8553 = vpop.permute.xlu0 %8552
      %8556 = vset.pattern.permute.xlu0 0
      %8557 = vperm.xlu0 %8556, %v8210
      %v8558 = vpop.permute.xlu0 %8557
      %8561 = vset.pattern.permute.xlu0 0
      %8562 = vperm.xlu0 %8561, %v8211
      %v8563 = vpop.permute.xlu0 %8562
      %8566 = vset.pattern.permute.xlu0 0
      %8567 = vperm.xlu0 %8566, %v8212
      %v8568 = vpop.permute.xlu0 %8567
      %8571 = vset.pattern.permute.xlu0 0
      %8572 = vperm.xlu0 %8571, %v8213
      %v8573 = vpop.permute.xlu0 %8572
      %8576 = vset.pattern.permute.xlu0 0
      %8577 = vperm.xlu0 %8576, %v8214
      %v8578 = vpop.permute.xlu0 %8577
      %8581 = vset.pattern.permute.xlu0 0
      %8582 = vperm.xlu0 %8581, %v8215
      %v8583 = vpop.permute.xlu0 %8582
      %8586 = vset.pattern.permute.xlu0 0
      %8587 = vperm.xlu0 %8586, %v8216
      %v8588 = vpop.permute.xlu0 %8587
      %8591 = vset.pattern.permute.xlu0 0
      %8592 = vperm.xlu0 %8591, %v8217
      %v8593 = vpop.permute.xlu0 %8592
      %8596 = vset.pattern.permute.xlu0 0
      %8597 = vperm.xlu0 %8596, %v8218
      %v8598 = vpop.permute.xlu0 %8597
      %8601 = vset.pattern.permute.xlu0 0
      %8602 = vperm.xlu0 %8601, %v8219
      %v8603 = vpop.permute.xlu0 %8602
      %8606 = vset.pattern.permute.xlu0 0
      %8607 = vperm.xlu0 %8606, %v8220
      %v8608 = vpop.permute.xlu0 %8607
      %8611 = vset.pattern.permute.xlu0 0
      %8612 = vperm.xlu0 %8611, %v8221
      %v8613 = vpop.permute.xlu0 %8612
      %8616 = vset.pattern.permute.xlu0 0
      %8617 = vperm.xlu0 %8616, %v8222
      %v8618 = vpop.permute.xlu0 %8617
      %8621 = vset.pattern.permute.xlu0 0
      %8622 = vperm.xlu0 %8621, %v8223
      %v8623 = vpop.permute.xlu0 %8622
      %8626 = vset.pattern.permute.xlu0 0
      %8627 = vperm.xlu0 %8626, %v8224
      %v8628 = vpop.permute.xlu0 %8627
      %8631 = vset.pattern.permute.xlu0 0
      %8632 = vperm.xlu0 %8631, %v8225
      %v8633 = vpop.permute.xlu0 %8632
      %8636 = vset.pattern.permute.xlu0 0
      %8637 = vperm.xlu0 %8636, %v8226
      %v8638 = vpop.permute.xlu0 %8637
      %8641 = vset.pattern.permute.xlu0 0
      %8642 = vperm.xlu0 %8641, %v8227
      %v8643 = vpop.permute.xlu0 %8642
      %8646 = vset.pattern.permute.xlu0 0
      %8647 = vperm.xlu0 %8646, %v8228
      %v8648 = vpop.permute.xlu0 %8647
      %8651 = vset.pattern.permute.xlu0 0
      %8652 = vperm.xlu0 %8651, %v8229
      %v8653 = vpop.permute.xlu0 %8652
      %8656 = vset.pattern.permute.xlu0 0
      %8657 = vperm.xlu0 %8656, %v8230
      %v8658 = vpop.permute.xlu0 %8657
      %8661 = vset.pattern.permute.xlu0 0
      %8662 = vperm.xlu0 %8661, %v8231
      %v8663 = vpop.permute.xlu0 %8662
      %8666 = vset.pattern.permute.xlu0 0
      %8667 = vperm.xlu0 %8666, %v8232
      %v8668 = vpop.permute.xlu0 %8667
      %8671 = vset.pattern.permute.xlu0 0
      %8672 = vperm.xlu0 %8671, %v8233
      %v8673 = vpop.permute.xlu0 %8672
      %8676 = vset.pattern.permute.xlu0 0
      %8677 = vperm.xlu0 %8676, %v8234
      %v8678 = vpop.permute.xlu0 %8677
      %8681 = vset.pattern.permute.xlu0 0
      %8682 = vperm.xlu0 %8681, %v8235
      %v8683 = vpop.permute.xlu0 %8682
      %8686 = vset.pattern.permute.xlu0 0
      %8687 = vperm.xlu0 %8686, %v8236
      %v8688 = vpop.permute.xlu0 %8687
      %8691 = vset.pattern.permute.xlu0 0
      %8692 = vperm.xlu0 %8691, %v8237
      %v8693 = vpop.permute.xlu0 %8692
      %8696 = vset.pattern.permute.xlu0 0
      %8697 = vperm.xlu0 %8696, %v8238
      %v8698 = vpop.permute.xlu0 %8697
      %8701 = vset.pattern.permute.xlu0 0
      %8702 = vperm.xlu0 %8701, %v8239
      %v8703 = vpop.permute.xlu0 %8702
      %8706 = vset.pattern.permute.xlu0 0
      %8707 = vperm.xlu0 %8706, %v8240
      %v8708 = vpop.permute.xlu0 %8707
      %8711 = vset.pattern.permute.xlu0 0
      %8712 = vperm.xlu0 %8711, %v8241
      %v8713 = vpop.permute.xlu0 %8712
      %8716 = vset.pattern.permute.xlu0 0
      %8717 = vperm.xlu0 %8716, %v8242
      %v8718 = vpop.permute.xlu0 %8717
      %8721 = vset.pattern.permute.xlu0 0
      %8722 = vperm.xlu0 %8721, %v8243
      %v8723 = vpop.permute.xlu0 %8722
      %8726 = vset.pattern.permute.xlu0 0
      %8727 = vperm.xlu0 %8726, %v8244
      %v8728 = vpop.permute.xlu0 %8727
      %8731 = vset.pattern.permute.xlu0 0
      %8732 = vperm.xlu0 %8731, %v8245
      %v8733 = vpop.permute.xlu0 %8732
      %8736 = vset.pattern.permute.xlu0 0
      %8737 = vperm.xlu0 %8736, %v8246
      %v8738 = vpop.permute.xlu0 %8737
      %8741 = vset.pattern.permute.xlu0 0
      %8742 = vperm.xlu0 %8741, %v8247
      %v8743 = vpop.permute.xlu0 %8742
      %8746 = vset.pattern.permute.xlu0 0
      %8747 = vperm.xlu0 %8746, %v8248
      %v8748 = vpop.permute.xlu0 %8747
      %8751 = vset.pattern.permute.xlu0 0
      %8752 = vperm.xlu0 %8751, %v8249
      %v8753 = vpop.permute.xlu0 %8752
      %8756 = vset.pattern.permute.xlu0 0
      %8757 = vperm.xlu0 %8756, %v8250
      %v8758 = vpop.permute.xlu0 %8757
      %8761 = vset.pattern.permute.xlu0 0
      %8762 = vperm.xlu0 %8761, %v8251
      %v8763 = vpop.permute.xlu0 %8762
      %8766 = vset.pattern.permute.xlu0 0
      %8767 = vperm.xlu0 %8766, %v8252
      %v8768 = vpop.permute.xlu0 %8767
      %8771 = vset.pattern.permute.xlu0 0
      %8772 = vperm.xlu0 %8771, %v8253
      %v8773 = vpop.permute.xlu0 %8772
      %8776 = vset.pattern.permute.xlu0 0
      %8777 = vperm.xlu0 %8776, %v8254
      %v8778 = vpop.permute.xlu0 %8777
      %8781 = vset.pattern.permute.xlu0 0
      %8782 = vperm.xlu0 %8781, %v8255
      %v8783 = vpop.permute.xlu0 %8782
      %8786 = vset.pattern.permute.xlu0 0
      %8787 = vperm.xlu0 %8786, %v8256
      %v8788 = vpop.permute.xlu0 %8787
      %8791 = vset.pattern.permute.xlu0 0
      %8792 = vperm.xlu0 %8791, %v8257
      %v8793 = vpop.permute.xlu0 %8792
      %8796 = vset.pattern.permute.xlu0 0
      %8797 = vperm.xlu0 %8796, %v8258
      %v8798 = vpop.permute.xlu0 %8797
      %8801 = vset.pattern.permute.xlu0 0
      %8802 = vperm.xlu0 %8801, %v8259
      %v8803 = vpop.permute.xlu0 %8802
      %8806 = vset.pattern.permute.xlu0 0
      %8807 = vperm.xlu0 %8806, %v8260
      %v8808 = vpop.permute.xlu0 %8807
      %8811 = vset.pattern.permute.xlu0 0
      %8812 = vperm.xlu0 %8811, %v8261
      %v8813 = vpop.permute.xlu0 %8812
      %8816 = vset.pattern.permute.xlu0 0
      %8817 = vperm.xlu0 %8816, %v8262
      %v8818 = vpop.permute.xlu0 %8817
      %8821 = vset.pattern.permute.xlu0 0
      %8822 = vperm.xlu0 %8821, %v8263
      %v8823 = vpop.permute.xlu0 %8822
      %8826 = vset.pattern.permute.xlu0 0
      %8827 = vperm.xlu0 %8826, %v8264
      %v8828 = vpop.permute.xlu0 %8827
      %8831 = vset.pattern.permute.xlu0 0
      %8832 = vperm.xlu0 %8831, %v8265
      %v8833 = vpop.permute.xlu0 %8832
      %8836 = vset.pattern.permute.xlu0 0
      %8837 = vperm.xlu0 %8836, %v8266
      %v8838 = vpop.permute.xlu0 %8837
      %8841 = vset.pattern.permute.xlu0 0
      %8842 = vperm.xlu0 %8841, %v8267
      %v8843 = vpop.permute.xlu0 %8842
      %8846 = vset.pattern.permute.xlu0 0
      %8847 = vperm.xlu0 %8846, %v8268
      %v8848 = vpop.permute.xlu0 %8847
      %8851 = vset.pattern.permute.xlu0 0
      %8852 = vperm.xlu0 %8851, %v8269
      %v8853 = vpop.permute.xlu0 %8852
      %8856 = vset.pattern.permute.xlu0 0
      %8857 = vperm.xlu0 %8856, %v8270
      %v8858 = vpop.permute.xlu0 %8857
      %8861 = vset.pattern.permute.xlu0 0
      %8862 = vperm.xlu0 %8861, %v8271
      %v8863 = vpop.permute.xlu0 %8862
      %8866 = vset.pattern.permute.xlu0 0
      %8867 = vperm.xlu0 %8866, %v8272
      %v8868 = vpop.permute.xlu0 %8867
      %8871 = vset.pattern.permute.xlu0 0
      %8872 = vperm.xlu0 %8871, %v8273
      %v8873 = vpop.permute.xlu0 %8872
      %8876 = vset.pattern.permute.xlu0 0
      %8877 = vperm.xlu0 %8876, %v8274
      %v8878 = vpop.permute.xlu0 %8877
      %8881 = vset.pattern.permute.xlu0 0
      %8882 = vperm.xlu0 %8881, %v8275
      %v8883 = vpop.permute.xlu0 %8882
      %v8885 = vmul.f32 %v7145, %v8453
      %v8886 = vmul.f32 %v7146, %v8453
      %v8887 = vmul.f32 %v7147, %v8458
      %v8888 = vmul.f32 %v7148, %v8458
      %v8889 = vmul.f32 %v7149, %v8463
      %v8890 = vmul.f32 %v7150, %v8463
      %v8891 = vmul.f32 %v7151, %v8468
      %v8892 = vmul.f32 %v7152, %v8468
      %v8893 = vmul.f32 %v7153, %v8473
      %v8894 = vmul.f32 %v7154, %v8473
      %v8895 = vmul.f32 %v7155, %v8478
      %v8896 = vmul.f32 %v7156, %v8478
      %v8897 = vmul.f32 %v7157, %v8483
      %v8898 = vmul.f32 %v7158, %v8483
      %v8899 = vmul.f32 %v7159, %v8488
      %v8900 = vmul.f32 %v7160, %v8488
      %v8901 = vmul.f32 %v7161, %v8493
      %v8902 = vmul.f32 %v7162, %v8493
      %v8903 = vmul.f32 %v7163, %v8498
      %v8904 = vmul.f32 %v7164, %v8498
      %v8905 = vmul.f32 %v7165, %v8503
      %v8906 = vmul.f32 %v7166, %v8503
      %v8907 = vmul.f32 %v7167, %v8508
      %v8908 = vmul.f32 %v7168, %v8508
      %v8909 = vmul.f32 %v7169, %v8513
      %v8910 = vmul.f32 %v7170, %v8513
      %v8911 = vmul.f32 %v7171, %v8518
      %v8912 = vmul.f32 %v7172, %v8518
      %v8913 = vmul.f32 %v7173, %v8523
      %v8914 = vmul.f32 %v7174, %v8523
      %v8915 = vmul.f32 %v7175, %v8528
      %v8916 = vmul.f32 %v7176, %v8528
      %v8917 = vmul.f32 %v7177, %v8533
      %v8918 = vmul.f32 %v7178, %v8533
      %v8919 = vmul.f32 %v7179, %v8538
      %v8920 = vmul.f32 %v7180, %v8538
      %v8921 = vmul.f32 %v7181, %v8543
      %v8922 = vmul.f32 %v7182, %v8543
      %v8923 = vmul.f32 %v7183, %v8548
      %v8924 = vmul.f32 %v7184, %v8548
      %v8925 = vmul.f32 %v7185, %v8553
      %v8926 = vmul.f32 %v7186, %v8553
      %v8927 = vmul.f32 %v7187, %v8558
      %v8928 = vmul.f32 %v7188, %v8558
      %v8929 = vmul.f32 %v7189, %v8563
      %v8930 = vmul.f32 %v7190, %v8563
      %v8931 = vmul.f32 %v7191, %v8568
      %v8932 = vmul.f32 %v7192, %v8568
      %v8933 = vmul.f32 %v7193, %v8573
      %v8934 = vmul.f32 %v7194, %v8573
      %v8935 = vmul.f32 %v7195, %v8578
      %v8936 = vmul.f32 %v7196, %v8578
      %v8937 = vmul.f32 %v7197, %v8583
      %v8938 = vmul.f32 %v7198, %v8583
      %v8939 = vmul.f32 %v7199, %v8588
      %v8940 = vmul.f32 %v7200, %v8588
      %v8941 = vmul.f32 %v7201, %v8593
      %v8942 = vmul.f32 %v7202, %v8593
      %v8943 = vmul.f32 %v7203, %v8598
      %v8944 = vmul.f32 %v7204, %v8598
      %v8945 = vmul.f32 %v7205, %v8603
      %v8946 = vmul.f32 %v7206, %v8603
      %v8947 = vmul.f32 %v7207, %v8608
      %v8948 = vmul.f32 %v7208, %v8608
      %v8949 = vmul.f32 %v7209, %v8613
      %v8950 = vmul.f32 %v7210, %v8613
      %v8951 = vmul.f32 %v7211, %v8618
      %v8952 = vmul.f32 %v7212, %v8618
      %v8953 = vmul.f32 %v7213, %v8623
      %v8954 = vmul.f32 %v7214, %v8623
      %v8955 = vmul.f32 %v7215, %v8628
      %v8956 = vmul.f32 %v7216, %v8628
      %v8957 = vmul.f32 %v7217, %v8633
      %v8958 = vmul.f32 %v7218, %v8633
      %v8959 = vmul.f32 %v7219, %v8638
      %v8960 = vmul.f32 %v7220, %v8638
      %v8961 = vmul.f32 %v7221, %v8643
      %v8962 = vmul.f32 %v7222, %v8643
      %v8963 = vmul.f32 %v7223, %v8648
      %v8964 = vmul.f32 %v7224, %v8648
      %v8965 = vmul.f32 %v7225, %v8653
      %v8966 = vmul.f32 %v7226, %v8653
      %v8967 = vmul.f32 %v7227, %v8658
      %v8968 = vmul.f32 %v7228, %v8658
      %v8969 = vmul.f32 %v7229, %v8663
      %v8970 = vmul.f32 %v7230, %v8663
      %v8971 = vmul.f32 %v7231, %v8668
      %v8972 = vmul.f32 %v7232, %v8668
      %v8973 = vmul.f32 %v7233, %v8673
      %v8974 = vmul.f32 %v7234, %v8673
      %v8975 = vmul.f32 %v7235, %v8678
      %v8976 = vmul.f32 %v7236, %v8678
      %v8977 = vmul.f32 %v7237, %v8683
      %v8978 = vmul.f32 %v7238, %v8683
      %v8979 = vmul.f32 %v7239, %v8688
      %v8980 = vmul.f32 %v7240, %v8688
      %v8981 = vmul.f32 %v7241, %v8693
      %v8982 = vmul.f32 %v7242, %v8693
      %v8983 = vmul.f32 %v7243, %v8698
      %v8984 = vmul.f32 %v7244, %v8698
      %v8985 = vmul.f32 %v7245, %v8703
      %v8986 = vmul.f32 %v7246, %v8703
      %v8987 = vmul.f32 %v7247, %v8708
      %v8988 = vmul.f32 %v7248, %v8708
      %v8989 = vmul.f32 %v7249, %v8713
      %v8990 = vmul.f32 %v7250, %v8713
      %v8991 = vmul.f32 %v7251, %v8718
      %v8992 = vmul.f32 %v7252, %v8718
      %v8993 = vmul.f32 %v7253, %v8723
      %v8994 = vmul.f32 %v7254, %v8723
      %v8995 = vmul.f32 %v7255, %v8728
      %v8996 = vmul.f32 %v7256, %v8728
      %v8997 = vmul.f32 %v7257, %v8733
      %v8998 = vmul.f32 %v7258, %v8733
      %v8999 = vmul.f32 %v7259, %v8738
      %v9000 = vmul.f32 %v7260, %v8738
      %v9001 = vmul.f32 %v7261, %v8743
      %v9002 = vmul.f32 %v7262, %v8743
      %v9003 = vmul.f32 %v7263, %v8748
      %v9004 = vmul.f32 %v7264, %v8748
      %v9005 = vmul.f32 %v7265, %v8753
      %v9006 = vmul.f32 %v7266, %v8753
      %v9007 = vmul.f32 %v7267, %v8758
      %v9008 = vmul.f32 %v7268, %v8758
      %v9009 = vmul.f32 %v7269, %v8763
      %v9010 = vmul.f32 %v7270, %v8763
      %v9011 = vmul.f32 %v7271, %v8768
      %v9012 = vmul.f32 %v7272, %v8768
      %v9013 = vmul.f32 %v7273, %v8773
      %v9014 = vmul.f32 %v7274, %v8773
      %v9015 = vmul.f32 %v7275, %v8778
      %v9016 = vmul.f32 %v7276, %v8778
      %v9017 = vmul.f32 %v7277, %v8783
      %v9018 = vmul.f32 %v7278, %v8783
      %v9019 = vmul.f32 %v7279, %v8788
      %v9020 = vmul.f32 %v7280, %v8788
      %v9021 = vmul.f32 %v7281, %v8793
      %v9022 = vmul.f32 %v7282, %v8793
      %v9023 = vmul.f32 %v7283, %v8798
      %v9024 = vmul.f32 %v7284, %v8798
      %v9025 = vmul.f32 %v7285, %v8803
      %v9026 = vmul.f32 %v7286, %v8803
      %v9027 = vmul.f32 %v7287, %v8808
      %v9028 = vmul.f32 %v7288, %v8808
      %v9029 = vmul.f32 %v7289, %v8813
      %v9030 = vmul.f32 %v7290, %v8813
      %v9031 = vmul.f32 %v7291, %v8818
      %v9032 = vmul.f32 %v7292, %v8818
      %v9033 = vmul.f32 %v7293, %v8823
      %v9034 = vmul.f32 %v7294, %v8823
      %v9035 = vmul.f32 %v7295, %v8828
      %v9036 = vmul.f32 %v7296, %v8828
      %v9037 = vmul.f32 %v7297, %v8833
      %v9038 = vmul.f32 %v7298, %v8833
      %v9039 = vmul.f32 %v7299, %v8838
      %v9040 = vmul.f32 %v7300, %v8838
      %v9041 = vmul.f32 %v7301, %v8843
      %v9042 = vmul.f32 %v7302, %v8843
      %v9043 = vmul.f32 %v7303, %v8848
      %v9044 = vmul.f32 %v7304, %v8848
      %v9045 = vmul.f32 %v7305, %v8853
      %v9046 = vmul.f32 %v7306, %v8853
      %v9047 = vmul.f32 %v7307, %v8858
      %v9048 = vmul.f32 %v7308, %v8858
      %v9049 = vmul.f32 %v7309, %v8863
      %v9050 = vmul.f32 %v7310, %v8863
      %v9051 = vmul.f32 %v7311, %v8868
      %v9052 = vmul.f32 %v7312, %v8868
      %v9053 = vmul.f32 %v7313, %v8873
      %v9054 = vmul.f32 %v7314, %v8873
      %v9055 = vmul.f32 %v7315, %v8878
      %v9056 = vmul.f32 %v7316, %v8878
      %v9057 = vmul.f32 %v7317, %v8883
      %v9058 = vmul.f32 %v7318, %v8883
      %v9059 = vadd.f32 %v8276, %v8885
      %v9060 = vadd.f32 %v8277, %v8886
      %v9061 = vadd.f32 %v8278, %v8887
      %v9062 = vadd.f32 %v8279, %v8888
      %v9063 = vadd.f32 %v8280, %v8889
      %v9064 = vadd.f32 %v8281, %v8890
      %v9065 = vadd.f32 %v8282, %v8891
      %v9066 = vadd.f32 %v8283, %v8892
      %v9067 = vadd.f32 %v8284, %v8893
      %v9068 = vadd.f32 %v8285, %v8894
      %v9069 = vadd.f32 %v8286, %v8895
      %v9070 = vadd.f32 %v8287, %v8896
      %v9071 = vadd.f32 %v8288, %v8897
      %v9072 = vadd.f32 %v8289, %v8898
      %v9073 = vadd.f32 %v8290, %v8899
      %v9074 = vadd.f32 %v8291, %v8900
      %v9075 = vadd.f32 %v8292, %v8901
      %v9076 = vadd.f32 %v8293, %v8902
      %v9077 = vadd.f32 %v8294, %v8903
      %v9078 = vadd.f32 %v8295, %v8904
      %v9079 = vadd.f32 %v8296, %v8905
      %v9080 = vadd.f32 %v8297, %v8906
      %v9081 = vadd.f32 %v8298, %v8907
      %v9082 = vadd.f32 %v8299, %v8908
      %v9083 = vadd.f32 %v8300, %v8909
      %v9084 = vadd.f32 %v8301, %v8910
      %v9085 = vadd.f32 %v8302, %v8911
      %v9086 = vadd.f32 %v8303, %v8912
      %v9087 = vadd.f32 %v8304, %v8913
      %v9088 = vadd.f32 %v8305, %v8914
      %v9089 = vadd.f32 %v8306, %v8915
      %v9090 = vadd.f32 %v8307, %v8916
      %v9091 = vadd.f32 %v8308, %v8917
      %v9092 = vadd.f32 %v8309, %v8918
      %v9093 = vadd.f32 %v8310, %v8919
      %v9094 = vadd.f32 %v8311, %v8920
      %v9095 = vadd.f32 %v8312, %v8921
      %v9096 = vadd.f32 %v8313, %v8922
      %v9097 = vadd.f32 %v8314, %v8923
      %v9098 = vadd.f32 %v8315, %v8924
      %v9099 = vadd.f32 %v8316, %v8925
      %v9100 = vadd.f32 %v8317, %v8926
      %v9101 = vadd.f32 %v8318, %v8927
      %v9102 = vadd.f32 %v8319, %v8928
      %v9103 = vadd.f32 %v8320, %v8929
      %v9104 = vadd.f32 %v8321, %v8930
      %v9105 = vadd.f32 %v8322, %v8931
      %v9106 = vadd.f32 %v8323, %v8932
      %v9107 = vadd.f32 %v8324, %v8933
      %v9108 = vadd.f32 %v8325, %v8934
      %v9109 = vadd.f32 %v8326, %v8935
      %v9110 = vadd.f32 %v8327, %v8936
      %v9111 = vadd.f32 %v8328, %v8937
      %v9112 = vadd.f32 %v8329, %v8938
      %v9113 = vadd.f32 %v8330, %v8939
      %v9114 = vadd.f32 %v8331, %v8940
      %v9115 = vadd.f32 %v8332, %v8941
      %v9116 = vadd.f32 %v8333, %v8942
      %v9117 = vadd.f32 %v8334, %v8943
      %v9118 = vadd.f32 %v8335, %v8944
      %v9119 = vadd.f32 %v8336, %v8945
      %v9120 = vadd.f32 %v8337, %v8946
      %v9121 = vadd.f32 %v8338, %v8947
      %v9122 = vadd.f32 %v8339, %v8948
      %v9123 = vadd.f32 %v8340, %v8949
      %v9124 = vadd.f32 %v8341, %v8950
      %v9125 = vadd.f32 %v8342, %v8951
      %v9126 = vadd.f32 %v8343, %v8952
      %v9127 = vadd.f32 %v8344, %v8953
      %v9128 = vadd.f32 %v8345, %v8954
      %v9129 = vadd.f32 %v8346, %v8955
      %v9130 = vadd.f32 %v8347, %v8956
      %v9131 = vadd.f32 %v8348, %v8957
      %v9132 = vadd.f32 %v8349, %v8958
      %v9133 = vadd.f32 %v8350, %v8959
      %v9134 = vadd.f32 %v8351, %v8960
      %v9135 = vadd.f32 %v8352, %v8961
      %v9136 = vadd.f32 %v8353, %v8962
      %v9137 = vadd.f32 %v8354, %v8963
      %v9138 = vadd.f32 %v8355, %v8964
      %v9139 = vadd.f32 %v8356, %v8965
      %v9140 = vadd.f32 %v8357, %v8966
      %v9141 = vadd.f32 %v8358, %v8967
      %v9142 = vadd.f32 %v8359, %v8968
      %v9143 = vadd.f32 %v8360, %v8969
      %v9144 = vadd.f32 %v8361, %v8970
      %v9145 = vadd.f32 %v8362, %v8971
      %v9146 = vadd.f32 %v8363, %v8972
      %v9147 = vadd.f32 %v8364, %v8973
      %v9148 = vadd.f32 %v8365, %v8974
      %v9149 = vadd.f32 %v8366, %v8975
      %v9150 = vadd.f32 %v8367, %v8976
      %v9151 = vadd.f32 %v8368, %v8977
      %v9152 = vadd.f32 %v8369, %v8978
      %v9153 = vadd.f32 %v8370, %v8979
      %v9154 = vadd.f32 %v8371, %v8980
      %v9155 = vadd.f32 %v8372, %v8981
      %v9156 = vadd.f32 %v8373, %v8982
      %v9157 = vadd.f32 %v8374, %v8983
      %v9158 = vadd.f32 %v8375, %v8984
      %v9159 = vadd.f32 %v8376, %v8985
      %v9160 = vadd.f32 %v8377, %v8986
      %v9161 = vadd.f32 %v8378, %v8987
      %v9162 = vadd.f32 %v8379, %v8988
      %v9163 = vadd.f32 %v8380, %v8989
      %v9164 = vadd.f32 %v8381, %v8990
      %v9165 = vadd.f32 %v8382, %v8991
      %v9166 = vadd.f32 %v8383, %v8992
      %v9167 = vadd.f32 %v8384, %v8993
      %v9168 = vadd.f32 %v8385, %v8994
      %v9169 = vadd.f32 %v8386, %v8995
      %v9170 = vadd.f32 %v8387, %v8996
      %v9171 = vadd.f32 %v8388, %v8997
      %v9172 = vadd.f32 %v8389, %v8998
      %v9173 = vadd.f32 %v8390, %v8999
      %v9174 = vadd.f32 %v8391, %v9000
      %v9175 = vadd.f32 %v8392, %v9001
      %v9176 = vadd.f32 %v8393, %v9002
      %v9177 = vadd.f32 %v8394, %v9003
      %v9178 = vadd.f32 %v8395, %v9004
      %v9179 = vadd.f32 %v8396, %v9005
      %v9180 = vadd.f32 %v8397, %v9006
      %v9181 = vadd.f32 %v8398, %v9007
      %v9182 = vadd.f32 %v8399, %v9008
      %v9183 = vadd.f32 %v8400, %v9009
      %v9184 = vadd.f32 %v8401, %v9010
      %v9185 = vadd.f32 %v8402, %v9011
      %v9186 = vadd.f32 %v8403, %v9012
      %v9187 = vadd.f32 %v8404, %v9013
      %v9188 = vadd.f32 %v8405, %v9014
      %v9189 = vadd.f32 %v8406, %v9015
      %v9190 = vadd.f32 %v8407, %v9016
      %v9191 = vadd.f32 %v8408, %v9017
      %v9192 = vadd.f32 %v8409, %v9018
      %v9193 = vadd.f32 %v8410, %v9019
      %v9194 = vadd.f32 %v8411, %v9020
      %v9195 = vadd.f32 %v8412, %v9021
      %v9196 = vadd.f32 %v8413, %v9022
      %v9197 = vadd.f32 %v8414, %v9023
      %v9198 = vadd.f32 %v8415, %v9024
      %v9199 = vadd.f32 %v8416, %v9025
      %v9200 = vadd.f32 %v8417, %v9026
      %v9201 = vadd.f32 %v8418, %v9027
      %v9202 = vadd.f32 %v8419, %v9028
      %v9203 = vadd.f32 %v8420, %v9029
      %v9204 = vadd.f32 %v8421, %v9030
      %v9205 = vadd.f32 %v8422, %v9031
      %v9206 = vadd.f32 %v8423, %v9032
      %v9207 = vadd.f32 %v8424, %v9033
      %v9208 = vadd.f32 %v8425, %v9034
      %v9209 = vadd.f32 %v8426, %v9035
      %v9210 = vadd.f32 %v8427, %v9036
      %v9211 = vadd.f32 %v8428, %v9037
      %v9212 = vadd.f32 %v8429, %v9038
      %v9213 = vadd.f32 %v8430, %v9039
      %v9214 = vadd.f32 %v8431, %v9040
      %v9215 = vadd.f32 %v8432, %v9041
      %v9216 = vadd.f32 %v8433, %v9042
      %v9217 = vadd.f32 %v8434, %v9043
      %v9218 = vadd.f32 %v8435, %v9044
      %v9219 = vadd.f32 %v8436, %v9045
      %v9220 = vadd.f32 %v8437, %v9046
      %v9221 = vadd.f32 %v8438, %v9047
      %v9222 = vadd.f32 %v8439, %v9048
      %v9223 = vadd.f32 %v8440, %v9049
      %v9224 = vadd.f32 %v8441, %v9050
      %v9225 = vadd.f32 %v8442, %v9051
      %v9226 = vadd.f32 %v8443, %v9052
      %v9227 = vadd.f32 %v8444, %v9053
      %v9228 = vadd.f32 %v8445, %v9054
      %v9229 = vadd.f32 %v8446, %v9055
      %v9230 = vadd.f32 %v8447, %v9056
      %v9231 = vadd.f32 %v8448, %v9057
      %v9232 = vadd.f32 %v8449, %v9058
      %v9233 = vld [vmem:[%s286] sm:$0xff]
      %v9234 = vld [vmem:[%s286 + $0x8] sm:$0xff]
      %v9235 = vld [vmem:[%s286 + $0x10] sm:$0xff]
      %v9236 = vld [vmem:[%s286 + $0x18] sm:$0xff]
      %v9237 = vld [vmem:[%s286 + $0x20] sm:$0xff]
      %v9238 = vld [vmem:[%s286 + $0x28] sm:$0xff]
      %v9239 = vld [vmem:[%s286 + $0x30] sm:$0xff]
      %v9240 = vld [vmem:[%s286 + $0x38] sm:$0xff]
      %v9241 = vld [vmem:[%s286 + $0x40] sm:$0xff]
      %v9242 = vld [vmem:[%s286 + $0x48] sm:$0xff]
      %v9243 = vld [vmem:[%s286 + $0x50] sm:$0xff]
      %v9244 = vld [vmem:[%s286 + $0x58] sm:$0xff]
      %v9245 = vld [vmem:[%s286 + $0x60] sm:$0xff]
      %v9246 = vld [vmem:[%s286 + $0x68] sm:$0xff]
      %v9247 = vld [vmem:[%s286 + $0x70] sm:$0xff]
      %v9248 = vld [vmem:[%s286 + $0x78] sm:$0xff]
      %v9249 = vld [vmem:[%s286 + $0x80] sm:$0xff]
      %v9250 = vld [vmem:[%s286 + $0x88] sm:$0xff]
      %v9251 = vld [vmem:[%s286 + $0x90] sm:$0xff]
      %v9252 = vld [vmem:[%s286 + $0x98] sm:$0xff]
      %v9253 = vld [vmem:[%s286 + $0xa0] sm:$0xff]
      %v9254 = vld [vmem:[%s286 + $0xa8] sm:$0xff]
      %v9255 = vld [vmem:[%s286 + $0xb0] sm:$0xff]
      %v9256 = vld [vmem:[%s286 + $0xb8] sm:$0xff]
      %v9257 = vld [vmem:[%s286 + $0xc0] sm:$0xff]
      %v9258 = vld [vmem:[%s286 + $0xc8] sm:$0xff]
      %v9259 = vld [vmem:[%s286 + $0xd0] sm:$0xff]
      %v9260 = vld [vmem:[%s286 + $0xd8] sm:$0xff]
      %v9261 = vld [vmem:[%s286 + $0xe0] sm:$0xff]
      %v9262 = vld [vmem:[%s286 + $0xe8] sm:$0xff]
      %v9263 = vld [vmem:[%s286 + $0xf0] sm:$0xff]
      %v9264 = vld [vmem:[%s286 + $0xf8] sm:$0xff]
      %v9265 = vld [vmem:[%s286 + $0x100] sm:$0xff]
      %v9266 = vld [vmem:[%s286 + $0x108] sm:$0xff]
      %v9267 = vld [vmem:[%s286 + $0x110] sm:$0xff]
      %v9268 = vld [vmem:[%s286 + $0x118] sm:$0xff]
      %v9269 = vld [vmem:[%s286 + $0x120] sm:$0xff]
      %v9270 = vld [vmem:[%s286 + $0x128] sm:$0xff]
      %v9271 = vld [vmem:[%s286 + $0x130] sm:$0xff]
      %v9272 = vld [vmem:[%s286 + $0x138] sm:$0xff]
      %v9273 = vld [vmem:[%s286 + $0x140] sm:$0xff]
      %v9274 = vld [vmem:[%s286 + $0x148] sm:$0xff]
      %v9275 = vld [vmem:[%s286 + $0x150] sm:$0xff]
      %v9276 = vld [vmem:[%s286 + $0x158] sm:$0xff]
      %v9277 = vld [vmem:[%s286 + $0x160] sm:$0xff]
      %v9278 = vld [vmem:[%s286 + $0x168] sm:$0xff]
      %v9279 = vld [vmem:[%s286 + $0x170] sm:$0xff]
      %v9280 = vld [vmem:[%s286 + $0x178] sm:$0xff]
      %v9281 = vld [vmem:[%s286 + $0x180] sm:$0xff]
      %v9282 = vld [vmem:[%s286 + $0x188] sm:$0xff]
      %v9283 = vld [vmem:[%s286 + $0x190] sm:$0xff]
      %v9284 = vld [vmem:[%s286 + $0x198] sm:$0xff]
      %v9285 = vld [vmem:[%s286 + $0x1a0] sm:$0xff]
      %v9286 = vld [vmem:[%s286 + $0x1a8] sm:$0xff]
      %v9287 = vld [vmem:[%s286 + $0x1b0] sm:$0xff]
      %v9288 = vld [vmem:[%s286 + $0x1b8] sm:$0xff]
      %v9289 = vld [vmem:[%s286 + $0x1c0] sm:$0xff]
      %v9290 = vld [vmem:[%s286 + $0x1c8] sm:$0xff]
      %v9291 = vld [vmem:[%s286 + $0x1d0] sm:$0xff]
      %v9292 = vld [vmem:[%s286 + $0x1d8] sm:$0xff]
      %v9293 = vld [vmem:[%s286 + $0x1e0] sm:$0xff]
      %v9294 = vld [vmem:[%s286 + $0x1e8] sm:$0xff]
      %v9295 = vld [vmem:[%s286 + $0x1f0] sm:$0xff]
      %v9296 = vld [vmem:[%s286 + $0x1f8] sm:$0xff]
      %v9297 = vld [vmem:[%s286 + $0x200] sm:$0xff]
      %v9298 = vld [vmem:[%s286 + $0x208] sm:$0xff]
      %v9299 = vld [vmem:[%s286 + $0x210] sm:$0xff]
      %v9300 = vld [vmem:[%s286 + $0x218] sm:$0xff]
      %v9301 = vld [vmem:[%s286 + $0x220] sm:$0xff]
      %v9302 = vld [vmem:[%s286 + $0x228] sm:$0xff]
      %v9303 = vld [vmem:[%s286 + $0x230] sm:$0xff]
      %v9304 = vld [vmem:[%s286 + $0x238] sm:$0xff]
      %v9305 = vld [vmem:[%s286 + $0x240] sm:$0xff]
      %v9306 = vld [vmem:[%s286 + $0x248] sm:$0xff]
      %v9307 = vld [vmem:[%s286 + $0x250] sm:$0xff]
      %v9308 = vld [vmem:[%s286 + $0x258] sm:$0xff]
      %v9309 = vld [vmem:[%s286 + $0x260] sm:$0xff]
      %v9310 = vld [vmem:[%s286 + $0x268] sm:$0xff]
      %v9311 = vld [vmem:[%s286 + $0x270] sm:$0xff]
      %v9312 = vld [vmem:[%s286 + $0x278] sm:$0xff]
      %v9313 = vld [vmem:[%s286 + $0x280] sm:$0xff]
      %v9314 = vld [vmem:[%s286 + $0x288] sm:$0xff]
      %v9315 = vld [vmem:[%s286 + $0x290] sm:$0xff]
      %v9316 = vld [vmem:[%s286 + $0x298] sm:$0xff]
      %v9317 = vld [vmem:[%s286 + $0x2a0] sm:$0xff]
      %v9318 = vld [vmem:[%s286 + $0x2a8] sm:$0xff]
      %v9319 = vld [vmem:[%s286 + $0x2b0] sm:$0xff]
      %9321 = vset.pattern.permute.xlu0 0
      %9322 = vperm.xlu0 %9321, %v9233
      %v9323 = vpop.permute.xlu0 %9322
      %9326 = vset.pattern.permute.xlu0 0
      %9327 = vperm.xlu0 %9326, %v9234
      %v9328 = vpop.permute.xlu0 %9327
      %9331 = vset.pattern.permute.xlu0 0
      %9332 = vperm.xlu0 %9331, %v9235
      %v9333 = vpop.permute.xlu0 %9332
      %9336 = vset.pattern.permute.xlu0 0
      %9337 = vperm.xlu0 %9336, %v9236
      %v9338 = vpop.permute.xlu0 %9337
      %9341 = vset.pattern.permute.xlu0 0
      %9342 = vperm.xlu0 %9341, %v9237
      %v9343 = vpop.permute.xlu0 %9342
      %9346 = vset.pattern.permute.xlu0 0
      %9347 = vperm.xlu0 %9346, %v9238
      %v9348 = vpop.permute.xlu0 %9347
      %9351 = vset.pattern.permute.xlu0 0
      %9352 = vperm.xlu0 %9351, %v9239
      %v9353 = vpop.permute.xlu0 %9352
      %9356 = vset.pattern.permute.xlu0 0
      %9357 = vperm.xlu0 %9356, %v9240
      %v9358 = vpop.permute.xlu0 %9357
      %9361 = vset.pattern.permute.xlu0 0
      %9362 = vperm.xlu0 %9361, %v9241
      %v9363 = vpop.permute.xlu0 %9362
      %9366 = vset.pattern.permute.xlu0 0
      %9367 = vperm.xlu0 %9366, %v9242
      %v9368 = vpop.permute.xlu0 %9367
      %9371 = vset.pattern.permute.xlu0 0
      %9372 = vperm.xlu0 %9371, %v9243
      %v9373 = vpop.permute.xlu0 %9372
      %9376 = vset.pattern.permute.xlu0 0
      %9377 = vperm.xlu0 %9376, %v9244
      %v9378 = vpop.permute.xlu0 %9377
      %9381 = vset.pattern.permute.xlu0 0
      %9382 = vperm.xlu0 %9381, %v9245
      %v9383 = vpop.permute.xlu0 %9382
      %9386 = vset.pattern.permute.xlu0 0
      %9387 = vperm.xlu0 %9386, %v9246
      %v9388 = vpop.permute.xlu0 %9387
      %9391 = vset.pattern.permute.xlu0 0
      %9392 = vperm.xlu0 %9391, %v9247
      %v9393 = vpop.permute.xlu0 %9392
      %9396 = vset.pattern.permute.xlu0 0
      %9397 = vperm.xlu0 %9396, %v9248
      %v9398 = vpop.permute.xlu0 %9397
      %9401 = vset.pattern.permute.xlu0 0
      %9402 = vperm.xlu0 %9401, %v9249
      %v9403 = vpop.permute.xlu0 %9402
      %9406 = vset.pattern.permute.xlu0 0
      %9407 = vperm.xlu0 %9406, %v9250
      %v9408 = vpop.permute.xlu0 %9407
      %9411 = vset.pattern.permute.xlu0 0
      %9412 = vperm.xlu0 %9411, %v9251
      %v9413 = vpop.permute.xlu0 %9412
      %9416 = vset.pattern.permute.xlu0 0
      %9417 = vperm.xlu0 %9416, %v9252
      %v9418 = vpop.permute.xlu0 %9417
      %9421 = vset.pattern.permute.xlu0 0
      %9422 = vperm.xlu0 %9421, %v9253
      %v9423 = vpop.permute.xlu0 %9422
      %9426 = vset.pattern.permute.xlu0 0
      %9427 = vperm.xlu0 %9426, %v9254
      %v9428 = vpop.permute.xlu0 %9427
      %9431 = vset.pattern.permute.xlu0 0
      %9432 = vperm.xlu0 %9431, %v9255
      %v9433 = vpop.permute.xlu0 %9432
      %9436 = vset.pattern.permute.xlu0 0
      %9437 = vperm.xlu0 %9436, %v9256
      %v9438 = vpop.permute.xlu0 %9437
      %9441 = vset.pattern.permute.xlu0 0
      %9442 = vperm.xlu0 %9441, %v9257
      %v9443 = vpop.permute.xlu0 %9442
      %9446 = vset.pattern.permute.xlu0 0
      %9447 = vperm.xlu0 %9446, %v9258
      %v9448 = vpop.permute.xlu0 %9447
      %9451 = vset.pattern.permute.xlu0 0
      %9452 = vperm.xlu0 %9451, %v9259
      %v9453 = vpop.permute.xlu0 %9452
      %9456 = vset.pattern.permute.xlu0 0
      %9457 = vperm.xlu0 %9456, %v9260
      %v9458 = vpop.permute.xlu0 %9457
      %9461 = vset.pattern.permute.xlu0 0
      %9462 = vperm.xlu0 %9461, %v9261
      %v9463 = vpop.permute.xlu0 %9462
      %9466 = vset.pattern.permute.xlu0 0
      %9467 = vperm.xlu0 %9466, %v9262
      %v9468 = vpop.permute.xlu0 %9467
      %9471 = vset.pattern.permute.xlu0 0
      %9472 = vperm.xlu0 %9471, %v9263
      %v9473 = vpop.permute.xlu0 %9472
      %9476 = vset.pattern.permute.xlu0 0
      %9477 = vperm.xlu0 %9476, %v9264
      %v9478 = vpop.permute.xlu0 %9477
      %9481 = vset.pattern.permute.xlu0 0
      %9482 = vperm.xlu0 %9481, %v9265
      %v9483 = vpop.permute.xlu0 %9482
      %9486 = vset.pattern.permute.xlu0 0
      %9487 = vperm.xlu0 %9486, %v9266
      %v9488 = vpop.permute.xlu0 %9487
      %9491 = vset.pattern.permute.xlu0 0
      %9492 = vperm.xlu0 %9491, %v9267
      %v9493 = vpop.permute.xlu0 %9492
      %9496 = vset.pattern.permute.xlu0 0
      %9497 = vperm.xlu0 %9496, %v9268
      %v9498 = vpop.permute.xlu0 %9497
      %9501 = vset.pattern.permute.xlu0 0
      %9502 = vperm.xlu0 %9501, %v9269
      %v9503 = vpop.permute.xlu0 %9502
      %9506 = vset.pattern.permute.xlu0 0
      %9507 = vperm.xlu0 %9506, %v9270
      %v9508 = vpop.permute.xlu0 %9507
      %9511 = vset.pattern.permute.xlu0 0
      %9512 = vperm.xlu0 %9511, %v9271
      %v9513 = vpop.permute.xlu0 %9512
      %9516 = vset.pattern.permute.xlu0 0
      %9517 = vperm.xlu0 %9516, %v9272
      %v9518 = vpop.permute.xlu0 %9517
      %9521 = vset.pattern.permute.xlu0 0
      %9522 = vperm.xlu0 %9521, %v9273
      %v9523 = vpop.permute.xlu0 %9522
      %9526 = vset.pattern.permute.xlu0 0
      %9527 = vperm.xlu0 %9526, %v9274
      %v9528 = vpop.permute.xlu0 %9527
      %9531 = vset.pattern.permute.xlu0 0
      %9532 = vperm.xlu0 %9531, %v9275
      %v9533 = vpop.permute.xlu0 %9532
      %9536 = vset.pattern.permute.xlu0 0
      %9537 = vperm.xlu0 %9536, %v9276
      %v9538 = vpop.permute.xlu0 %9537
      %9541 = vset.pattern.permute.xlu0 0
      %9542 = vperm.xlu0 %9541, %v9277
      %v9543 = vpop.permute.xlu0 %9542
      %9546 = vset.pattern.permute.xlu0 0
      %9547 = vperm.xlu0 %9546, %v9278
      %v9548 = vpop.permute.xlu0 %9547
      %9551 = vset.pattern.permute.xlu0 0
      %9552 = vperm.xlu0 %9551, %v9279
      %v9553 = vpop.permute.xlu0 %9552
      %9556 = vset.pattern.permute.xlu0 0
      %9557 = vperm.xlu0 %9556, %v9280
      %v9558 = vpop.permute.xlu0 %9557
      %9561 = vset.pattern.permute.xlu0 0
      %9562 = vperm.xlu0 %9561, %v9281
      %v9563 = vpop.permute.xlu0 %9562
      %9566 = vset.pattern.permute.xlu0 0
      %9567 = vperm.xlu0 %9566, %v9282
      %v9568 = vpop.permute.xlu0 %9567
      %9571 = vset.pattern.permute.xlu0 0
      %9572 = vperm.xlu0 %9571, %v9283
      %v9573 = vpop.permute.xlu0 %9572
      %9576 = vset.pattern.permute.xlu0 0
      %9577 = vperm.xlu0 %9576, %v9284
      %v9578 = vpop.permute.xlu0 %9577
      %9581 = vset.pattern.permute.xlu0 0
      %9582 = vperm.xlu0 %9581, %v9285
      %v9583 = vpop.permute.xlu0 %9582
      %9586 = vset.pattern.permute.xlu0 0
      %9587 = vperm.xlu0 %9586, %v9286
      %v9588 = vpop.permute.xlu0 %9587
      %9591 = vset.pattern.permute.xlu0 0
      %9592 = vperm.xlu0 %9591, %v9287
      %v9593 = vpop.permute.xlu0 %9592
      %9596 = vset.pattern.permute.xlu0 0
      %9597 = vperm.xlu0 %9596, %v9288
      %v9598 = vpop.permute.xlu0 %9597
      %9601 = vset.pattern.permute.xlu0 0
      %9602 = vperm.xlu0 %9601, %v9289
      %v9603 = vpop.permute.xlu0 %9602
      %9606 = vset.pattern.permute.xlu0 0
      %9607 = vperm.xlu0 %9606, %v9290
      %v9608 = vpop.permute.xlu0 %9607
      %9611 = vset.pattern.permute.xlu0 0
      %9612 = vperm.xlu0 %9611, %v9291
      %v9613 = vpop.permute.xlu0 %9612
      %9616 = vset.pattern.permute.xlu0 0
      %9617 = vperm.xlu0 %9616, %v9292
      %v9618 = vpop.permute.xlu0 %9617
      %9621 = vset.pattern.permute.xlu0 0
      %9622 = vperm.xlu0 %9621, %v9293
      %v9623 = vpop.permute.xlu0 %9622
      %9626 = vset.pattern.permute.xlu0 0
      %9627 = vperm.xlu0 %9626, %v9294
      %v9628 = vpop.permute.xlu0 %9627
      %9631 = vset.pattern.permute.xlu0 0
      %9632 = vperm.xlu0 %9631, %v9295
      %v9633 = vpop.permute.xlu0 %9632
      %9636 = vset.pattern.permute.xlu0 0
      %9637 = vperm.xlu0 %9636, %v9296
      %v9638 = vpop.permute.xlu0 %9637
      %9641 = vset.pattern.permute.xlu0 0
      %9642 = vperm.xlu0 %9641, %v9297
      %v9643 = vpop.permute.xlu0 %9642
      %9646 = vset.pattern.permute.xlu0 0
      %9647 = vperm.xlu0 %9646, %v9298
      %v9648 = vpop.permute.xlu0 %9647
      %9651 = vset.pattern.permute.xlu0 0
      %9652 = vperm.xlu0 %9651, %v9299
      %v9653 = vpop.permute.xlu0 %9652
      %9656 = vset.pattern.permute.xlu0 0
      %9657 = vperm.xlu0 %9656, %v9300
      %v9658 = vpop.permute.xlu0 %9657
      %9661 = vset.pattern.permute.xlu0 0
      %9662 = vperm.xlu0 %9661, %v9301
      %v9663 = vpop.permute.xlu0 %9662
      %9666 = vset.pattern.permute.xlu0 0
      %9667 = vperm.xlu0 %9666, %v9302
      %v9668 = vpop.permute.xlu0 %9667
      %9671 = vset.pattern.permute.xlu0 0
      %9672 = vperm.xlu0 %9671, %v9303
      %v9673 = vpop.permute.xlu0 %9672
      %9676 = vset.pattern.permute.xlu0 0
      %9677 = vperm.xlu0 %9676, %v9304
      %v9678 = vpop.permute.xlu0 %9677
      %9681 = vset.pattern.permute.xlu0 0
      %9682 = vperm.xlu0 %9681, %v9305
      %v9683 = vpop.permute.xlu0 %9682
      %9686 = vset.pattern.permute.xlu0 0
      %9687 = vperm.xlu0 %9686, %v9306
      %v9688 = vpop.permute.xlu0 %9687
      %9691 = vset.pattern.permute.xlu0 0
      %9692 = vperm.xlu0 %9691, %v9307
      %v9693 = vpop.permute.xlu0 %9692
      %9696 = vset.pattern.permute.xlu0 0
      %9697 = vperm.xlu0 %9696, %v9308
      %v9698 = vpop.permute.xlu0 %9697
      %9701 = vset.pattern.permute.xlu0 0
      %9702 = vperm.xlu0 %9701, %v9309
      %v9703 = vpop.permute.xlu0 %9702
      %9706 = vset.pattern.permute.xlu0 0
      %9707 = vperm.xlu0 %9706, %v9310
      %v9708 = vpop.permute.xlu0 %9707
      %9711 = vset.pattern.permute.xlu0 0
      %9712 = vperm.xlu0 %9711, %v9311
      %v9713 = vpop.permute.xlu0 %9712
      %9716 = vset.pattern.permute.xlu0 0
      %9717 = vperm.xlu0 %9716, %v9312
      %v9718 = vpop.permute.xlu0 %9717
      %9721 = vset.pattern.permute.xlu0 0
      %9722 = vperm.xlu0 %9721, %v9313
      %v9723 = vpop.permute.xlu0 %9722
      %9726 = vset.pattern.permute.xlu0 0
      %9727 = vperm.xlu0 %9726, %v9314
      %v9728 = vpop.permute.xlu0 %9727
      %9731 = vset.pattern.permute.xlu0 0
      %9732 = vperm.xlu0 %9731, %v9315
      %v9733 = vpop.permute.xlu0 %9732
      %9736 = vset.pattern.permute.xlu0 0
      %9737 = vperm.xlu0 %9736, %v9316
      %v9738 = vpop.permute.xlu0 %9737
      %9741 = vset.pattern.permute.xlu0 0
      %9742 = vperm.xlu0 %9741, %v9317
      %v9743 = vpop.permute.xlu0 %9742
      %9746 = vset.pattern.permute.xlu0 0
      %9747 = vperm.xlu0 %9746, %v9318
      %v9748 = vpop.permute.xlu0 %9747
      %9751 = vset.pattern.permute.xlu0 0
      %9752 = vperm.xlu0 %9751, %v9319
      %v9753 = vpop.permute.xlu0 %9752
      %v9755 = vadd.f32 %v9059, %v9323
      %v9756 = vadd.f32 %v9060, %v9323
      %v9757 = vadd.f32 %v9061, %v9328
      %v9758 = vadd.f32 %v9062, %v9328
      %v9759 = vadd.f32 %v9063, %v9333
      %v9760 = vadd.f32 %v9064, %v9333
      %v9761 = vadd.f32 %v9065, %v9338
      %v9762 = vadd.f32 %v9066, %v9338
      %v9763 = vadd.f32 %v9067, %v9343
      %v9764 = vadd.f32 %v9068, %v9343
      %v9765 = vadd.f32 %v9069, %v9348
      %v9766 = vadd.f32 %v9070, %v9348
      %v9767 = vadd.f32 %v9071, %v9353
      %v9768 = vadd.f32 %v9072, %v9353
      %v9769 = vadd.f32 %v9073, %v9358
      %v9770 = vadd.f32 %v9074, %v9358
      %v9771 = vadd.f32 %v9075, %v9363
      %v9772 = vadd.f32 %v9076, %v9363
      %v9773 = vadd.f32 %v9077, %v9368
      %v9774 = vadd.f32 %v9078, %v9368
      %v9775 = vadd.f32 %v9079, %v9373
      %v9776 = vadd.f32 %v9080, %v9373
      %v9777 = vadd.f32 %v9081, %v9378
      %v9778 = vadd.f32 %v9082, %v9378
      %v9779 = vadd.f32 %v9083, %v9383
      %v9780 = vadd.f32 %v9084, %v9383
      %v9781 = vadd.f32 %v9085, %v9388
      %v9782 = vadd.f32 %v9086, %v9388
      %v9783 = vadd.f32 %v9087, %v9393
      %v9784 = vadd.f32 %v9088, %v9393
      %v9785 = vadd.f32 %v9089, %v9398
      %v9786 = vadd.f32 %v9090, %v9398
      %v9787 = vadd.f32 %v9091, %v9403
      %v9788 = vadd.f32 %v9092, %v9403
      %v9789 = vadd.f32 %v9093, %v9408
      %v9790 = vadd.f32 %v9094, %v9408
      %v9791 = vadd.f32 %v9095, %v9413
      %v9792 = vadd.f32 %v9096, %v9413
      %v9793 = vadd.f32 %v9097, %v9418
      %v9794 = vadd.f32 %v9098, %v9418
      %v9795 = vadd.f32 %v9099, %v9423
      %v9796 = vadd.f32 %v9100, %v9423
      %v9797 = vadd.f32 %v9101, %v9428
      %v9798 = vadd.f32 %v9102, %v9428
      %v9799 = vadd.f32 %v9103, %v9433
      %v9800 = vadd.f32 %v9104, %v9433
      %v9801 = vadd.f32 %v9105, %v9438
      %v9802 = vadd.f32 %v9106, %v9438
      %v9803 = vadd.f32 %v9107, %v9443
      %v9804 = vadd.f32 %v9108, %v9443
      %v9805 = vadd.f32 %v9109, %v9448
      %v9806 = vadd.f32 %v9110, %v9448
      %v9807 = vadd.f32 %v9111, %v9453
      %v9808 = vadd.f32 %v9112, %v9453
      %v9809 = vadd.f32 %v9113, %v9458
      %v9810 = vadd.f32 %v9114, %v9458
      %v9811 = vadd.f32 %v9115, %v9463
      %v9812 = vadd.f32 %v9116, %v9463
      %v9813 = vadd.f32 %v9117, %v9468
      %v9814 = vadd.f32 %v9118, %v9468
      %v9815 = vadd.f32 %v9119, %v9473
      %v9816 = vadd.f32 %v9120, %v9473
      %v9817 = vadd.f32 %v9121, %v9478
      %v9818 = vadd.f32 %v9122, %v9478
      %v9819 = vadd.f32 %v9123, %v9483
      %v9820 = vadd.f32 %v9124, %v9483
      %v9821 = vadd.f32 %v9125, %v9488
      %v9822 = vadd.f32 %v9126, %v9488
      %v9823 = vadd.f32 %v9127, %v9493
      %v9824 = vadd.f32 %v9128, %v9493
      %v9825 = vadd.f32 %v9129, %v9498
      %v9826 = vadd.f32 %v9130, %v9498
      %v9827 = vadd.f32 %v9131, %v9503
      %v9828 = vadd.f32 %v9132, %v9503
      %v9829 = vadd.f32 %v9133, %v9508
      %v9830 = vadd.f32 %v9134, %v9508
      %v9831 = vadd.f32 %v9135, %v9513
      %v9832 = vadd.f32 %v9136, %v9513
      %v9833 = vadd.f32 %v9137, %v9518
      %v9834 = vadd.f32 %v9138, %v9518
      %v9835 = vadd.f32 %v9139, %v9523
      %v9836 = vadd.f32 %v9140, %v9523
      %v9837 = vadd.f32 %v9141, %v9528
      %v9838 = vadd.f32 %v9142, %v9528
      %v9839 = vadd.f32 %v9143, %v9533
      %v9840 = vadd.f32 %v9144, %v9533
      %v9841 = vadd.f32 %v9145, %v9538
      %v9842 = vadd.f32 %v9146, %v9538
      %v9843 = vadd.f32 %v9147, %v9543
      %v9844 = vadd.f32 %v9148, %v9543
      %v9845 = vadd.f32 %v9149, %v9548
      %v9846 = vadd.f32 %v9150, %v9548
      %v9847 = vadd.f32 %v9151, %v9553
      %v9848 = vadd.f32 %v9152, %v9553
      %v9849 = vadd.f32 %v9153, %v9558
      %v9850 = vadd.f32 %v9154, %v9558
      %v9851 = vadd.f32 %v9155, %v9563
      %v9852 = vadd.f32 %v9156, %v9563
      %v9853 = vadd.f32 %v9157, %v9568
      %v9854 = vadd.f32 %v9158, %v9568
      %v9855 = vadd.f32 %v9159, %v9573
      %v9856 = vadd.f32 %v9160, %v9573
      %v9857 = vadd.f32 %v9161, %v9578
      %v9858 = vadd.f32 %v9162, %v9578
      %v9859 = vadd.f32 %v9163, %v9583
      %v9860 = vadd.f32 %v9164, %v9583
      %v9861 = vadd.f32 %v9165, %v9588
      %v9862 = vadd.f32 %v9166, %v9588
      %v9863 = vadd.f32 %v9167, %v9593
      %v9864 = vadd.f32 %v9168, %v9593
      %v9865 = vadd.f32 %v9169, %v9598
      %v9866 = vadd.f32 %v9170, %v9598
      %v9867 = vadd.f32 %v9171, %v9603
      %v9868 = vadd.f32 %v9172, %v9603
      %v9869 = vadd.f32 %v9173, %v9608
      %v9870 = vadd.f32 %v9174, %v9608
      %v9871 = vadd.f32 %v9175, %v9613
      %v9872 = vadd.f32 %v9176, %v9613
      %v9873 = vadd.f32 %v9177, %v9618
      %v9874 = vadd.f32 %v9178, %v9618
      %v9875 = vadd.f32 %v9179, %v9623
      %v9876 = vadd.f32 %v9180, %v9623
      %v9877 = vadd.f32 %v9181, %v9628
      %v9878 = vadd.f32 %v9182, %v9628
      %v9879 = vadd.f32 %v9183, %v9633
      %v9880 = vadd.f32 %v9184, %v9633
      %v9881 = vadd.f32 %v9185, %v9638
      %v9882 = vadd.f32 %v9186, %v9638
      %v9883 = vadd.f32 %v9187, %v9643
      %v9884 = vadd.f32 %v9188, %v9643
      %v9885 = vadd.f32 %v9189, %v9648
      %v9886 = vadd.f32 %v9190, %v9648
      %v9887 = vadd.f32 %v9191, %v9653
      %v9888 = vadd.f32 %v9192, %v9653
      %v9889 = vadd.f32 %v9193, %v9658
      %v9890 = vadd.f32 %v9194, %v9658
      %v9891 = vadd.f32 %v9195, %v9663
      %v9892 = vadd.f32 %v9196, %v9663
      %v9893 = vadd.f32 %v9197, %v9668
      %v9894 = vadd.f32 %v9198, %v9668
      %v9895 = vadd.f32 %v9199, %v9673
      %v9896 = vadd.f32 %v9200, %v9673
      %v9897 = vadd.f32 %v9201, %v9678
      %v9898 = vadd.f32 %v9202, %v9678
      %v9899 = vadd.f32 %v9203, %v9683
      %v9900 = vadd.f32 %v9204, %v9683
      %v9901 = vadd.f32 %v9205, %v9688
      %v9902 = vadd.f32 %v9206, %v9688
      %v9903 = vadd.f32 %v9207, %v9693
      %v9904 = vadd.f32 %v9208, %v9693
      %v9905 = vadd.f32 %v9209, %v9698
      %v9906 = vadd.f32 %v9210, %v9698
      %v9907 = vadd.f32 %v9211, %v9703
      %v9908 = vadd.f32 %v9212, %v9703
      %v9909 = vadd.f32 %v9213, %v9708
      %v9910 = vadd.f32 %v9214, %v9708
      %v9911 = vadd.f32 %v9215, %v9713
      %v9912 = vadd.f32 %v9216, %v9713
      %v9913 = vadd.f32 %v9217, %v9718
      %v9914 = vadd.f32 %v9218, %v9718
      %v9915 = vadd.f32 %v9219, %v9723
      %v9916 = vadd.f32 %v9220, %v9723
      %v9917 = vadd.f32 %v9221, %v9728
      %v9918 = vadd.f32 %v9222, %v9728
      %v9919 = vadd.f32 %v9223, %v9733
      %v9920 = vadd.f32 %v9224, %v9733
      %v9921 = vadd.f32 %v9225, %v9738
      %v9922 = vadd.f32 %v9226, %v9738
      %v9923 = vadd.f32 %v9227, %v9743
      %v9924 = vadd.f32 %v9228, %v9743
      %v9925 = vadd.f32 %v9229, %v9748
      %v9926 = vadd.f32 %v9230, %v9748
      %v9927 = vadd.f32 %v9231, %v9753
      %v9928 = vadd.f32 %v9232, %v9753
      %9929 = vst [vmem:[%s300] sm:$0xff] %v9755
      %9930 = vst.msk [vmem:[%s300 + $0x8] sm:$0xff] %vm6709, %v9756
      %9931 = vst [vmem:[%s300 + $0x10] sm:$0xff] %v9757
      %9932 = vst.msk [vmem:[%s300 + $0x18] sm:$0xff] %vm6709, %v9758
      %9933 = vst [vmem:[%s300 + $0x20] sm:$0xff] %v9759
      %9934 = vst.msk [vmem:[%s300 + $0x28] sm:$0xff] %vm6709, %v9760
      %9935 = vst [vmem:[%s300 + $0x30] sm:$0xff] %v9761
      %9936 = vst.msk [vmem:[%s300 + $0x38] sm:$0xff] %vm6709, %v9762
      %9937 = vst [vmem:[%s300 + $0x40] sm:$0xff] %v9763
      %9938 = vst.msk [vmem:[%s300 + $0x48] sm:$0xff] %vm6709, %v9764
      %9939 = vst [vmem:[%s300 + $0x50] sm:$0xff] %v9765
      %9940 = vst.msk [vmem:[%s300 + $0x58] sm:$0xff] %vm6709, %v9766
      %9941 = vst [vmem:[%s300 + $0x60] sm:$0xff] %v9767
      %9942 = vst.msk [vmem:[%s300 + $0x68] sm:$0xff] %vm6709, %v9768
      %9943 = vst [vmem:[%s300 + $0x70] sm:$0xff] %v9769
      %9944 = vst.msk [vmem:[%s300 + $0x78] sm:$0xff] %vm6709, %v9770
      %9945 = vst [vmem:[%s300 + $0x80] sm:$0xff] %v9771
      %9946 = vst.msk [vmem:[%s300 + $0x88] sm:$0xff] %vm6709, %v9772
      %9947 = vst [vmem:[%s300 + $0x90] sm:$0xff] %v9773
      %9948 = vst.msk [vmem:[%s300 + $0x98] sm:$0xff] %vm6709, %v9774
      %9949 = vst [vmem:[%s300 + $0xa0] sm:$0xff] %v9775
      %9950 = vst.msk [vmem:[%s300 + $0xa8] sm:$0xff] %vm6709, %v9776
      %9951 = vst [vmem:[%s300 + $0xb0] sm:$0xff] %v9777
      %9952 = vst.msk [vmem:[%s300 + $0xb8] sm:$0xff] %vm6709, %v9778
      %9953 = vst [vmem:[%s300 + $0xc0] sm:$0xff] %v9779
      %9954 = vst.msk [vmem:[%s300 + $0xc8] sm:$0xff] %vm6709, %v9780
      %9955 = vst [vmem:[%s300 + $0xd0] sm:$0xff] %v9781
      %9956 = vst.msk [vmem:[%s300 + $0xd8] sm:$0xff] %vm6709, %v9782
      %9957 = vst [vmem:[%s300 + $0xe0] sm:$0xff] %v9783
      %9958 = vst.msk [vmem:[%s300 + $0xe8] sm:$0xff] %vm6709, %v9784
      %9959 = vst [vmem:[%s300 + $0xf0] sm:$0xff] %v9785
      %9960 = vst.msk [vmem:[%s300 + $0xf8] sm:$0xff] %vm6709, %v9786
      %9961 = vst [vmem:[%s300 + $0x100] sm:$0xff] %v9787
      %9962 = vst.msk [vmem:[%s300 + $0x108] sm:$0xff] %vm6709, %v9788
      %9963 = vst [vmem:[%s300 + $0x110] sm:$0xff] %v9789
      %9964 = vst.msk [vmem:[%s300 + $0x118] sm:$0xff] %vm6709, %v9790
      %9965 = vst [vmem:[%s300 + $0x120] sm:$0xff] %v9791
      %9966 = vst.msk [vmem:[%s300 + $0x128] sm:$0xff] %vm6709, %v9792
      %9967 = vst [vmem:[%s300 + $0x130] sm:$0xff] %v9793
      %9968 = vst.msk [vmem:[%s300 + $0x138] sm:$0xff] %vm6709, %v9794
      %9969 = vst [vmem:[%s300 + $0x140] sm:$0xff] %v9795
      %9970 = vst.msk [vmem:[%s300 + $0x148] sm:$0xff] %vm6709, %v9796
      %9971 = vst [vmem:[%s300 + $0x150] sm:$0xff] %v9797
      %9972 = vst.msk [vmem:[%s300 + $0x158] sm:$0xff] %vm6709, %v9798
      %9973 = vst [vmem:[%s300 + $0x160] sm:$0xff] %v9799
      %9974 = vst.msk [vmem:[%s300 + $0x168] sm:$0xff] %vm6709, %v9800
      %9975 = vst [vmem:[%s300 + $0x170] sm:$0xff] %v9801
      %9976 = vst.msk [vmem:[%s300 + $0x178] sm:$0xff] %vm6709, %v9802
      %9977 = vst [vmem:[%s300 + $0x180] sm:$0xff] %v9803
      %9978 = vst.msk [vmem:[%s300 + $0x188] sm:$0xff] %vm6709, %v9804
      %9979 = vst [vmem:[%s300 + $0x190] sm:$0xff] %v9805
      %9980 = vst.msk [vmem:[%s300 + $0x198] sm:$0xff] %vm6709, %v9806
      %9981 = vst [vmem:[%s300 + $0x1a0] sm:$0xff] %v9807
      %9982 = vst.msk [vmem:[%s300 + $0x1a8] sm:$0xff] %vm6709, %v9808
      %9983 = vst [vmem:[%s300 + $0x1b0] sm:$0xff] %v9809
      %9984 = vst.msk [vmem:[%s300 + $0x1b8] sm:$0xff] %vm6709, %v9810
      %9985 = vst [vmem:[%s300 + $0x1c0] sm:$0xff] %v9811
      %9986 = vst.msk [vmem:[%s300 + $0x1c8] sm:$0xff] %vm6709, %v9812
      %9987 = vst [vmem:[%s300 + $0x1d0] sm:$0xff] %v9813
      %9988 = vst.msk [vmem:[%s300 + $0x1d8] sm:$0xff] %vm6709, %v9814
      %9989 = vst [vmem:[%s300 + $0x1e0] sm:$0xff] %v9815
      %9990 = vst.msk [vmem:[%s300 + $0x1e8] sm:$0xff] %vm6709, %v9816
      %9991 = vst [vmem:[%s300 + $0x1f0] sm:$0xff] %v9817
      %9992 = vst.msk [vmem:[%s300 + $0x1f8] sm:$0xff] %vm6709, %v9818
      %9993 = vst [vmem:[%s300 + $0x200] sm:$0xff] %v9819
      %9994 = vst.msk [vmem:[%s300 + $0x208] sm:$0xff] %vm6709, %v9820
      %9995 = vst [vmem:[%s300 + $0x210] sm:$0xff] %v9821
      %9996 = vst.msk [vmem:[%s300 + $0x218] sm:$0xff] %vm6709, %v9822
      %9997 = vst [vmem:[%s300 + $0x220] sm:$0xff] %v9823
      %9998 = vst.msk [vmem:[%s300 + $0x228] sm:$0xff] %vm6709, %v9824
      %9999 = vst [vmem:[%s300 + $0x230] sm:$0xff] %v9825
      %10000 = vst.msk [vmem:[%s300 + $0x238] sm:$0xff] %vm6709, %v9826
      %10001 = vst [vmem:[%s300 + $0x240] sm:$0xff] %v9827
      %10002 = vst.msk [vmem:[%s300 + $0x248] sm:$0xff] %vm6709, %v9828
      %10003 = vst [vmem:[%s300 + $0x250] sm:$0xff] %v9829
      %10004 = vst.msk [vmem:[%s300 + $0x258] sm:$0xff] %vm6709, %v9830
      %10005 = vst [vmem:[%s300 + $0x260] sm:$0xff] %v9831
      %10006 = vst.msk [vmem:[%s300 + $0x268] sm:$0xff] %vm6709, %v9832
      %10007 = vst [vmem:[%s300 + $0x270] sm:$0xff] %v9833
      %10008 = vst.msk [vmem:[%s300 + $0x278] sm:$0xff] %vm6709, %v9834
      %10009 = vst [vmem:[%s300 + $0x280] sm:$0xff] %v9835
      %10010 = vst.msk [vmem:[%s300 + $0x288] sm:$0xff] %vm6709, %v9836
      %10011 = vst [vmem:[%s300 + $0x290] sm:$0xff] %v9837
      %10012 = vst.msk [vmem:[%s300 + $0x298] sm:$0xff] %vm6709, %v9838
      %10013 = vst [vmem:[%s300 + $0x2a0] sm:$0xff] %v9839
      %10014 = vst.msk [vmem:[%s300 + $0x2a8] sm:$0xff] %vm6709, %v9840
      %10015 = vst [vmem:[%s300 + $0x2b0] sm:$0xff] %v9841
      %10016 = vst.msk [vmem:[%s300 + $0x2b8] sm:$0xff] %vm6709, %v9842
      %10017 = vst [vmem:[%s300 + $0x2c0] sm:$0xff] %v9843
      %10018 = vst.msk [vmem:[%s300 + $0x2c8] sm:$0xff] %vm6709, %v9844
      %10019 = vst [vmem:[%s300 + $0x2d0] sm:$0xff] %v9845
      %10020 = vst.msk [vmem:[%s300 + $0x2d8] sm:$0xff] %vm6709, %v9846
      %10021 = vst [vmem:[%s300 + $0x2e0] sm:$0xff] %v9847
      %10022 = vst.msk [vmem:[%s300 + $0x2e8] sm:$0xff] %vm6709, %v9848
      %10023 = vst [vmem:[%s300 + $0x2f0] sm:$0xff] %v9849
      %10024 = vst.msk [vmem:[%s300 + $0x2f8] sm:$0xff] %vm6709, %v9850
      %10025 = vst [vmem:[%s300 + $0x300] sm:$0xff] %v9851
      %10026 = vst.msk [vmem:[%s300 + $0x308] sm:$0xff] %vm6709, %v9852
      %10027 = vst [vmem:[%s300 + $0x310] sm:$0xff] %v9853
      %10028 = vst.msk [vmem:[%s300 + $0x318] sm:$0xff] %vm6709, %v9854
      %10029 = vst [vmem:[%s300 + $0x320] sm:$0xff] %v9855
      %10030 = vst.msk [vmem:[%s300 + $0x328] sm:$0xff] %vm6709, %v9856
      %10031 = vst [vmem:[%s300 + $0x330] sm:$0xff] %v9857
      %10032 = vst.msk [vmem:[%s300 + $0x338] sm:$0xff] %vm6709, %v9858
      %10033 = vst [vmem:[%s300 + $0x340] sm:$0xff] %v9859
      %10034 = vst.msk [vmem:[%s300 + $0x348] sm:$0xff] %vm6709, %v9860
      %10035 = vst [vmem:[%s300 + $0x350] sm:$0xff] %v9861
      %10036 = vst.msk [vmem:[%s300 + $0x358] sm:$0xff] %vm6709, %v9862
      %10037 = vst [vmem:[%s300 + $0x360] sm:$0xff] %v9863
      %10038 = vst.msk [vmem:[%s300 + $0x368] sm:$0xff] %vm6709, %v9864
      %10039 = vst [vmem:[%s300 + $0x370] sm:$0xff] %v9865
      %10040 = vst.msk [vmem:[%s300 + $0x378] sm:$0xff] %vm6709, %v9866
      %10041 = vst [vmem:[%s300 + $0x380] sm:$0xff] %v9867
      %10042 = vst.msk [vmem:[%s300 + $0x388] sm:$0xff] %vm6709, %v9868
      %10043 = vst [vmem:[%s300 + $0x390] sm:$0xff] %v9869
      %10044 = vst.msk [vmem:[%s300 + $0x398] sm:$0xff] %vm6709, %v9870
      %10045 = vst [vmem:[%s300 + $0x3a0] sm:$0xff] %v9871
      %10046 = vst.msk [vmem:[%s300 + $0x3a8] sm:$0xff] %vm6709, %v9872
      %10047 = vst [vmem:[%s300 + $0x3b0] sm:$0xff] %v9873
      %10048 = vst.msk [vmem:[%s300 + $0x3b8] sm:$0xff] %vm6709, %v9874
      %10049 = vst [vmem:[%s300 + $0x3c0] sm:$0xff] %v9875
      %10050 = vst.msk [vmem:[%s300 + $0x3c8] sm:$0xff] %vm6709, %v9876
      %10051 = vst [vmem:[%s300 + $0x3d0] sm:$0xff] %v9877
      %10052 = vst.msk [vmem:[%s300 + $0x3d8] sm:$0xff] %vm6709, %v9878
      %10053 = vst [vmem:[%s300 + $0x3e0] sm:$0xff] %v9879
      %10054 = vst.msk [vmem:[%s300 + $0x3e8] sm:$0xff] %vm6709, %v9880
      %10055 = vst [vmem:[%s300 + $0x3f0] sm:$0xff] %v9881
      %10056 = vst.msk [vmem:[%s300 + $0x3f8] sm:$0xff] %vm6709, %v9882
      %10057 = vst [vmem:[%s300 + $0x400] sm:$0xff] %v9883
      %10058 = vst.msk [vmem:[%s300 + $0x408] sm:$0xff] %vm6709, %v9884
      %10059 = vst [vmem:[%s300 + $0x410] sm:$0xff] %v9885
      %10060 = vst.msk [vmem:[%s300 + $0x418] sm:$0xff] %vm6709, %v9886
      %10061 = vst [vmem:[%s300 + $0x420] sm:$0xff] %v9887
      %10062 = vst.msk [vmem:[%s300 + $0x428] sm:$0xff] %vm6709, %v9888
      %10063 = vst [vmem:[%s300 + $0x430] sm:$0xff] %v9889
      %10064 = vst.msk [vmem:[%s300 + $0x438] sm:$0xff] %vm6709, %v9890
      %10065 = vst [vmem:[%s300 + $0x440] sm:$0xff] %v9891
      %10066 = vst.msk [vmem:[%s300 + $0x448] sm:$0xff] %vm6709, %v9892
      %10067 = vst [vmem:[%s300 + $0x450] sm:$0xff] %v9893
      %10068 = vst.msk [vmem:[%s300 + $0x458] sm:$0xff] %vm6709, %v9894
      %10069 = vst [vmem:[%s300 + $0x460] sm:$0xff] %v9895
      %10070 = vst.msk [vmem:[%s300 + $0x468] sm:$0xff] %vm6709, %v9896
      %10071 = vst [vmem:[%s300 + $0x470] sm:$0xff] %v9897
      %10072 = vst.msk [vmem:[%s300 + $0x478] sm:$0xff] %vm6709, %v9898
      %10073 = vst [vmem:[%s300 + $0x480] sm:$0xff] %v9899
      %10074 = vst.msk [vmem:[%s300 + $0x488] sm:$0xff] %vm6709, %v9900
      %10075 = vst [vmem:[%s300 + $0x490] sm:$0xff] %v9901
      %10076 = vst.msk [vmem:[%s300 + $0x498] sm:$0xff] %vm6709, %v9902
      %10077 = vst [vmem:[%s300 + $0x4a0] sm:$0xff] %v9903
      %10078 = vst.msk [vmem:[%s300 + $0x4a8] sm:$0xff] %vm6709, %v9904
      %10079 = vst [vmem:[%s300 + $0x4b0] sm:$0xff] %v9905
      %10080 = vst.msk [vmem:[%s300 + $0x4b8] sm:$0xff] %vm6709, %v9906
      %10081 = vst [vmem:[%s300 + $0x4c0] sm:$0xff] %v9907
      %10082 = vst.msk [vmem:[%s300 + $0x4c8] sm:$0xff] %vm6709, %v9908
      %10083 = vst [vmem:[%s300 + $0x4d0] sm:$0xff] %v9909
      %10084 = vst.msk [vmem:[%s300 + $0x4d8] sm:$0xff] %vm6709, %v9910
      %10085 = vst [vmem:[%s300 + $0x4e0] sm:$0xff] %v9911
      %10086 = vst.msk [vmem:[%s300 + $0x4e8] sm:$0xff] %vm6709, %v9912
      %10087 = vst [vmem:[%s300 + $0x4f0] sm:$0xff] %v9913
      %10088 = vst.msk [vmem:[%s300 + $0x4f8] sm:$0xff] %vm6709, %v9914
      %10089 = vst [vmem:[%s300 + $0x500] sm:$0xff] %v9915
      %10090 = vst.msk [vmem:[%s300 + $0x508] sm:$0xff] %vm6709, %v9916
      %10091 = vst [vmem:[%s300 + $0x510] sm:$0xff] %v9917
      %10092 = vst.msk [vmem:[%s300 + $0x518] sm:$0xff] %vm6709, %v9918
      %10093 = vst [vmem:[%s300 + $0x520] sm:$0xff] %v9919
      %10094 = vst.msk [vmem:[%s300 + $0x528] sm:$0xff] %vm6709, %v9920
      %10095 = vst [vmem:[%s300 + $0x530] sm:$0xff] %v9921
      %10096 = vst.msk [vmem:[%s300 + $0x538] sm:$0xff] %vm6709, %v9922
      %10097 = vst [vmem:[%s300 + $0x540] sm:$0xff] %v9923
      %10098 = vst.msk [vmem:[%s300 + $0x548] sm:$0xff] %vm6709, %v9924
      %10099 = vst [vmem:[%s300 + $0x550] sm:$0xff] %v9925
      %10100 = vst.msk [vmem:[%s300 + $0x558] sm:$0xff] %vm6709, %v9926
      %10101 = vst [vmem:[%s300 + $0x560] sm:$0xff] %v9927
      %10102 = vst.msk [vmem:[%s300 + $0x568] sm:$0xff] %vm6709, %v9928
      %s10103 = smul.u32 87, %s16
      %p10104 = scmp.lt.s32.totalorder %s10103, 173
      %s10105 = scalar_select %p10104, %s10103, 173
      %s10106 = smul.addr %s10105, 2
      %s10107 = smul.addr %s10106, 8
      %s10108 = scalar_lea.vmem %s5, %s10107
      // Predicated region
      $region41: #{tpu_custom_call.1} parent=39 // pred_check
        %p10109 = pneg %p159
      $region42: #{tpu_custom_call.1} parent=39 // pred_check_branch
        %10111 = sbr.rel (%p10109) target = $region44
      $region43: #{tpu_custom_call.1} parent=39 // pred_region
        %s10112 = smul.u32 87, %s16
      $region44: #{tpu_custom_call.1} parent=39 // pred_fallthru
        _
    $region40: #{tpu_custom_call.1} parent=5 // pred_fallthru
      _
    %p10113 = scmp.le.s32.totalorder 2, %s11
    // Predicated region
    $region45: #{tpu_custom_call.1} parent=5 // pred_check
      %p10114 = pneg %p10113
    $region46: #{tpu_custom_call.1} parent=5 // pred_check_branch
      %10116 = sbr.rel (%p10114) target = $region48
    $region47: #{tpu_custom_call.1} parent=5 // pred_region
      %s10117 = ssub.s32 %s11, 2
      // Predicated region
      $region49: #{tpu_custom_call.1} parent=47 // pred_check
        %p10118 = pneg %p165
      $region50: #{tpu_custom_call.1} parent=47 // pred_check_branch
        %10120 = sbr.rel (%p10118) target = $region52
      $region51: #{tpu_custom_call.1} parent=47 // pred_region
        %s10121 = smul.u32 87, %s17
        %p10122 = scmp.lt.s32.totalorder %s10121, 173
        %s10123 = scalar_select %p10122, %s10121, 173
        %s10124 = smul.addr %s10123, 2
        %s10125 = smul.addr %s10124, 8
        %s10126 = scalar_lea.vmem %s5, %s10125
      $region52: #{tpu_custom_call.1} parent=47 // pred_fallthru
        _
    $region48: #{tpu_custom_call.1} parent=5 // pred_fallthru
      _
  $region6: #{tpu_custom_call.1} parent=0 // loop_footer
    %s15 = sadd.s32 1, %s11
  $region7: #{tpu_custom_call.1} parent=0 // loop_footer_branch
    %10 = sbr.rel target = $region3
  $region8: #{tpu_custom_call.1} parent=0 // loop_exit
    _

</llo_original>
